<compile_context>
chip_gen: v7x
topology: tpu7x:2x2x1
jax: 0.10.0
libtpu: 0.0.40
codegen_flags: <defaults>
</compile_context>

<pallas_src>
import functools
import math

import jax
import jax.numpy as jnp
from jax import lax
from jax.experimental import pallas as pl
from jax.experimental.pallas import tpu as pltpu


def _shift_flat(x, d):
    """y[:, f] = x[:, f + d] (static d), zero-filled where f + d is out of range."""
    if d == 0:
        return x
    n = x.shape[-1]
    z = jnp.zeros((x.shape[0], abs(d)), x.dtype)
    if d > 0:
        return jnp.concatenate([x[:, d:], z], axis=-1)
    return jnp.concatenate([z, x[:, :n + d]], axis=-1)


# ---------------------------------------------------------------------------
# Fused whole-head kernel. One grid step == one batch sample.
# Activations are channel-major: (C, H*W), flat spatial on the lane dim.
# ---------------------------------------------------------------------------
def _top_down_head_kernel(*refs, sizes, groups, eps, num_up, num_conv):
    o_ref = refs[-1]
    x_ref = refs[0]
    u_refs = refs[1:1 + num_up]
    p_ref = refs[1 + num_up]
    base = 2 + num_up
    n_layers = num_up * num_conv
    layer_refs = [refs[base + 3 * i: base + 3 * i + 3] for i in range(n_layers)]
    wo_ref = refs[base + 3 * n_layers]
    bo_ref = refs[base + 3 * n_layers + 1]

    def conv3x3_gn_gelu(x_cm, w_ref, g_ref, b_ref, H, W, mask_l, mask_r):
        """x_cm: (Cin, H*W). Conv3x3 (pad=1, no bias) + GroupNorm + exact-erf GELU."""
        HW = H * W
        # im2col: 9 shifted copies stacked along sublanes -> (9*Cin, HW).
        # Flat shift by dy*W + dx; zero-fill handles the top/bottom rows, the
        # left/right column masks handle the row-wrap of the dx=+-1 taps.
        taps = []
        for dy in (-1, 0, 1):
            for dx in (-1, 0, 1):
                t = _shift_flat(x_cm, dy * W + dx)
                if dx == -1:
                    t = t * mask_l
                elif dx == 1:
                    t = t * mask_r
                taps.append(t)
        xs9 = jnp.concatenate(taps, axis=0)                        # (9*Cin, HW)

        # Single deep MXU matmul: (Cout, 9*Cin) @ (9*Cin, HW) -> (Cout, HW).
        acc = jnp.dot(w_ref[...], xs9, preferred_element_type=jnp.float32)

        # GroupNorm (per sample), two-pass / centered for numerical safety.
        cout = acc.shape[0]
        inv_cnt = 1.0 / float(HW * (cout // groups))
        s1 = jnp.sum(acc, axis=1, keepdims=True)                   # (Cout, 1)
        mean_c = jnp.dot(p_ref[...], s1,
                         preferred_element_type=jnp.float32) * inv_cnt
        xc = acc - mean_c
        s2 = jnp.sum(xc * xc, axis=1, keepdims=True)               # (Cout, 1)
        var_c = jnp.dot(p_ref[...], s2,
                        preferred_element_type=jnp.float32) * inv_cnt
        y = xc * lax.rsqrt(jnp.maximum(var_c, 0.0) + eps)
        y = y * g_ref[...] + b_ref[...]
        # Exact (erf-based) GELU, matching nn.GELU() default.
        return 0.5 * y * (1.0 + lax.erf(y * (1.0 / math.sqrt(2.0))))

    x = x_ref[0]                                                   # (Cin0, H0*W0)
    li = 0
    for ui in range(num_up):
        # Bilinear 2x upsample (align_corners=True): one matmul vs kron(Ah, Aw)^T.
        x = jnp.dot(x, u_refs[ui][...], preferred_element_type=jnp.float32)
        H, W = sizes[ui + 1]
        HW = H * W
        # Column masks for this spatial size (shared by both convs of the block).
        col = lax.broadcasted_iota(jnp.int32, (1, HW), 1) % W
        mask_l = (col >= 1).astype(jnp.float32)
        mask_r = (col <= W - 2).astype(jnp.float32)
        for _ in range(num_conv):
            w_ref, g_ref, b_ref = layer_refs[li]
            li += 1
            x = conv3x3_gn_gelu(x, w_ref, g_ref, b_ref, H, W, mask_l, mask_r)

    # Fused 1x1 output conv with bias: (out_dim, Cfeat) @ (Cfeat, HW) + b.
    out = jnp.dot(wo_ref[...], x, preferred_element_type=jnp.float32) + bo_ref[...]
    o_ref[0] = out.astype(o_ref.dtype)


# ---------------------------------------------------------------------------
# Host-side glue: interpolation matrices, weight repacking, pallas_call wrapper.
# ---------------------------------------------------------------------------
def _interp_matrix(n_in):
    """(2*n_in, n_in) bilinear interp matrix, align_corners=True."""
    n_out = 2 * n_in
    if n_in == 1:
        return jnp.ones((n_out, 1), jnp.float32)
    src = jnp.arange(n_out, dtype=jnp.float32) * (n_in - 1) / (n_out - 1)
    lo = jnp.clip(jnp.floor(src).astype(jnp.int32), 0, n_in - 2)
    frac = src - lo.astype(jnp.float32)
    m = jnp.zeros((n_out, n_in), jnp.float32)
    m = m.at[jnp.arange(n_out), lo].set(1.0 - frac)
    m = m.at[jnp.arange(n_out), lo + 1].add(frac)
    return m


def _upsample_matrix_t(H, W):
    """(H*W, 4*H*W): x_flat @ kron(Ah, Aw)^T == bilinear 2x upsample of (H, W)."""
    return jnp.kron(_interp_matrix(H), _interp_matrix(W)).T


def top_down_head_forward(x_nchw, conv_params, out_params, groups,
                          num_up=3, num_conv_per_block=2, eps=1e-5):
    N, cin0, H0, W0 = x_nchw.shape
    feat = conv_params[0][0].shape[0]
    w_out, b_out = out_params
    out_dim = w_out.shape[0]

    sizes = tuple((H0 << i, W0 << i) for i in range(num_up + 1))
    Hf, Wf = sizes[-1]

    # Channel-major: stays NCHW, spatial flattened onto the lane dim. No transposes.
    x_flat = x_nchw.reshape(N, cin0, H0 * W0)

    # Per-stage bilinear interpolation matrices (transposed kron).
    u_mats = [_upsample_matrix_t(h, w) for (h, w) in sizes[:-1]]

    # GN group-membership matrix: P[i, j] = 1 iff channels i, j share a group.
    cpg = feat // groups
    ch = jnp.arange(feat)
    pmat = (ch[:, None] // cpg == ch[None, :] // cpg).astype(jnp.float32)

    # Conv weights: PyTorch OIHW -> (Cout, 9*Cin), tap-major / channel-minor,
    # matching the in-kernel im2col tap order.
    layer_args = []
    for (w, gamma, beta) in conv_params:
        co, ci = w.shape[0], w.shape[1]
        w9 = jnp.transpose(w, (0, 2, 3, 1)).reshape(co, 9 * ci)
        layer_args += [w9, gamma.reshape(co, 1), beta.reshape(co, 1)]

    wo = w_out.reshape(out_dim, feat)
    bo = b_out.reshape(out_dim, 1)

    args = [x_flat] + u_mats + [pmat] + layer_args + [wo, bo]

    def _const_spec(a):
        nd = a.ndim
        return pl.BlockSpec(a.shape, lambda n, _nd=nd: (0,) * _nd)

    in_specs = [pl.BlockSpec((1, cin0, H0 * W0), lambda n: (n, 0, 0))]
    in_specs += [_const_spec(a) for a in args[1:]]

    kernel = functools.partial(
        _top_down_head_kernel, sizes=sizes, groups=groups, eps=eps,
        num_up=num_up, num_conv=num_conv_per_block)

    out = pl.pallas_call(
        kernel,
        out_shape=jax.ShapeDtypeStruct((N, out_dim, Hf * Wf), x_nchw.dtype),
        grid=(N,),
        in_specs=in_specs,
        out_specs=pl.BlockSpec((1, out_dim, Hf * Wf), lambda n: (n, 0, 0)),
        compiler_params=pltpu.CompilerParams(
            dimension_semantics=("parallel",),      # batch shards across TCs (v7x)
            vmem_limit_bytes=32 * 1024 * 1024),
    )(*args)
    return out.reshape(N, out_dim, Hf, Wf)


# ---------------------------------------------------------------------------
# Parameter init (mirrors the module's __init__ initializers), PyTorch layouts.
# ---------------------------------------------------------------------------
def init_params(key, in_dim, feat_dim, out_dim, num_up=3, num_conv_per_block=2):
    conv_params = []
    cin = in_dim
    for _ in range(num_up):
        for _ in range(num_conv_per_block):
            key, k1 = jax.random.split(key)
            w = jax.random.normal(k1, (feat_dim, cin, 3, 3), jnp.float32) * 0.001
            gamma = jnp.ones((feat_dim,), jnp.float32)   # constant_init(GN, 1)
            beta = jnp.zeros((feat_dim,), jnp.float32)
            conv_params.append((w, gamma, beta))
            cin = feat_dim
    key, k1 = jax.random.split(key)
    w_out = jax.random.normal(k1, (out_dim, feat_dim, 1, 1), jnp.float32) * 0.01
    b_out = jnp.zeros((out_dim,), jnp.float32)
    return conv_params, (w_out, b_out)


# ---------------------------------------------------------------------------
# Plain-JAX reference (NCHW) for a correctness self-check.
# ---------------------------------------------------------------------------
def _reference_forward(x_nchw, conv_params, out_params, groups,
                       num_up=3, num_conv_per_block=2, eps=1e-5):
    hp = lax.Precision.HIGHEST
    x = x_nchw
    idx = 0
    for _ in range(num_up):
        _, _, H, W = x.shape
        ah = _interp_matrix(H)
        aw = _interp_matrix(W)
        x = jnp.einsum('ih,nchw->nciw', ah, x, precision=hp)
        x = jnp.einsum('jw,nciw->ncij', aw, x, precision=hp)
        for _ in range(num_conv_per_block):
            w, gamma, beta = conv_params[idx]
            idx += 1
            y = lax.conv_general_dilated(
                x, w, window_strides=(1, 1), padding=((1, 1), (1, 1)),
                dimension_numbers=('NCHW', 'OIHW', 'NCHW'), precision=hp)
            n, c, h, wd = y.shape
            yg = y.reshape(n, groups, c // groups, h, wd)
            mean = yg.mean(axis=(2, 3, 4), keepdims=True)
            var = ((yg - mean) ** 2).mean(axis=(2, 3, 4), keepdims=True)
            y = ((yg - mean) / jnp.sqrt(var + eps)).reshape(n, c, h, wd)
            y = y * gamma.reshape(1, c, 1, 1) + beta.reshape(1, c, 1, 1)
            x = 0.5 * y * (1.0 + lax.erf(y * (1.0 / math.sqrt(2.0))))
    w_out, b_out = out_params
    out = lax.conv_general_dilated(
        x, w_out, window_strides=(1, 1), padding=((0, 0), (0, 0)),
        dimension_numbers=('NCHW', 'OIHW', 'NCHW'), precision=hp)
    return out + b_out.reshape(1, -1, 1, 1)


if __name__ == "__main__":
    # Shapes consistent with the module: in_dim=16, feat_dim=32, num_gn_groups=8,
    # 3 bilinear x2 ups (stride 32 -> stride 4), out_dim=1.
    N, in_dim, H, W = 2, 16, 4, 4
    feat_dim, groups, out_dim = 32, 8, 1

    key = jax.random.PRNGKey(0)
    kx, kp = jax.random.split(key)
    x = jax.random.normal(kx, (N, in_dim, H, W), jnp.float32)
    conv_params, out_params = init_params(kp, in_dim, feat_dim, out_dim)

    fwd = jax.jit(lambda xx, cp, op: top_down_head_forward(xx, cp, op, groups))
    out = jax.block_until_ready(fwd(x, conv_params, out_params))

    assert out.shape == (N, out_dim, H * 8, W * 8), out.shape
    assert out.dtype == jnp.float32

    ref = _reference_forward(x, conv_params, out_params, groups)
    max_err = float(jnp.max(jnp.abs(out - ref)))
    assert jnp.allclose(out, ref, rtol=1e-2, atol=1e-4), max_err

    print("KERNEL_OK")
</pallas_src>

<mosaic_0001>
module attributes {stable_mosaic.version = 11 : i64} {
  func.func private @main(%arg0: i32) attributes {dimension_semantics = [#tpu.dimension_semantics<core_parallel>], iteration_bounds = array<i64: 2>, tpu.core_type = #tpu.core_type<sc_scalar_subcore>, window_params = []} {
    return
  }
}

module attributes {stable_mosaic.version = 11 : i64} {
  func.func private @main(%arg0: i32) attributes {dimension_semantics = [#tpu.dimension_semantics<core_parallel>], iteration_bounds = array<i64: 2>, tpu.core_type = #tpu.core_type<sc_scalar_subcore>, window_params = []} {
    return
  }
}

module attributes {stable_mosaic.version = 11 : i64} {
  func.func @_top_down_head_kernel(%arg0: i32, %arg1: memref<1x16x16xf32, #tpu.memory_space<vmem>>, %arg2: memref<16x64xf32, #tpu.memory_space<vmem>>, %arg3: memref<64x256xf32, #tpu.memory_space<vmem>>, %arg4: memref<256x1024xf32, #tpu.memory_space<vmem>>, %arg5: memref<32x32xf32, #tpu.memory_space<vmem>>, %arg6: memref<32x144xf32, #tpu.memory_space<vmem>>, %arg7: memref<32x1xf32, #tpu.memory_space<vmem>>, %arg8: memref<32x1xf32, #tpu.memory_space<vmem>>, %arg9: memref<32x288xf32, #tpu.memory_space<vmem>>, %arg10: memref<32x1xf32, #tpu.memory_space<vmem>>, %arg11: memref<32x1xf32, #tpu.memory_space<vmem>>, %arg12: memref<32x288xf32, #tpu.memory_space<vmem>>, %arg13: memref<32x1xf32, #tpu.memory_space<vmem>>, %arg14: memref<32x1xf32, #tpu.memory_space<vmem>>, %arg15: memref<32x288xf32, #tpu.memory_space<vmem>>, %arg16: memref<32x1xf32, #tpu.memory_space<vmem>>, %arg17: memref<32x1xf32, #tpu.memory_space<vmem>>, %arg18: memref<32x288xf32, #tpu.memory_space<vmem>>, %arg19: memref<32x1xf32, #tpu.memory_space<vmem>>, %arg20: memref<32x1xf32, #tpu.memory_space<vmem>>, %arg21: memref<32x288xf32, #tpu.memory_space<vmem>>, %arg22: memref<32x1xf32, #tpu.memory_space<vmem>>, %arg23: memref<32x1xf32, #tpu.memory_space<vmem>>, %arg24: memref<1x32xf32, #tpu.memory_space<vmem>>, %arg25: memref<1x1xf32, #tpu.memory_space<vmem>>, %arg26: memref<1x1x1024xf32, #tpu.memory_space<vmem>>) attributes {dimension_semantics = [#tpu.dimension_semantics<parallel>], iteration_bounds = array<i64: 2>, scalar_prefetch = 0 : i64, scratch_operands = 0 : i64, tpu.core_type = #tpu.core_type<tc>, window_params = [{transform_indices = @transform_0, window_bounds = array<i64: 1, 16, 16>}, {pipeline_mode = #tpu.pipeline_mode<synchronous>, transform_indices = @transform_1, window_bounds = array<i64: 16, 64>}, {pipeline_mode = #tpu.pipeline_mode<synchronous>, transform_indices = @transform_2, window_bounds = array<i64: 64, 256>}, {pipeline_mode = #tpu.pipeline_mode<synchronous>, transform_indices = @transform_3, window_bounds = array<i64: 256, 1024>}, {pipeline_mode = #tpu.pipeline_mode<synchronous>, transform_indices = @transform_4, window_bounds = array<i64: 32, 32>}, {pipeline_mode = #tpu.pipeline_mode<synchronous>, transform_indices = @transform_5, window_bounds = array<i64: 32, 144>}, {pipeline_mode = #tpu.pipeline_mode<synchronous>, transform_indices = @transform_6, window_bounds = array<i64: 32, 1>}, {pipeline_mode = #tpu.pipeline_mode<synchronous>, transform_indices = @transform_7, window_bounds = array<i64: 32, 1>}, {pipeline_mode = #tpu.pipeline_mode<synchronous>, transform_indices = @transform_8, window_bounds = array<i64: 32, 288>}, {pipeline_mode = #tpu.pipeline_mode<synchronous>, transform_indices = @transform_9, window_bounds = array<i64: 32, 1>}, {pipeline_mode = #tpu.pipeline_mode<synchronous>, transform_indices = @transform_10, window_bounds = array<i64: 32, 1>}, {pipeline_mode = #tpu.pipeline_mode<synchronous>, transform_indices = @transform_11, window_bounds = array<i64: 32, 288>}, {pipeline_mode = #tpu.pipeline_mode<synchronous>, transform_indices = @transform_12, window_bounds = array<i64: 32, 1>}, {pipeline_mode = #tpu.pipeline_mode<synchronous>, transform_indices = @transform_13, window_bounds = array<i64: 32, 1>}, {pipeline_mode = #tpu.pipeline_mode<synchronous>, transform_indices = @transform_14, window_bounds = array<i64: 32, 288>}, {pipeline_mode = #tpu.pipeline_mode<synchronous>, transform_indices = @transform_15, window_bounds = array<i64: 32, 1>}, {pipeline_mode = #tpu.pipeline_mode<synchronous>, transform_indices = @transform_16, window_bounds = array<i64: 32, 1>}, {pipeline_mode = #tpu.pipeline_mode<synchronous>, transform_indices = @transform_17, window_bounds = array<i64: 32, 288>}, {pipeline_mode = #tpu.pipeline_mode<synchronous>, transform_indices = @transform_18, window_bounds = array<i64: 32, 1>}, {pipeline_mode = #tpu.pipeline_mode<synchronous>, transform_indices = @transform_19, window_bounds = array<i64: 32, 1>}, {pipeline_mode = #tpu.pipeline_mode<synchronous>, transform_indices = @transform_20, window_bounds = array<i64: 32, 288>}, {pipeline_mode = #tpu.pipeline_mode<synchronous>, transform_indices = @transform_21, window_bounds = array<i64: 32, 1>}, {pipeline_mode = #tpu.pipeline_mode<synchronous>, transform_indices = @transform_22, window_bounds = array<i64: 32, 1>}, {pipeline_mode = #tpu.pipeline_mode<synchronous>, transform_indices = @transform_23, window_bounds = array<i64: 1, 32>}, {pipeline_mode = #tpu.pipeline_mode<synchronous>, transform_indices = @transform_24, window_bounds = array<i64: 1, 1>}, {transform_indices = @transform_25, window_bounds = array<i64: 1, 1, 1024>}]} {
    %c0 = arith.constant 0 : index
    %c0_0 = arith.constant 0 : index
    %c0_1 = arith.constant 0 : index
    %0 = vector.load %arg1[%c0, %c0_0, %c0_1] : memref<1x16x16xf32, #tpu.memory_space<vmem>>, vector<1x16x16xf32>
    %1 = vector.shape_cast %0 : vector<1x16x16xf32> to vector<16x16xf32>
    %c0_2 = arith.constant 0 : index
    %c0_3 = arith.constant 0 : index
    %2 = vector.load %arg2[%c0_2, %c0_3] : memref<16x64xf32, #tpu.memory_space<vmem>>, vector<16x64xf32>
    %cst = arith.constant dense<0.000000e+00> : vector<16x64xf32>
    %3 = tpu.matmul %1, %2, %cst {dimension_numbers = #tpu.dot_dimension_numbers<[1], [0], [0], [1], [0, 0, 1, 1], [], []>} : vector<16x16xf32>, vector<16x64xf32>, vector<16x64xf32> -> vector<16x64xf32>
    %4 = tpu.iota {dimensions = array<i32: 1>} : vector<1x64xi32>
    %c8_i32 = arith.constant 8 : i32
    %c0_i32 = arith.constant 0 : i32
    %5 = arith.cmpi eq, %c8_i32, %c0_i32 : i32
    %c1_i32 = arith.constant 1 : i32
    %6 = arith.select %5, %c1_i32, %c8_i32 : i32
    %7 = vector.broadcast %6 : i32 to vector<1x64xi32>
    %8 = arith.remsi %4, %7 : vector<1x64xi32>
    %c0_i32_4 = arith.constant 0 : i32
    %9 = vector.broadcast %c0_i32_4 : i32 to vector<1x64xi32>
    %10 = arith.cmpi ne, %8, %9 : vector<1x64xi32>
    %c0_i32_5 = arith.constant 0 : i32
    %11 = vector.broadcast %c0_i32_5 : i32 to vector<1x64xi32>
    %12 = arith.cmpi slt, %8, %11 : vector<1x64xi32>
    %c0_i32_6 = arith.constant 0 : i32
    %13 = arith.cmpi slt, %6, %c0_i32_6 : i32
    %14 = vector.broadcast %13 : i1 to vector<1x64xi1>
    %15 = vector.broadcast %14 : vector<1x64xi1> to vector<1x64xi1>
    %16 = arith.xori %12, %15 : vector<1x64xi1>
    %17 = arith.andi %16, %10 : vector<1x64xi1>
    %18 = vector.broadcast %6 : i32 to vector<1x64xi32>
    %19 = arith.addi %8, %18 : vector<1x64xi32>
    %20 = arith.select %17, %19, %8 : vector<1x64xi1>, vector<1x64xi32>
    %c1_i32_7 = arith.constant 1 : i32
    %21 = vector.broadcast %c1_i32_7 : i32 to vector<1x64xi32>
    %22 = arith.cmpi sge, %20, %21 : vector<1x64xi32>
    %23 = arith.extui %22 : vector<1x64xi1> to vector<1x64xi32>
    %24 = arith.sitofp %23 : vector<1x64xi32> to vector<1x64xf32>
    %c6_i32 = arith.constant 6 : i32
    %25 = vector.broadcast %c6_i32 : i32 to vector<1x64xi32>
    %26 = arith.cmpi sle, %20, %25 : vector<1x64xi32>
    %27 = arith.extui %26 : vector<1x64xi1> to vector<1x64xi32>
    %28 = arith.sitofp %27 : vector<1x64xi32> to vector<1x64xf32>
    %cst_8 = arith.constant 0.000000e+00 : f32
    %29 = vector.broadcast %cst_8 : f32 to vector<16x9xf32>
    %30 = vector.extract_strided_slice %3 {offsets = [0, 0], sizes = [16, 55], strides = [1, 1]} : vector<16x64xf32> to vector<16x55xf32>
    %31 = tpu.concatenate %29, %30 in 1 : vector<16x9xf32>, vector<16x55xf32> -> vector<16x64xf32>
    %32 = vector.broadcast %24 : vector<1x64xf32> to vector<16x64xf32>
    %33 = arith.mulf %31, %32 : vector<16x64xf32>
    %cst_9 = arith.constant 0.000000e+00 : f32
    %34 = vector.broadcast %cst_9 : f32 to vector<16x8xf32>
    %35 = vector.extract_strided_slice %3 {offsets = [0, 0], sizes = [16, 56], strides = [1, 1]} : vector<16x64xf32> to vector<16x56xf32>
    %36 = tpu.concatenate %34, %35 in 1 : vector<16x8xf32>, vector<16x56xf32> -> vector<16x64xf32>
    %cst_10 = arith.constant 0.000000e+00 : f32
    %37 = vector.broadcast %cst_10 : f32 to vector<16x7xf32>
    %38 = vector.extract_strided_slice %3 {offsets = [0, 0], sizes = [16, 57], strides = [1, 1]} : vector<16x64xf32> to vector<16x57xf32>
    %39 = tpu.concatenate %37, %38 in 1 : vector<16x7xf32>, vector<16x57xf32> -> vector<16x64xf32>
    %40 = vector.broadcast %28 : vector<1x64xf32> to vector<16x64xf32>
    %41 = arith.mulf %39, %40 : vector<16x64xf32>
    %cst_11 = arith.constant 0.000000e+00 : f32
    %42 = vector.broadcast %cst_11 : f32 to vector<16x1xf32>
    %43 = vector.extract_strided_slice %3 {offsets = [0, 0], sizes = [16, 63], strides = [1, 1]} : vector<16x64xf32> to vector<16x63xf32>
    %44 = tpu.concatenate %42, %43 in 1 : vector<16x1xf32>, vector<16x63xf32> -> vector<16x64xf32>
    %45 = vector.broadcast %24 : vector<1x64xf32> to vector<16x64xf32>
    %46 = arith.mulf %44, %45 : vector<16x64xf32>
    %cst_12 = arith.constant 0.000000e+00 : f32
    %47 = vector.broadcast %cst_12 : f32 to vector<16x1xf32>
    %48 = vector.extract_strided_slice %3 {offsets = [0, 1], sizes = [16, 63], strides = [1, 1]} : vector<16x64xf32> to vector<16x63xf32>
    %49 = tpu.concatenate %48, %47 in 1 : vector<16x63xf32>, vector<16x1xf32> -> vector<16x64xf32>
    %50 = vector.broadcast %28 : vector<1x64xf32> to vector<16x64xf32>
    %51 = arith.mulf %49, %50 : vector<16x64xf32>
    %cst_13 = arith.constant 0.000000e+00 : f32
    %52 = vector.broadcast %cst_13 : f32 to vector<16x7xf32>
    %53 = vector.extract_strided_slice %3 {offsets = [0, 7], sizes = [16, 57], strides = [1, 1]} : vector<16x64xf32> to vector<16x57xf32>
    %54 = tpu.concatenate %53, %52 in 1 : vector<16x57xf32>, vector<16x7xf32> -> vector<16x64xf32>
    %55 = vector.broadcast %24 : vector<1x64xf32> to vector<16x64xf32>
    %56 = arith.mulf %54, %55 : vector<16x64xf32>
    %cst_14 = arith.constant 0.000000e+00 : f32
    %57 = vector.broadcast %cst_14 : f32 to vector<16x8xf32>
    %58 = vector.extract_strided_slice %3 {offsets = [0, 8], sizes = [16, 56], strides = [1, 1]} : vector<16x64xf32> to vector<16x56xf32>
    %59 = tpu.concatenate %58, %57 in 1 : vector<16x56xf32>, vector<16x8xf32> -> vector<16x64xf32>
    %cst_15 = arith.constant 0.000000e+00 : f32
    %60 = vector.broadcast %cst_15 : f32 to vector<16x9xf32>
    %61 = vector.extract_strided_slice %3 {offsets = [0, 9], sizes = [16, 55], strides = [1, 1]} : vector<16x64xf32> to vector<16x55xf32>
    %62 = tpu.concatenate %61, %60 in 1 : vector<16x55xf32>, vector<16x9xf32> -> vector<16x64xf32>
    %63 = vector.broadcast %28 : vector<1x64xf32> to vector<16x64xf32>
    %64 = arith.mulf %62, %63 : vector<16x64xf32>
    %65 = tpu.concatenate %33, %36, %41, %46, %3, %51, %56, %59, %64 in 0 : vector<16x64xf32>, vector<16x64xf32>, vector<16x64xf32>, vector<16x64xf32>, vector<16x64xf32>, vector<16x64xf32>, vector<16x64xf32>, vector<16x64xf32>, vector<16x64xf32> -> vector<144x64xf32>
    %c0_16 = arith.constant 0 : index
    %c0_17 = arith.constant 0 : index
    %66 = vector.load %arg6[%c0_16, %c0_17] : memref<32x144xf32, #tpu.memory_space<vmem>>, vector<32x144xf32>
    %cst_18 = arith.constant dense<0.000000e+00> : vector<32x64xf32>
    %67 = tpu.matmul %66, %65, %cst_18 {dimension_numbers = #tpu.dot_dimension_numbers<[1], [0], [0], [1], [0, 0, 1, 1], [], []>} : vector<32x144xf32>, vector<144x64xf32>, vector<32x64xf32> -> vector<32x64xf32>
    %cst_19 = arith.constant dense<0.000000e+00> : vector<32xf32>
    %68 = vector.multi_reduction <add>, %67, %cst_19 [1] : vector<32x64xf32> to vector<32xf32>
    %69 = vector.shape_cast %68 : vector<32xf32> to vector<32x1xf32>
    %c0_20 = arith.constant 0 : index
    %c0_21 = arith.constant 0 : index
    %70 = vector.load %arg5[%c0_20, %c0_21] : memref<32x32xf32, #tpu.memory_space<vmem>>, vector<32x32xf32>
    %cst_22 = arith.constant dense<0.000000e+00> : vector<32x1xf32>
    %71 = tpu.matmul %70, %69, %cst_22 {dimension_numbers = #tpu.dot_dimension_numbers<[1], [0], [0], [1], [0, 0, 1, 1], [], []>} : vector<32x32xf32>, vector<32x1xf32>, vector<32x1xf32> -> vector<32x1xf32>
    %cst_23 = arith.constant 3.906250e-03 : f32
    %72 = vector.broadcast %cst_23 : f32 to vector<32x1xf32>
    %73 = arith.mulf %71, %72 : vector<32x1xf32>
    %74 = vector.broadcast %73 : vector<32x1xf32> to vector<32x64xf32>
    %75 = arith.subf %67, %74 : vector<32x64xf32>
    %76 = arith.mulf %75, %75 : vector<32x64xf32>
    %cst_24 = arith.constant dense<0.000000e+00> : vector<32xf32>
    %77 = vector.multi_reduction <add>, %76, %cst_24 [1] : vector<32x64xf32> to vector<32xf32>
    %78 = vector.shape_cast %77 : vector<32xf32> to vector<32x1xf32>
    %c0_25 = arith.constant 0 : index
    %c0_26 = arith.constant 0 : index
    %79 = vector.load %arg5[%c0_25, %c0_26] : memref<32x32xf32, #tpu.memory_space<vmem>>, vector<32x32xf32>
    %cst_27 = arith.constant dense<0.000000e+00> : vector<32x1xf32>
    %80 = tpu.matmul %79, %78, %cst_27 {dimension_numbers = #tpu.dot_dimension_numbers<[1], [0], [0], [1], [0, 0, 1, 1], [], []>} : vector<32x32xf32>, vector<32x1xf32>, vector<32x1xf32> -> vector<32x1xf32>
    %cst_28 = arith.constant 3.906250e-03 : f32
    %81 = vector.broadcast %cst_28 : f32 to vector<32x1xf32>
    %82 = arith.mulf %80, %81 : vector<32x1xf32>
    %cst_29 = arith.constant 0.000000e+00 : f32
    %83 = vector.broadcast %cst_29 : f32 to vector<32x1xf32>
    %84 = arith.maximumf %82, %83 : vector<32x1xf32>
    %cst_30 = arith.constant 9.99999974E-6 : f32
    %85 = vector.broadcast %cst_30 : f32 to vector<32x1xf32>
    %86 = arith.addf %84, %85 : vector<32x1xf32>
    %87 = math.rsqrt %86 : vector<32x1xf32>
    %88 = vector.broadcast %87 : vector<32x1xf32> to vector<32x64xf32>
    %89 = arith.mulf %75, %88 : vector<32x64xf32>
    %c0_31 = arith.constant 0 : index
    %c0_32 = arith.constant 0 : index
    %90 = vector.load %arg7[%c0_31, %c0_32] : memref<32x1xf32, #tpu.memory_space<vmem>>, vector<32x1xf32>
    %91 = vector.broadcast %90 : vector<32x1xf32> to vector<32x64xf32>
    %92 = arith.mulf %89, %91 : vector<32x64xf32>
    %c0_33 = arith.constant 0 : index
    %c0_34 = arith.constant 0 : index
    %93 = vector.load %arg8[%c0_33, %c0_34] : memref<32x1xf32, #tpu.memory_space<vmem>>, vector<32x1xf32>
    %94 = vector.broadcast %93 : vector<32x1xf32> to vector<32x64xf32>
    %95 = arith.addf %92, %94 : vector<32x64xf32>
    %cst_35 = arith.constant 5.000000e-01 : f32
    %96 = vector.broadcast %cst_35 : f32 to vector<32x64xf32>
    %97 = arith.mulf %96, %95 : vector<32x64xf32>
    %cst_36 = arith.constant 0.707106769 : f32
    %98 = vector.broadcast %cst_36 : f32 to vector<32x64xf32>
    %99 = arith.mulf %95, %98 : vector<32x64xf32>
    %100 = math.erf %99 : vector<32x64xf32>
    %cst_37 = arith.constant 1.000000e+00 : f32
    %101 = vector.broadcast %cst_37 : f32 to vector<32x64xf32>
    %102 = arith.addf %101, %100 : vector<32x64xf32>
    %103 = arith.mulf %97, %102 : vector<32x64xf32>
    %cst_38 = arith.constant 0.000000e+00 : f32
    %104 = vector.broadcast %cst_38 : f32 to vector<32x9xf32>
    %105 = vector.extract_strided_slice %103 {offsets = [0, 0], sizes = [32, 55], strides = [1, 1]} : vector<32x64xf32> to vector<32x55xf32>
    %106 = tpu.concatenate %104, %105 in 1 : vector<32x9xf32>, vector<32x55xf32> -> vector<32x64xf32>
    %107 = vector.broadcast %24 : vector<1x64xf32> to vector<32x64xf32>
    %108 = arith.mulf %106, %107 : vector<32x64xf32>
    %cst_39 = arith.constant 0.000000e+00 : f32
    %109 = vector.broadcast %cst_39 : f32 to vector<32x8xf32>
    %110 = vector.extract_strided_slice %103 {offsets = [0, 0], sizes = [32, 56], strides = [1, 1]} : vector<32x64xf32> to vector<32x56xf32>
    %111 = tpu.concatenate %109, %110 in 1 : vector<32x8xf32>, vector<32x56xf32> -> vector<32x64xf32>
    %cst_40 = arith.constant 0.000000e+00 : f32
    %112 = vector.broadcast %cst_40 : f32 to vector<32x7xf32>
    %113 = vector.extract_strided_slice %103 {offsets = [0, 0], sizes = [32, 57], strides = [1, 1]} : vector<32x64xf32> to vector<32x57xf32>
    %114 = tpu.concatenate %112, %113 in 1 : vector<32x7xf32>, vector<32x57xf32> -> vector<32x64xf32>
    %115 = vector.broadcast %28 : vector<1x64xf32> to vector<32x64xf32>
    %116 = arith.mulf %114, %115 : vector<32x64xf32>
    %cst_41 = arith.constant 0.000000e+00 : f32
    %117 = vector.broadcast %cst_41 : f32 to vector<32x1xf32>
    %118 = vector.extract_strided_slice %103 {offsets = [0, 0], sizes = [32, 63], strides = [1, 1]} : vector<32x64xf32> to vector<32x63xf32>
    %119 = tpu.concatenate %117, %118 in 1 : vector<32x1xf32>, vector<32x63xf32> -> vector<32x64xf32>
    %120 = vector.broadcast %24 : vector<1x64xf32> to vector<32x64xf32>
    %121 = arith.mulf %119, %120 : vector<32x64xf32>
    %cst_42 = arith.constant 0.000000e+00 : f32
    %122 = vector.broadcast %cst_42 : f32 to vector<32x1xf32>
    %123 = vector.extract_strided_slice %103 {offsets = [0, 1], sizes = [32, 63], strides = [1, 1]} : vector<32x64xf32> to vector<32x63xf32>
    %124 = tpu.concatenate %123, %122 in 1 : vector<32x63xf32>, vector<32x1xf32> -> vector<32x64xf32>
    %125 = vector.broadcast %28 : vector<1x64xf32> to vector<32x64xf32>
    %126 = arith.mulf %124, %125 : vector<32x64xf32>
    %cst_43 = arith.constant 0.000000e+00 : f32
    %127 = vector.broadcast %cst_43 : f32 to vector<32x7xf32>
    %128 = vector.extract_strided_slice %103 {offsets = [0, 7], sizes = [32, 57], strides = [1, 1]} : vector<32x64xf32> to vector<32x57xf32>
    %129 = tpu.concatenate %128, %127 in 1 : vector<32x57xf32>, vector<32x7xf32> -> vector<32x64xf32>
    %130 = vector.broadcast %24 : vector<1x64xf32> to vector<32x64xf32>
    %131 = arith.mulf %129, %130 : vector<32x64xf32>
    %cst_44 = arith.constant 0.000000e+00 : f32
    %132 = vector.broadcast %cst_44 : f32 to vector<32x8xf32>
    %133 = vector.extract_strided_slice %103 {offsets = [0, 8], sizes = [32, 56], strides = [1, 1]} : vector<32x64xf32> to vector<32x56xf32>
    %134 = tpu.concatenate %133, %132 in 1 : vector<32x56xf32>, vector<32x8xf32> -> vector<32x64xf32>
    %cst_45 = arith.constant 0.000000e+00 : f32
    %135 = vector.broadcast %cst_45 : f32 to vector<32x9xf32>
    %136 = vector.extract_strided_slice %103 {offsets = [0, 9], sizes = [32, 55], strides = [1, 1]} : vector<32x64xf32> to vector<32x55xf32>
    %137 = tpu.concatenate %136, %135 in 1 : vector<32x55xf32>, vector<32x9xf32> -> vector<32x64xf32>
    %138 = vector.broadcast %28 : vector<1x64xf32> to vector<32x64xf32>
    %139 = arith.mulf %137, %138 : vector<32x64xf32>
    %140 = tpu.concatenate %108, %111, %116, %121, %103, %126, %131, %134, %139 in 0 : vector<32x64xf32>, vector<32x64xf32>, vector<32x64xf32>, vector<32x64xf32>, vector<32x64xf32>, vector<32x64xf32>, vector<32x64xf32>, vector<32x64xf32>, vector<32x64xf32> -> vector<288x64xf32>
    %c0_46 = arith.constant 0 : index
    %c0_47 = arith.constant 0 : index
    %141 = vector.load %arg9[%c0_46, %c0_47] : memref<32x288xf32, #tpu.memory_space<vmem>>, vector<32x288xf32>
    %cst_48 = arith.constant dense<0.000000e+00> : vector<32x64xf32>
    %142 = tpu.matmul %141, %140, %cst_48 {dimension_numbers = #tpu.dot_dimension_numbers<[1], [0], [0], [1], [0, 0, 1, 1], [], []>} : vector<32x288xf32>, vector<288x64xf32>, vector<32x64xf32> -> vector<32x64xf32>
    %cst_49 = arith.constant dense<0.000000e+00> : vector<32xf32>
    %143 = vector.multi_reduction <add>, %142, %cst_49 [1] : vector<32x64xf32> to vector<32xf32>
    %144 = vector.shape_cast %143 : vector<32xf32> to vector<32x1xf32>
    %c0_50 = arith.constant 0 : index
    %c0_51 = arith.constant 0 : index
    %145 = vector.load %arg5[%c0_50, %c0_51] : memref<32x32xf32, #tpu.memory_space<vmem>>, vector<32x32xf32>
    %cst_52 = arith.constant dense<0.000000e+00> : vector<32x1xf32>
    %146 = tpu.matmul %145, %144, %cst_52 {dimension_numbers = #tpu.dot_dimension_numbers<[1], [0], [0], [1], [0, 0, 1, 1], [], []>} : vector<32x32xf32>, vector<32x1xf32>, vector<32x1xf32> -> vector<32x1xf32>
    %cst_53 = arith.constant 3.906250e-03 : f32
    %147 = vector.broadcast %cst_53 : f32 to vector<32x1xf32>
    %148 = arith.mulf %146, %147 : vector<32x1xf32>
    %149 = vector.broadcast %148 : vector<32x1xf32> to vector<32x64xf32>
    %150 = arith.subf %142, %149 : vector<32x64xf32>
    %151 = arith.mulf %150, %150 : vector<32x64xf32>
    %cst_54 = arith.constant dense<0.000000e+00> : vector<32xf32>
    %152 = vector.multi_reduction <add>, %151, %cst_54 [1] : vector<32x64xf32> to vector<32xf32>
    %153 = vector.shape_cast %152 : vector<32xf32> to vector<32x1xf32>
    %c0_55 = arith.constant 0 : index
    %c0_56 = arith.constant 0 : index
    %154 = vector.load %arg5[%c0_55, %c0_56] : memref<32x32xf32, #tpu.memory_space<vmem>>, vector<32x32xf32>
    %cst_57 = arith.constant dense<0.000000e+00> : vector<32x1xf32>
    %155 = tpu.matmul %154, %153, %cst_57 {dimension_numbers = #tpu.dot_dimension_numbers<[1], [0], [0], [1], [0, 0, 1, 1], [], []>} : vector<32x32xf32>, vector<32x1xf32>, vector<32x1xf32> -> vector<32x1xf32>
    %cst_58 = arith.constant 3.906250e-03 : f32
    %156 = vector.broadcast %cst_58 : f32 to vector<32x1xf32>
    %157 = arith.mulf %155, %156 : vector<32x1xf32>
    %cst_59 = arith.constant 0.000000e+00 : f32
    %158 = vector.broadcast %cst_59 : f32 to vector<32x1xf32>
    %159 = arith.maximumf %157, %158 : vector<32x1xf32>
    %cst_60 = arith.constant 9.99999974E-6 : f32
    %160 = vector.broadcast %cst_60 : f32 to vector<32x1xf32>
    %161 = arith.addf %159, %160 : vector<32x1xf32>
    %162 = math.rsqrt %161 : vector<32x1xf32>
    %163 = vector.broadcast %162 : vector<32x1xf32> to vector<32x64xf32>
    %164 = arith.mulf %150, %163 : vector<32x64xf32>
    %c0_61 = arith.constant 0 : index
    %c0_62 = arith.constant 0 : index
    %165 = vector.load %arg10[%c0_61, %c0_62] : memref<32x1xf32, #tpu.memory_space<vmem>>, vector<32x1xf32>
    %166 = vector.broadcast %165 : vector<32x1xf32> to vector<32x64xf32>
    %167 = arith.mulf %164, %166 : vector<32x64xf32>
    %c0_63 = arith.constant 0 : index
    %c0_64 = arith.constant 0 : index
    %168 = vector.load %arg11[%c0_63, %c0_64] : memref<32x1xf32, #tpu.memory_space<vmem>>, vector<32x1xf32>
    %169 = vector.broadcast %168 : vector<32x1xf32> to vector<32x64xf32>
    %170 = arith.addf %167, %169 : vector<32x64xf32>
    %cst_65 = arith.constant 5.000000e-01 : f32
    %171 = vector.broadcast %cst_65 : f32 to vector<32x64xf32>
    %172 = arith.mulf %171, %170 : vector<32x64xf32>
    %cst_66 = arith.constant 0.707106769 : f32
    %173 = vector.broadcast %cst_66 : f32 to vector<32x64xf32>
    %174 = arith.mulf %170, %173 : vector<32x64xf32>
    %175 = math.erf %174 : vector<32x64xf32>
    %cst_67 = arith.constant 1.000000e+00 : f32
    %176 = vector.broadcast %cst_67 : f32 to vector<32x64xf32>
    %177 = arith.addf %176, %175 : vector<32x64xf32>
    %178 = arith.mulf %172, %177 : vector<32x64xf32>
    %c0_68 = arith.constant 0 : index
    %c0_69 = arith.constant 0 : index
    %179 = vector.load %arg3[%c0_68, %c0_69] : memref<64x256xf32, #tpu.memory_space<vmem>>, vector<64x256xf32>
    %cst_70 = arith.constant dense<0.000000e+00> : vector<32x256xf32>
    %180 = tpu.matmul %178, %179, %cst_70 {dimension_numbers = #tpu.dot_dimension_numbers<[1], [0], [0], [1], [0, 0, 1, 1], [], []>} : vector<32x64xf32>, vector<64x256xf32>, vector<32x256xf32> -> vector<32x256xf32>
    %181 = tpu.iota {dimensions = array<i32: 1>} : vector<1x256xi32>
    %c16_i32 = arith.constant 16 : i32
    %c0_i32_71 = arith.constant 0 : i32
    %182 = arith.cmpi eq, %c16_i32, %c0_i32_71 : i32
    %c1_i32_72 = arith.constant 1 : i32
    %183 = arith.select %182, %c1_i32_72, %c16_i32 : i32
    %184 = vector.broadcast %183 : i32 to vector<1x256xi32>
    %185 = arith.remsi %181, %184 : vector<1x256xi32>
    %c0_i32_73 = arith.constant 0 : i32
    %186 = vector.broadcast %c0_i32_73 : i32 to vector<1x256xi32>
    %187 = arith.cmpi ne, %185, %186 : vector<1x256xi32>
    %c0_i32_74 = arith.constant 0 : i32
    %188 = vector.broadcast %c0_i32_74 : i32 to vector<1x256xi32>
    %189 = arith.cmpi slt, %185, %188 : vector<1x256xi32>
    %c0_i32_75 = arith.constant 0 : i32
    %190 = arith.cmpi slt, %183, %c0_i32_75 : i32
    %191 = vector.broadcast %190 : i1 to vector<1x256xi1>
    %192 = vector.broadcast %191 : vector<1x256xi1> to vector<1x256xi1>
    %193 = arith.xori %189, %192 : vector<1x256xi1>
    %194 = arith.andi %193, %187 : vector<1x256xi1>
    %195 = vector.broadcast %183 : i32 to vector<1x256xi32>
    %196 = arith.addi %185, %195 : vector<1x256xi32>
    %197 = arith.select %194, %196, %185 : vector<1x256xi1>, vector<1x256xi32>
    %c1_i32_76 = arith.constant 1 : i32
    %198 = vector.broadcast %c1_i32_76 : i32 to vector<1x256xi32>
    %199 = arith.cmpi sge, %197, %198 : vector<1x256xi32>
    %200 = arith.extui %199 : vector<1x256xi1> to vector<1x256xi32>
    %201 = arith.sitofp %200 : vector<1x256xi32> to vector<1x256xf32>
    %c14_i32 = arith.constant 14 : i32
    %202 = vector.broadcast %c14_i32 : i32 to vector<1x256xi32>
    %203 = arith.cmpi sle, %197, %202 : vector<1x256xi32>
    %204 = arith.extui %203 : vector<1x256xi1> to vector<1x256xi32>
    %205 = arith.sitofp %204 : vector<1x256xi32> to vector<1x256xf32>
    %cst_77 = arith.constant 0.000000e+00 : f32
    %206 = vector.broadcast %cst_77 : f32 to vector<32x17xf32>
    %207 = vector.extract_strided_slice %180 {offsets = [0, 0], sizes = [32, 239], strides = [1, 1]} : vector<32x256xf32> to vector<32x239xf32>
    %208 = tpu.concatenate %206, %207 in 1 : vector<32x17xf32>, vector<32x239xf32> -> vector<32x256xf32>
    %209 = vector.broadcast %201 : vector<1x256xf32> to vector<32x256xf32>
    %210 = arith.mulf %208, %209 : vector<32x256xf32>
    %cst_78 = arith.constant 0.000000e+00 : f32
    %211 = vector.broadcast %cst_78 : f32 to vector<32x16xf32>
    %212 = vector.extract_strided_slice %180 {offsets = [0, 0], sizes = [32, 240], strides = [1, 1]} : vector<32x256xf32> to vector<32x240xf32>
    %213 = tpu.concatenate %211, %212 in 1 : vector<32x16xf32>, vector<32x240xf32> -> vector<32x256xf32>
    %cst_79 = arith.constant 0.000000e+00 : f32
    %214 = vector.broadcast %cst_79 : f32 to vector<32x15xf32>
    %215 = vector.extract_strided_slice %180 {offsets = [0, 0], sizes = [32, 241], strides = [1, 1]} : vector<32x256xf32> to vector<32x241xf32>
    %216 = tpu.concatenate %214, %215 in 1 : vector<32x15xf32>, vector<32x241xf32> -> vector<32x256xf32>
    %217 = vector.broadcast %205 : vector<1x256xf32> to vector<32x256xf32>
    %218 = arith.mulf %216, %217 : vector<32x256xf32>
    %cst_80 = arith.constant 0.000000e+00 : f32
    %219 = vector.broadcast %cst_80 : f32 to vector<32x1xf32>
    %220 = vector.extract_strided_slice %180 {offsets = [0, 0], sizes = [32, 255], strides = [1, 1]} : vector<32x256xf32> to vector<32x255xf32>
    %221 = tpu.concatenate %219, %220 in 1 : vector<32x1xf32>, vector<32x255xf32> -> vector<32x256xf32>
    %222 = vector.broadcast %201 : vector<1x256xf32> to vector<32x256xf32>
    %223 = arith.mulf %221, %222 : vector<32x256xf32>
    %cst_81 = arith.constant 0.000000e+00 : f32
    %224 = vector.broadcast %cst_81 : f32 to vector<32x1xf32>
    %225 = vector.extract_strided_slice %180 {offsets = [0, 1], sizes = [32, 255], strides = [1, 1]} : vector<32x256xf32> to vector<32x255xf32>
    %226 = tpu.concatenate %225, %224 in 1 : vector<32x255xf32>, vector<32x1xf32> -> vector<32x256xf32>
    %227 = vector.broadcast %205 : vector<1x256xf32> to vector<32x256xf32>
    %228 = arith.mulf %226, %227 : vector<32x256xf32>
    %cst_82 = arith.constant 0.000000e+00 : f32
    %229 = vector.broadcast %cst_82 : f32 to vector<32x15xf32>
    %230 = vector.extract_strided_slice %180 {offsets = [0, 15], sizes = [32, 241], strides = [1, 1]} : vector<32x256xf32> to vector<32x241xf32>
    %231 = tpu.concatenate %230, %229 in 1 : vector<32x241xf32>, vector<32x15xf32> -> vector<32x256xf32>
    %232 = vector.broadcast %201 : vector<1x256xf32> to vector<32x256xf32>
    %233 = arith.mulf %231, %232 : vector<32x256xf32>
    %cst_83 = arith.constant 0.000000e+00 : f32
    %234 = vector.broadcast %cst_83 : f32 to vector<32x16xf32>
    %235 = vector.extract_strided_slice %180 {offsets = [0, 16], sizes = [32, 240], strides = [1, 1]} : vector<32x256xf32> to vector<32x240xf32>
    %236 = tpu.concatenate %235, %234 in 1 : vector<32x240xf32>, vector<32x16xf32> -> vector<32x256xf32>
    %cst_84 = arith.constant 0.000000e+00 : f32
    %237 = vector.broadcast %cst_84 : f32 to vector<32x17xf32>
    %238 = vector.extract_strided_slice %180 {offsets = [0, 17], sizes = [32, 239], strides = [1, 1]} : vector<32x256xf32> to vector<32x239xf32>
    %239 = tpu.concatenate %238, %237 in 1 : vector<32x239xf32>, vector<32x17xf32> -> vector<32x256xf32>
    %240 = vector.broadcast %205 : vector<1x256xf32> to vector<32x256xf32>
    %241 = arith.mulf %239, %240 : vector<32x256xf32>
    %242 = tpu.concatenate %210, %213, %218, %223, %180, %228, %233, %236, %241 in 0 : vector<32x256xf32>, vector<32x256xf32>, vector<32x256xf32>, vector<32x256xf32>, vector<32x256xf32>, vector<32x256xf32>, vector<32x256xf32>, vector<32x256xf32>, vector<32x256xf32> -> vector<288x256xf32>
    %c0_85 = arith.constant 0 : index
    %c0_86 = arith.constant 0 : index
    %243 = vector.load %arg12[%c0_85, %c0_86] : memref<32x288xf32, #tpu.memory_space<vmem>>, vector<32x288xf32>
    %cst_87 = arith.constant dense<0.000000e+00> : vector<32x256xf32>
    %244 = tpu.matmul %243, %242, %cst_87 {dimension_numbers = #tpu.dot_dimension_numbers<[1], [0], [0], [1], [0, 0, 1, 1], [], []>} : vector<32x288xf32>, vector<288x256xf32>, vector<32x256xf32> -> vector<32x256xf32>
    %cst_88 = arith.constant dense<0.000000e+00> : vector<32xf32>
    %245 = vector.multi_reduction <add>, %244, %cst_88 [1] : vector<32x256xf32> to vector<32xf32>
    %246 = vector.shape_cast %245 : vector<32xf32> to vector<32x1xf32>
    %c0_89 = arith.constant 0 : index
    %c0_90 = arith.constant 0 : index
    %247 = vector.load %arg5[%c0_89, %c0_90] : memref<32x32xf32, #tpu.memory_space<vmem>>, vector<32x32xf32>
    %cst_91 = arith.constant dense<0.000000e+00> : vector<32x1xf32>
    %248 = tpu.matmul %247, %246, %cst_91 {dimension_numbers = #tpu.dot_dimension_numbers<[1], [0], [0], [1], [0, 0, 1, 1], [], []>} : vector<32x32xf32>, vector<32x1xf32>, vector<32x1xf32> -> vector<32x1xf32>
    %cst_92 = arith.constant 9.765625E-4 : f32
    %249 = vector.broadcast %cst_92 : f32 to vector<32x1xf32>
    %250 = arith.mulf %248, %249 : vector<32x1xf32>
    %251 = vector.broadcast %250 : vector<32x1xf32> to vector<32x256xf32>
    %252 = arith.subf %244, %251 : vector<32x256xf32>
    %253 = arith.mulf %252, %252 : vector<32x256xf32>
    %cst_93 = arith.constant dense<0.000000e+00> : vector<32xf32>
    %254 = vector.multi_reduction <add>, %253, %cst_93 [1] : vector<32x256xf32> to vector<32xf32>
    %255 = vector.shape_cast %254 : vector<32xf32> to vector<32x1xf32>
    %c0_94 = arith.constant 0 : index
    %c0_95 = arith.constant 0 : index
    %256 = vector.load %arg5[%c0_94, %c0_95] : memref<32x32xf32, #tpu.memory_space<vmem>>, vector<32x32xf32>
    %cst_96 = arith.constant dense<0.000000e+00> : vector<32x1xf32>
    %257 = tpu.matmul %256, %255, %cst_96 {dimension_numbers = #tpu.dot_dimension_numbers<[1], [0], [0], [1], [0, 0, 1, 1], [], []>} : vector<32x32xf32>, vector<32x1xf32>, vector<32x1xf32> -> vector<32x1xf32>
    %cst_97 = arith.constant 9.765625E-4 : f32
    %258 = vector.broadcast %cst_97 : f32 to vector<32x1xf32>
    %259 = arith.mulf %257, %258 : vector<32x1xf32>
    %cst_98 = arith.constant 0.000000e+00 : f32
    %260 = vector.broadcast %cst_98 : f32 to vector<32x1xf32>
    %261 = arith.maximumf %259, %260 : vector<32x1xf32>
    %cst_99 = arith.constant 9.99999974E-6 : f32
    %262 = vector.broadcast %cst_99 : f32 to vector<32x1xf32>
    %263 = arith.addf %261, %262 : vector<32x1xf32>
    %264 = math.rsqrt %263 : vector<32x1xf32>
    %265 = vector.broadcast %264 : vector<32x1xf32> to vector<32x256xf32>
    %266 = arith.mulf %252, %265 : vector<32x256xf32>
    %c0_100 = arith.constant 0 : index
    %c0_101 = arith.constant 0 : index
    %267 = vector.load %arg13[%c0_100, %c0_101] : memref<32x1xf32, #tpu.memory_space<vmem>>, vector<32x1xf32>
    %268 = vector.broadcast %267 : vector<32x1xf32> to vector<32x256xf32>
    %269 = arith.mulf %266, %268 : vector<32x256xf32>
    %c0_102 = arith.constant 0 : index
    %c0_103 = arith.constant 0 : index
    %270 = vector.load %arg14[%c0_102, %c0_103] : memref<32x1xf32, #tpu.memory_space<vmem>>, vector<32x1xf32>
    %271 = vector.broadcast %270 : vector<32x1xf32> to vector<32x256xf32>
    %272 = arith.addf %269, %271 : vector<32x256xf32>
    %cst_104 = arith.constant 5.000000e-01 : f32
    %273 = vector.broadcast %cst_104 : f32 to vector<32x256xf32>
    %274 = arith.mulf %273, %272 : vector<32x256xf32>
    %cst_105 = arith.constant 0.707106769 : f32
    %275 = vector.broadcast %cst_105 : f32 to vector<32x256xf32>
    %276 = arith.mulf %272, %275 : vector<32x256xf32>
    %277 = math.erf %276 : vector<32x256xf32>
    %cst_106 = arith.constant 1.000000e+00 : f32
    %278 = vector.broadcast %cst_106 : f32 to vector<32x256xf32>
    %279 = arith.addf %278, %277 : vector<32x256xf32>
    %280 = arith.mulf %274, %279 : vector<32x256xf32>
    %cst_107 = arith.constant 0.000000e+00 : f32
    %281 = vector.broadcast %cst_107 : f32 to vector<32x17xf32>
    %282 = vector.extract_strided_slice %280 {offsets = [0, 0], sizes = [32, 239], strides = [1, 1]} : vector<32x256xf32> to vector<32x239xf32>
    %283 = tpu.concatenate %281, %282 in 1 : vector<32x17xf32>, vector<32x239xf32> -> vector<32x256xf32>
    %284 = vector.broadcast %201 : vector<1x256xf32> to vector<32x256xf32>
    %285 = arith.mulf %283, %284 : vector<32x256xf32>
    %cst_108 = arith.constant 0.000000e+00 : f32
    %286 = vector.broadcast %cst_108 : f32 to vector<32x16xf32>
    %287 = vector.extract_strided_slice %280 {offsets = [0, 0], sizes = [32, 240], strides = [1, 1]} : vector<32x256xf32> to vector<32x240xf32>
    %288 = tpu.concatenate %286, %287 in 1 : vector<32x16xf32>, vector<32x240xf32> -> vector<32x256xf32>
    %cst_109 = arith.constant 0.000000e+00 : f32
    %289 = vector.broadcast %cst_109 : f32 to vector<32x15xf32>
    %290 = vector.extract_strided_slice %280 {offsets = [0, 0], sizes = [32, 241], strides = [1, 1]} : vector<32x256xf32> to vector<32x241xf32>
    %291 = tpu.concatenate %289, %290 in 1 : vector<32x15xf32>, vector<32x241xf32> -> vector<32x256xf32>
    %292 = vector.broadcast %205 : vector<1x256xf32> to vector<32x256xf32>
    %293 = arith.mulf %291, %292 : vector<32x256xf32>
    %cst_110 = arith.constant 0.000000e+00 : f32
    %294 = vector.broadcast %cst_110 : f32 to vector<32x1xf32>
    %295 = vector.extract_strided_slice %280 {offsets = [0, 0], sizes = [32, 255], strides = [1, 1]} : vector<32x256xf32> to vector<32x255xf32>
    %296 = tpu.concatenate %294, %295 in 1 : vector<32x1xf32>, vector<32x255xf32> -> vector<32x256xf32>
    %297 = vector.broadcast %201 : vector<1x256xf32> to vector<32x256xf32>
    %298 = arith.mulf %296, %297 : vector<32x256xf32>
    %cst_111 = arith.constant 0.000000e+00 : f32
    %299 = vector.broadcast %cst_111 : f32 to vector<32x1xf32>
    %300 = vector.extract_strided_slice %280 {offsets = [0, 1], sizes = [32, 255], strides = [1, 1]} : vector<32x256xf32> to vector<32x255xf32>
    %301 = tpu.concatenate %300, %299 in 1 : vector<32x255xf32>, vector<32x1xf32> -> vector<32x256xf32>
    %302 = vector.broadcast %205 : vector<1x256xf32> to vector<32x256xf32>
    %303 = arith.mulf %301, %302 : vector<32x256xf32>
    %cst_112 = arith.constant 0.000000e+00 : f32
    %304 = vector.broadcast %cst_112 : f32 to vector<32x15xf32>
    %305 = vector.extract_strided_slice %280 {offsets = [0, 15], sizes = [32, 241], strides = [1, 1]} : vector<32x256xf32> to vector<32x241xf32>
    %306 = tpu.concatenate %305, %304 in 1 : vector<32x241xf32>, vector<32x15xf32> -> vector<32x256xf32>
    %307 = vector.broadcast %201 : vector<1x256xf32> to vector<32x256xf32>
    %308 = arith.mulf %306, %307 : vector<32x256xf32>
    %cst_113 = arith.constant 0.000000e+00 : f32
    %309 = vector.broadcast %cst_113 : f32 to vector<32x16xf32>
    %310 = vector.extract_strided_slice %280 {offsets = [0, 16], sizes = [32, 240], strides = [1, 1]} : vector<32x256xf32> to vector<32x240xf32>
    %311 = tpu.concatenate %310, %309 in 1 : vector<32x240xf32>, vector<32x16xf32> -> vector<32x256xf32>
    %cst_114 = arith.constant 0.000000e+00 : f32
    %312 = vector.broadcast %cst_114 : f32 to vector<32x17xf32>
    %313 = vector.extract_strided_slice %280 {offsets = [0, 17], sizes = [32, 239], strides = [1, 1]} : vector<32x256xf32> to vector<32x239xf32>
    %314 = tpu.concatenate %313, %312 in 1 : vector<32x239xf32>, vector<32x17xf32> -> vector<32x256xf32>
    %315 = vector.broadcast %205 : vector<1x256xf32> to vector<32x256xf32>
    %316 = arith.mulf %314, %315 : vector<32x256xf32>
    %317 = tpu.concatenate %285, %288, %293, %298, %280, %303, %308, %311, %316 in 0 : vector<32x256xf32>, vector<32x256xf32>, vector<32x256xf32>, vector<32x256xf32>, vector<32x256xf32>, vector<32x256xf32>, vector<32x256xf32>, vector<32x256xf32>, vector<32x256xf32> -> vector<288x256xf32>
    %c0_115 = arith.constant 0 : index
    %c0_116 = arith.constant 0 : index
    %318 = vector.load %arg15[%c0_115, %c0_116] : memref<32x288xf32, #tpu.memory_space<vmem>>, vector<32x288xf32>
    %cst_117 = arith.constant dense<0.000000e+00> : vector<32x256xf32>
    %319 = tpu.matmul %318, %317, %cst_117 {dimension_numbers = #tpu.dot_dimension_numbers<[1], [0], [0], [1], [0, 0, 1, 1], [], []>} : vector<32x288xf32>, vector<288x256xf32>, vector<32x256xf32> -> vector<32x256xf32>
    %cst_118 = arith.constant dense<0.000000e+00> : vector<32xf32>
    %320 = vector.multi_reduction <add>, %319, %cst_118 [1] : vector<32x256xf32> to vector<32xf32>
    %321 = vector.shape_cast %320 : vector<32xf32> to vector<32x1xf32>
    %c0_119 = arith.constant 0 : index
    %c0_120 = arith.constant 0 : index
    %322 = vector.load %arg5[%c0_119, %c0_120] : memref<32x32xf32, #tpu.memory_space<vmem>>, vector<32x32xf32>
    %cst_121 = arith.constant dense<0.000000e+00> : vector<32x1xf32>
    %323 = tpu.matmul %322, %321, %cst_121 {dimension_numbers = #tpu.dot_dimension_numbers<[1], [0], [0], [1], [0, 0, 1, 1], [], []>} : vector<32x32xf32>, vector<32x1xf32>, vector<32x1xf32> -> vector<32x1xf32>
    %cst_122 = arith.constant 9.765625E-4 : f32
    %324 = vector.broadcast %cst_122 : f32 to vector<32x1xf32>
    %325 = arith.mulf %323, %324 : vector<32x1xf32>
    %326 = vector.broadcast %325 : vector<32x1xf32> to vector<32x256xf32>
    %327 = arith.subf %319, %326 : vector<32x256xf32>
    %328 = arith.mulf %327, %327 : vector<32x256xf32>
    %cst_123 = arith.constant dense<0.000000e+00> : vector<32xf32>
    %329 = vector.multi_reduction <add>, %328, %cst_123 [1] : vector<32x256xf32> to vector<32xf32>
    %330 = vector.shape_cast %329 : vector<32xf32> to vector<32x1xf32>
    %c0_124 = arith.constant 0 : index
    %c0_125 = arith.constant 0 : index
    %331 = vector.load %arg5[%c0_124, %c0_125] : memref<32x32xf32, #tpu.memory_space<vmem>>, vector<32x32xf32>
    %cst_126 = arith.constant dense<0.000000e+00> : vector<32x1xf32>
    %332 = tpu.matmul %331, %330, %cst_126 {dimension_numbers = #tpu.dot_dimension_numbers<[1], [0], [0], [1], [0, 0, 1, 1], [], []>} : vector<32x32xf32>, vector<32x1xf32>, vector<32x1xf32> -> vector<32x1xf32>
    %cst_127 = arith.constant 9.765625E-4 : f32
    %333 = vector.broadcast %cst_127 : f32 to vector<32x1xf32>
    %334 = arith.mulf %332, %333 : vector<32x1xf32>
    %cst_128 = arith.constant 0.000000e+00 : f32
    %335 = vector.broadcast %cst_128 : f32 to vector<32x1xf32>
    %336 = arith.maximumf %334, %335 : vector<32x1xf32>
    %cst_129 = arith.constant 9.99999974E-6 : f32
    %337 = vector.broadcast %cst_129 : f32 to vector<32x1xf32>
    %338 = arith.addf %336, %337 : vector<32x1xf32>
    %339 = math.rsqrt %338 : vector<32x1xf32>
    %340 = vector.broadcast %339 : vector<32x1xf32> to vector<32x256xf32>
    %341 = arith.mulf %327, %340 : vector<32x256xf32>
    %c0_130 = arith.constant 0 : index
    %c0_131 = arith.constant 0 : index
    %342 = vector.load %arg16[%c0_130, %c0_131] : memref<32x1xf32, #tpu.memory_space<vmem>>, vector<32x1xf32>
    %343 = vector.broadcast %342 : vector<32x1xf32> to vector<32x256xf32>
    %344 = arith.mulf %341, %343 : vector<32x256xf32>
    %c0_132 = arith.constant 0 : index
    %c0_133 = arith.constant 0 : index
    %345 = vector.load %arg17[%c0_132, %c0_133] : memref<32x1xf32, #tpu.memory_space<vmem>>, vector<32x1xf32>
    %346 = vector.broadcast %345 : vector<32x1xf32> to vector<32x256xf32>
    %347 = arith.addf %344, %346 : vector<32x256xf32>
    %cst_134 = arith.constant 5.000000e-01 : f32
    %348 = vector.broadcast %cst_134 : f32 to vector<32x256xf32>
    %349 = arith.mulf %348, %347 : vector<32x256xf32>
    %cst_135 = arith.constant 0.707106769 : f32
    %350 = vector.broadcast %cst_135 : f32 to vector<32x256xf32>
    %351 = arith.mulf %347, %350 : vector<32x256xf32>
    %352 = math.erf %351 : vector<32x256xf32>
    %cst_136 = arith.constant 1.000000e+00 : f32
    %353 = vector.broadcast %cst_136 : f32 to vector<32x256xf32>
    %354 = arith.addf %353, %352 : vector<32x256xf32>
    %355 = arith.mulf %349, %354 : vector<32x256xf32>
    %c0_137 = arith.constant 0 : index
    %c0_138 = arith.constant 0 : index
    %356 = vector.load %arg4[%c0_137, %c0_138] : memref<256x1024xf32, #tpu.memory_space<vmem>>, vector<256x1024xf32>
    %cst_139 = arith.constant dense<0.000000e+00> : vector<32x1024xf32>
    %357 = tpu.matmul %355, %356, %cst_139 {dimension_numbers = #tpu.dot_dimension_numbers<[1], [0], [0], [1], [0, 0, 1, 1], [], []>} : vector<32x256xf32>, vector<256x1024xf32>, vector<32x1024xf32> -> vector<32x1024xf32>
    %358 = tpu.iota {dimensions = array<i32: 1>} : vector<1x1024xi32>
    %c32_i32 = arith.constant 32 : i32
    %c0_i32_140 = arith.constant 0 : i32
    %359 = arith.cmpi eq, %c32_i32, %c0_i32_140 : i32
    %c1_i32_141 = arith.constant 1 : i32
    %360 = arith.select %359, %c1_i32_141, %c32_i32 : i32
    %361 = vector.broadcast %360 : i32 to vector<1x1024xi32>
    %362 = arith.remsi %358, %361 : vector<1x1024xi32>
    %c0_i32_142 = arith.constant 0 : i32
    %363 = vector.broadcast %c0_i32_142 : i32 to vector<1x1024xi32>
    %364 = arith.cmpi ne, %362, %363 : vector<1x1024xi32>
    %c0_i32_143 = arith.constant 0 : i32
    %365 = vector.broadcast %c0_i32_143 : i32 to vector<1x1024xi32>
    %366 = arith.cmpi slt, %362, %365 : vector<1x1024xi32>
    %c0_i32_144 = arith.constant 0 : i32
    %367 = arith.cmpi slt, %360, %c0_i32_144 : i32
    %368 = vector.broadcast %367 : i1 to vector<1x1024xi1>
    %369 = vector.broadcast %368 : vector<1x1024xi1> to vector<1x1024xi1>
    %370 = arith.xori %366, %369 : vector<1x1024xi1>
    %371 = arith.andi %370, %364 : vector<1x1024xi1>
    %372 = vector.broadcast %360 : i32 to vector<1x1024xi32>
    %373 = arith.addi %362, %372 : vector<1x1024xi32>
    %374 = arith.select %371, %373, %362 : vector<1x1024xi1>, vector<1x1024xi32>
    %c1_i32_145 = arith.constant 1 : i32
    %375 = vector.broadcast %c1_i32_145 : i32 to vector<1x1024xi32>
    %376 = arith.cmpi sge, %374, %375 : vector<1x1024xi32>
    %377 = arith.extui %376 : vector<1x1024xi1> to vector<1x1024xi32>
    %378 = arith.sitofp %377 : vector<1x1024xi32> to vector<1x1024xf32>
    %c30_i32 = arith.constant 30 : i32
    %379 = vector.broadcast %c30_i32 : i32 to vector<1x1024xi32>
    %380 = arith.cmpi sle, %374, %379 : vector<1x1024xi32>
    %381 = arith.extui %380 : vector<1x1024xi1> to vector<1x1024xi32>
    %382 = arith.sitofp %381 : vector<1x1024xi32> to vector<1x1024xf32>
    %cst_146 = arith.constant 0.000000e+00 : f32
    %383 = vector.broadcast %cst_146 : f32 to vector<32x33xf32>
    %384 = vector.extract_strided_slice %357 {offsets = [0, 0], sizes = [32, 991], strides = [1, 1]} : vector<32x1024xf32> to vector<32x991xf32>
    %385 = tpu.concatenate %383, %384 in 1 : vector<32x33xf32>, vector<32x991xf32> -> vector<32x1024xf32>
    %386 = vector.broadcast %378 : vector<1x1024xf32> to vector<32x1024xf32>
    %387 = arith.mulf %385, %386 : vector<32x1024xf32>
    %cst_147 = arith.constant 0.000000e+00 : f32
    %388 = vector.broadcast %cst_147 : f32 to vector<32x32xf32>
    %389 = vector.extract_strided_slice %357 {offsets = [0, 0], sizes = [32, 992], strides = [1, 1]} : vector<32x1024xf32> to vector<32x992xf32>
    %390 = tpu.concatenate %388, %389 in 1 : vector<32x32xf32>, vector<32x992xf32> -> vector<32x1024xf32>
    %cst_148 = arith.constant 0.000000e+00 : f32
    %391 = vector.broadcast %cst_148 : f32 to vector<32x31xf32>
    %392 = vector.extract_strided_slice %357 {offsets = [0, 0], sizes = [32, 993], strides = [1, 1]} : vector<32x1024xf32> to vector<32x993xf32>
    %393 = tpu.concatenate %391, %392 in 1 : vector<32x31xf32>, vector<32x993xf32> -> vector<32x1024xf32>
    %394 = vector.broadcast %382 : vector<1x1024xf32> to vector<32x1024xf32>
    %395 = arith.mulf %393, %394 : vector<32x1024xf32>
    %cst_149 = arith.constant 0.000000e+00 : f32
    %396 = vector.broadcast %cst_149 : f32 to vector<32x1xf32>
    %397 = vector.extract_strided_slice %357 {offsets = [0, 0], sizes = [32, 1023], strides = [1, 1]} : vector<32x1024xf32> to vector<32x1023xf32>
    %398 = tpu.concatenate %396, %397 in 1 : vector<32x1xf32>, vector<32x1023xf32> -> vector<32x1024xf32>
    %399 = vector.broadcast %378 : vector<1x1024xf32> to vector<32x1024xf32>
    %400 = arith.mulf %398, %399 : vector<32x1024xf32>
    %cst_150 = arith.constant 0.000000e+00 : f32
    %401 = vector.broadcast %cst_150 : f32 to vector<32x1xf32>
    %402 = vector.extract_strided_slice %357 {offsets = [0, 1], sizes = [32, 1023], strides = [1, 1]} : vector<32x1024xf32> to vector<32x1023xf32>
    %403 = tpu.concatenate %402, %401 in 1 : vector<32x1023xf32>, vector<32x1xf32> -> vector<32x1024xf32>
    %404 = vector.broadcast %382 : vector<1x1024xf32> to vector<32x1024xf32>
    %405 = arith.mulf %403, %404 : vector<32x1024xf32>
    %cst_151 = arith.constant 0.000000e+00 : f32
    %406 = vector.broadcast %cst_151 : f32 to vector<32x31xf32>
    %407 = vector.extract_strided_slice %357 {offsets = [0, 31], sizes = [32, 993], strides = [1, 1]} : vector<32x1024xf32> to vector<32x993xf32>
    %408 = tpu.concatenate %407, %406 in 1 : vector<32x993xf32>, vector<32x31xf32> -> vector<32x1024xf32>
    %409 = vector.broadcast %378 : vector<1x1024xf32> to vector<32x1024xf32>
    %410 = arith.mulf %408, %409 : vector<32x1024xf32>
    %cst_152 = arith.constant 0.000000e+00 : f32
    %411 = vector.broadcast %cst_152 : f32 to vector<32x32xf32>
    %412 = vector.extract_strided_slice %357 {offsets = [0, 32], sizes = [32, 992], strides = [1, 1]} : vector<32x1024xf32> to vector<32x992xf32>
    %413 = tpu.concatenate %412, %411 in 1 : vector<32x992xf32>, vector<32x32xf32> -> vector<32x1024xf32>
    %cst_153 = arith.constant 0.000000e+00 : f32
    %414 = vector.broadcast %cst_153 : f32 to vector<32x33xf32>
    %415 = vector.extract_strided_slice %357 {offsets = [0, 33], sizes = [32, 991], strides = [1, 1]} : vector<32x1024xf32> to vector<32x991xf32>
    %416 = tpu.concatenate %415, %414 in 1 : vector<32x991xf32>, vector<32x33xf32> -> vector<32x1024xf32>
    %417 = vector.broadcast %382 : vector<1x1024xf32> to vector<32x1024xf32>
    %418 = arith.mulf %416, %417 : vector<32x1024xf32>
    %419 = tpu.concatenate %387, %390, %395, %400, %357, %405, %410, %413, %418 in 0 : vector<32x1024xf32>, vector<32x1024xf32>, vector<32x1024xf32>, vector<32x1024xf32>, vector<32x1024xf32>, vector<32x1024xf32>, vector<32x1024xf32>, vector<32x1024xf32>, vector<32x1024xf32> -> vector<288x1024xf32>
    %c0_154 = arith.constant 0 : index
    %c0_155 = arith.constant 0 : index
    %420 = vector.load %arg18[%c0_154, %c0_155] : memref<32x288xf32, #tpu.memory_space<vmem>>, vector<32x288xf32>
    %cst_156 = arith.constant dense<0.000000e+00> : vector<32x1024xf32>
    %421 = tpu.matmul %420, %419, %cst_156 {dimension_numbers = #tpu.dot_dimension_numbers<[1], [0], [0], [1], [0, 0, 1, 1], [], []>} : vector<32x288xf32>, vector<288x1024xf32>, vector<32x1024xf32> -> vector<32x1024xf32>
    %cst_157 = arith.constant dense<0.000000e+00> : vector<32xf32>
    %422 = vector.multi_reduction <add>, %421, %cst_157 [1] : vector<32x1024xf32> to vector<32xf32>
    %423 = vector.shape_cast %422 : vector<32xf32> to vector<32x1xf32>
    %c0_158 = arith.constant 0 : index
    %c0_159 = arith.constant 0 : index
    %424 = vector.load %arg5[%c0_158, %c0_159] : memref<32x32xf32, #tpu.memory_space<vmem>>, vector<32x32xf32>
    %cst_160 = arith.constant dense<0.000000e+00> : vector<32x1xf32>
    %425 = tpu.matmul %424, %423, %cst_160 {dimension_numbers = #tpu.dot_dimension_numbers<[1], [0], [0], [1], [0, 0, 1, 1], [], []>} : vector<32x32xf32>, vector<32x1xf32>, vector<32x1xf32> -> vector<32x1xf32>
    %cst_161 = arith.constant 2.44140625E-4 : f32
    %426 = vector.broadcast %cst_161 : f32 to vector<32x1xf32>
    %427 = arith.mulf %425, %426 : vector<32x1xf32>
    %428 = vector.broadcast %427 : vector<32x1xf32> to vector<32x1024xf32>
    %429 = arith.subf %421, %428 : vector<32x1024xf32>
    %430 = arith.mulf %429, %429 : vector<32x1024xf32>
    %cst_162 = arith.constant dense<0.000000e+00> : vector<32xf32>
    %431 = vector.multi_reduction <add>, %430, %cst_162 [1] : vector<32x1024xf32> to vector<32xf32>
    %432 = vector.shape_cast %431 : vector<32xf32> to vector<32x1xf32>
    %c0_163 = arith.constant 0 : index
    %c0_164 = arith.constant 0 : index
    %433 = vector.load %arg5[%c0_163, %c0_164] : memref<32x32xf32, #tpu.memory_space<vmem>>, vector<32x32xf32>
    %cst_165 = arith.constant dense<0.000000e+00> : vector<32x1xf32>
    %434 = tpu.matmul %433, %432, %cst_165 {dimension_numbers = #tpu.dot_dimension_numbers<[1], [0], [0], [1], [0, 0, 1, 1], [], []>} : vector<32x32xf32>, vector<32x1xf32>, vector<32x1xf32> -> vector<32x1xf32>
    %cst_166 = arith.constant 2.44140625E-4 : f32
    %435 = vector.broadcast %cst_166 : f32 to vector<32x1xf32>
    %436 = arith.mulf %434, %435 : vector<32x1xf32>
    %cst_167 = arith.constant 0.000000e+00 : f32
    %437 = vector.broadcast %cst_167 : f32 to vector<32x1xf32>
    %438 = arith.maximumf %436, %437 : vector<32x1xf32>
    %cst_168 = arith.constant 9.99999974E-6 : f32
    %439 = vector.broadcast %cst_168 : f32 to vector<32x1xf32>
    %440 = arith.addf %438, %439 : vector<32x1xf32>
    %441 = math.rsqrt %440 : vector<32x1xf32>
    %442 = vector.broadcast %441 : vector<32x1xf32> to vector<32x1024xf32>
    %443 = arith.mulf %429, %442 : vector<32x1024xf32>
    %c0_169 = arith.constant 0 : index
    %c0_170 = arith.constant 0 : index
    %444 = vector.load %arg19[%c0_169, %c0_170] : memref<32x1xf32, #tpu.memory_space<vmem>>, vector<32x1xf32>
    %445 = vector.broadcast %444 : vector<32x1xf32> to vector<32x1024xf32>
    %446 = arith.mulf %443, %445 : vector<32x1024xf32>
    %c0_171 = arith.constant 0 : index
    %c0_172 = arith.constant 0 : index
    %447 = vector.load %arg20[%c0_171, %c0_172] : memref<32x1xf32, #tpu.memory_space<vmem>>, vector<32x1xf32>
    %448 = vector.broadcast %447 : vector<32x1xf32> to vector<32x1024xf32>
    %449 = arith.addf %446, %448 : vector<32x1024xf32>
    %cst_173 = arith.constant 5.000000e-01 : f32
    %450 = vector.broadcast %cst_173 : f32 to vector<32x1024xf32>
    %451 = arith.mulf %450, %449 : vector<32x1024xf32>
    %cst_174 = arith.constant 0.707106769 : f32
    %452 = vector.broadcast %cst_174 : f32 to vector<32x1024xf32>
    %453 = arith.mulf %449, %452 : vector<32x1024xf32>
    %454 = math.erf %453 : vector<32x1024xf32>
    %cst_175 = arith.constant 1.000000e+00 : f32
    %455 = vector.broadcast %cst_175 : f32 to vector<32x1024xf32>
    %456 = arith.addf %455, %454 : vector<32x1024xf32>
    %457 = arith.mulf %451, %456 : vector<32x1024xf32>
    %cst_176 = arith.constant 0.000000e+00 : f32
    %458 = vector.broadcast %cst_176 : f32 to vector<32x33xf32>
    %459 = vector.extract_strided_slice %457 {offsets = [0, 0], sizes = [32, 991], strides = [1, 1]} : vector<32x1024xf32> to vector<32x991xf32>
    %460 = tpu.concatenate %458, %459 in 1 : vector<32x33xf32>, vector<32x991xf32> -> vector<32x1024xf32>
    %461 = vector.broadcast %378 : vector<1x1024xf32> to vector<32x1024xf32>
    %462 = arith.mulf %460, %461 : vector<32x1024xf32>
    %cst_177 = arith.constant 0.000000e+00 : f32
    %463 = vector.broadcast %cst_177 : f32 to vector<32x32xf32>
    %464 = vector.extract_strided_slice %457 {offsets = [0, 0], sizes = [32, 992], strides = [1, 1]} : vector<32x1024xf32> to vector<32x992xf32>
    %465 = tpu.concatenate %463, %464 in 1 : vector<32x32xf32>, vector<32x992xf32> -> vector<32x1024xf32>
    %cst_178 = arith.constant 0.000000e+00 : f32
    %466 = vector.broadcast %cst_178 : f32 to vector<32x31xf32>
    %467 = vector.extract_strided_slice %457 {offsets = [0, 0], sizes = [32, 993], strides = [1, 1]} : vector<32x1024xf32> to vector<32x993xf32>
    %468 = tpu.concatenate %466, %467 in 1 : vector<32x31xf32>, vector<32x993xf32> -> vector<32x1024xf32>
    %469 = vector.broadcast %382 : vector<1x1024xf32> to vector<32x1024xf32>
    %470 = arith.mulf %468, %469 : vector<32x1024xf32>
    %cst_179 = arith.constant 0.000000e+00 : f32
    %471 = vector.broadcast %cst_179 : f32 to vector<32x1xf32>
    %472 = vector.extract_strided_slice %457 {offsets = [0, 0], sizes = [32, 1023], strides = [1, 1]} : vector<32x1024xf32> to vector<32x1023xf32>
    %473 = tpu.concatenate %471, %472 in 1 : vector<32x1xf32>, vector<32x1023xf32> -> vector<32x1024xf32>
    %474 = vector.broadcast %378 : vector<1x1024xf32> to vector<32x1024xf32>
    %475 = arith.mulf %473, %474 : vector<32x1024xf32>
    %cst_180 = arith.constant 0.000000e+00 : f32
    %476 = vector.broadcast %cst_180 : f32 to vector<32x1xf32>
    %477 = vector.extract_strided_slice %457 {offsets = [0, 1], sizes = [32, 1023], strides = [1, 1]} : vector<32x1024xf32> to vector<32x1023xf32>
    %478 = tpu.concatenate %477, %476 in 1 : vector<32x1023xf32>, vector<32x1xf32> -> vector<32x1024xf32>
    %479 = vector.broadcast %382 : vector<1x1024xf32> to vector<32x1024xf32>
    %480 = arith.mulf %478, %479 : vector<32x1024xf32>
    %cst_181 = arith.constant 0.000000e+00 : f32
    %481 = vector.broadcast %cst_181 : f32 to vector<32x31xf32>
    %482 = vector.extract_strided_slice %457 {offsets = [0, 31], sizes = [32, 993], strides = [1, 1]} : vector<32x1024xf32> to vector<32x993xf32>
    %483 = tpu.concatenate %482, %481 in 1 : vector<32x993xf32>, vector<32x31xf32> -> vector<32x1024xf32>
    %484 = vector.broadcast %378 : vector<1x1024xf32> to vector<32x1024xf32>
    %485 = arith.mulf %483, %484 : vector<32x1024xf32>
    %cst_182 = arith.constant 0.000000e+00 : f32
    %486 = vector.broadcast %cst_182 : f32 to vector<32x32xf32>
    %487 = vector.extract_strided_slice %457 {offsets = [0, 32], sizes = [32, 992], strides = [1, 1]} : vector<32x1024xf32> to vector<32x992xf32>
    %488 = tpu.concatenate %487, %486 in 1 : vector<32x992xf32>, vector<32x32xf32> -> vector<32x1024xf32>
    %cst_183 = arith.constant 0.000000e+00 : f32
    %489 = vector.broadcast %cst_183 : f32 to vector<32x33xf32>
    %490 = vector.extract_strided_slice %457 {offsets = [0, 33], sizes = [32, 991], strides = [1, 1]} : vector<32x1024xf32> to vector<32x991xf32>
    %491 = tpu.concatenate %490, %489 in 1 : vector<32x991xf32>, vector<32x33xf32> -> vector<32x1024xf32>
    %492 = vector.broadcast %382 : vector<1x1024xf32> to vector<32x1024xf32>
    %493 = arith.mulf %491, %492 : vector<32x1024xf32>
    %494 = tpu.concatenate %462, %465, %470, %475, %457, %480, %485, %488, %493 in 0 : vector<32x1024xf32>, vector<32x1024xf32>, vector<32x1024xf32>, vector<32x1024xf32>, vector<32x1024xf32>, vector<32x1024xf32>, vector<32x1024xf32>, vector<32x1024xf32>, vector<32x1024xf32> -> vector<288x1024xf32>
    %c0_184 = arith.constant 0 : index
    %c0_185 = arith.constant 0 : index
    %495 = vector.load %arg21[%c0_184, %c0_185] : memref<32x288xf32, #tpu.memory_space<vmem>>, vector<32x288xf32>
    %cst_186 = arith.constant dense<0.000000e+00> : vector<32x1024xf32>
    %496 = tpu.matmul %495, %494, %cst_186 {dimension_numbers = #tpu.dot_dimension_numbers<[1], [0], [0], [1], [0, 0, 1, 1], [], []>} : vector<32x288xf32>, vector<288x1024xf32>, vector<32x1024xf32> -> vector<32x1024xf32>
    %cst_187 = arith.constant dense<0.000000e+00> : vector<32xf32>
    %497 = vector.multi_reduction <add>, %496, %cst_187 [1] : vector<32x1024xf32> to vector<32xf32>
    %498 = vector.shape_cast %497 : vector<32xf32> to vector<32x1xf32>
    %c0_188 = arith.constant 0 : index
    %c0_189 = arith.constant 0 : index
    %499 = vector.load %arg5[%c0_188, %c0_189] : memref<32x32xf32, #tpu.memory_space<vmem>>, vector<32x32xf32>
    %cst_190 = arith.constant dense<0.000000e+00> : vector<32x1xf32>
    %500 = tpu.matmul %499, %498, %cst_190 {dimension_numbers = #tpu.dot_dimension_numbers<[1], [0], [0], [1], [0, 0, 1, 1], [], []>} : vector<32x32xf32>, vector<32x1xf32>, vector<32x1xf32> -> vector<32x1xf32>
    %cst_191 = arith.constant 2.44140625E-4 : f32
    %501 = vector.broadcast %cst_191 : f32 to vector<32x1xf32>
    %502 = arith.mulf %500, %501 : vector<32x1xf32>
    %503 = vector.broadcast %502 : vector<32x1xf32> to vector<32x1024xf32>
    %504 = arith.subf %496, %503 : vector<32x1024xf32>
    %505 = arith.mulf %504, %504 : vector<32x1024xf32>
    %cst_192 = arith.constant dense<0.000000e+00> : vector<32xf32>
    %506 = vector.multi_reduction <add>, %505, %cst_192 [1] : vector<32x1024xf32> to vector<32xf32>
    %507 = vector.shape_cast %506 : vector<32xf32> to vector<32x1xf32>
    %c0_193 = arith.constant 0 : index
    %c0_194 = arith.constant 0 : index
    %508 = vector.load %arg5[%c0_193, %c0_194] : memref<32x32xf32, #tpu.memory_space<vmem>>, vector<32x32xf32>
    %cst_195 = arith.constant dense<0.000000e+00> : vector<32x1xf32>
    %509 = tpu.matmul %508, %507, %cst_195 {dimension_numbers = #tpu.dot_dimension_numbers<[1], [0], [0], [1], [0, 0, 1, 1], [], []>} : vector<32x32xf32>, vector<32x1xf32>, vector<32x1xf32> -> vector<32x1xf32>
    %cst_196 = arith.constant 2.44140625E-4 : f32
    %510 = vector.broadcast %cst_196 : f32 to vector<32x1xf32>
    %511 = arith.mulf %509, %510 : vector<32x1xf32>
    %cst_197 = arith.constant 0.000000e+00 : f32
    %512 = vector.broadcast %cst_197 : f32 to vector<32x1xf32>
    %513 = arith.maximumf %511, %512 : vector<32x1xf32>
    %cst_198 = arith.constant 9.99999974E-6 : f32
    %514 = vector.broadcast %cst_198 : f32 to vector<32x1xf32>
    %515 = arith.addf %513, %514 : vector<32x1xf32>
    %516 = math.rsqrt %515 : vector<32x1xf32>
    %517 = vector.broadcast %516 : vector<32x1xf32> to vector<32x1024xf32>
    %518 = arith.mulf %504, %517 : vector<32x1024xf32>
    %c0_199 = arith.constant 0 : index
    %c0_200 = arith.constant 0 : index
    %519 = vector.load %arg22[%c0_199, %c0_200] : memref<32x1xf32, #tpu.memory_space<vmem>>, vector<32x1xf32>
    %520 = vector.broadcast %519 : vector<32x1xf32> to vector<32x1024xf32>
    %521 = arith.mulf %518, %520 : vector<32x1024xf32>
    %c0_201 = arith.constant 0 : index
    %c0_202 = arith.constant 0 : index
    %522 = vector.load %arg23[%c0_201, %c0_202] : memref<32x1xf32, #tpu.memory_space<vmem>>, vector<32x1xf32>
    %523 = vector.broadcast %522 : vector<32x1xf32> to vector<32x1024xf32>
    %524 = arith.addf %521, %523 : vector<32x1024xf32>
    %cst_203 = arith.constant 5.000000e-01 : f32
    %525 = vector.broadcast %cst_203 : f32 to vector<32x1024xf32>
    %526 = arith.mulf %525, %524 : vector<32x1024xf32>
    %cst_204 = arith.constant 0.707106769 : f32
    %527 = vector.broadcast %cst_204 : f32 to vector<32x1024xf32>
    %528 = arith.mulf %524, %527 : vector<32x1024xf32>
    %529 = math.erf %528 : vector<32x1024xf32>
    %cst_205 = arith.constant 1.000000e+00 : f32
    %530 = vector.broadcast %cst_205 : f32 to vector<32x1024xf32>
    %531 = arith.addf %530, %529 : vector<32x1024xf32>
    %532 = arith.mulf %526, %531 : vector<32x1024xf32>
    %c0_206 = arith.constant 0 : index
    %c0_207 = arith.constant 0 : index
    %533 = vector.load %arg24[%c0_206, %c0_207] : memref<1x32xf32, #tpu.memory_space<vmem>>, vector<1x32xf32>
    %cst_208 = arith.constant dense<0.000000e+00> : vector<1x1024xf32>
    %534 = tpu.matmul %533, %532, %cst_208 {dimension_numbers = #tpu.dot_dimension_numbers<[1], [0], [0], [1], [0, 0, 1, 1], [], []>} : vector<1x32xf32>, vector<32x1024xf32>, vector<1x1024xf32> -> vector<1x1024xf32>
    %c0_209 = arith.constant 0 : index
    %c0_210 = arith.constant 0 : index
    %535 = vector.load %arg25[%c0_209, %c0_210] : memref<1x1xf32, #tpu.memory_space<vmem>>, vector<1x1xf32>
    %536 = vector.broadcast %535 : vector<1x1xf32> to vector<1x1024xf32>
    %537 = arith.addf %534, %536 : vector<1x1024xf32>
    %c0_211 = arith.constant 0 : index
    %c0_212 = arith.constant 0 : index
    %c0_213 = arith.constant 0 : index
    %538 = vector.load %arg26[%c0_211, %c0_212, %c0_213] : memref<1x1x1024xf32, #tpu.memory_space<vmem>>, vector<1x1x1024xf32>
    %539 = vector.shape_cast %538 : vector<1x1x1024xf32> to vector<1x1024xf32>
    %540 = vector.shape_cast %537 : vector<1x1024xf32> to vector<1x1x1024xf32>
    tpu.vector_store %arg26[%c0_211, %c0_212, %c0_213], %540 {strides = array<i32>} : memref<1x1x1024xf32, #tpu.memory_space<vmem>>, vector<1x1x1024xf32>,
    return
  }
  func.func @transform_0(%arg0: i32) -> (i32, i32, i32) {
    %c0_i32 = arith.constant 0 : i32
    %c0_i32_0 = arith.constant 0 : i32
    %c0_i32_1 = arith.constant 0 : i32
    return %arg0, %c0_i32, %c0_i32_0 : i32, i32, i32
  }
  func.func @transform_1(%arg0: i32) -> (i32, i32) {
    %c0_i32 = arith.constant 0 : i32
    %c0_i32_0 = arith.constant 0 : i32
    %c0_i32_1 = arith.constant 0 : i32
    return %c0_i32, %c0_i32_0 : i32, i32
  }
  func.func @transform_2(%arg0: i32) -> (i32, i32) {
    %c0_i32 = arith.constant 0 : i32
    %c0_i32_0 = arith.constant 0 : i32
    %c0_i32_1 = arith.constant 0 : i32
    return %c0_i32, %c0_i32_0 : i32, i32
  }
  func.func @transform_3(%arg0: i32) -> (i32, i32) {
    %c0_i32 = arith.constant 0 : i32
    %c0_i32_0 = arith.constant 0 : i32
    %c0_i32_1 = arith.constant 0 : i32
    return %c0_i32, %c0_i32_0 : i32, i32
  }
  func.func @transform_4(%arg0: i32) -> (i32, i32) {
    %c0_i32 = arith.constant 0 : i32
    %c0_i32_0 = arith.constant 0 : i32
    %c0_i32_1 = arith.constant 0 : i32
    return %c0_i32, %c0_i32_0 : i32, i32
  }
  func.func @transform_5(%arg0: i32) -> (i32, i32) {
    %c0_i32 = arith.constant 0 : i32
    %c0_i32_0 = arith.constant 0 : i32
    %c0_i32_1 = arith.constant 0 : i32
    return %c0_i32, %c0_i32_0 : i32, i32
  }
  func.func @transform_6(%arg0: i32) -> (i32, i32) {
    %c0_i32 = arith.constant 0 : i32
    %c0_i32_0 = arith.constant 0 : i32
    %c0_i32_1 = arith.constant 0 : i32
    return %c0_i32, %c0_i32_0 : i32, i32
  }
  func.func @transform_7(%arg0: i32) -> (i32, i32) {
    %c0_i32 = arith.constant 0 : i32
    %c0_i32_0 = arith.constant 0 : i32
    %c0_i32_1 = arith.constant 0 : i32
    return %c0_i32, %c0_i32_0 : i32, i32
  }
  func.func @transform_8(%arg0: i32) -> (i32, i32) {
    %c0_i32 = arith.constant 0 : i32
    %c0_i32_0 = arith.constant 0 : i32
    %c0_i32_1 = arith.constant 0 : i32
    return %c0_i32, %c0_i32_0 : i32, i32
  }
  func.func @transform_9(%arg0: i32) -> (i32, i32) {
    %c0_i32 = arith.constant 0 : i32
    %c0_i32_0 = arith.constant 0 : i32
    %c0_i32_1 = arith.constant 0 : i32
    return %c0_i32, %c0_i32_0 : i32, i32
  }
  func.func @transform_10(%arg0: i32) -> (i32, i32) {
    %c0_i32 = arith.constant 0 : i32
    %c0_i32_0 = arith.constant 0 : i32
    %c0_i32_1 = arith.constant 0 : i32
    return %c0_i32, %c0_i32_0 : i32, i32
  }
  func.func @transform_11(%arg0: i32) -> (i32, i32) {
    %c0_i32 = arith.constant 0 : i32
    %c0_i32_0 = arith.constant 0 : i32
    %c0_i32_1 = arith.constant 0 : i32
    return %c0_i32, %c0_i32_0 : i32, i32
  }
  func.func @transform_12(%arg0: i32) -> (i32, i32) {
    %c0_i32 = arith.constant 0 : i32
    %c0_i32_0 = arith.constant 0 : i32
    %c0_i32_1 = arith.constant 0 : i32
    return %c0_i32, %c0_i32_0 : i32, i32
  }
  func.func @transform_13(%arg0: i32) -> (i32, i32) {
    %c0_i32 = arith.constant 0 : i32
    %c0_i32_0 = arith.constant 0 : i32
    %c0_i32_1 = arith.constant 0 : i32
    return %c0_i32, %c0_i32_0 : i32, i32
  }
  func.func @transform_14(%arg0: i32) -> (i32, i32) {
    %c0_i32 = arith.constant 0 : i32
    %c0_i32_0 = arith.constant 0 : i32
    %c0_i32_1 = arith.constant 0 : i32
    return %c0_i32, %c0_i32_0 : i32, i32
  }
  func.func @transform_15(%arg0: i32) -> (i32, i32) {
    %c0_i32 = arith.constant 0 : i32
    %c0_i32_0 = arith.constant 0 : i32
    %c0_i32_1 = arith.constant 0 : i32
    return %c0_i32, %c0_i32_0 : i32, i32
  }
  func.func @transform_16(%arg0: i32) -> (i32, i32) {
    %c0_i32 = arith.constant 0 : i32
    %c0_i32_0 = arith.constant 0 : i32
    %c0_i32_1 = arith.constant 0 : i32
    return %c0_i32, %c0_i32_0 : i32, i32
  }
  func.func @transform_17(%arg0: i32) -> (i32, i32) {
    %c0_i32 = arith.constant 0 : i32
    %c0_i32_0 = arith.constant 0 : i32
    %c0_i32_1 = arith.constant 0 : i32
    return %c0_i32, %c0_i32_0 : i32, i32
  }
  func.func @transform_18(%arg0: i32) -> (i32, i32) {
    %c0_i32 = arith.constant 0 : i32
    %c0_i32_0 = arith.constant 0 : i32
    %c0_i32_1 = arith.constant 0 : i32
    return %c0_i32, %c0_i32_0 : i32, i32
  }
  func.func @transform_19(%arg0: i32) -> (i32, i32) {
    %c0_i32 = arith.constant 0 : i32
    %c0_i32_0 = arith.constant 0 : i32
    %c0_i32_1 = arith.constant 0 : i32
    return %c0_i32, %c0_i32_0 : i32, i32
  }
  func.func @transform_20(%arg0: i32) -> (i32, i32) {
    %c0_i32 = arith.constant 0 : i32
    %c0_i32_0 = arith.constant 0 : i32
    %c0_i32_1 = arith.constant 0 : i32
    return %c0_i32, %c0_i32_0 : i32, i32
  }
  func.func @transform_21(%arg0: i32) -> (i32, i32) {
    %c0_i32 = arith.constant 0 : i32
    %c0_i32_0 = arith.constant 0 : i32
    %c0_i32_1 = arith.constant 0 : i32
    return %c0_i32, %c0_i32_0 : i32, i32
  }
  func.func @transform_22(%arg0: i32) -> (i32, i32) {
    %c0_i32 = arith.constant 0 : i32
    %c0_i32_0 = arith.constant 0 : i32
    %c0_i32_1 = arith.constant 0 : i32
    return %c0_i32, %c0_i32_0 : i32, i32
  }
  func.func @transform_23(%arg0: i32) -> (i32, i32) {
    %c0_i32 = arith.constant 0 : i32
    %c0_i32_0 = arith.constant 0 : i32
    %c0_i32_1 = arith.constant 0 : i32
    return %c0_i32, %c0_i32_0 : i32, i32
  }
  func.func @transform_24(%arg0: i32) -> (i32, i32) {
    %c0_i32 = arith.constant 0 : i32
    %c0_i32_0 = arith.constant 0 : i32
    %c0_i32_1 = arith.constant 0 : i32
    return %c0_i32, %c0_i32_0 : i32, i32
  }
  func.func @transform_25(%arg0: i32) -> (i32, i32, i32) {
    %c0_i32 = arith.constant 0 : i32
    %c0_i32_0 = arith.constant 0 : i32
    %c0_i32_1 = arith.constant 0 : i32
    return %arg0, %c0_i32, %c0_i32_0 : i32, i32, i32
  }
}

</mosaic_0001>

<llo_original>
// kernel: _lambda_.1
$region0: #{_lambda_.1}
  #allocation0 [shape = 'u32[]', space=smem, size = 0x4, offset = 0x4, fixed_abs, tag = 'smem constant byte address 0x4 - core index']
  #allocation1 [shape = 'u32[144,128]{1,0:T(1,128)}', space=vmem, size = 0x12000, scoped, tag = 'internal scratch']
  #allocation2 [shape = 'f32[1,1]{1,0:T(1,128)S(1)}', space=vmem, size = 0x200, scoped, tag = 'scoped memory for _lambda_.1']
  %s0 = inlined_call_operand.vmem [shape: f32[2,16,16], index: 0, kind: input, shape index: {}]
  %s1 = inlined_call_operand.vmem [shape: f32[16,64], index: 1, kind: input, shape index: {}]
  %s2 = inlined_call_operand.vmem [shape: f32[64,256], index: 2, kind: input, shape index: {}]
  %s3 = inlined_call_operand.vmem [shape: f32[256,1024], index: 3, kind: input, shape index: {}]
  %s4 = inlined_call_operand.vmem [shape: f32[32,32], index: 4, kind: input, shape index: {}]
  %s5 = inlined_call_operand.vmem [shape: f32[32,144], index: 5, kind: input, shape index: {}]
  %s6 = inlined_call_operand.vmem [shape: f32[32,1], index: 6, kind: input, shape index: {}]
  %s7 = inlined_call_operand.vmem [shape: f32[32,1], index: 7, kind: input, shape index: {}]
  %s8 = inlined_call_operand.vmem [shape: f32[32,288], index: 8, kind: input, shape index: {}]
  %s9 = inlined_call_operand.vmem [shape: f32[32,1], index: 9, kind: input, shape index: {}]
  %s10 = inlined_call_operand.vmem [shape: f32[32,1], index: 10, kind: input, shape index: {}]
  %s11 = inlined_call_operand.vmem [shape: f32[32,288], index: 11, kind: input, shape index: {}]
  %s12 = inlined_call_operand.vmem [shape: f32[32,1], index: 12, kind: input, shape index: {}]
  %s13 = inlined_call_operand.vmem [shape: f32[32,1], index: 13, kind: input, shape index: {}]
  %s14 = inlined_call_operand.vmem [shape: f32[32,288], index: 14, kind: input, shape index: {}]
  %s15 = inlined_call_operand.vmem [shape: f32[32,1], index: 15, kind: input, shape index: {}]
  %s16 = inlined_call_operand.vmem [shape: f32[32,1], index: 16, kind: input, shape index: {}]
  %s17 = inlined_call_operand.vmem [shape: f32[32,288], index: 17, kind: input, shape index: {}]
  %s18 = inlined_call_operand.vmem [shape: f32[32,1], index: 18, kind: input, shape index: {}]
  %s19 = inlined_call_operand.vmem [shape: f32[32,1], index: 19, kind: input, shape index: {}]
  %s20 = inlined_call_operand.vmem [shape: f32[32,288], index: 20, kind: input, shape index: {}]
  %s21 = inlined_call_operand.vmem [shape: f32[32,1], index: 21, kind: input, shape index: {}]
  %s22 = inlined_call_operand.vmem [shape: f32[32,1], index: 22, kind: input, shape index: {}]
  %s23 = inlined_call_operand.vmem [shape: f32[1,32], index: 23, kind: input, shape index: {}]
  %s24 = inlined_call_operand.<no memory space> [shape: f32[1,1], index: 24, kind: input, shape index: {}]
  %s25 = inlined_call_operand.vmem [shape: f32[2,1,1024], index: 25, kind: output, shape index: {}]
  %s26 = sld [smem:[#allocation0]]
  $region133: #{_lambda_.1} parent=0
    _
  %s28 = ssub.s32 1, %s26
  %s29 = scalar_select 0, %s28, %s26
  %v30 = vstv %s24
  %31 = vst [vmem:[#allocation2] sm:$0x1] %v30
  loop: start=0, step=1, limit=4
  $region2: #{_lambda_.1} parent=0 // loop_pre_header
    _
  $region3: #{_lambda_.1} parent=0 // loop_header
    %s33 = sphi 0, %s37
    %p34 = scmp.ge.s32.totalorder %s33, 4
    %s43 = sphi 0, %s45
    %s46 = sphi 0, %s43
    %s47 = sphi 0, %s46
    %s63 = sphi 0, %s47
    %s67 = sphi 0, %s67
    %s69 = sphi 0, %s67
    %s70 = sphi 0, %s69
    %s84 = sphi 0, %s70
    %s88 = sphi 0, %s88
    %s90 = sphi 0, %s88
    %s91 = sphi 0, %s90
    %s105 = sphi 0, %s91
    %s109 = sphi 0, %s109
    %s111 = sphi 0, %s109
    %s112 = sphi 0, %s111
    %s126 = sphi 0, %s112
    %s130 = sphi 0, %s130
    %s132 = sphi 0, %s130
    %s133 = sphi 0, %s132
    %s147 = sphi 0, %s133
    %s151 = sphi 0, %s151
    %s153 = sphi 0, %s151
    %s154 = sphi 0, %s153
    %s168 = sphi 0, %s154
    %s172 = sphi 0, %s172
    %s174 = sphi 0, %s172
    %s175 = sphi 0, %s174
    %s189 = sphi 0, %s175
    %s193 = sphi 0, %s193
    %s195 = sphi 0, %s193
    %s196 = sphi 0, %s195
    %s210 = sphi 0, %s196
    %s214 = sphi 0, %s214
    %s216 = sphi 0, %s214
    %s217 = sphi 0, %s216
    %s231 = sphi 0, %s217
    %s235 = sphi 0, %s235
    %s237 = sphi 0, %s235
    %s238 = sphi 0, %s237
    %s252 = sphi 0, %s238
    %s256 = sphi 0, %s256
    %s258 = sphi 0, %s256
    %s259 = sphi 0, %s258
    %s273 = sphi 0, %s259
    %s277 = sphi 0, %s277
    %s279 = sphi 0, %s277
    %s280 = sphi 0, %s279
    %s294 = sphi 0, %s280
    %s298 = sphi 0, %s298
    %s300 = sphi 0, %s298
    %s301 = sphi 0, %s300
    %s315 = sphi 0, %s301
    %s319 = sphi 0, %s319
    %s321 = sphi 0, %s319
    %s322 = sphi 0, %s321
    %s336 = sphi 0, %s322
    %s340 = sphi 0, %s340
    %s342 = sphi 0, %s340
    %s343 = sphi 0, %s342
    %s357 = sphi 0, %s343
    %s361 = sphi 0, %s361
    %s363 = sphi 0, %s361
    %s364 = sphi 0, %s363
    %s378 = sphi 0, %s364
    %s382 = sphi 0, %s382
    %s384 = sphi 0, %s382
    %s385 = sphi 0, %s384
    %s399 = sphi 0, %s385
    %s403 = sphi 0, %s403
    %s405 = sphi 0, %s403
    %s406 = sphi 0, %s405
    %s420 = sphi 0, %s406
    %s424 = sphi 0, %s424
    %s426 = sphi 0, %s424
    %s427 = sphi 0, %s426
    %s441 = sphi 0, %s427
    %s445 = sphi 0, %s445
    %s447 = sphi 0, %s445
    %s448 = sphi 0, %s447
    %s462 = sphi 0, %s448
    %s466 = sphi 0, %s466
    %s468 = sphi 0, %s466
    %s469 = sphi 0, %s468
    %s483 = sphi 0, %s469
    %s487 = sphi 0, %s487
    %s489 = sphi 0, %s487
    %s490 = sphi 0, %s489
    %s504 = sphi 0, %s490
    %s508 = sphi 0, %s508
    %s510 = sphi 0, %s508
    %s511 = sphi 0, %s510
    %s525 = sphi 0, %s511
    %s529 = sphi 0, %s529
    %s531 = sphi 0, %s529
    %s532 = sphi 0, %s531
    %s546 = sphi 0, %s532
    %s550 = sphi 0, %s550
    %s552 = sphi 0, %s550
    %s553 = sphi 0, %s552
    %s567 = sphi 0, %s553
    %s573 = sphi 0, %s575
    %s576 = sphi 0, %s573
    %s577 = sphi 0, %s576
    %s593 = sphi 0, %s577
  $region4: #{_lambda_.1} parent=0 // loop_header_branch
    %36 = sbr.rel (%p34) target = $region8
  $region5: #{_lambda_.1} parent=0 // loop_body
    %s38 = ssub.s32 %s33, 1
    %s39 = ssub.s32 %s33, 2
    %s40 = sadd.s32 %s33, 1
    %s41 = ssub.s32 %s33, %s40
    %p42 = scmp.eq.s32.totalorder %s41, 0
    %s44 = sadd.s32 %s43, 1
    %s45 = scalar_select %p42, %s43, %s44
    %p48 = pneg %p42
    %p49 = scmp.eq.s32.totalorder %s33, 1
    %p50 = por %p48, %p49
    %p51 = scmp.ne.s32.totalorder %s43, %s46
    %p52 = scmp.eq.s32.totalorder %s33, 0
    %p53 = por %p51, %p52
    %p54 = scmp.ne.s32.totalorder %s43, %s46
    %p55 = scmp.eq.s32.totalorder %s38, 1
    %p56 = por %p54, %p55
    %p57 = scmp.ne.s32.totalorder %s46, %s47
    %p58 = scmp.eq.s32.totalorder %s38, 0
    %p59 = por %p57, %p58
    %p60 = scmp.ne.s32.totalorder %s46, %s47
    %p61 = scmp.eq.s32.totalorder %s39, 1
    %p62 = por %p60, %p61
    %p64 = scmp.ne.s32.totalorder %s47, %s63
    %p65 = scmp.eq.s32.totalorder %s39, 0
    %p66 = por %p64, %p65
    %s68 = sadd.s32 %s67, 1
    %p71 = scmp.eq.s32.totalorder %s33, 1
    %p72 = scmp.ne.s32.totalorder %s67, %s69
    %p73 = scmp.eq.s32.totalorder %s33, 0
    %p74 = por %p72, %p73
    %p75 = scmp.ne.s32.totalorder %s67, %s69
    %p76 = scmp.eq.s32.totalorder %s38, 1
    %p77 = por %p75, %p76
    %p78 = scmp.ne.s32.totalorder %s69, %s70
    %p79 = scmp.eq.s32.totalorder %s38, 0
    %p80 = por %p78, %p79
    %p81 = scmp.ne.s32.totalorder %s69, %s70
    %p82 = scmp.eq.s32.totalorder %s39, 1
    %p83 = por %p81, %p82
    %p85 = scmp.ne.s32.totalorder %s70, %s84
    %p86 = scmp.eq.s32.totalorder %s39, 0
    %p87 = por %p85, %p86
    %s89 = sadd.s32 %s88, 1
    %p92 = scmp.eq.s32.totalorder %s33, 1
    %p93 = scmp.ne.s32.totalorder %s88, %s90
    %p94 = scmp.eq.s32.totalorder %s33, 0
    %p95 = por %p93, %p94
    %p96 = scmp.ne.s32.totalorder %s88, %s90
    %p97 = scmp.eq.s32.totalorder %s38, 1
    %p98 = por %p96, %p97
    %p99 = scmp.ne.s32.totalorder %s90, %s91
    %p100 = scmp.eq.s32.totalorder %s38, 0
    %p101 = por %p99, %p100
    %p102 = scmp.ne.s32.totalorder %s90, %s91
    %p103 = scmp.eq.s32.totalorder %s39, 1
    %p104 = por %p102, %p103
    %p106 = scmp.ne.s32.totalorder %s91, %s105
    %p107 = scmp.eq.s32.totalorder %s39, 0
    %p108 = por %p106, %p107
    %s110 = sadd.s32 %s109, 1
    %p113 = scmp.eq.s32.totalorder %s33, 1
    %p114 = scmp.ne.s32.totalorder %s109, %s111
    %p115 = scmp.eq.s32.totalorder %s33, 0
    %p116 = por %p114, %p115
    %p117 = scmp.ne.s32.totalorder %s109, %s111
    %p118 = scmp.eq.s32.totalorder %s38, 1
    %p119 = por %p117, %p118
    %p120 = scmp.ne.s32.totalorder %s111, %s112
    %p121 = scmp.eq.s32.totalorder %s38, 0
    %p122 = por %p120, %p121
    %p123 = scmp.ne.s32.totalorder %s111, %s112
    %p124 = scmp.eq.s32.totalorder %s39, 1
    %p125 = por %p123, %p124
    %p127 = scmp.ne.s32.totalorder %s112, %s126
    %p128 = scmp.eq.s32.totalorder %s39, 0
    %p129 = por %p127, %p128
    %s131 = sadd.s32 %s130, 1
    %p134 = scmp.eq.s32.totalorder %s33, 1
    %p135 = scmp.ne.s32.totalorder %s130, %s132
    %p136 = scmp.eq.s32.totalorder %s33, 0
    %p137 = por %p135, %p136
    %p138 = scmp.ne.s32.totalorder %s130, %s132
    %p139 = scmp.eq.s32.totalorder %s38, 1
    %p140 = por %p138, %p139
    %p141 = scmp.ne.s32.totalorder %s132, %s133
    %p142 = scmp.eq.s32.totalorder %s38, 0
    %p143 = por %p141, %p142
    %p144 = scmp.ne.s32.totalorder %s132, %s133
    %p145 = scmp.eq.s32.totalorder %s39, 1
    %p146 = por %p144, %p145
    %p148 = scmp.ne.s32.totalorder %s133, %s147
    %p149 = scmp.eq.s32.totalorder %s39, 0
    %p150 = por %p148, %p149
    %s152 = sadd.s32 %s151, 1
    %p155 = scmp.eq.s32.totalorder %s33, 1
    %p156 = scmp.ne.s32.totalorder %s151, %s153
    %p157 = scmp.eq.s32.totalorder %s33, 0
    %p158 = por %p156, %p157
    %p159 = scmp.ne.s32.totalorder %s151, %s153
    %p160 = scmp.eq.s32.totalorder %s38, 1
    %p161 = por %p159, %p160
    %p162 = scmp.ne.s32.totalorder %s153, %s154
    %p163 = scmp.eq.s32.totalorder %s38, 0
    %p164 = por %p162, %p163
    %p165 = scmp.ne.s32.totalorder %s153, %s154
    %p166 = scmp.eq.s32.totalorder %s39, 1
    %p167 = por %p165, %p166
    %p169 = scmp.ne.s32.totalorder %s154, %s168
    %p170 = scmp.eq.s32.totalorder %s39, 0
    %p171 = por %p169, %p170
    %s173 = sadd.s32 %s172, 1
    %p176 = scmp.eq.s32.totalorder %s33, 1
    %p177 = scmp.ne.s32.totalorder %s172, %s174
    %p178 = scmp.eq.s32.totalorder %s33, 0
    %p179 = por %p177, %p178
    %p180 = scmp.ne.s32.totalorder %s172, %s174
    %p181 = scmp.eq.s32.totalorder %s38, 1
    %p182 = por %p180, %p181
    %p183 = scmp.ne.s32.totalorder %s174, %s175
    %p184 = scmp.eq.s32.totalorder %s38, 0
    %p185 = por %p183, %p184
    %p186 = scmp.ne.s32.totalorder %s174, %s175
    %p187 = scmp.eq.s32.totalorder %s39, 1
    %p188 = por %p186, %p187
    %p190 = scmp.ne.s32.totalorder %s175, %s189
    %p191 = scmp.eq.s32.totalorder %s39, 0
    %p192 = por %p190, %p191
    %s194 = sadd.s32 %s193, 1
    %p197 = scmp.eq.s32.totalorder %s33, 1
    %p198 = scmp.ne.s32.totalorder %s193, %s195
    %p199 = scmp.eq.s32.totalorder %s33, 0
    %p200 = por %p198, %p199
    %p201 = scmp.ne.s32.totalorder %s193, %s195
    %p202 = scmp.eq.s32.totalorder %s38, 1
    %p203 = por %p201, %p202
    %p204 = scmp.ne.s32.totalorder %s195, %s196
    %p205 = scmp.eq.s32.totalorder %s38, 0
    %p206 = por %p204, %p205
    %p207 = scmp.ne.s32.totalorder %s195, %s196
    %p208 = scmp.eq.s32.totalorder %s39, 1
    %p209 = por %p207, %p208
    %p211 = scmp.ne.s32.totalorder %s196, %s210
    %p212 = scmp.eq.s32.totalorder %s39, 0
    %p213 = por %p211, %p212
    %s215 = sadd.s32 %s214, 1
    %p218 = scmp.eq.s32.totalorder %s33, 1
    %p219 = scmp.ne.s32.totalorder %s214, %s216
    %p220 = scmp.eq.s32.totalorder %s33, 0
    %p221 = por %p219, %p220
    %p222 = scmp.ne.s32.totalorder %s214, %s216
    %p223 = scmp.eq.s32.totalorder %s38, 1
    %p224 = por %p222, %p223
    %p225 = scmp.ne.s32.totalorder %s216, %s217
    %p226 = scmp.eq.s32.totalorder %s38, 0
    %p227 = por %p225, %p226
    %p228 = scmp.ne.s32.totalorder %s216, %s217
    %p229 = scmp.eq.s32.totalorder %s39, 1
    %p230 = por %p228, %p229
    %p232 = scmp.ne.s32.totalorder %s217, %s231
    %p233 = scmp.eq.s32.totalorder %s39, 0
    %p234 = por %p232, %p233
    %s236 = sadd.s32 %s235, 1
    %p239 = scmp.eq.s32.totalorder %s33, 1
    %p240 = scmp.ne.s32.totalorder %s235, %s237
    %p241 = scmp.eq.s32.totalorder %s33, 0
    %p242 = por %p240, %p241
    %p243 = scmp.ne.s32.totalorder %s235, %s237
    %p244 = scmp.eq.s32.totalorder %s38, 1
    %p245 = por %p243, %p244
    %p246 = scmp.ne.s32.totalorder %s237, %s238
    %p247 = scmp.eq.s32.totalorder %s38, 0
    %p248 = por %p246, %p247
    %p249 = scmp.ne.s32.totalorder %s237, %s238
    %p250 = scmp.eq.s32.totalorder %s39, 1
    %p251 = por %p249, %p250
    %p253 = scmp.ne.s32.totalorder %s238, %s252
    %p254 = scmp.eq.s32.totalorder %s39, 0
    %p255 = por %p253, %p254
    %s257 = sadd.s32 %s256, 1
    %p260 = scmp.eq.s32.totalorder %s33, 1
    %p261 = scmp.ne.s32.totalorder %s256, %s258
    %p262 = scmp.eq.s32.totalorder %s33, 0
    %p263 = por %p261, %p262
    %p264 = scmp.ne.s32.totalorder %s256, %s258
    %p265 = scmp.eq.s32.totalorder %s38, 1
    %p266 = por %p264, %p265
    %p267 = scmp.ne.s32.totalorder %s258, %s259
    %p268 = scmp.eq.s32.totalorder %s38, 0
    %p269 = por %p267, %p268
    %p270 = scmp.ne.s32.totalorder %s258, %s259
    %p271 = scmp.eq.s32.totalorder %s39, 1
    %p272 = por %p270, %p271
    %p274 = scmp.ne.s32.totalorder %s259, %s273
    %p275 = scmp.eq.s32.totalorder %s39, 0
    %p276 = por %p274, %p275
    %s278 = sadd.s32 %s277, 1
    %p281 = scmp.eq.s32.totalorder %s33, 1
    %p282 = scmp.ne.s32.totalorder %s277, %s279
    %p283 = scmp.eq.s32.totalorder %s33, 0
    %p284 = por %p282, %p283
    %p285 = scmp.ne.s32.totalorder %s277, %s279
    %p286 = scmp.eq.s32.totalorder %s38, 1
    %p287 = por %p285, %p286
    %p288 = scmp.ne.s32.totalorder %s279, %s280
    %p289 = scmp.eq.s32.totalorder %s38, 0
    %p290 = por %p288, %p289
    %p291 = scmp.ne.s32.totalorder %s279, %s280
    %p292 = scmp.eq.s32.totalorder %s39, 1
    %p293 = por %p291, %p292
    %p295 = scmp.ne.s32.totalorder %s280, %s294
    %p296 = scmp.eq.s32.totalorder %s39, 0
    %p297 = por %p295, %p296
    %s299 = sadd.s32 %s298, 1
    %p302 = scmp.eq.s32.totalorder %s33, 1
    %p303 = scmp.ne.s32.totalorder %s298, %s300
    %p304 = scmp.eq.s32.totalorder %s33, 0
    %p305 = por %p303, %p304
    %p306 = scmp.ne.s32.totalorder %s298, %s300
    %p307 = scmp.eq.s32.totalorder %s38, 1
    %p308 = por %p306, %p307
    %p309 = scmp.ne.s32.totalorder %s300, %s301
    %p310 = scmp.eq.s32.totalorder %s38, 0
    %p311 = por %p309, %p310
    %p312 = scmp.ne.s32.totalorder %s300, %s301
    %p313 = scmp.eq.s32.totalorder %s39, 1
    %p314 = por %p312, %p313
    %p316 = scmp.ne.s32.totalorder %s301, %s315
    %p317 = scmp.eq.s32.totalorder %s39, 0
    %p318 = por %p316, %p317
    %s320 = sadd.s32 %s319, 1
    %p323 = scmp.eq.s32.totalorder %s33, 1
    %p324 = scmp.ne.s32.totalorder %s319, %s321
    %p325 = scmp.eq.s32.totalorder %s33, 0
    %p326 = por %p324, %p325
    %p327 = scmp.ne.s32.totalorder %s319, %s321
    %p328 = scmp.eq.s32.totalorder %s38, 1
    %p329 = por %p327, %p328
    %p330 = scmp.ne.s32.totalorder %s321, %s322
    %p331 = scmp.eq.s32.totalorder %s38, 0
    %p332 = por %p330, %p331
    %p333 = scmp.ne.s32.totalorder %s321, %s322
    %p334 = scmp.eq.s32.totalorder %s39, 1
    %p335 = por %p333, %p334
    %p337 = scmp.ne.s32.totalorder %s322, %s336
    %p338 = scmp.eq.s32.totalorder %s39, 0
    %p339 = por %p337, %p338
    %s341 = sadd.s32 %s340, 1
    %p344 = scmp.eq.s32.totalorder %s33, 1
    %p345 = scmp.ne.s32.totalorder %s340, %s342
    %p346 = scmp.eq.s32.totalorder %s33, 0
    %p347 = por %p345, %p346
    %p348 = scmp.ne.s32.totalorder %s340, %s342
    %p349 = scmp.eq.s32.totalorder %s38, 1
    %p350 = por %p348, %p349
    %p351 = scmp.ne.s32.totalorder %s342, %s343
    %p352 = scmp.eq.s32.totalorder %s38, 0
    %p353 = por %p351, %p352
    %p354 = scmp.ne.s32.totalorder %s342, %s343
    %p355 = scmp.eq.s32.totalorder %s39, 1
    %p356 = por %p354, %p355
    %p358 = scmp.ne.s32.totalorder %s343, %s357
    %p359 = scmp.eq.s32.totalorder %s39, 0
    %p360 = por %p358, %p359
    %s362 = sadd.s32 %s361, 1
    %p365 = scmp.eq.s32.totalorder %s33, 1
    %p366 = scmp.ne.s32.totalorder %s361, %s363
    %p367 = scmp.eq.s32.totalorder %s33, 0
    %p368 = por %p366, %p367
    %p369 = scmp.ne.s32.totalorder %s361, %s363
    %p370 = scmp.eq.s32.totalorder %s38, 1
    %p371 = por %p369, %p370
    %p372 = scmp.ne.s32.totalorder %s363, %s364
    %p373 = scmp.eq.s32.totalorder %s38, 0
    %p374 = por %p372, %p373
    %p375 = scmp.ne.s32.totalorder %s363, %s364
    %p376 = scmp.eq.s32.totalorder %s39, 1
    %p377 = por %p375, %p376
    %p379 = scmp.ne.s32.totalorder %s364, %s378
    %p380 = scmp.eq.s32.totalorder %s39, 0
    %p381 = por %p379, %p380
    %s383 = sadd.s32 %s382, 1
    %p386 = scmp.eq.s32.totalorder %s33, 1
    %p387 = scmp.ne.s32.totalorder %s382, %s384
    %p388 = scmp.eq.s32.totalorder %s33, 0
    %p389 = por %p387, %p388
    %p390 = scmp.ne.s32.totalorder %s382, %s384
    %p391 = scmp.eq.s32.totalorder %s38, 1
    %p392 = por %p390, %p391
    %p393 = scmp.ne.s32.totalorder %s384, %s385
    %p394 = scmp.eq.s32.totalorder %s38, 0
    %p395 = por %p393, %p394
    %p396 = scmp.ne.s32.totalorder %s384, %s385
    %p397 = scmp.eq.s32.totalorder %s39, 1
    %p398 = por %p396, %p397
    %p400 = scmp.ne.s32.totalorder %s385, %s399
    %p401 = scmp.eq.s32.totalorder %s39, 0
    %p402 = por %p400, %p401
    %s404 = sadd.s32 %s403, 1
    %p407 = scmp.eq.s32.totalorder %s33, 1
    %p408 = scmp.ne.s32.totalorder %s403, %s405
    %p409 = scmp.eq.s32.totalorder %s33, 0
    %p410 = por %p408, %p409
    %p411 = scmp.ne.s32.totalorder %s403, %s405
    %p412 = scmp.eq.s32.totalorder %s38, 1
    %p413 = por %p411, %p412
    %p414 = scmp.ne.s32.totalorder %s405, %s406
    %p415 = scmp.eq.s32.totalorder %s38, 0
    %p416 = por %p414, %p415
    %p417 = scmp.ne.s32.totalorder %s405, %s406
    %p418 = scmp.eq.s32.totalorder %s39, 1
    %p419 = por %p417, %p418
    %p421 = scmp.ne.s32.totalorder %s406, %s420
    %p422 = scmp.eq.s32.totalorder %s39, 0
    %p423 = por %p421, %p422
    %s425 = sadd.s32 %s424, 1
    %p428 = scmp.eq.s32.totalorder %s33, 1
    %p429 = scmp.ne.s32.totalorder %s424, %s426
    %p430 = scmp.eq.s32.totalorder %s33, 0
    %p431 = por %p429, %p430
    %p432 = scmp.ne.s32.totalorder %s424, %s426
    %p433 = scmp.eq.s32.totalorder %s38, 1
    %p434 = por %p432, %p433
    %p435 = scmp.ne.s32.totalorder %s426, %s427
    %p436 = scmp.eq.s32.totalorder %s38, 0
    %p437 = por %p435, %p436
    %p438 = scmp.ne.s32.totalorder %s426, %s427
    %p439 = scmp.eq.s32.totalorder %s39, 1
    %p440 = por %p438, %p439
    %p442 = scmp.ne.s32.totalorder %s427, %s441
    %p443 = scmp.eq.s32.totalorder %s39, 0
    %p444 = por %p442, %p443
    %s446 = sadd.s32 %s445, 1
    %p449 = scmp.eq.s32.totalorder %s33, 1
    %p450 = scmp.ne.s32.totalorder %s445, %s447
    %p451 = scmp.eq.s32.totalorder %s33, 0
    %p452 = por %p450, %p451
    %p453 = scmp.ne.s32.totalorder %s445, %s447
    %p454 = scmp.eq.s32.totalorder %s38, 1
    %p455 = por %p453, %p454
    %p456 = scmp.ne.s32.totalorder %s447, %s448
    %p457 = scmp.eq.s32.totalorder %s38, 0
    %p458 = por %p456, %p457
    %p459 = scmp.ne.s32.totalorder %s447, %s448
    %p460 = scmp.eq.s32.totalorder %s39, 1
    %p461 = por %p459, %p460
    %p463 = scmp.ne.s32.totalorder %s448, %s462
    %p464 = scmp.eq.s32.totalorder %s39, 0
    %p465 = por %p463, %p464
    %s467 = sadd.s32 %s466, 1
    %p470 = scmp.eq.s32.totalorder %s33, 1
    %p471 = scmp.ne.s32.totalorder %s466, %s468
    %p472 = scmp.eq.s32.totalorder %s33, 0
    %p473 = por %p471, %p472
    %p474 = scmp.ne.s32.totalorder %s466, %s468
    %p475 = scmp.eq.s32.totalorder %s38, 1
    %p476 = por %p474, %p475
    %p477 = scmp.ne.s32.totalorder %s468, %s469
    %p478 = scmp.eq.s32.totalorder %s38, 0
    %p479 = por %p477, %p478
    %p480 = scmp.ne.s32.totalorder %s468, %s469
    %p481 = scmp.eq.s32.totalorder %s39, 1
    %p482 = por %p480, %p481
    %p484 = scmp.ne.s32.totalorder %s469, %s483
    %p485 = scmp.eq.s32.totalorder %s39, 0
    %p486 = por %p484, %p485
    %s488 = sadd.s32 %s487, 1
    %p491 = scmp.eq.s32.totalorder %s33, 1
    %p492 = scmp.ne.s32.totalorder %s487, %s489
    %p493 = scmp.eq.s32.totalorder %s33, 0
    %p494 = por %p492, %p493
    %p495 = scmp.ne.s32.totalorder %s487, %s489
    %p496 = scmp.eq.s32.totalorder %s38, 1
    %p497 = por %p495, %p496
    %p498 = scmp.ne.s32.totalorder %s489, %s490
    %p499 = scmp.eq.s32.totalorder %s38, 0
    %p500 = por %p498, %p499
    %p501 = scmp.ne.s32.totalorder %s489, %s490
    %p502 = scmp.eq.s32.totalorder %s39, 1
    %p503 = por %p501, %p502
    %p505 = scmp.ne.s32.totalorder %s490, %s504
    %p506 = scmp.eq.s32.totalorder %s39, 0
    %p507 = por %p505, %p506
    %s509 = sadd.s32 %s508, 1
    %p512 = scmp.eq.s32.totalorder %s33, 1
    %p513 = scmp.ne.s32.totalorder %s508, %s510
    %p514 = scmp.eq.s32.totalorder %s33, 0
    %p515 = por %p513, %p514
    %p516 = scmp.ne.s32.totalorder %s508, %s510
    %p517 = scmp.eq.s32.totalorder %s38, 1
    %p518 = por %p516, %p517
    %p519 = scmp.ne.s32.totalorder %s510, %s511
    %p520 = scmp.eq.s32.totalorder %s38, 0
    %p521 = por %p519, %p520
    %p522 = scmp.ne.s32.totalorder %s510, %s511
    %p523 = scmp.eq.s32.totalorder %s39, 1
    %p524 = por %p522, %p523
    %p526 = scmp.ne.s32.totalorder %s511, %s525
    %p527 = scmp.eq.s32.totalorder %s39, 0
    %p528 = por %p526, %p527
    %s530 = sadd.s32 %s529, 1
    %p533 = scmp.eq.s32.totalorder %s33, 1
    %p534 = scmp.ne.s32.totalorder %s529, %s531
    %p535 = scmp.eq.s32.totalorder %s33, 0
    %p536 = por %p534, %p535
    %p537 = scmp.ne.s32.totalorder %s529, %s531
    %p538 = scmp.eq.s32.totalorder %s38, 1
    %p539 = por %p537, %p538
    %p540 = scmp.ne.s32.totalorder %s531, %s532
    %p541 = scmp.eq.s32.totalorder %s38, 0
    %p542 = por %p540, %p541
    %p543 = scmp.ne.s32.totalorder %s531, %s532
    %p544 = scmp.eq.s32.totalorder %s39, 1
    %p545 = por %p543, %p544
    %p547 = scmp.ne.s32.totalorder %s532, %s546
    %p548 = scmp.eq.s32.totalorder %s39, 0
    %p549 = por %p547, %p548
    %s551 = sadd.s32 %s550, 1
    %p554 = scmp.eq.s32.totalorder %s33, 1
    %p555 = scmp.ne.s32.totalorder %s550, %s552
    %p556 = scmp.eq.s32.totalorder %s33, 0
    %p557 = por %p555, %p556
    %p558 = scmp.ne.s32.totalorder %s550, %s552
    %p559 = scmp.eq.s32.totalorder %s38, 1
    %p560 = por %p558, %p559
    %p561 = scmp.ne.s32.totalorder %s552, %s553
    %p562 = scmp.eq.s32.totalorder %s38, 0
    %p563 = por %p561, %p562
    %p564 = scmp.ne.s32.totalorder %s552, %s553
    %p565 = scmp.eq.s32.totalorder %s39, 1
    %p566 = por %p564, %p565
    %p568 = scmp.ne.s32.totalorder %s553, %s567
    %p569 = scmp.eq.s32.totalorder %s39, 0
    %p570 = por %p568, %p569
    %s571 = ssub.s32 %s33, %s40
    %p572 = scmp.eq.s32.totalorder %s571, 0
    %s574 = sadd.s32 %s573, 1
    %s575 = scalar_select %p572, %s573, %s574
    %p578 = pneg %p572
    %p579 = scmp.eq.s32.totalorder %s33, 1
    %p580 = por %p578, %p579
    %p581 = scmp.ne.s32.totalorder %s573, %s576
    %p582 = scmp.eq.s32.totalorder %s33, 0
    %p583 = por %p581, %p582
    %p584 = scmp.ne.s32.totalorder %s573, %s576
    %p585 = scmp.eq.s32.totalorder %s38, 1
    %p586 = por %p584, %p585
    %p587 = scmp.ne.s32.totalorder %s576, %s577
    %p588 = scmp.eq.s32.totalorder %s38, 0
    %p589 = por %p587, %p588
    %p590 = scmp.ne.s32.totalorder %s576, %s577
    %p591 = scmp.eq.s32.totalorder %s39, 1
    %p592 = por %p590, %p591
    %p594 = scmp.ne.s32.totalorder %s577, %s593
    %p595 = scmp.eq.s32.totalorder %s39, 0
    %p596 = por %p594, %p595
    %p597 = scmp.le.s32.totalorder 1, %s33
    %p598 = scmp.lt.s32.totalorder %s33, 3
    %p599 = pnand %p597, %p598
    %p600 = pneg %p599
    // Predicated region
    $region9: #{_lambda_.1} parent=5 // pred_check
      _
    $region10: #{_lambda_.1} parent=5 // pred_check_branch
      %602 = sbr.rel (%p599) target = $region12
    $region11: #{_lambda_.1} parent=5 // pred_region
      %s603 = ssub.s32 %s33, 1
      // Predicated region
      $region13: #{_lambda_.1} parent=11 // pred_check
        %p604 = pneg %p80
      $region14: #{_lambda_.1} parent=11 // pred_check_branch
        %606 = sbr.rel (%p604) target = $region16
      $region15: #{_lambda_.1} parent=11 // pred_region
        _
      $region16: #{_lambda_.1} parent=11 // pred_fallthru
        _
      // Predicated region
      $region17: #{_lambda_.1} parent=11 // pred_check
        %p607 = pneg %p101
      $region18: #{_lambda_.1} parent=11 // pred_check_branch
        %609 = sbr.rel (%p607) target = $region20
      $region19: #{_lambda_.1} parent=11 // pred_region
        _
      $region20: #{_lambda_.1} parent=11 // pred_fallthru
        _
      // Predicated region
      $region21: #{_lambda_.1} parent=11 // pred_check
        %p610 = pneg %p122
      $region22: #{_lambda_.1} parent=11 // pred_check_branch
        %612 = sbr.rel (%p610) target = $region24
      $region23: #{_lambda_.1} parent=11 // pred_region
        _
      $region24: #{_lambda_.1} parent=11 // pred_fallthru
        _
      // Predicated region
      $region25: #{_lambda_.1} parent=11 // pred_check
        %p613 = pneg %p143
      $region26: #{_lambda_.1} parent=11 // pred_check_branch
        %615 = sbr.rel (%p613) target = $region28
      $region27: #{_lambda_.1} parent=11 // pred_region
        _
      $region28: #{_lambda_.1} parent=11 // pred_fallthru
        _
      // Predicated region
      $region29: #{_lambda_.1} parent=11 // pred_check
        %p616 = pneg %p164
      $region30: #{_lambda_.1} parent=11 // pred_check_branch
        %618 = sbr.rel (%p616) target = $region32
      $region31: #{_lambda_.1} parent=11 // pred_region
        _
      $region32: #{_lambda_.1} parent=11 // pred_fallthru
        _
      // Predicated region
      $region33: #{_lambda_.1} parent=11 // pred_check
        %p619 = pneg %p185
      $region34: #{_lambda_.1} parent=11 // pred_check_branch
        %621 = sbr.rel (%p619) target = $region36
      $region35: #{_lambda_.1} parent=11 // pred_region
        _
      $region36: #{_lambda_.1} parent=11 // pred_fallthru
        _
      // Predicated region
      $region37: #{_lambda_.1} parent=11 // pred_check
        %p622 = pneg %p206
      $region38: #{_lambda_.1} parent=11 // pred_check_branch
        %624 = sbr.rel (%p622) target = $region40
      $region39: #{_lambda_.1} parent=11 // pred_region
        _
      $region40: #{_lambda_.1} parent=11 // pred_fallthru
        _
      // Predicated region
      $region41: #{_lambda_.1} parent=11 // pred_check
        %p625 = pneg %p227
      $region42: #{_lambda_.1} parent=11 // pred_check_branch
        %627 = sbr.rel (%p625) target = $region44
      $region43: #{_lambda_.1} parent=11 // pred_region
        _
      $region44: #{_lambda_.1} parent=11 // pred_fallthru
        _
      // Predicated region
      $region45: #{_lambda_.1} parent=11 // pred_check
        %p628 = pneg %p248
      $region46: #{_lambda_.1} parent=11 // pred_check_branch
        %630 = sbr.rel (%p628) target = $region48
      $region47: #{_lambda_.1} parent=11 // pred_region
        _
      $region48: #{_lambda_.1} parent=11 // pred_fallthru
        _
      // Predicated region
      $region49: #{_lambda_.1} parent=11 // pred_check
        %p631 = pneg %p269
      $region50: #{_lambda_.1} parent=11 // pred_check_branch
        %633 = sbr.rel (%p631) target = $region52
      $region51: #{_lambda_.1} parent=11 // pred_region
        _
      $region52: #{_lambda_.1} parent=11 // pred_fallthru
        _
      // Predicated region
      $region53: #{_lambda_.1} parent=11 // pred_check
        %p634 = pneg %p290
      $region54: #{_lambda_.1} parent=11 // pred_check_branch
        %636 = sbr.rel (%p634) target = $region56
      $region55: #{_lambda_.1} parent=11 // pred_region
        _
      $region56: #{_lambda_.1} parent=11 // pred_fallthru
        _
      // Predicated region
      $region57: #{_lambda_.1} parent=11 // pred_check
        %p637 = pneg %p311
      $region58: #{_lambda_.1} parent=11 // pred_check_branch
        %639 = sbr.rel (%p637) target = $region60
      $region59: #{_lambda_.1} parent=11 // pred_region
        _
      $region60: #{_lambda_.1} parent=11 // pred_fallthru
        _
      // Predicated region
      $region61: #{_lambda_.1} parent=11 // pred_check
        %p640 = pneg %p332
      $region62: #{_lambda_.1} parent=11 // pred_check_branch
        %642 = sbr.rel (%p640) target = $region64
      $region63: #{_lambda_.1} parent=11 // pred_region
        _
      $region64: #{_lambda_.1} parent=11 // pred_fallthru
        _
      // Predicated region
      $region65: #{_lambda_.1} parent=11 // pred_check
        %p643 = pneg %p353
      $region66: #{_lambda_.1} parent=11 // pred_check_branch
        %645 = sbr.rel (%p643) target = $region68
      $region67: #{_lambda_.1} parent=11 // pred_region
        _
      $region68: #{_lambda_.1} parent=11 // pred_fallthru
        _
      // Predicated region
      $region69: #{_lambda_.1} parent=11 // pred_check
        %p646 = pneg %p374
      $region70: #{_lambda_.1} parent=11 // pred_check_branch
        %648 = sbr.rel (%p646) target = $region72
      $region71: #{_lambda_.1} parent=11 // pred_region
        _
      $region72: #{_lambda_.1} parent=11 // pred_fallthru
        _
      // Predicated region
      $region73: #{_lambda_.1} parent=11 // pred_check
        %p649 = pneg %p395
      $region74: #{_lambda_.1} parent=11 // pred_check_branch
        %651 = sbr.rel (%p649) target = $region76
      $region75: #{_lambda_.1} parent=11 // pred_region
        _
      $region76: #{_lambda_.1} parent=11 // pred_fallthru
        _
      // Predicated region
      $region77: #{_lambda_.1} parent=11 // pred_check
        %p652 = pneg %p416
      $region78: #{_lambda_.1} parent=11 // pred_check_branch
        %654 = sbr.rel (%p652) target = $region80
      $region79: #{_lambda_.1} parent=11 // pred_region
        _
      $region80: #{_lambda_.1} parent=11 // pred_fallthru
        _
      // Predicated region
      $region81: #{_lambda_.1} parent=11 // pred_check
        %p655 = pneg %p437
      $region82: #{_lambda_.1} parent=11 // pred_check_branch
        %657 = sbr.rel (%p655) target = $region84
      $region83: #{_lambda_.1} parent=11 // pred_region
        _
      $region84: #{_lambda_.1} parent=11 // pred_fallthru
        _
      // Predicated region
      $region85: #{_lambda_.1} parent=11 // pred_check
        %p658 = pneg %p458
      $region86: #{_lambda_.1} parent=11 // pred_check_branch
        %660 = sbr.rel (%p658) target = $region88
      $region87: #{_lambda_.1} parent=11 // pred_region
        _
      $region88: #{_lambda_.1} parent=11 // pred_fallthru
        _
      // Predicated region
      $region89: #{_lambda_.1} parent=11 // pred_check
        %p661 = pneg %p479
      $region90: #{_lambda_.1} parent=11 // pred_check_branch
        %663 = sbr.rel (%p661) target = $region92
      $region91: #{_lambda_.1} parent=11 // pred_region
        _
      $region92: #{_lambda_.1} parent=11 // pred_fallthru
        _
      // Predicated region
      $region93: #{_lambda_.1} parent=11 // pred_check
        %p664 = pneg %p500
      $region94: #{_lambda_.1} parent=11 // pred_check_branch
        %666 = sbr.rel (%p664) target = $region96
      $region95: #{_lambda_.1} parent=11 // pred_region
        _
      $region96: #{_lambda_.1} parent=11 // pred_fallthru
        _
      // Predicated region
      $region97: #{_lambda_.1} parent=11 // pred_check
        %p667 = pneg %p521
      $region98: #{_lambda_.1} parent=11 // pred_check_branch
        %669 = sbr.rel (%p667) target = $region100
      $region99: #{_lambda_.1} parent=11 // pred_region
        _
      $region100: #{_lambda_.1} parent=11 // pred_fallthru
        _
      // Predicated region
      $region101: #{_lambda_.1} parent=11 // pred_check
        %p670 = pneg %p542
      $region102: #{_lambda_.1} parent=11 // pred_check_branch
        %672 = sbr.rel (%p670) target = $region104
      $region103: #{_lambda_.1} parent=11 // pred_region
        _
      $region104: #{_lambda_.1} parent=11 // pred_fallthru
        _
      // Predicated region
      $region105: #{_lambda_.1} parent=11 // pred_check
        %p673 = pneg %p563
      $region106: #{_lambda_.1} parent=11 // pred_check_branch
        %675 = sbr.rel (%p673) target = $region108
      $region107: #{_lambda_.1} parent=11 // pred_region
        _
      $region108: #{_lambda_.1} parent=11 // pred_fallthru
        _
    $region12: #{_lambda_.1} parent=5 // pred_fallthru
      _
    %p676 = scmp.lt.s32.totalorder %s33, 2
    // Predicated region
    $region109: #{_lambda_.1} parent=5 // pred_check
      %p677 = pneg %p676
    $region110: #{_lambda_.1} parent=5 // pred_check_branch
      %679 = sbr.rel (%p677) target = $region112
    $region111: #{_lambda_.1} parent=5 // pred_region
      // Predicated region
      $region113: #{_lambda_.1} parent=111 // pred_check
        %p680 = pneg %p53
      $region114: #{_lambda_.1} parent=111 // pred_check_branch
        %682 = sbr.rel (%p680) target = $region116
      $region115: #{_lambda_.1} parent=111 // pred_region
        %p683 = scmp.lt.s32.totalorder %s33, 1
        %s684 = scalar_select %p683, %s33, 1
        %s685 = smul.addr %s684, 2
        %s686 = smul.addr %s685, 8
        %s687 = scalar_lea.vmem %s0, %s686
      $region116: #{_lambda_.1} parent=111 // pred_fallthru
        _
    $region112: #{_lambda_.1} parent=5 // pred_fallthru
      _
    %p688 = scmp.le.s32.totalorder 1, %s33
    %p689 = scmp.lt.s32.totalorder %s33, 3
    %p690 = pnand %p688, %p689
    %p691 = pneg %p690
    // Predicated region
    $region117: #{_lambda_.1} parent=5 // pred_check
      _
    $region118: #{_lambda_.1} parent=5 // pred_check_branch
      %693 = sbr.rel (%p690) target = $region120
    $region119: #{_lambda_.1} parent=5 // pred_region
      %s694 = ssub.s32 %s33, 1
      %p695 = scmp.lt.s32.totalorder %s38, 1
      %s696 = scalar_select %p695, %s38, 1
      %s697 = smul.addr %s696, 2
      %s698 = smul.addr %s697, 8
      %s699 = scalar_lea.vmem %s0, %s698
      %p700 = pneg %p59
      %p701 = pneg %p56
      %p702 = pneg %p80
      %p703 = pneg %p77
      %p704 = pneg %p101
      %p705 = pneg %p98
      %p706 = pneg %p122
      %p707 = pneg %p119
      %p708 = pneg %p143
      %p709 = pneg %p140
      %p710 = pneg %p164
      %p711 = pneg %p161
      %p712 = pneg %p185
      %p713 = pneg %p182
      %p714 = pneg %p206
      %p715 = pneg %p203
      %p716 = pneg %p227
      %p717 = pneg %p224
      %p718 = pneg %p248
      %p719 = pneg %p245
      %p720 = pneg %p269
      %p721 = pneg %p266
      %p722 = pneg %p290
      %p723 = pneg %p287
      %p724 = pneg %p311
      %p725 = pneg %p308
      %p726 = pneg %p332
      %p727 = pneg %p329
      %p728 = pneg %p353
      %p729 = pneg %p350
      %p730 = pneg %p374
      %p731 = pneg %p371
      %p732 = pneg %p395
      %p733 = pneg %p392
      %p734 = pneg %p416
      %p735 = pneg %p413
      %p736 = pneg %p437
      %p737 = pneg %p434
      %p738 = pneg %p458
      %p739 = pneg %p455
      %p740 = pneg %p479
      %p741 = pneg %p476
      %p742 = pneg %p500
      %p743 = pneg %p497
      %p744 = pneg %p521
      %p745 = pneg %p518
      %p746 = pneg %p542
      %p747 = pneg %p539
      %p748 = pneg %p563
      %p749 = pneg %p560
      %p750 = pneg %p589
      %p751 = pneg %p586
      %p752 = scmp.lt.s32.totalorder %s38, 1
      %s753 = scalar_select %p752, %s38, 1
      %s754 = smul.addr %s753, 8
      %s755 = scalar_lea.vmem %s25, %s754
      %p756 = scmp.lt.s32.totalorder %s38, 1
      %s757 = scalar_select %p756, %s38, 1
      %s758 = smul.addr %s757, 2
      %s759 = smul.addr %s758, 8
      %s760 = scalar_lea.vmem %s0, %s759
      %p761 = scmp.lt.s32.totalorder %s38, 1
      %s762 = scalar_select %p761, %s38, 1
      %s763 = smul.addr %s762, 8
      %s764 = scalar_lea.vmem %s25, %s763
      %v765 = vld [vmem:[%s760] sm:$0xff]
      %v766 = vld [vmem:[%s760 + $0x8] sm:$0xff]
      %v767 = vld [vmem:[%s1] sm:$0xff]
      %v768 = vld [vmem:[%s1 + $0x8] sm:$0xff]
      %vm769 = vcmask 130048
      %v771 = vsel %vm769, %v765, 0
      %v774 = vsel %vm769, %v766, 0
      %776 = vmatprep.subr.mxu0 0.0
      %777 = vmatpush1.msra.mxu0 %v767
      %778 = vmatprep.subr.mxu0 0.0
      %779 = vmatpush1.msra.mxu0 %v768
      %780 = vmatprep.subr.mxu0 0.0
      %781 = vmatpush1.msra.mxu0 0.0
      %782 = vmatprep.subr.mxu0 0.0
      %783 = vmatpush1.msra.mxu0 0.0
      %784 = vmatprep.subr.mxu0 0.0
      %785 = vmatpush1.msra.mxu0 0.0
      %786 = vmatprep.subr.mxu0 0.0
      %787 = vmatpush1.msra.mxu0 0.0
      %788 = vmatprep.subr.mxu0 0.0
      %789 = vmatpush1.msra.mxu0 0.0
      %790 = vmatprep.subr.mxu0 0.0
      %791 = vmatpush1.msra.mxu0 0.0
      %792 = vmatprep.subr.mxu0 0.0
      %793 = vmatpush1.msra.mxu0 0.0
      %794 = vmatprep.subr.mxu0 0.0
      %795 = vmatpush1.msra.mxu0 0.0
      %796 = vmatprep.subr.mxu0 0.0
      %797 = vmatpush1.msra.mxu0 0.0
      %798 = vmatprep.subr.mxu0 0.0
      %799 = vmatpush1.msra.mxu0 0.0
      %800 = vmatprep.subr.mxu0 0.0
      %801 = vmatpush1.msra.mxu0 0.0
      %802 = vmatprep.subr.mxu0 0.0
      %803 = vmatpush1.msra.mxu0 0.0
      %804 = vmatprep.subr.mxu0 0.0
      %805 = vmatpush1.msra.mxu0 0.0
      %806 = vmatprep.subr.mxu0 0.0
      %807 = vmatpush1.msra.mxu0 0.0
      %808 = vmatprep.subr.mxu0 0.0
      %809 = vmatpush1.msra.mxu0 0.0
      %810 = vmatprep.subr.mxu0 0.0
      %811 = vmatpush1.msra.mxu0 0.0
      %812 = vmatprep.subr.mxu0 0.0
      %813 = vmatpush1.msra.mxu0 0.0
      %814 = vmatprep.subr.mxu0 0.0
      %815 = vmatpush1.msra.mxu0 0.0
      %816 = vmatprep.subr.mxu0 0.0
      %817 = vmatpush1.msra.mxu0 0.0
      %818 = vmatprep.subr.mxu0 0.0
      %819 = vmatpush1.msra.mxu0 0.0
      %820 = vmatprep.subr.mxu0 0.0
      %821 = vmatpush1.msra.mxu0 0.0
      %822 = vmatprep.subr.mxu0 0.0
      %823 = vmatpush1.msra.mxu0 0.0
      %824 = vmatprep.subr.mxu0 0.0
      %825 = vmatpush1.msra.mxu0 0.0
      %826 = vmatprep.subr.mxu0 0.0
      %827 = vmatpush1.msra.mxu0 0.0
      %828 = vmatprep.subr.mxu0 0.0
      %829 = vmatpush1.msra.mxu0 0.0
      %830 = vmatprep.subr.mxu0 0.0
      %831 = vmatpush1.msra.mxu0 0.0
      %832 = vmatprep.subr.mxu0 0.0
      %833 = vmatpush1.msra.mxu0 0.0
      %834 = vmatprep.subr.mxu0 0.0
      %835 = vmatpush1.msra.mxu0 0.0
      %836 = vmatprep.subr.mxu0 0.0
      %837 = vmatpush1.msra.mxu0 0.0
      %838 = vmatprep.subr.mxu0 0.0
      %839 = vmatpush1.msra.mxu0 0.0
      %840 = vmatprep.mubr.f32.mxu0 0.0
      %841 = vmatmul.mubr.f32.gmra.mrb[0].mxu0 %v771
      %v842 = vpop.f32.mrb[0].mxu0
      %v843 = vadd.f32 0.0, %v842
      %v844 = vpop.f32.mrb[0].mxu0
      %845 = vmatprep.mubr.f32.mxu0 0.0
      %846 = vmatmul.mubr.f32.gmra.mrb[0].mxu0 %v774
      %v847 = vpop.f32.mrb[0].mxu0
      %v848 = vadd.f32 0.0, %v847
      %v849 = vpop.f32.mrb[0].mxu0
      %850 = vdwg.mxu0
      %v851 = vlaneseq
      %v852 = vand.u32 %v851, 127
      %vm853 = vcmp.lt.s32.totalorder %v852, 0
      %v854 = vsub.s32 0, %v852
      %v855 = vsel %vm853, %v854, %v852
      %v856 = vshrl.u32 %v855, 3
      %v857 = vand.u32 %v855, 7
      %v858 = vsub.s32 0, %v857
      %v859 = vsel %vm853, %v858, %v857
      %vm860 = vcmp.ne.s32.totalorder %v859, 0
      %vm861 = vcmp.lt.s32.totalorder %v859, 0
      %vm862 = vmand %vm861, %vm860
      %v863 = vadd.s32 %v859, 8
      %v864 = vsel %vm862, %v863, %v859
      %vm865 = vcmp.ge.s32.totalorder %v864, 1
      %v866 = vsel %vm865, 1, 0
      %v867 = vcvt.s32.f32 %v866
      %vm868 = vcmp.le.s32.totalorder %v864, 6
      %v869 = vsel %vm868, 1, 0
      %v870 = vcvt.s32.f32 %v869
      %873 = vrot.lane.b32.xlu0 %v843, 9
      %v874 = vpop.permute.xlu0 %873
      %875 = vrot.lane.b32.xlu0 %v848, 9
      %v876 = vpop.permute.xlu0 %875
      %vm879 = vcmask 72704
      %v880 = vsel %vm879, 0.0, %v874
      %v881 = vsel %vm879, 0.0, %v876
      %v882 = vmul.f32 %v880, %v867
      %v883 = vmul.f32 %v881, %v867
      %884 = vrot.lane.b32.xlu0 %v843, 8
      %v885 = vpop.permute.xlu0 %884
      %886 = vrot.lane.b32.xlu0 %v848, 8
      %v887 = vpop.permute.xlu0 %886
      %vm890 = vcmask 64512
      %v891 = vsel %vm890, 0.0, %v885
      %v892 = vsel %vm890, 0.0, %v887
      %893 = vrot.lane.b32.xlu0 %v843, 7
      %v894 = vpop.permute.xlu0 %893
      %895 = vrot.lane.b32.xlu0 %v848, 7
      %v896 = vpop.permute.xlu0 %895
      %vm899 = vcmask 56320
      %v900 = vsel %vm899, 0.0, %v894
      %v901 = vsel %vm899, 0.0, %v896
      %v902 = vmul.f32 %v900, %v870
      %v903 = vmul.f32 %v901, %v870
      %904 = vrot.lane.b32.xlu0 %v843, 1
      %v905 = vpop.permute.xlu0 %904
      %906 = vrot.lane.b32.xlu0 %v848, 1
      %v907 = vpop.permute.xlu0 %906
      %vm910 = vcmask 7168
      %v911 = vsel %vm910, 0.0, %v905
      %v912 = vsel %vm910, 0.0, %v907
      %v913 = vmul.f32 %v911, %v867
      %v914 = vmul.f32 %v912, %v867
      %915 = vrot.lane.b32.xlu0 %v843, 127
      %v916 = vpop.permute.xlu0 %915
      %917 = vrot.lane.b32.xlu0 %v848, 127
      %v918 = vpop.permute.xlu0 %917
      %vm921 = vcmask 515072
      %v922 = vsel %vm921, %v916, 0.0
      %v923 = vsel %vm921, %v918, 0.0
      %v924 = vmul.f32 %v922, %v870
      %v925 = vmul.f32 %v923, %v870
      %926 = vrot.lane.b32.xlu0 %v843, 121
      %v927 = vpop.permute.xlu0 %926
      %928 = vrot.lane.b32.xlu0 %v848, 121
      %v929 = vpop.permute.xlu0 %928
      %vm932 = vcmask 465920
      %v933 = vsel %vm932, %v927, 0.0
      %v934 = vsel %vm932, %v929, 0.0
      %v935 = vmul.f32 %v933, %v867
      %v936 = vmul.f32 %v934, %v867
      %937 = vrot.lane.b32.xlu0 %v843, 120
      %v938 = vpop.permute.xlu0 %937
      %939 = vrot.lane.b32.xlu0 %v848, 120
      %v940 = vpop.permute.xlu0 %939
      %vm943 = vcmask 457728
      %v944 = vsel %vm943, %v938, 0.0
      %v945 = vsel %vm943, %v940, 0.0
      %946 = vrot.lane.b32.xlu0 %v843, 119
      %v947 = vpop.permute.xlu0 %946
      %948 = vrot.lane.b32.xlu0 %v848, 119
      %v949 = vpop.permute.xlu0 %948
      %vm952 = vcmask 449536
      %v953 = vsel %vm952, %v947, 0.0
      %v954 = vsel %vm952, %v949, 0.0
      %v955 = vmul.f32 %v953, %v870
      %v956 = vmul.f32 %v954, %v870
      %v957 = vld [vmem:[%s5] sm:$0xff]
      %v958 = vld [vmem:[%s5 + $0x8] sm:$0xff]
      %v959 = vld [vmem:[%s5 + $0x10] sm:$0xff]
      %v960 = vld [vmem:[%s5 + $0x18] sm:$0xff]
      %v961 = vld [vmem:[%s5 + $0x20] sm:$0xff]
      %v962 = vld [vmem:[%s5 + $0x28] sm:$0xff]
      %v963 = vld [vmem:[%s5 + $0x30] sm:$0xff]
      %v964 = vld [vmem:[%s5 + $0x38] sm:$0xff]
      %v966 = vsel %vm769, %v958, 0
      %v969 = vsel %vm769, %v960, 0
      %v972 = vsel %vm769, %v962, 0
      %v975 = vsel %vm769, %v964, 0
      %977 = vmatprep.subr.mxu0 0.0
      %978 = vmatpush1.msra.mxu0 %v882
      %979 = vmatprep.subr.mxu0 0.0
      %980 = vmatpush1.msra.mxu0 %v883
      %981 = vmatprep.subr.mxu0 0.0
      %982 = vmatpush1.msra.mxu0 %v891
      %983 = vmatprep.subr.mxu0 0.0
      %984 = vmatpush1.msra.mxu0 %v892
      %985 = vmatprep.subr.mxu0 0.0
      %986 = vmatpush1.msra.mxu0 %v902
      %987 = vmatprep.subr.mxu0 0.0
      %988 = vmatpush1.msra.mxu0 %v903
      %989 = vmatprep.subr.mxu0 0.0
      %990 = vmatpush1.msra.mxu0 %v913
      %991 = vmatprep.subr.mxu0 0.0
      %992 = vmatpush1.msra.mxu0 %v914
      %993 = vmatprep.subr.mxu0 0.0
      %994 = vmatpush1.msra.mxu0 %v843
      %995 = vmatprep.subr.mxu0 0.0
      %996 = vmatpush1.msra.mxu0 %v848
      %997 = vmatprep.subr.mxu0 0.0
      %998 = vmatpush1.msra.mxu0 %v924
      %999 = vmatprep.subr.mxu0 0.0
      %1000 = vmatpush1.msra.mxu0 %v925
      %1001 = vmatprep.subr.mxu0 0.0
      %1002 = vmatpush1.msra.mxu0 %v935
      %1003 = vmatprep.subr.mxu0 0.0
      %1004 = vmatpush1.msra.mxu0 %v936
      %1005 = vmatprep.subr.mxu0 0.0
      %1006 = vmatpush1.msra.mxu0 %v944
      %1007 = vmatprep.subr.mxu0 0.0
      %1008 = vmatpush1.msra.mxu0 %v945
      %1009 = vmatprep.subr.mxu0 0.0
      %1010 = vmatpush1.msra.mxu0 %v955
      %1011 = vmatprep.subr.mxu0 0.0
      %1012 = vmatpush1.msra.mxu0 %v956
      %1013 = vmatprep.subr.mxu0 0.0
      %1014 = vmatpush1.msra.mxu0 0.0
      %1015 = vmatprep.subr.mxu0 0.0
      %1016 = vmatpush1.msra.mxu0 0.0
      %1017 = vmatprep.subr.mxu0 0.0
      %1018 = vmatpush1.msra.mxu0 0.0
      %1019 = vmatprep.subr.mxu0 0.0
      %1020 = vmatpush1.msra.mxu0 0.0
      %1021 = vmatprep.subr.mxu0 0.0
      %1022 = vmatpush1.msra.mxu0 0.0
      %1023 = vmatprep.subr.mxu0 0.0
      %1024 = vmatpush1.msra.mxu0 0.0
      %1025 = vmatprep.subr.mxu0 0.0
      %1026 = vmatpush1.msra.mxu0 0.0
      %1027 = vmatprep.subr.mxu0 0.0
      %1028 = vmatpush1.msra.mxu0 0.0
      %1029 = vmatprep.subr.mxu0 0.0
      %1030 = vmatpush1.msra.mxu0 0.0
      %1031 = vmatprep.subr.mxu0 0.0
      %1032 = vmatpush1.msra.mxu0 0.0
      %1033 = vmatprep.subr.mxu0 0.0
      %1034 = vmatpush1.msra.mxu0 0.0
      %1035 = vmatprep.subr.mxu0 0.0
      %1036 = vmatpush1.msra.mxu0 0.0
      %1037 = vmatprep.subr.mxu0 0.0
      %1038 = vmatpush1.msra.mxu0 0.0
      %1039 = vmatprep.subr.mxu0 0.0
      %1040 = vmatpush1.msra.mxu0 0.0
      %1041 = vmatprep.mubr.f32.mxu0 %v966
      %1042 = vmatmul.mubr.f32.gmra.mrb[0].mxu0 %v957
      %v1043 = vpop.f32.mrb[0].mxu0
      %v1044 = vadd.f32 0.0, %v1043
      %v1045 = vpop.f32.mrb[0].mxu0
      %1046 = vmatprep.mubr.f32.mxu0 %v969
      %1047 = vmatmul.mubr.f32.gmra.mrb[0].mxu0 %v959
      %v1048 = vpop.f32.mrb[0].mxu0
      %v1049 = vadd.f32 0.0, %v1048
      %v1050 = vpop.f32.mrb[0].mxu0
      %1051 = vmatprep.mubr.f32.mxu0 %v972
      %1052 = vmatmul.mubr.f32.gmra.mrb[0].mxu0 %v961
      %v1053 = vpop.f32.mrb[0].mxu0
      %v1054 = vadd.f32 0.0, %v1053
      %v1055 = vpop.f32.mrb[0].mxu0
      %1056 = vmatprep.mubr.f32.mxu0 %v975
      %1057 = vmatmul.mubr.f32.gmra.mrb[0].mxu0 %v963
      %v1058 = vpop.f32.mrb[0].mxu0
      %v1059 = vadd.f32 0.0, %v1058
      %v1060 = vpop.f32.mrb[0].mxu0
      %1061 = vdwg.mxu0
      %vm1062 = vcmask 523264
      %v1063 = vsel %vm1062, %v1044, 0.0
      %1064 = vadd.xlane.f32.xlu0 %v1063
      %v1065 = vpop.xlane.xlu0 %1064
      %v1066 = vsel %vm1062, %v1049, 0.0
      %1067 = vadd.xlane.f32.xlu0 %v1066
      %v1068 = vpop.xlane.xlu0 %1067
      %v1069 = vsel %vm1062, %v1054, 0.0
      %1070 = vadd.xlane.f32.xlu0 %v1069
      %v1071 = vpop.xlane.xlu0 %1070
      %v1072 = vsel %vm1062, %v1059, 0.0
      %1073 = vadd.xlane.f32.xlu0 %v1072
      %v1074 = vpop.xlane.xlu0 %1073
      %v1075 = vld [vmem:[%s4] sm:$0xff]
      %v1076 = vld [vmem:[%s4 + $0x8] sm:$0xff]
      %v1077 = vld [vmem:[%s4 + $0x10] sm:$0xff]
      %v1078 = vld [vmem:[%s4 + $0x18] sm:$0xff]
      %vm1079 = vcmask 261120
      %v1081 = vsel %vm1079, %v1075, 0
      %v1084 = vsel %vm1079, %v1076, 0
      %v1087 = vsel %vm1079, %v1077, 0
      %v1090 = vsel %vm1079, %v1078, 0
      %1092 = vmatprep.subr.mxu0 0.0
      %1093 = vmatpush1.msra.mxu0 %v1065
      %1094 = vmatprep.subr.mxu0 0.0
      %1095 = vmatpush1.msra.mxu0 %v1068
      %1096 = vmatprep.subr.mxu0 0.0
      %1097 = vmatpush1.msra.mxu0 %v1071
      %1098 = vmatprep.subr.mxu0 0.0
      %1099 = vmatpush1.msra.mxu0 %v1074
      %1100 = vmatprep.subr.mxu0 0.0
      %1101 = vmatpush1.msra.mxu0 0.0
      %1102 = vmatprep.subr.mxu0 0.0
      %1103 = vmatpush1.msra.mxu0 0.0
      %1104 = vmatprep.subr.mxu0 0.0
      %1105 = vmatpush1.msra.mxu0 0.0
      %1106 = vmatprep.subr.mxu0 0.0
      %1107 = vmatpush1.msra.mxu0 0.0
      %1108 = vmatprep.subr.mxu0 0.0
      %1109 = vmatpush1.msra.mxu0 0.0
      %1110 = vmatprep.subr.mxu0 0.0
      %1111 = vmatpush1.msra.mxu0 0.0
      %1112 = vmatprep.subr.mxu0 0.0
      %1113 = vmatpush1.msra.mxu0 0.0
      %1114 = vmatprep.subr.mxu0 0.0
      %1115 = vmatpush1.msra.mxu0 0.0
      %1116 = vmatprep.subr.mxu0 0.0
      %1117 = vmatpush1.msra.mxu0 0.0
      %1118 = vmatprep.subr.mxu0 0.0
      %1119 = vmatpush1.msra.mxu0 0.0
      %1120 = vmatprep.subr.mxu0 0.0
      %1121 = vmatpush1.msra.mxu0 0.0
      %1122 = vmatprep.subr.mxu0 0.0
      %1123 = vmatpush1.msra.mxu0 0.0
      %1124 = vmatprep.subr.mxu0 0.0
      %1125 = vmatpush1.msra.mxu0 0.0
      %1126 = vmatprep.subr.mxu0 0.0
      %1127 = vmatpush1.msra.mxu0 0.0
      %1128 = vmatprep.subr.mxu0 0.0
      %1129 = vmatpush1.msra.mxu0 0.0
      %1130 = vmatprep.subr.mxu0 0.0
      %1131 = vmatpush1.msra.mxu0 0.0
      %1132 = vmatprep.subr.mxu0 0.0
      %1133 = vmatpush1.msra.mxu0 0.0
      %1134 = vmatprep.subr.mxu0 0.0
      %1135 = vmatpush1.msra.mxu0 0.0
      %1136 = vmatprep.subr.mxu0 0.0
      %1137 = vmatpush1.msra.mxu0 0.0
      %1138 = vmatprep.subr.mxu0 0.0
      %1139 = vmatpush1.msra.mxu0 0.0
      %1140 = vmatprep.subr.mxu0 0.0
      %1141 = vmatpush1.msra.mxu0 0.0
      %1142 = vmatprep.subr.mxu0 0.0
      %1143 = vmatpush1.msra.mxu0 0.0
      %1144 = vmatprep.subr.mxu0 0.0
      %1145 = vmatpush1.msra.mxu0 0.0
      %1146 = vmatprep.subr.mxu0 0.0
      %1147 = vmatpush1.msra.mxu0 0.0
      %1148 = vmatprep.subr.mxu0 0.0
      %1149 = vmatpush1.msra.mxu0 0.0
      %1150 = vmatprep.subr.mxu0 0.0
      %1151 = vmatpush1.msra.mxu0 0.0
      %1152 = vmatprep.subr.mxu0 0.0
      %1153 = vmatpush1.msra.mxu0 0.0
      %1154 = vmatprep.subr.mxu0 0.0
      %1155 = vmatpush1.msra.mxu0 0.0
      %1156 = vmatprep.mubr.f32.mxu0 0.0
      %1157 = vmatmul.mubr.f32.gmra.mrb[0].mxu0 %v1081
      %v1158 = vpop.f32.mrb[0].mxu0
      %v1159 = vadd.f32 0.0, %v1158
      %v1160 = vpop.f32.mrb[0].mxu0
      %1161 = vmatprep.mubr.f32.mxu0 0.0
      %1162 = vmatmul.mubr.f32.gmra.mrb[0].mxu0 %v1084
      %v1163 = vpop.f32.mrb[0].mxu0
      %v1164 = vadd.f32 0.0, %v1163
      %v1165 = vpop.f32.mrb[0].mxu0
      %1166 = vmatprep.mubr.f32.mxu0 0.0
      %1167 = vmatmul.mubr.f32.gmra.mrb[0].mxu0 %v1087
      %v1168 = vpop.f32.mrb[0].mxu0
      %v1169 = vadd.f32 0.0, %v1168
      %v1170 = vpop.f32.mrb[0].mxu0
      %1171 = vmatprep.mubr.f32.mxu0 0.0
      %1172 = vmatmul.mubr.f32.gmra.mrb[0].mxu0 %v1090
      %v1173 = vpop.f32.mrb[0].mxu0
      %v1174 = vadd.f32 0.0, %v1173
      %v1175 = vpop.f32.mrb[0].mxu0
      %1176 = vdwg.mxu0
      %v1177 = vmul.f32 %v1159, 0.00390625
      %v1178 = vmul.f32 %v1164, 0.00390625
      %v1179 = vmul.f32 %v1169, 0.00390625
      %v1180 = vmul.f32 %v1174, 0.00390625
      %1182 = vset.pattern.permute.xlu0 0
      %1183 = vperm.xlu0 %1182, %v1177
      %v1184 = vpop.permute.xlu0 %1183
      %1187 = vset.pattern.permute.xlu0 0
      %1188 = vperm.xlu0 %1187, %v1178
      %v1189 = vpop.permute.xlu0 %1188
      %1192 = vset.pattern.permute.xlu0 0
      %1193 = vperm.xlu0 %1192, %v1179
      %v1194 = vpop.permute.xlu0 %1193
      %1197 = vset.pattern.permute.xlu0 0
      %1198 = vperm.xlu0 %1197, %v1180
      %v1199 = vpop.permute.xlu0 %1198
      %v1201 = vsub.f32 %v1044, %v1184
      %v1202 = vsub.f32 %v1049, %v1189
      %v1203 = vsub.f32 %v1054, %v1194
      %v1204 = vsub.f32 %v1059, %v1199
      %v1205 = vmul.f32 %v1201, %v1201
      %v1206 = vmul.f32 %v1202, %v1202
      %v1207 = vmul.f32 %v1203, %v1203
      %v1208 = vmul.f32 %v1204, %v1204
      %v1209 = vsel %vm1062, %v1205, 0.0
      %1210 = vadd.xlane.f32.xlu0 %v1209
      %v1211 = vpop.xlane.xlu0 %1210
      %v1212 = vsel %vm1062, %v1206, 0.0
      %1213 = vadd.xlane.f32.xlu0 %v1212
      %v1214 = vpop.xlane.xlu0 %1213
      %v1215 = vsel %vm1062, %v1207, 0.0
      %1216 = vadd.xlane.f32.xlu0 %v1215
      %v1217 = vpop.xlane.xlu0 %1216
      %v1218 = vsel %vm1062, %v1208, 0.0
      %1219 = vadd.xlane.f32.xlu0 %v1218
      %v1220 = vpop.xlane.xlu0 %1219
      %1221 = vmatprep.subr.mxu0 0.0
      %1222 = vmatpush1.msra.mxu0 %v1211
      %1223 = vmatprep.subr.mxu0 0.0
      %1224 = vmatpush1.msra.mxu0 %v1214
      %1225 = vmatprep.subr.mxu0 0.0
      %1226 = vmatpush1.msra.mxu0 %v1217
      %1227 = vmatprep.subr.mxu0 0.0
      %1228 = vmatpush1.msra.mxu0 %v1220
      %1229 = vmatprep.subr.mxu0 0.0
      %1230 = vmatpush1.msra.mxu0 0.0
      %1231 = vmatprep.subr.mxu0 0.0
      %1232 = vmatpush1.msra.mxu0 0.0
      %1233 = vmatprep.subr.mxu0 0.0
      %1234 = vmatpush1.msra.mxu0 0.0
      %1235 = vmatprep.subr.mxu0 0.0
      %1236 = vmatpush1.msra.mxu0 0.0
      %1237 = vmatprep.subr.mxu0 0.0
      %1238 = vmatpush1.msra.mxu0 0.0
      %1239 = vmatprep.subr.mxu0 0.0
      %1240 = vmatpush1.msra.mxu0 0.0
      %1241 = vmatprep.subr.mxu0 0.0
      %1242 = vmatpush1.msra.mxu0 0.0
      %1243 = vmatprep.subr.mxu0 0.0
      %1244 = vmatpush1.msra.mxu0 0.0
      %1245 = vmatprep.subr.mxu0 0.0
      %1246 = vmatpush1.msra.mxu0 0.0
      %1247 = vmatprep.subr.mxu0 0.0
      %1248 = vmatpush1.msra.mxu0 0.0
      %1249 = vmatprep.subr.mxu0 0.0
      %1250 = vmatpush1.msra.mxu0 0.0
      %1251 = vmatprep.subr.mxu0 0.0
      %1252 = vmatpush1.msra.mxu0 0.0
      %1253 = vmatprep.subr.mxu0 0.0
      %1254 = vmatpush1.msra.mxu0 0.0
      %1255 = vmatprep.subr.mxu0 0.0
      %1256 = vmatpush1.msra.mxu0 0.0
      %1257 = vmatprep.subr.mxu0 0.0
      %1258 = vmatpush1.msra.mxu0 0.0
      %1259 = vmatprep.subr.mxu0 0.0
      %1260 = vmatpush1.msra.mxu0 0.0
      %1261 = vmatprep.subr.mxu0 0.0
      %1262 = vmatpush1.msra.mxu0 0.0
      %1263 = vmatprep.subr.mxu0 0.0
      %1264 = vmatpush1.msra.mxu0 0.0
      %1265 = vmatprep.subr.mxu0 0.0
      %1266 = vmatpush1.msra.mxu0 0.0
      %1267 = vmatprep.subr.mxu0 0.0
      %1268 = vmatpush1.msra.mxu0 0.0
      %1269 = vmatprep.subr.mxu0 0.0
      %1270 = vmatpush1.msra.mxu0 0.0
      %1271 = vmatprep.subr.mxu0 0.0
      %1272 = vmatpush1.msra.mxu0 0.0
      %1273 = vmatprep.subr.mxu0 0.0
      %1274 = vmatpush1.msra.mxu0 0.0
      %1275 = vmatprep.subr.mxu0 0.0
      %1276 = vmatpush1.msra.mxu0 0.0
      %1277 = vmatprep.subr.mxu0 0.0
      %1278 = vmatpush1.msra.mxu0 0.0
      %1279 = vmatprep.subr.mxu0 0.0
      %1280 = vmatpush1.msra.mxu0 0.0
      %1281 = vmatprep.subr.mxu0 0.0
      %1282 = vmatpush1.msra.mxu0 0.0
      %1283 = vmatprep.subr.mxu0 0.0
      %1284 = vmatpush1.msra.mxu0 0.0
      %1285 = vmatprep.mubr.f32.mxu0 0.0
      %1286 = vmatmul.mubr.f32.gmra.mrb[0].mxu0 %v1081
      %v1287 = vpop.f32.mrb[0].mxu0
      %v1288 = vadd.f32 0.0, %v1287
      %v1289 = vpop.f32.mrb[0].mxu0
      %1290 = vmatprep.mubr.f32.mxu0 0.0
      %1291 = vmatmul.mubr.f32.gmra.mrb[0].mxu0 %v1084
      %v1292 = vpop.f32.mrb[0].mxu0
      %v1293 = vadd.f32 0.0, %v1292
      %v1294 = vpop.f32.mrb[0].mxu0
      %1295 = vmatprep.mubr.f32.mxu0 0.0
      %1296 = vmatmul.mubr.f32.gmra.mrb[0].mxu0 %v1087
      %v1297 = vpop.f32.mrb[0].mxu0
      %v1298 = vadd.f32 0.0, %v1297
      %v1299 = vpop.f32.mrb[0].mxu0
      %1300 = vmatprep.mubr.f32.mxu0 0.0
      %1301 = vmatmul.mubr.f32.gmra.mrb[0].mxu0 %v1090
      %v1302 = vpop.f32.mrb[0].mxu0
      %v1303 = vadd.f32 0.0, %v1302
      %v1304 = vpop.f32.mrb[0].mxu0
      %1305 = vdwg.mxu0
      %v1306 = vmul.f32 %v1288, 0.00390625
      %v1307 = vmul.f32 %v1293, 0.00390625
      %v1308 = vmul.f32 %v1298, 0.00390625
      %v1309 = vmul.f32 %v1303, 0.00390625
      %v1310 = vmax.f32 %v1306, 0.0
      %v1311 = vmax.f32 %v1307, 0.0
      %v1312 = vmax.f32 %v1308, 0.0
      %v1313 = vmax.f32 %v1309, 0.0
      %v1314 = vadd.f32 %v1310, 1e-05
      %v1315 = vadd.f32 %v1311, 1e-05
      %v1316 = vadd.f32 %v1312, 1e-05
      %v1317 = vadd.f32 %v1313, 1e-05
      %v1318 = vrsqrt.pop %v1314
      %v1319 = vrsqrt.pop %v1315
      %v1320 = vrsqrt.pop %v1316
      %v1321 = vrsqrt.pop %v1317
      %1323 = vset.pattern.permute.xlu0 0
      %1324 = vperm.xlu0 %1323, %v1318
      %v1325 = vpop.permute.xlu0 %1324
      %1328 = vset.pattern.permute.xlu0 0
      %1329 = vperm.xlu0 %1328, %v1319
      %v1330 = vpop.permute.xlu0 %1329
      %1333 = vset.pattern.permute.xlu0 0
      %1334 = vperm.xlu0 %1333, %v1320
      %v1335 = vpop.permute.xlu0 %1334
      %1338 = vset.pattern.permute.xlu0 0
      %1339 = vperm.xlu0 %1338, %v1321
      %v1340 = vpop.permute.xlu0 %1339
      %v1342 = vmul.f32 %v1201, %v1325
      %v1343 = vmul.f32 %v1202, %v1330
      %v1344 = vmul.f32 %v1203, %v1335
      %v1345 = vmul.f32 %v1204, %v1340
      %v1346 = vld [vmem:[%s6] sm:$0xff]
      %v1347 = vld [vmem:[%s6 + $0x8] sm:$0xff]
      %v1348 = vld [vmem:[%s6 + $0x10] sm:$0xff]
      %v1349 = vld [vmem:[%s6 + $0x18] sm:$0xff]
      %1351 = vset.pattern.permute.xlu0 0
      %1352 = vperm.xlu0 %1351, %v1346
      %v1353 = vpop.permute.xlu0 %1352
      %1356 = vset.pattern.permute.xlu0 0
      %1357 = vperm.xlu0 %1356, %v1347
      %v1358 = vpop.permute.xlu0 %1357
      %1361 = vset.pattern.permute.xlu0 0
      %1362 = vperm.xlu0 %1361, %v1348
      %v1363 = vpop.permute.xlu0 %1362
      %1366 = vset.pattern.permute.xlu0 0
      %1367 = vperm.xlu0 %1366, %v1349
      %v1368 = vpop.permute.xlu0 %1367
      %v1370 = vmul.f32 %v1342, %v1353
      %v1371 = vmul.f32 %v1343, %v1358
      %v1372 = vmul.f32 %v1344, %v1363
      %v1373 = vmul.f32 %v1345, %v1368
      %v1374 = vld [vmem:[%s7] sm:$0xff]
      %v1375 = vld [vmem:[%s7 + $0x8] sm:$0xff]
      %v1376 = vld [vmem:[%s7 + $0x10] sm:$0xff]
      %v1377 = vld [vmem:[%s7 + $0x18] sm:$0xff]
      %1379 = vset.pattern.permute.xlu0 0
      %1380 = vperm.xlu0 %1379, %v1374
      %v1381 = vpop.permute.xlu0 %1380
      %1384 = vset.pattern.permute.xlu0 0
      %1385 = vperm.xlu0 %1384, %v1375
      %v1386 = vpop.permute.xlu0 %1385
      %1389 = vset.pattern.permute.xlu0 0
      %1390 = vperm.xlu0 %1389, %v1376
      %v1391 = vpop.permute.xlu0 %1390
      %1394 = vset.pattern.permute.xlu0 0
      %1395 = vperm.xlu0 %1394, %v1377
      %v1396 = vpop.permute.xlu0 %1395
      %v1398 = vadd.f32 %v1370, %v1381
      %v1399 = vadd.f32 %v1371, %v1386
      %v1400 = vadd.f32 %v1372, %v1391
      %v1401 = vadd.f32 %v1373, %v1396
      %v1402 = vmul.f32 %v1398, 0.5
      %v1403 = vmul.f32 %v1399, 0.5
      %v1404 = vmul.f32 %v1400, 0.5
      %v1405 = vmul.f32 %v1401, 0.5
      %v1406 = vmul.f32 %v1398, 0.70710677
      %v1407 = vmul.f32 %v1399, 0.70710677
      %v1408 = vmul.f32 %v1400, 0.70710677
      %v1409 = vmul.f32 %v1401, 0.70710677
      %v1410 = verf.f32.pop %v1406
      %v1411 = verf.f32.pop %v1407
      %v1412 = verf.f32.pop %v1408
      %v1413 = verf.f32.pop %v1409
      %v1414 = vadd.f32 %v1410, 1.0
      %v1415 = vadd.f32 %v1411, 1.0
      %v1416 = vadd.f32 %v1412, 1.0
      %v1417 = vadd.f32 %v1413, 1.0
      %v1418 = vmul.f32 %v1402, %v1414
      %v1419 = vmul.f32 %v1403, %v1415
      %v1420 = vmul.f32 %v1404, %v1416
      %v1421 = vmul.f32 %v1405, %v1417
      %1426 = vrot.lane.b32.xlu0 %v1418, 9
      %v1427 = vpop.permute.xlu0 %1426
      %1428 = vrot.lane.b32.xlu0 %v1419, 9
      %v1429 = vpop.permute.xlu0 %1428
      %1430 = vrot.lane.b32.xlu0 %v1420, 9
      %v1431 = vpop.permute.xlu0 %1430
      %1432 = vrot.lane.b32.xlu0 %v1421, 9
      %v1433 = vpop.permute.xlu0 %1432
      %v1438 = vsel %vm879, 0.0, %v1427
      %v1439 = vsel %vm879, 0.0, %v1429
      %v1440 = vsel %vm879, 0.0, %v1431
      %v1441 = vsel %vm879, 0.0, %v1433
      %v1442 = vmul.f32 %v1438, %v867
      %v1443 = vmul.f32 %v1439, %v867
      %v1444 = vmul.f32 %v1440, %v867
      %v1445 = vmul.f32 %v1441, %v867
      %1446 = vrot.lane.b32.xlu0 %v1418, 8
      %v1447 = vpop.permute.xlu0 %1446
      %1448 = vrot.lane.b32.xlu0 %v1419, 8
      %v1449 = vpop.permute.xlu0 %1448
      %1450 = vrot.lane.b32.xlu0 %v1420, 8
      %v1451 = vpop.permute.xlu0 %1450
      %1452 = vrot.lane.b32.xlu0 %v1421, 8
      %v1453 = vpop.permute.xlu0 %1452
      %v1458 = vsel %vm890, 0.0, %v1447
      %v1459 = vsel %vm890, 0.0, %v1449
      %v1460 = vsel %vm890, 0.0, %v1451
      %v1461 = vsel %vm890, 0.0, %v1453
      %1462 = vrot.lane.b32.xlu0 %v1418, 7
      %v1463 = vpop.permute.xlu0 %1462
      %1464 = vrot.lane.b32.xlu0 %v1419, 7
      %v1465 = vpop.permute.xlu0 %1464
      %1466 = vrot.lane.b32.xlu0 %v1420, 7
      %v1467 = vpop.permute.xlu0 %1466
      %1468 = vrot.lane.b32.xlu0 %v1421, 7
      %v1469 = vpop.permute.xlu0 %1468
      %v1474 = vsel %vm899, 0.0, %v1463
      %v1475 = vsel %vm899, 0.0, %v1465
      %v1476 = vsel %vm899, 0.0, %v1467
      %v1477 = vsel %vm899, 0.0, %v1469
      %v1478 = vmul.f32 %v1474, %v870
      %v1479 = vmul.f32 %v1475, %v870
      %v1480 = vmul.f32 %v1476, %v870
      %v1481 = vmul.f32 %v1477, %v870
      %1482 = vrot.lane.b32.xlu0 %v1418, 1
      %v1483 = vpop.permute.xlu0 %1482
      %1484 = vrot.lane.b32.xlu0 %v1419, 1
      %v1485 = vpop.permute.xlu0 %1484
      %1486 = vrot.lane.b32.xlu0 %v1420, 1
      %v1487 = vpop.permute.xlu0 %1486
      %1488 = vrot.lane.b32.xlu0 %v1421, 1
      %v1489 = vpop.permute.xlu0 %1488
      %v1494 = vsel %vm910, 0.0, %v1483
      %v1495 = vsel %vm910, 0.0, %v1485
      %v1496 = vsel %vm910, 0.0, %v1487
      %v1497 = vsel %vm910, 0.0, %v1489
      %v1498 = vmul.f32 %v1494, %v867
      %v1499 = vmul.f32 %v1495, %v867
      %v1500 = vmul.f32 %v1496, %v867
      %v1501 = vmul.f32 %v1497, %v867
      %1502 = vrot.lane.b32.xlu0 %v1418, 127
      %v1503 = vpop.permute.xlu0 %1502
      %1504 = vrot.lane.b32.xlu0 %v1419, 127
      %v1505 = vpop.permute.xlu0 %1504
      %1506 = vrot.lane.b32.xlu0 %v1420, 127
      %v1507 = vpop.permute.xlu0 %1506
      %1508 = vrot.lane.b32.xlu0 %v1421, 127
      %v1509 = vpop.permute.xlu0 %1508
      %v1514 = vsel %vm921, %v1503, 0.0
      %v1515 = vsel %vm921, %v1505, 0.0
      %v1516 = vsel %vm921, %v1507, 0.0
      %v1517 = vsel %vm921, %v1509, 0.0
      %v1518 = vmul.f32 %v1514, %v870
      %v1519 = vmul.f32 %v1515, %v870
      %v1520 = vmul.f32 %v1516, %v870
      %v1521 = vmul.f32 %v1517, %v870
      %1522 = vrot.lane.b32.xlu0 %v1418, 121
      %v1523 = vpop.permute.xlu0 %1522
      %1524 = vrot.lane.b32.xlu0 %v1419, 121
      %v1525 = vpop.permute.xlu0 %1524
      %1526 = vrot.lane.b32.xlu0 %v1420, 121
      %v1527 = vpop.permute.xlu0 %1526
      %1528 = vrot.lane.b32.xlu0 %v1421, 121
      %v1529 = vpop.permute.xlu0 %1528
      %v1534 = vsel %vm932, %v1523, 0.0
      %v1535 = vsel %vm932, %v1525, 0.0
      %v1536 = vsel %vm932, %v1527, 0.0
      %v1537 = vsel %vm932, %v1529, 0.0
      %v1538 = vmul.f32 %v1534, %v867
      %v1539 = vmul.f32 %v1535, %v867
      %v1540 = vmul.f32 %v1536, %v867
      %v1541 = vmul.f32 %v1537, %v867
      %1542 = vrot.lane.b32.xlu0 %v1418, 120
      %v1543 = vpop.permute.xlu0 %1542
      %1544 = vrot.lane.b32.xlu0 %v1419, 120
      %v1545 = vpop.permute.xlu0 %1544
      %1546 = vrot.lane.b32.xlu0 %v1420, 120
      %v1547 = vpop.permute.xlu0 %1546
      %1548 = vrot.lane.b32.xlu0 %v1421, 120
      %v1549 = vpop.permute.xlu0 %1548
      %v1554 = vsel %vm943, %v1543, 0.0
      %v1555 = vsel %vm943, %v1545, 0.0
      %v1556 = vsel %vm943, %v1547, 0.0
      %v1557 = vsel %vm943, %v1549, 0.0
      %1558 = vrot.lane.b32.xlu0 %v1418, 119
      %v1559 = vpop.permute.xlu0 %1558
      %1560 = vrot.lane.b32.xlu0 %v1419, 119
      %v1561 = vpop.permute.xlu0 %1560
      %1562 = vrot.lane.b32.xlu0 %v1420, 119
      %v1563 = vpop.permute.xlu0 %1562
      %1564 = vrot.lane.b32.xlu0 %v1421, 119
      %v1565 = vpop.permute.xlu0 %1564
      %v1570 = vsel %vm952, %v1559, 0.0
      %v1571 = vsel %vm952, %v1561, 0.0
      %v1572 = vsel %vm952, %v1563, 0.0
      %v1573 = vsel %vm952, %v1565, 0.0
      %v1574 = vmul.f32 %v1570, %v870
      %v1575 = vmul.f32 %v1571, %v870
      %v1576 = vmul.f32 %v1572, %v870
      %v1577 = vmul.f32 %v1573, %v870
      %v1578 = vld [vmem:[%s8] sm:$0xff]
      %v1579 = vld [vmem:[%s8 + $0x8] sm:$0xff]
      %v1580 = vld [vmem:[%s8 + $0x10] sm:$0xff]
      %v1581 = vld [vmem:[%s8 + $0x18] sm:$0xff]
      %v1582 = vld [vmem:[%s8 + $0x20] sm:$0xff]
      %v1583 = vld [vmem:[%s8 + $0x28] sm:$0xff]
      %v1584 = vld [vmem:[%s8 + $0x30] sm:$0xff]
      %v1585 = vld [vmem:[%s8 + $0x38] sm:$0xff]
      %v1586 = vld [vmem:[%s8 + $0x40] sm:$0xff]
      %v1587 = vld [vmem:[%s8 + $0x48] sm:$0xff]
      %v1588 = vld [vmem:[%s8 + $0x50] sm:$0xff]
      %v1589 = vld [vmem:[%s8 + $0x58] sm:$0xff]
      %v1591 = vsel %vm1079, %v1580, 0
      %v1594 = vsel %vm1079, %v1583, 0
      %v1597 = vsel %vm1079, %v1586, 0
      %v1600 = vsel %vm1079, %v1589, 0
      %1602 = vmatprep.subr.mxu0 0.0
      %1603 = vmatpush1.msra.mxu0 %v1442
      %1604 = vmatprep.subr.mxu0 0.0
      %1605 = vmatpush1.msra.mxu0 %v1443
      %1606 = vmatprep.subr.mxu0 0.0
      %1607 = vmatpush1.msra.mxu0 %v1444
      %1608 = vmatprep.subr.mxu0 0.0
      %1609 = vmatpush1.msra.mxu0 %v1445
      %1610 = vmatprep.subr.mxu0 0.0
      %1611 = vmatpush1.msra.mxu0 %v1458
      %1612 = vmatprep.subr.mxu0 0.0
      %1613 = vmatpush1.msra.mxu0 %v1459
      %1614 = vmatprep.subr.mxu0 0.0
      %1615 = vmatpush1.msra.mxu0 %v1460
      %1616 = vmatprep.subr.mxu0 0.0
      %1617 = vmatpush1.msra.mxu0 %v1461
      %1618 = vmatprep.subr.mxu0 0.0
      %1619 = vmatpush1.msra.mxu0 %v1478
      %1620 = vmatprep.subr.mxu0 0.0
      %1621 = vmatpush1.msra.mxu0 %v1479
      %1622 = vmatprep.subr.mxu0 0.0
      %1623 = vmatpush1.msra.mxu0 %v1480
      %1624 = vmatprep.subr.mxu0 0.0
      %1625 = vmatpush1.msra.mxu0 %v1481
      %1626 = vmatprep.subr.mxu0 0.0
      %1627 = vmatpush1.msra.mxu0 %v1498
      %1628 = vmatprep.subr.mxu0 0.0
      %1629 = vmatpush1.msra.mxu0 %v1499
      %1630 = vmatprep.subr.mxu0 0.0
      %1631 = vmatpush1.msra.mxu0 %v1500
      %1632 = vmatprep.subr.mxu0 0.0
      %1633 = vmatpush1.msra.mxu0 %v1501
      %1634 = vmatprep.subr.mxu0 0.0
      %1635 = vmatpush1.msra.mxu0 %v1418
      %1636 = vmatprep.subr.mxu0 0.0
      %1637 = vmatpush1.msra.mxu0 %v1419
      %1638 = vmatprep.subr.mxu0 0.0
      %1639 = vmatpush1.msra.mxu0 %v1420
      %1640 = vmatprep.subr.mxu0 0.0
      %1641 = vmatpush1.msra.mxu0 %v1421
      %1642 = vmatprep.subr.mxu0 0.0
      %1643 = vmatpush1.msra.mxu0 %v1518
      %1644 = vmatprep.subr.mxu0 0.0
      %1645 = vmatpush1.msra.mxu0 %v1519
      %1646 = vmatprep.subr.mxu0 0.0
      %1647 = vmatpush1.msra.mxu0 %v1520
      %1648 = vmatprep.subr.mxu0 0.0
      %1649 = vmatpush1.msra.mxu0 %v1521
      %1650 = vmatprep.subr.mxu0 0.0
      %1651 = vmatpush1.msra.mxu0 %v1538
      %1652 = vmatprep.subr.mxu0 0.0
      %1653 = vmatpush1.msra.mxu0 %v1539
      %1654 = vmatprep.subr.mxu0 0.0
      %1655 = vmatpush1.msra.mxu0 %v1540
      %1656 = vmatprep.subr.mxu0 0.0
      %1657 = vmatpush1.msra.mxu0 %v1541
      %1658 = vmatprep.subr.mxu0 0.0
      %1659 = vmatpush1.msra.mxu0 %v1554
      %1660 = vmatprep.subr.mxu0 0.0
      %1661 = vmatpush1.msra.mxu0 %v1555
      %1662 = vmatprep.subr.mxu0 0.0
      %1663 = vmatpush1.msra.mxu0 %v1556
      %1664 = vmatprep.subr.mxu0 0.0
      %1665 = vmatpush1.msra.mxu0 %v1557
      %1666 = vmatprep.mubr.f32.mxu0 %v1579
      %1667 = vmatmul.mubr.f32.gmra.mrb[0].mxu0 %v1578
      %v1668 = vpop.f32.mrb[0].mxu0
      %v1669 = vadd.f32 0.0, %v1668
      %v1670 = vpop.f32.mrb[0].mxu0
      %1671 = vmatprep.mubr.f32.mxu0 %v1582
      %1672 = vmatmul.mubr.f32.gmra.mrb[0].mxu0 %v1581
      %v1673 = vpop.f32.mrb[0].mxu0
      %v1674 = vadd.f32 0.0, %v1673
      %v1675 = vpop.f32.mrb[0].mxu0
      %1676 = vmatprep.mubr.f32.mxu0 %v1585
      %1677 = vmatmul.mubr.f32.gmra.mrb[0].mxu0 %v1584
      %v1678 = vpop.f32.mrb[0].mxu0
      %v1679 = vadd.f32 0.0, %v1678
      %v1680 = vpop.f32.mrb[0].mxu0
      %1681 = vmatprep.mubr.f32.mxu0 %v1588
      %1682 = vmatmul.mubr.f32.gmra.mrb[0].mxu0 %v1587
      %v1683 = vpop.f32.mrb[0].mxu0
      %v1684 = vadd.f32 0.0, %v1683
      %v1685 = vpop.f32.mrb[0].mxu0
      %1686 = vdwg.mxu0
      %1687 = vmatprep.subr.mxu0 0.0
      %1688 = vmatpush1.msra.mxu0 %v1574
      %1689 = vmatprep.subr.mxu0 0.0
      %1690 = vmatpush1.msra.mxu0 %v1575
      %1691 = vmatprep.subr.mxu0 0.0
      %1692 = vmatpush1.msra.mxu0 %v1576
      %1693 = vmatprep.subr.mxu0 0.0
      %1694 = vmatpush1.msra.mxu0 %v1577
      %1695 = vmatprep.subr.mxu0 0.0
      %1696 = vmatpush1.msra.mxu0 0.0
      %1697 = vmatprep.subr.mxu0 0.0
      %1698 = vmatpush1.msra.mxu0 0.0
      %1699 = vmatprep.subr.mxu0 0.0
      %1700 = vmatpush1.msra.mxu0 0.0
      %1701 = vmatprep.subr.mxu0 0.0
      %1702 = vmatpush1.msra.mxu0 0.0
      %1703 = vmatprep.subr.mxu0 0.0
      %1704 = vmatpush1.msra.mxu0 0.0
      %1705 = vmatprep.subr.mxu0 0.0
      %1706 = vmatpush1.msra.mxu0 0.0
      %1707 = vmatprep.subr.mxu0 0.0
      %1708 = vmatpush1.msra.mxu0 0.0
      %1709 = vmatprep.subr.mxu0 0.0
      %1710 = vmatpush1.msra.mxu0 0.0
      %1711 = vmatprep.subr.mxu0 0.0
      %1712 = vmatpush1.msra.mxu0 0.0
      %1713 = vmatprep.subr.mxu0 0.0
      %1714 = vmatpush1.msra.mxu0 0.0
      %1715 = vmatprep.subr.mxu0 0.0
      %1716 = vmatpush1.msra.mxu0 0.0
      %1717 = vmatprep.subr.mxu0 0.0
      %1718 = vmatpush1.msra.mxu0 0.0
      %1719 = vmatprep.subr.mxu0 0.0
      %1720 = vmatpush1.msra.mxu0 0.0
      %1721 = vmatprep.subr.mxu0 0.0
      %1722 = vmatpush1.msra.mxu0 0.0
      %1723 = vmatprep.subr.mxu0 0.0
      %1724 = vmatpush1.msra.mxu0 0.0
      %1725 = vmatprep.subr.mxu0 0.0
      %1726 = vmatpush1.msra.mxu0 0.0
      %1727 = vmatprep.subr.mxu0 0.0
      %1728 = vmatpush1.msra.mxu0 0.0
      %1729 = vmatprep.subr.mxu0 0.0
      %1730 = vmatpush1.msra.mxu0 0.0
      %1731 = vmatprep.subr.mxu0 0.0
      %1732 = vmatpush1.msra.mxu0 0.0
      %1733 = vmatprep.subr.mxu0 0.0
      %1734 = vmatpush1.msra.mxu0 0.0
      %1735 = vmatprep.subr.mxu0 0.0
      %1736 = vmatpush1.msra.mxu0 0.0
      %1737 = vmatprep.subr.mxu0 0.0
      %1738 = vmatpush1.msra.mxu0 0.0
      %1739 = vmatprep.subr.mxu0 0.0
      %1740 = vmatpush1.msra.mxu0 0.0
      %1741 = vmatprep.subr.mxu0 0.0
      %1742 = vmatpush1.msra.mxu0 0.0
      %1743 = vmatprep.subr.mxu0 0.0
      %1744 = vmatpush1.msra.mxu0 0.0
      %1745 = vmatprep.subr.mxu0 0.0
      %1746 = vmatpush1.msra.mxu0 0.0
      %1747 = vmatprep.subr.mxu0 0.0
      %1748 = vmatpush1.msra.mxu0 0.0
      %1749 = vmatprep.subr.mxu0 0.0
      %1750 = vmatpush1.msra.mxu0 0.0
      %1751 = vmatprep.mubr.f32.mxu0 0.0
      %1752 = vmatmul.mubr.f32.gmra.mrb[0].mxu0 %v1591
      %v1753 = vpop.f32.mrb[0].mxu0
      %v1754 = vadd.f32 %v1669, %v1753
      %v1755 = vpop.f32.mrb[0].mxu0
      %1756 = vmatprep.mubr.f32.mxu0 0.0
      %1757 = vmatmul.mubr.f32.gmra.mrb[0].mxu0 %v1594
      %v1758 = vpop.f32.mrb[0].mxu0
      %v1759 = vadd.f32 %v1674, %v1758
      %v1760 = vpop.f32.mrb[0].mxu0
      %1761 = vmatprep.mubr.f32.mxu0 0.0
      %1762 = vmatmul.mubr.f32.gmra.mrb[0].mxu0 %v1597
      %v1763 = vpop.f32.mrb[0].mxu0
      %v1764 = vadd.f32 %v1679, %v1763
      %v1765 = vpop.f32.mrb[0].mxu0
      %1766 = vmatprep.mubr.f32.mxu0 0.0
      %1767 = vmatmul.mubr.f32.gmra.mrb[0].mxu0 %v1600
      %v1768 = vpop.f32.mrb[0].mxu0
      %v1769 = vadd.f32 %v1684, %v1768
      %v1770 = vpop.f32.mrb[0].mxu0
      %1771 = vdwg.mxu0
      %v1772 = vsel %vm1062, %v1754, 0.0
      %1773 = vadd.xlane.f32.xlu0 %v1772
      %v1774 = vpop.xlane.xlu0 %1773
      %v1775 = vsel %vm1062, %v1759, 0.0
      %1776 = vadd.xlane.f32.xlu0 %v1775
      %v1777 = vpop.xlane.xlu0 %1776
      %v1778 = vsel %vm1062, %v1764, 0.0
      %1779 = vadd.xlane.f32.xlu0 %v1778
      %v1780 = vpop.xlane.xlu0 %1779
      %v1781 = vsel %vm1062, %v1769, 0.0
      %1782 = vadd.xlane.f32.xlu0 %v1781
      %v1783 = vpop.xlane.xlu0 %1782
      %1784 = vmatprep.subr.mxu0 0.0
      %1785 = vmatpush1.msra.mxu0 %v1774
      %1786 = vmatprep.subr.mxu0 0.0
      %1787 = vmatpush1.msra.mxu0 %v1777
      %1788 = vmatprep.subr.mxu0 0.0
      %1789 = vmatpush1.msra.mxu0 %v1780
      %1790 = vmatprep.subr.mxu0 0.0
      %1791 = vmatpush1.msra.mxu0 %v1783
      %1792 = vmatprep.subr.mxu0 0.0
      %1793 = vmatpush1.msra.mxu0 0.0
      %1794 = vmatprep.subr.mxu0 0.0
      %1795 = vmatpush1.msra.mxu0 0.0
      %1796 = vmatprep.subr.mxu0 0.0
      %1797 = vmatpush1.msra.mxu0 0.0
      %1798 = vmatprep.subr.mxu0 0.0
      %1799 = vmatpush1.msra.mxu0 0.0
      %1800 = vmatprep.subr.mxu0 0.0
      %1801 = vmatpush1.msra.mxu0 0.0
      %1802 = vmatprep.subr.mxu0 0.0
      %1803 = vmatpush1.msra.mxu0 0.0
      %1804 = vmatprep.subr.mxu0 0.0
      %1805 = vmatpush1.msra.mxu0 0.0
      %1806 = vmatprep.subr.mxu0 0.0
      %1807 = vmatpush1.msra.mxu0 0.0
      %1808 = vmatprep.subr.mxu0 0.0
      %1809 = vmatpush1.msra.mxu0 0.0
      %1810 = vmatprep.subr.mxu0 0.0
      %1811 = vmatpush1.msra.mxu0 0.0
      %1812 = vmatprep.subr.mxu0 0.0
      %1813 = vmatpush1.msra.mxu0 0.0
      %1814 = vmatprep.subr.mxu0 0.0
      %1815 = vmatpush1.msra.mxu0 0.0
      %1816 = vmatprep.subr.mxu0 0.0
      %1817 = vmatpush1.msra.mxu0 0.0
      %1818 = vmatprep.subr.mxu0 0.0
      %1819 = vmatpush1.msra.mxu0 0.0
      %1820 = vmatprep.subr.mxu0 0.0
      %1821 = vmatpush1.msra.mxu0 0.0
      %1822 = vmatprep.subr.mxu0 0.0
      %1823 = vmatpush1.msra.mxu0 0.0
      %1824 = vmatprep.subr.mxu0 0.0
      %1825 = vmatpush1.msra.mxu0 0.0
      %1826 = vmatprep.subr.mxu0 0.0
      %1827 = vmatpush1.msra.mxu0 0.0
      %1828 = vmatprep.subr.mxu0 0.0
      %1829 = vmatpush1.msra.mxu0 0.0
      %1830 = vmatprep.subr.mxu0 0.0
      %1831 = vmatpush1.msra.mxu0 0.0
      %1832 = vmatprep.subr.mxu0 0.0
      %1833 = vmatpush1.msra.mxu0 0.0
      %1834 = vmatprep.subr.mxu0 0.0
      %1835 = vmatpush1.msra.mxu0 0.0
      %1836 = vmatprep.subr.mxu0 0.0
      %1837 = vmatpush1.msra.mxu0 0.0
      %1838 = vmatprep.subr.mxu0 0.0
      %1839 = vmatpush1.msra.mxu0 0.0
      %1840 = vmatprep.subr.mxu0 0.0
      %1841 = vmatpush1.msra.mxu0 0.0
      %1842 = vmatprep.subr.mxu0 0.0
      %1843 = vmatpush1.msra.mxu0 0.0
      %1844 = vmatprep.subr.mxu0 0.0
      %1845 = vmatpush1.msra.mxu0 0.0
      %1846 = vmatprep.subr.mxu0 0.0
      %1847 = vmatpush1.msra.mxu0 0.0
      %1848 = vmatprep.mubr.f32.mxu0 0.0
      %1849 = vmatmul.mubr.f32.gmra.mrb[0].mxu0 %v1081
      %v1850 = vpop.f32.mrb[0].mxu0
      %v1851 = vadd.f32 0.0, %v1850
      %v1852 = vpop.f32.mrb[0].mxu0
      %1853 = vmatprep.mubr.f32.mxu0 0.0
      %1854 = vmatmul.mubr.f32.gmra.mrb[0].mxu0 %v1084
      %v1855 = vpop.f32.mrb[0].mxu0
      %v1856 = vadd.f32 0.0, %v1855
      %v1857 = vpop.f32.mrb[0].mxu0
      %1858 = vmatprep.mubr.f32.mxu0 0.0
      %1859 = vmatmul.mubr.f32.gmra.mrb[0].mxu0 %v1087
      %v1860 = vpop.f32.mrb[0].mxu0
      %v1861 = vadd.f32 0.0, %v1860
      %v1862 = vpop.f32.mrb[0].mxu0
      %1863 = vmatprep.mubr.f32.mxu0 0.0
      %1864 = vmatmul.mubr.f32.gmra.mrb[0].mxu0 %v1090
      %v1865 = vpop.f32.mrb[0].mxu0
      %v1866 = vadd.f32 0.0, %v1865
      %v1867 = vpop.f32.mrb[0].mxu0
      %1868 = vdwg.mxu0
      %v1869 = vmul.f32 %v1851, 0.00390625
      %v1870 = vmul.f32 %v1856, 0.00390625
      %v1871 = vmul.f32 %v1861, 0.00390625
      %v1872 = vmul.f32 %v1866, 0.00390625
      %1874 = vset.pattern.permute.xlu0 0
      %1875 = vperm.xlu0 %1874, %v1869
      %v1876 = vpop.permute.xlu0 %1875
      %1879 = vset.pattern.permute.xlu0 0
      %1880 = vperm.xlu0 %1879, %v1870
      %v1881 = vpop.permute.xlu0 %1880
      %1884 = vset.pattern.permute.xlu0 0
      %1885 = vperm.xlu0 %1884, %v1871
      %v1886 = vpop.permute.xlu0 %1885
      %1889 = vset.pattern.permute.xlu0 0
      %1890 = vperm.xlu0 %1889, %v1872
      %v1891 = vpop.permute.xlu0 %1890
      %v1893 = vsub.f32 %v1754, %v1876
      %v1894 = vsub.f32 %v1759, %v1881
      %v1895 = vsub.f32 %v1764, %v1886
      %v1896 = vsub.f32 %v1769, %v1891
      %v1897 = vmul.f32 %v1893, %v1893
      %v1898 = vmul.f32 %v1894, %v1894
      %v1899 = vmul.f32 %v1895, %v1895
      %v1900 = vmul.f32 %v1896, %v1896
      %v1901 = vsel %vm1062, %v1897, 0.0
      %1902 = vadd.xlane.f32.xlu0 %v1901
      %v1903 = vpop.xlane.xlu0 %1902
      %v1904 = vsel %vm1062, %v1898, 0.0
      %1905 = vadd.xlane.f32.xlu0 %v1904
      %v1906 = vpop.xlane.xlu0 %1905
      %v1907 = vsel %vm1062, %v1899, 0.0
      %1908 = vadd.xlane.f32.xlu0 %v1907
      %v1909 = vpop.xlane.xlu0 %1908
      %v1910 = vsel %vm1062, %v1900, 0.0
      %1911 = vadd.xlane.f32.xlu0 %v1910
      %v1912 = vpop.xlane.xlu0 %1911
      %1913 = vmatprep.subr.mxu0 0.0
      %1914 = vmatpush1.msra.mxu0 %v1903
      %1915 = vmatprep.subr.mxu0 0.0
      %1916 = vmatpush1.msra.mxu0 %v1906
      %1917 = vmatprep.subr.mxu0 0.0
      %1918 = vmatpush1.msra.mxu0 %v1909
      %1919 = vmatprep.subr.mxu0 0.0
      %1920 = vmatpush1.msra.mxu0 %v1912
      %1921 = vmatprep.subr.mxu0 0.0
      %1922 = vmatpush1.msra.mxu0 0.0
      %1923 = vmatprep.subr.mxu0 0.0
      %1924 = vmatpush1.msra.mxu0 0.0
      %1925 = vmatprep.subr.mxu0 0.0
      %1926 = vmatpush1.msra.mxu0 0.0
      %1927 = vmatprep.subr.mxu0 0.0
      %1928 = vmatpush1.msra.mxu0 0.0
      %1929 = vmatprep.subr.mxu0 0.0
      %1930 = vmatpush1.msra.mxu0 0.0
      %1931 = vmatprep.subr.mxu0 0.0
      %1932 = vmatpush1.msra.mxu0 0.0
      %1933 = vmatprep.subr.mxu0 0.0
      %1934 = vmatpush1.msra.mxu0 0.0
      %1935 = vmatprep.subr.mxu0 0.0
      %1936 = vmatpush1.msra.mxu0 0.0
      %1937 = vmatprep.subr.mxu0 0.0
      %1938 = vmatpush1.msra.mxu0 0.0
      %1939 = vmatprep.subr.mxu0 0.0
      %1940 = vmatpush1.msra.mxu0 0.0
      %1941 = vmatprep.subr.mxu0 0.0
      %1942 = vmatpush1.msra.mxu0 0.0
      %1943 = vmatprep.subr.mxu0 0.0
      %1944 = vmatpush1.msra.mxu0 0.0
      %1945 = vmatprep.subr.mxu0 0.0
      %1946 = vmatpush1.msra.mxu0 0.0
      %1947 = vmatprep.subr.mxu0 0.0
      %1948 = vmatpush1.msra.mxu0 0.0
      %1949 = vmatprep.subr.mxu0 0.0
      %1950 = vmatpush1.msra.mxu0 0.0
      %1951 = vmatprep.subr.mxu0 0.0
      %1952 = vmatpush1.msra.mxu0 0.0
      %1953 = vmatprep.subr.mxu0 0.0
      %1954 = vmatpush1.msra.mxu0 0.0
      %1955 = vmatprep.subr.mxu0 0.0
      %1956 = vmatpush1.msra.mxu0 0.0
      %1957 = vmatprep.subr.mxu0 0.0
      %1958 = vmatpush1.msra.mxu0 0.0
      %1959 = vmatprep.subr.mxu0 0.0
      %1960 = vmatpush1.msra.mxu0 0.0
      %1961 = vmatprep.subr.mxu0 0.0
      %1962 = vmatpush1.msra.mxu0 0.0
      %1963 = vmatprep.subr.mxu0 0.0
      %1964 = vmatpush1.msra.mxu0 0.0
      %1965 = vmatprep.subr.mxu0 0.0
      %1966 = vmatpush1.msra.mxu0 0.0
      %1967 = vmatprep.subr.mxu0 0.0
      %1968 = vmatpush1.msra.mxu0 0.0
      %1969 = vmatprep.subr.mxu0 0.0
      %1970 = vmatpush1.msra.mxu0 0.0
      %1971 = vmatprep.subr.mxu0 0.0
      %1972 = vmatpush1.msra.mxu0 0.0
      %1973 = vmatprep.subr.mxu0 0.0
      %1974 = vmatpush1.msra.mxu0 0.0
      %1975 = vmatprep.subr.mxu0 0.0
      %1976 = vmatpush1.msra.mxu0 0.0
      %1977 = vmatprep.mubr.f32.mxu0 0.0
      %1978 = vmatmul.mubr.f32.gmra.mrb[0].mxu0 %v1081
      %v1979 = vpop.f32.mrb[0].mxu0
      %v1980 = vadd.f32 0.0, %v1979
      %v1981 = vpop.f32.mrb[0].mxu0
      %1982 = vmatprep.mubr.f32.mxu0 0.0
      %1983 = vmatmul.mubr.f32.gmra.mrb[0].mxu0 %v1084
      %v1984 = vpop.f32.mrb[0].mxu0
      %v1985 = vadd.f32 0.0, %v1984
      %v1986 = vpop.f32.mrb[0].mxu0
      %1987 = vmatprep.mubr.f32.mxu0 0.0
      %1988 = vmatmul.mubr.f32.gmra.mrb[0].mxu0 %v1087
      %v1989 = vpop.f32.mrb[0].mxu0
      %v1990 = vadd.f32 0.0, %v1989
      %v1991 = vpop.f32.mrb[0].mxu0
      %1992 = vmatprep.mubr.f32.mxu0 0.0
      %1993 = vmatmul.mubr.f32.gmra.mrb[0].mxu0 %v1090
      %v1994 = vpop.f32.mrb[0].mxu0
      %v1995 = vadd.f32 0.0, %v1994
      %v1996 = vpop.f32.mrb[0].mxu0
      %1997 = vdwg.mxu0
      %v1998 = vmul.f32 %v1980, 0.00390625
      %v1999 = vmul.f32 %v1985, 0.00390625
      %v2000 = vmul.f32 %v1990, 0.00390625
      %v2001 = vmul.f32 %v1995, 0.00390625
      %v2002 = vmax.f32 %v1998, 0.0
      %v2003 = vmax.f32 %v1999, 0.0
      %v2004 = vmax.f32 %v2000, 0.0
      %v2005 = vmax.f32 %v2001, 0.0
      %v2006 = vadd.f32 %v2002, 1e-05
      %v2007 = vadd.f32 %v2003, 1e-05
      %v2008 = vadd.f32 %v2004, 1e-05
      %v2009 = vadd.f32 %v2005, 1e-05
      %v2010 = vrsqrt.pop %v2006
      %v2011 = vrsqrt.pop %v2007
      %v2012 = vrsqrt.pop %v2008
      %v2013 = vrsqrt.pop %v2009
      %2015 = vset.pattern.permute.xlu0 0
      %2016 = vperm.xlu0 %2015, %v2010
      %v2017 = vpop.permute.xlu0 %2016
      %2020 = vset.pattern.permute.xlu0 0
      %2021 = vperm.xlu0 %2020, %v2011
      %v2022 = vpop.permute.xlu0 %2021
      %2025 = vset.pattern.permute.xlu0 0
      %2026 = vperm.xlu0 %2025, %v2012
      %v2027 = vpop.permute.xlu0 %2026
      %2030 = vset.pattern.permute.xlu0 0
      %2031 = vperm.xlu0 %2030, %v2013
      %v2032 = vpop.permute.xlu0 %2031
      %v2034 = vmul.f32 %v1893, %v2017
      %v2035 = vmul.f32 %v1894, %v2022
      %v2036 = vmul.f32 %v1895, %v2027
      %v2037 = vmul.f32 %v1896, %v2032
      %v2038 = vld [vmem:[%s9] sm:$0xff]
      %v2039 = vld [vmem:[%s9 + $0x8] sm:$0xff]
      %v2040 = vld [vmem:[%s9 + $0x10] sm:$0xff]
      %v2041 = vld [vmem:[%s9 + $0x18] sm:$0xff]
      %2043 = vset.pattern.permute.xlu0 0
      %2044 = vperm.xlu0 %2043, %v2038
      %v2045 = vpop.permute.xlu0 %2044
      %2048 = vset.pattern.permute.xlu0 0
      %2049 = vperm.xlu0 %2048, %v2039
      %v2050 = vpop.permute.xlu0 %2049
      %2053 = vset.pattern.permute.xlu0 0
      %2054 = vperm.xlu0 %2053, %v2040
      %v2055 = vpop.permute.xlu0 %2054
      %2058 = vset.pattern.permute.xlu0 0
      %2059 = vperm.xlu0 %2058, %v2041
      %v2060 = vpop.permute.xlu0 %2059
      %v2062 = vmul.f32 %v2034, %v2045
      %v2063 = vmul.f32 %v2035, %v2050
      %v2064 = vmul.f32 %v2036, %v2055
      %v2065 = vmul.f32 %v2037, %v2060
      %v2066 = vld [vmem:[%s10] sm:$0xff]
      %v2067 = vld [vmem:[%s10 + $0x8] sm:$0xff]
      %v2068 = vld [vmem:[%s10 + $0x10] sm:$0xff]
      %v2069 = vld [vmem:[%s10 + $0x18] sm:$0xff]
      %2071 = vset.pattern.permute.xlu0 0
      %2072 = vperm.xlu0 %2071, %v2066
      %v2073 = vpop.permute.xlu0 %2072
      %2076 = vset.pattern.permute.xlu0 0
      %2077 = vperm.xlu0 %2076, %v2067
      %v2078 = vpop.permute.xlu0 %2077
      %2081 = vset.pattern.permute.xlu0 0
      %2082 = vperm.xlu0 %2081, %v2068
      %v2083 = vpop.permute.xlu0 %2082
      %2086 = vset.pattern.permute.xlu0 0
      %2087 = vperm.xlu0 %2086, %v2069
      %v2088 = vpop.permute.xlu0 %2087
      %v2090 = vadd.f32 %v2062, %v2073
      %v2091 = vadd.f32 %v2063, %v2078
      %v2092 = vadd.f32 %v2064, %v2083
      %v2093 = vadd.f32 %v2065, %v2088
      %v2094 = vmul.f32 %v2090, 0.5
      %v2095 = vmul.f32 %v2091, 0.5
      %v2096 = vmul.f32 %v2092, 0.5
      %v2097 = vmul.f32 %v2093, 0.5
      %v2098 = vmul.f32 %v2090, 0.70710677
      %v2099 = vmul.f32 %v2091, 0.70710677
      %v2100 = vmul.f32 %v2092, 0.70710677
      %v2101 = vmul.f32 %v2093, 0.70710677
      %v2102 = verf.f32.pop %v2098
      %v2103 = verf.f32.pop %v2099
      %v2104 = verf.f32.pop %v2100
      %v2105 = verf.f32.pop %v2101
      %v2106 = vadd.f32 %v2102, 1.0
      %v2107 = vadd.f32 %v2103, 1.0
      %v2108 = vadd.f32 %v2104, 1.0
      %v2109 = vadd.f32 %v2105, 1.0
      %v2110 = vmul.f32 %v2094, %v2106
      %v2111 = vmul.f32 %v2095, %v2107
      %v2112 = vmul.f32 %v2096, %v2108
      %v2113 = vmul.f32 %v2097, %v2109
      %v2114 = vld [vmem:[%s2] sm:$0xff]
      %v2115 = vld [vmem:[%s2 + $0x8] sm:$0xff]
      %v2116 = vld [vmem:[%s2 + $0x10] sm:$0xff]
      %v2117 = vld [vmem:[%s2 + $0x18] sm:$0xff]
      %v2118 = vld [vmem:[%s2 + $0x20] sm:$0xff]
      %v2119 = vld [vmem:[%s2 + $0x28] sm:$0xff]
      %v2120 = vld [vmem:[%s2 + $0x30] sm:$0xff]
      %v2121 = vld [vmem:[%s2 + $0x38] sm:$0xff]
      %v2122 = vld [vmem:[%s2 + $0x40] sm:$0xff]
      %v2123 = vld [vmem:[%s2 + $0x48] sm:$0xff]
      %v2124 = vld [vmem:[%s2 + $0x50] sm:$0xff]
      %v2125 = vld [vmem:[%s2 + $0x58] sm:$0xff]
      %v2126 = vld [vmem:[%s2 + $0x60] sm:$0xff]
      %v2127 = vld [vmem:[%s2 + $0x68] sm:$0xff]
      %v2128 = vld [vmem:[%s2 + $0x70] sm:$0xff]
      %v2129 = vld [vmem:[%s2 + $0x78] sm:$0xff]
      %v2131 = vsel %vm1062, %v2110, 0
      %v2134 = vsel %vm1062, %v2111, 0
      %v2137 = vsel %vm1062, %v2112, 0
      %v2140 = vsel %vm1062, %v2113, 0
      %2142 = vmatprep.subr.mxu0 %v2115
      %2143 = vmatpush1.msra.mxu0 %v2114
      %2144 = vmatprep.subr.mxu0 %v2117
      %2145 = vmatpush1.msra.mxu0 %v2116
      %2146 = vmatprep.subr.mxu0 %v2119
      %2147 = vmatpush1.msra.mxu0 %v2118
      %2148 = vmatprep.subr.mxu0 %v2121
      %2149 = vmatpush1.msra.mxu0 %v2120
      %2150 = vmatprep.subr.mxu0 %v2123
      %2151 = vmatpush1.msra.mxu0 %v2122
      %2152 = vmatprep.subr.mxu0 %v2125
      %2153 = vmatpush1.msra.mxu0 %v2124
      %2154 = vmatprep.subr.mxu0 %v2127
      %2155 = vmatpush1.msra.mxu0 %v2126
      %2156 = vmatprep.subr.mxu0 %v2129
      %2157 = vmatpush1.msra.mxu0 %v2128
      %2158 = vmatprep.subr.mxu0 0.0
      %2159 = vmatpush1.msra.mxu0 0.0
      %2160 = vmatprep.subr.mxu0 0.0
      %2161 = vmatpush1.msra.mxu0 0.0
      %2162 = vmatprep.subr.mxu0 0.0
      %2163 = vmatpush1.msra.mxu0 0.0
      %2164 = vmatprep.subr.mxu0 0.0
      %2165 = vmatpush1.msra.mxu0 0.0
      %2166 = vmatprep.subr.mxu0 0.0
      %2167 = vmatpush1.msra.mxu0 0.0
      %2168 = vmatprep.subr.mxu0 0.0
      %2169 = vmatpush1.msra.mxu0 0.0
      %2170 = vmatprep.subr.mxu0 0.0
      %2171 = vmatpush1.msra.mxu0 0.0
      %2172 = vmatprep.subr.mxu0 0.0
      %2173 = vmatpush1.msra.mxu0 0.0
      %2174 = vmatprep.subr.mxu0 0.0
      %2175 = vmatpush1.msra.mxu0 0.0
      %2176 = vmatprep.subr.mxu0 0.0
      %2177 = vmatpush1.msra.mxu0 0.0
      %2178 = vmatprep.subr.mxu0 0.0
      %2179 = vmatpush1.msra.mxu0 0.0
      %2180 = vmatprep.subr.mxu0 0.0
      %2181 = vmatpush1.msra.mxu0 0.0
      %2182 = vmatprep.subr.mxu0 0.0
      %2183 = vmatpush1.msra.mxu0 0.0
      %2184 = vmatprep.subr.mxu0 0.0
      %2185 = vmatpush1.msra.mxu0 0.0
      %2186 = vmatprep.subr.mxu0 0.0
      %2187 = vmatpush1.msra.mxu0 0.0
      %2188 = vmatprep.subr.mxu0 0.0
      %2189 = vmatpush1.msra.mxu0 0.0
      %2190 = vmatprep.subr.mxu0 0.0
      %2191 = vmatpush1.msra.mxu0 0.0
      %2192 = vmatprep.subr.mxu0 0.0
      %2193 = vmatpush1.msra.mxu0 0.0
      %2194 = vmatprep.subr.mxu0 0.0
      %2195 = vmatpush1.msra.mxu0 0.0
      %2196 = vmatprep.subr.mxu0 0.0
      %2197 = vmatpush1.msra.mxu0 0.0
      %2198 = vmatprep.subr.mxu0 0.0
      %2199 = vmatpush1.msra.mxu0 0.0
      %2200 = vmatprep.subr.mxu0 0.0
      %2201 = vmatpush1.msra.mxu0 0.0
      %2202 = vmatprep.subr.mxu0 0.0
      %2203 = vmatpush1.msra.mxu0 0.0
      %2204 = vmatprep.subr.mxu0 0.0
      %2205 = vmatpush1.msra.mxu0 0.0
      %2206 = vmatprep.mubr.f32.mxu0 0.0
      %2207 = vmatmul.mubr.f32.gmra.mrb[0].mxu0 %v2131
      %v2208 = vpop.f32.mrb[0].mxu0
      %v2209 = vadd.f32 0.0, %v2208
      %v2210 = vpop.f32.mrb[0].mxu0
      %v2211 = vadd.f32 0.0, %v2210
      %2212 = vmatprep.mubr.f32.mxu0 0.0
      %2213 = vmatmul.mubr.f32.gmra.mrb[0].mxu0 %v2134
      %v2214 = vpop.f32.mrb[0].mxu0
      %v2215 = vadd.f32 0.0, %v2214
      %v2216 = vpop.f32.mrb[0].mxu0
      %v2217 = vadd.f32 0.0, %v2216
      %2218 = vmatprep.mubr.f32.mxu0 0.0
      %2219 = vmatmul.mubr.f32.gmra.mrb[0].mxu0 %v2137
      %v2220 = vpop.f32.mrb[0].mxu0
      %v2221 = vadd.f32 0.0, %v2220
      %v2222 = vpop.f32.mrb[0].mxu0
      %v2223 = vadd.f32 0.0, %v2222
      %2224 = vmatprep.mubr.f32.mxu0 0.0
      %2225 = vmatmul.mubr.f32.gmra.mrb[0].mxu0 %v2140
      %v2226 = vpop.f32.mrb[0].mxu0
      %v2227 = vadd.f32 0.0, %v2226
      %v2228 = vpop.f32.mrb[0].mxu0
      %v2229 = vadd.f32 0.0, %v2228
      %2230 = vdwg.mxu0
      %v2231 = vadd.s32 %v852, 128
      %vm2232 = vcmp.lt.s32.totalorder %v852, 0
      %v2233 = vsub.s32 0, %v852
      %v2234 = vsel %vm2232, %v2233, %v852
      %v2235 = vshrl.u32 %v2234, 4
      %v2236 = vand.u32 %v2234, 15
      %v2237 = vsub.s32 0, %v2236
      %v2238 = vsel %vm2232, %v2237, %v2236
      %vm2239 = vcmp.lt.s32.totalorder %v2231, 0
      %v2240 = vsub.s32 0, %v2231
      %v2241 = vsel %vm2239, %v2240, %v2231
      %v2242 = vshrl.u32 %v2241, 4
      %v2243 = vand.u32 %v2241, 15
      %v2244 = vsub.s32 0, %v2243
      %v2245 = vsel %vm2239, %v2244, %v2243
      %vm2246 = vcmp.ne.s32.totalorder %v2238, 0
      %vm2247 = vcmp.ne.s32.totalorder %v2245, 0
      %vm2248 = vcmp.lt.s32.totalorder %v2238, 0
      %vm2249 = vcmp.lt.s32.totalorder %v2245, 0
      %vm2250 = vmand %vm2248, %vm2246
      %vm2251 = vmand %vm2249, %vm2247
      %v2252 = vadd.s32 %v2238, 16
      %v2253 = vadd.s32 %v2245, 16
      %v2254 = vsel %vm2250, %v2252, %v2238
      %v2255 = vsel %vm2251, %v2253, %v2245
      %vm2256 = vcmp.ge.s32.totalorder %v2254, 1
      %vm2257 = vcmp.ge.s32.totalorder %v2255, 1
      %v2258 = vsel %vm2256, 1, 0
      %v2259 = vsel %vm2257, 1, 0
      %v2260 = vcvt.s32.f32 %v2258
      %v2261 = vcvt.s32.f32 %v2259
      %vm2262 = vcmp.le.s32.totalorder %v2254, 14
      %vm2263 = vcmp.le.s32.totalorder %v2255, 14
      %v2264 = vsel %vm2262, 1, 0
      %v2265 = vsel %vm2263, 1, 0
      %v2266 = vcvt.s32.f32 %v2264
      %v2267 = vcvt.s32.f32 %v2265
      %2276 = vrot.lane.b32.xlu0 %v2209, 17
      %v2277 = vpop.permute.xlu0 %2276
      %2278 = vrot.lane.b32.xlu0 %v2211, 17
      %v2279 = vpop.permute.xlu0 %2278
      %2280 = vrot.lane.b32.xlu0 %v2215, 17
      %v2281 = vpop.permute.xlu0 %2280
      %2282 = vrot.lane.b32.xlu0 %v2217, 17
      %v2283 = vpop.permute.xlu0 %2282
      %2284 = vrot.lane.b32.xlu0 %v2221, 17
      %v2285 = vpop.permute.xlu0 %2284
      %2286 = vrot.lane.b32.xlu0 %v2223, 17
      %v2287 = vpop.permute.xlu0 %2286
      %2288 = vrot.lane.b32.xlu0 %v2227, 17
      %v2289 = vpop.permute.xlu0 %2288
      %2290 = vrot.lane.b32.xlu0 %v2229, 17
      %v2291 = vpop.permute.xlu0 %2290
      %vm2292 = vcmask 138240
      %v2293 = vsel %vm2292, %v2277, %v2279
      %v2294 = vsel %vm2292, %v2281, %v2283
      %v2295 = vsel %vm2292, %v2285, %v2287
      %v2296 = vsel %vm2292, %v2289, %v2291
      %v2305 = vsel %vm2292, 0.0, %v2277
      %v2306 = vsel %vm2292, 0.0, %v2281
      %v2307 = vsel %vm2292, 0.0, %v2285
      %v2308 = vsel %vm2292, 0.0, %v2289
      %v2309 = vmul.f32 %v2305, %v2260
      %v2310 = vmul.f32 %v2293, %v2261
      %v2311 = vmul.f32 %v2306, %v2260
      %v2312 = vmul.f32 %v2294, %v2261
      %v2313 = vmul.f32 %v2307, %v2260
      %v2314 = vmul.f32 %v2295, %v2261
      %v2315 = vmul.f32 %v2308, %v2260
      %v2316 = vmul.f32 %v2296, %v2261
      %2317 = vrot.lane.b32.xlu0 %v2209, 16
      %v2318 = vpop.permute.xlu0 %2317
      %2319 = vrot.lane.b32.xlu0 %v2211, 16
      %v2320 = vpop.permute.xlu0 %2319
      %2321 = vrot.lane.b32.xlu0 %v2215, 16
      %v2322 = vpop.permute.xlu0 %2321
      %2323 = vrot.lane.b32.xlu0 %v2217, 16
      %v2324 = vpop.permute.xlu0 %2323
      %2325 = vrot.lane.b32.xlu0 %v2221, 16
      %v2326 = vpop.permute.xlu0 %2325
      %2327 = vrot.lane.b32.xlu0 %v2223, 16
      %v2328 = vpop.permute.xlu0 %2327
      %2329 = vrot.lane.b32.xlu0 %v2227, 16
      %v2330 = vpop.permute.xlu0 %2329
      %2331 = vrot.lane.b32.xlu0 %v2229, 16
      %v2332 = vpop.permute.xlu0 %2331
      %v2333 = vsel %vm769, %v2318, %v2320
      %v2334 = vsel %vm769, %v2322, %v2324
      %v2335 = vsel %vm769, %v2326, %v2328
      %v2336 = vsel %vm769, %v2330, %v2332
      %v2345 = vsel %vm769, 0.0, %v2318
      %v2346 = vsel %vm769, 0.0, %v2322
      %v2347 = vsel %vm769, 0.0, %v2326
      %v2348 = vsel %vm769, 0.0, %v2330
      %2349 = vrot.lane.b32.xlu0 %v2209, 15
      %v2350 = vpop.permute.xlu0 %2349
      %2351 = vrot.lane.b32.xlu0 %v2211, 15
      %v2352 = vpop.permute.xlu0 %2351
      %2353 = vrot.lane.b32.xlu0 %v2215, 15
      %v2354 = vpop.permute.xlu0 %2353
      %2355 = vrot.lane.b32.xlu0 %v2217, 15
      %v2356 = vpop.permute.xlu0 %2355
      %2357 = vrot.lane.b32.xlu0 %v2221, 15
      %v2358 = vpop.permute.xlu0 %2357
      %2359 = vrot.lane.b32.xlu0 %v2223, 15
      %v2360 = vpop.permute.xlu0 %2359
      %2361 = vrot.lane.b32.xlu0 %v2227, 15
      %v2362 = vpop.permute.xlu0 %2361
      %2363 = vrot.lane.b32.xlu0 %v2229, 15
      %v2364 = vpop.permute.xlu0 %2363
      %vm2365 = vcmask 121856
      %v2366 = vsel %vm2365, %v2350, %v2352
      %v2367 = vsel %vm2365, %v2354, %v2356
      %v2368 = vsel %vm2365, %v2358, %v2360
      %v2369 = vsel %vm2365, %v2362, %v2364
      %v2378 = vsel %vm2365, 0.0, %v2350
      %v2379 = vsel %vm2365, 0.0, %v2354
      %v2380 = vsel %vm2365, 0.0, %v2358
      %v2381 = vsel %vm2365, 0.0, %v2362
      %v2382 = vmul.f32 %v2378, %v2266
      %v2383 = vmul.f32 %v2366, %v2267
      %v2384 = vmul.f32 %v2379, %v2266
      %v2385 = vmul.f32 %v2367, %v2267
      %v2386 = vmul.f32 %v2380, %v2266
      %v2387 = vmul.f32 %v2368, %v2267
      %v2388 = vmul.f32 %v2381, %v2266
      %v2389 = vmul.f32 %v2369, %v2267
      %2390 = vrot.lane.b32.xlu0 %v2209, 1
      %v2391 = vpop.permute.xlu0 %2390
      %2392 = vrot.lane.b32.xlu0 %v2211, 1
      %v2393 = vpop.permute.xlu0 %2392
      %2394 = vrot.lane.b32.xlu0 %v2215, 1
      %v2395 = vpop.permute.xlu0 %2394
      %2396 = vrot.lane.b32.xlu0 %v2217, 1
      %v2397 = vpop.permute.xlu0 %2396
      %2398 = vrot.lane.b32.xlu0 %v2221, 1
      %v2399 = vpop.permute.xlu0 %2398
      %2400 = vrot.lane.b32.xlu0 %v2223, 1
      %v2401 = vpop.permute.xlu0 %2400
      %2402 = vrot.lane.b32.xlu0 %v2227, 1
      %v2403 = vpop.permute.xlu0 %2402
      %2404 = vrot.lane.b32.xlu0 %v2229, 1
      %v2405 = vpop.permute.xlu0 %2404
      %v2406 = vsel %vm910, %v2391, %v2393
      %v2407 = vsel %vm910, %v2395, %v2397
      %v2408 = vsel %vm910, %v2399, %v2401
      %v2409 = vsel %vm910, %v2403, %v2405
      %v2418 = vsel %vm910, 0.0, %v2391
      %v2419 = vsel %vm910, 0.0, %v2395
      %v2420 = vsel %vm910, 0.0, %v2399
      %v2421 = vsel %vm910, 0.0, %v2403
      %v2422 = vmul.f32 %v2418, %v2260
      %v2423 = vmul.f32 %v2406, %v2261
      %v2424 = vmul.f32 %v2419, %v2260
      %v2425 = vmul.f32 %v2407, %v2261
      %v2426 = vmul.f32 %v2420, %v2260
      %v2427 = vmul.f32 %v2408, %v2261
      %v2428 = vmul.f32 %v2421, %v2260
      %v2429 = vmul.f32 %v2409, %v2261
      %2430 = vrot.lane.b32.xlu0 %v2209, 127
      %v2431 = vpop.permute.xlu0 %2430
      %2432 = vrot.lane.b32.xlu0 %v2211, 127
      %v2433 = vpop.permute.xlu0 %2432
      %2434 = vrot.lane.b32.xlu0 %v2215, 127
      %v2435 = vpop.permute.xlu0 %2434
      %2436 = vrot.lane.b32.xlu0 %v2217, 127
      %v2437 = vpop.permute.xlu0 %2436
      %2438 = vrot.lane.b32.xlu0 %v2221, 127
      %v2439 = vpop.permute.xlu0 %2438
      %2440 = vrot.lane.b32.xlu0 %v2223, 127
      %v2441 = vpop.permute.xlu0 %2440
      %2442 = vrot.lane.b32.xlu0 %v2227, 127
      %v2443 = vpop.permute.xlu0 %2442
      %2444 = vrot.lane.b32.xlu0 %v2229, 127
      %v2445 = vpop.permute.xlu0 %2444
      %vm2446 = vcmask 1039360
      %v2447 = vsel %vm2446, %v2431, %v2433
      %v2448 = vsel %vm2446, %v2435, %v2437
      %v2449 = vsel %vm2446, %v2439, %v2441
      %v2450 = vsel %vm2446, %v2443, %v2445
      %v2459 = vsel %vm2446, %v2433, 0.0
      %v2460 = vsel %vm2446, %v2437, 0.0
      %v2461 = vsel %vm2446, %v2441, 0.0
      %v2462 = vsel %vm2446, %v2445, 0.0
      %v2463 = vmul.f32 %v2447, %v2266
      %v2464 = vmul.f32 %v2459, %v2267
      %v2465 = vmul.f32 %v2448, %v2266
      %v2466 = vmul.f32 %v2460, %v2267
      %v2467 = vmul.f32 %v2449, %v2266
      %v2468 = vmul.f32 %v2461, %v2267
      %v2469 = vmul.f32 %v2450, %v2266
      %v2470 = vmul.f32 %v2462, %v2267
      %2471 = vrot.lane.b32.xlu0 %v2209, 113
      %v2472 = vpop.permute.xlu0 %2471
      %2473 = vrot.lane.b32.xlu0 %v2211, 113
      %v2474 = vpop.permute.xlu0 %2473
      %2475 = vrot.lane.b32.xlu0 %v2215, 113
      %v2476 = vpop.permute.xlu0 %2475
      %2477 = vrot.lane.b32.xlu0 %v2217, 113
      %v2478 = vpop.permute.xlu0 %2477
      %2479 = vrot.lane.b32.xlu0 %v2221, 113
      %v2480 = vpop.permute.xlu0 %2479
      %2481 = vrot.lane.b32.xlu0 %v2223, 113
      %v2482 = vpop.permute.xlu0 %2481
      %2483 = vrot.lane.b32.xlu0 %v2227, 113
      %v2484 = vpop.permute.xlu0 %2483
      %2485 = vrot.lane.b32.xlu0 %v2229, 113
      %v2486 = vpop.permute.xlu0 %2485
      %vm2487 = vcmask 924672
      %v2488 = vsel %vm2487, %v2472, %v2474
      %v2489 = vsel %vm2487, %v2476, %v2478
      %v2490 = vsel %vm2487, %v2480, %v2482
      %v2491 = vsel %vm2487, %v2484, %v2486
      %v2500 = vsel %vm2487, %v2474, 0.0
      %v2501 = vsel %vm2487, %v2478, 0.0
      %v2502 = vsel %vm2487, %v2482, 0.0
      %v2503 = vsel %vm2487, %v2486, 0.0
      %v2504 = vmul.f32 %v2488, %v2260
      %v2505 = vmul.f32 %v2500, %v2261
      %v2506 = vmul.f32 %v2489, %v2260
      %v2507 = vmul.f32 %v2501, %v2261
      %v2508 = vmul.f32 %v2490, %v2260
      %v2509 = vmul.f32 %v2502, %v2261
      %v2510 = vmul.f32 %v2491, %v2260
      %v2511 = vmul.f32 %v2503, %v2261
      %2512 = vrot.lane.b32.xlu0 %v2209, 112
      %v2513 = vpop.permute.xlu0 %2512
      %2514 = vrot.lane.b32.xlu0 %v2211, 112
      %v2515 = vpop.permute.xlu0 %2514
      %2516 = vrot.lane.b32.xlu0 %v2215, 112
      %v2517 = vpop.permute.xlu0 %2516
      %2518 = vrot.lane.b32.xlu0 %v2217, 112
      %v2519 = vpop.permute.xlu0 %2518
      %2520 = vrot.lane.b32.xlu0 %v2221, 112
      %v2521 = vpop.permute.xlu0 %2520
      %2522 = vrot.lane.b32.xlu0 %v2223, 112
      %v2523 = vpop.permute.xlu0 %2522
      %2524 = vrot.lane.b32.xlu0 %v2227, 112
      %v2525 = vpop.permute.xlu0 %2524
      %2526 = vrot.lane.b32.xlu0 %v2229, 112
      %v2527 = vpop.permute.xlu0 %2526
      %vm2528 = vcmask 916480
      %v2529 = vsel %vm2528, %v2513, %v2515
      %v2530 = vsel %vm2528, %v2517, %v2519
      %v2531 = vsel %vm2528, %v2521, %v2523
      %v2532 = vsel %vm2528, %v2525, %v2527
      %v2541 = vsel %vm2528, %v2515, 0.0
      %v2542 = vsel %vm2528, %v2519, 0.0
      %v2543 = vsel %vm2528, %v2523, 0.0
      %v2544 = vsel %vm2528, %v2527, 0.0
      %2545 = vrot.lane.b32.xlu0 %v2209, 111
      %v2546 = vpop.permute.xlu0 %2545
      %2547 = vrot.lane.b32.xlu0 %v2211, 111
      %v2548 = vpop.permute.xlu0 %2547
      %2549 = vrot.lane.b32.xlu0 %v2215, 111
      %v2550 = vpop.permute.xlu0 %2549
      %2551 = vrot.lane.b32.xlu0 %v2217, 111
      %v2552 = vpop.permute.xlu0 %2551
      %2553 = vrot.lane.b32.xlu0 %v2221, 111
      %v2554 = vpop.permute.xlu0 %2553
      %2555 = vrot.lane.b32.xlu0 %v2223, 111
      %v2556 = vpop.permute.xlu0 %2555
      %2557 = vrot.lane.b32.xlu0 %v2227, 111
      %v2558 = vpop.permute.xlu0 %2557
      %2559 = vrot.lane.b32.xlu0 %v2229, 111
      %v2560 = vpop.permute.xlu0 %2559
      %vm2561 = vcmask 908288
      %v2562 = vsel %vm2561, %v2546, %v2548
      %v2563 = vsel %vm2561, %v2550, %v2552
      %v2564 = vsel %vm2561, %v2554, %v2556
      %v2565 = vsel %vm2561, %v2558, %v2560
      %v2574 = vsel %vm2561, %v2548, 0.0
      %v2575 = vsel %vm2561, %v2552, 0.0
      %v2576 = vsel %vm2561, %v2556, 0.0
      %v2577 = vsel %vm2561, %v2560, 0.0
      %v2578 = vmul.f32 %v2562, %v2266
      %v2579 = vmul.f32 %v2574, %v2267
      %v2580 = vmul.f32 %v2563, %v2266
      %v2581 = vmul.f32 %v2575, %v2267
      %v2582 = vmul.f32 %v2564, %v2266
      %v2583 = vmul.f32 %v2576, %v2267
      %v2584 = vmul.f32 %v2565, %v2266
      %v2585 = vmul.f32 %v2577, %v2267
      %v2586 = vld [vmem:[%s11] sm:$0xff]
      %v2587 = vld [vmem:[%s11 + $0x8] sm:$0xff]
      %v2588 = vld [vmem:[%s11 + $0x10] sm:$0xff]
      %v2589 = vld [vmem:[%s11 + $0x18] sm:$0xff]
      %v2590 = vld [vmem:[%s11 + $0x20] sm:$0xff]
      %v2591 = vld [vmem:[%s11 + $0x28] sm:$0xff]
      %v2592 = vld [vmem:[%s11 + $0x30] sm:$0xff]
      %v2593 = vld [vmem:[%s11 + $0x38] sm:$0xff]
      %v2594 = vld [vmem:[%s11 + $0x40] sm:$0xff]
      %v2595 = vld [vmem:[%s11 + $0x48] sm:$0xff]
      %v2596 = vld [vmem:[%s11 + $0x50] sm:$0xff]
      %v2597 = vld [vmem:[%s11 + $0x58] sm:$0xff]
      %v2599 = vsel %vm1079, %v2588, 0
      %v2602 = vsel %vm1079, %v2591, 0
      %v2605 = vsel %vm1079, %v2594, 0
      %v2608 = vsel %vm1079, %v2597, 0
      %2610 = vmatprep.subr.mxu0 %v2310
      %2611 = vmatpush1.msra.mxu0 %v2309
      %2612 = vmatprep.subr.mxu0 %v2312
      %2613 = vmatpush1.msra.mxu0 %v2311
      %2614 = vmatprep.subr.mxu0 %v2314
      %2615 = vmatpush1.msra.mxu0 %v2313
      %2616 = vmatprep.subr.mxu0 %v2316
      %2617 = vmatpush1.msra.mxu0 %v2315
      %2618 = vmatprep.subr.mxu0 %v2333
      %2619 = vmatpush1.msra.mxu0 %v2345
      %2620 = vmatprep.subr.mxu0 %v2334
      %2621 = vmatpush1.msra.mxu0 %v2346
      %2622 = vmatprep.subr.mxu0 %v2335
      %2623 = vmatpush1.msra.mxu0 %v2347
      %2624 = vmatprep.subr.mxu0 %v2336
      %2625 = vmatpush1.msra.mxu0 %v2348
      %2626 = vmatprep.subr.mxu0 %v2383
      %2627 = vmatpush1.msra.mxu0 %v2382
      %2628 = vmatprep.subr.mxu0 %v2385
      %2629 = vmatpush1.msra.mxu0 %v2384
      %2630 = vmatprep.subr.mxu0 %v2387
      %2631 = vmatpush1.msra.mxu0 %v2386
      %2632 = vmatprep.subr.mxu0 %v2389
      %2633 = vmatpush1.msra.mxu0 %v2388
      %2634 = vmatprep.subr.mxu0 %v2423
      %2635 = vmatpush1.msra.mxu0 %v2422
      %2636 = vmatprep.subr.mxu0 %v2425
      %2637 = vmatpush1.msra.mxu0 %v2424
      %2638 = vmatprep.subr.mxu0 %v2427
      %2639 = vmatpush1.msra.mxu0 %v2426
      %2640 = vmatprep.subr.mxu0 %v2429
      %2641 = vmatpush1.msra.mxu0 %v2428
      %2642 = vmatprep.subr.mxu0 %v2211
      %2643 = vmatpush1.msra.mxu0 %v2209
      %2644 = vmatprep.subr.mxu0 %v2217
      %2645 = vmatpush1.msra.mxu0 %v2215
      %2646 = vmatprep.subr.mxu0 %v2223
      %2647 = vmatpush1.msra.mxu0 %v2221
      %2648 = vmatprep.subr.mxu0 %v2229
      %2649 = vmatpush1.msra.mxu0 %v2227
      %2650 = vmatprep.subr.mxu0 %v2464
      %2651 = vmatpush1.msra.mxu0 %v2463
      %2652 = vmatprep.subr.mxu0 %v2466
      %2653 = vmatpush1.msra.mxu0 %v2465
      %2654 = vmatprep.subr.mxu0 %v2468
      %2655 = vmatpush1.msra.mxu0 %v2467
      %2656 = vmatprep.subr.mxu0 %v2470
      %2657 = vmatpush1.msra.mxu0 %v2469
      %2658 = vmatprep.subr.mxu0 %v2505
      %2659 = vmatpush1.msra.mxu0 %v2504
      %2660 = vmatprep.subr.mxu0 %v2507
      %2661 = vmatpush1.msra.mxu0 %v2506
      %2662 = vmatprep.subr.mxu0 %v2509
      %2663 = vmatpush1.msra.mxu0 %v2508
      %2664 = vmatprep.subr.mxu0 %v2511
      %2665 = vmatpush1.msra.mxu0 %v2510
      %2666 = vmatprep.subr.mxu0 %v2541
      %2667 = vmatpush1.msra.mxu0 %v2529
      %2668 = vmatprep.subr.mxu0 %v2542
      %2669 = vmatpush1.msra.mxu0 %v2530
      %2670 = vmatprep.subr.mxu0 %v2543
      %2671 = vmatpush1.msra.mxu0 %v2531
      %2672 = vmatprep.subr.mxu0 %v2544
      %2673 = vmatpush1.msra.mxu0 %v2532
      %2674 = vmatprep.mubr.f32.mxu0 %v2587
      %2675 = vmatmul.mubr.f32.gmra.mrb[0].mxu0 %v2586
      %v2676 = vpop.f32.mrb[0].mxu0
      %v2677 = vadd.f32 0.0, %v2676
      %v2678 = vpop.f32.mrb[0].mxu0
      %v2679 = vadd.f32 0.0, %v2678
      %2680 = vmatprep.mubr.f32.mxu0 %v2590
      %2681 = vmatmul.mubr.f32.gmra.mrb[0].mxu0 %v2589
      %v2682 = vpop.f32.mrb[0].mxu0
      %v2683 = vadd.f32 0.0, %v2682
      %v2684 = vpop.f32.mrb[0].mxu0
      %v2685 = vadd.f32 0.0, %v2684
      %2686 = vmatprep.mubr.f32.mxu0 %v2593
      %2687 = vmatmul.mubr.f32.gmra.mrb[0].mxu0 %v2592
      %v2688 = vpop.f32.mrb[0].mxu0
      %v2689 = vadd.f32 0.0, %v2688
      %v2690 = vpop.f32.mrb[0].mxu0
      %v2691 = vadd.f32 0.0, %v2690
      %2692 = vmatprep.mubr.f32.mxu0 %v2596
      %2693 = vmatmul.mubr.f32.gmra.mrb[0].mxu0 %v2595
      %v2694 = vpop.f32.mrb[0].mxu0
      %v2695 = vadd.f32 0.0, %v2694
      %v2696 = vpop.f32.mrb[0].mxu0
      %v2697 = vadd.f32 0.0, %v2696
      %2698 = vdwg.mxu0
      %2699 = vmatprep.subr.mxu0 %v2579
      %2700 = vmatpush1.msra.mxu0 %v2578
      %2701 = vmatprep.subr.mxu0 %v2581
      %2702 = vmatpush1.msra.mxu0 %v2580
      %2703 = vmatprep.subr.mxu0 %v2583
      %2704 = vmatpush1.msra.mxu0 %v2582
      %2705 = vmatprep.subr.mxu0 %v2585
      %2706 = vmatpush1.msra.mxu0 %v2584
      %2707 = vmatprep.subr.mxu0 0.0
      %2708 = vmatpush1.msra.mxu0 0.0
      %2709 = vmatprep.subr.mxu0 0.0
      %2710 = vmatpush1.msra.mxu0 0.0
      %2711 = vmatprep.subr.mxu0 0.0
      %2712 = vmatpush1.msra.mxu0 0.0
      %2713 = vmatprep.subr.mxu0 0.0
      %2714 = vmatpush1.msra.mxu0 0.0
      %2715 = vmatprep.subr.mxu0 0.0
      %2716 = vmatpush1.msra.mxu0 0.0
      %2717 = vmatprep.subr.mxu0 0.0
      %2718 = vmatpush1.msra.mxu0 0.0
      %2719 = vmatprep.subr.mxu0 0.0
      %2720 = vmatpush1.msra.mxu0 0.0
      %2721 = vmatprep.subr.mxu0 0.0
      %2722 = vmatpush1.msra.mxu0 0.0
      %2723 = vmatprep.subr.mxu0 0.0
      %2724 = vmatpush1.msra.mxu0 0.0
      %2725 = vmatprep.subr.mxu0 0.0
      %2726 = vmatpush1.msra.mxu0 0.0
      %2727 = vmatprep.subr.mxu0 0.0
      %2728 = vmatpush1.msra.mxu0 0.0
      %2729 = vmatprep.subr.mxu0 0.0
      %2730 = vmatpush1.msra.mxu0 0.0
      %2731 = vmatprep.subr.mxu0 0.0
      %2732 = vmatpush1.msra.mxu0 0.0
      %2733 = vmatprep.subr.mxu0 0.0
      %2734 = vmatpush1.msra.mxu0 0.0
      %2735 = vmatprep.subr.mxu0 0.0
      %2736 = vmatpush1.msra.mxu0 0.0
      %2737 = vmatprep.subr.mxu0 0.0
      %2738 = vmatpush1.msra.mxu0 0.0
      %2739 = vmatprep.subr.mxu0 0.0
      %2740 = vmatpush1.msra.mxu0 0.0
      %2741 = vmatprep.subr.mxu0 0.0
      %2742 = vmatpush1.msra.mxu0 0.0
      %2743 = vmatprep.subr.mxu0 0.0
      %2744 = vmatpush1.msra.mxu0 0.0
      %2745 = vmatprep.subr.mxu0 0.0
      %2746 = vmatpush1.msra.mxu0 0.0
      %2747 = vmatprep.subr.mxu0 0.0
      %2748 = vmatpush1.msra.mxu0 0.0
      %2749 = vmatprep.subr.mxu0 0.0
      %2750 = vmatpush1.msra.mxu0 0.0
      %2751 = vmatprep.subr.mxu0 0.0
      %2752 = vmatpush1.msra.mxu0 0.0
      %2753 = vmatprep.subr.mxu0 0.0
      %2754 = vmatpush1.msra.mxu0 0.0
      %2755 = vmatprep.subr.mxu0 0.0
      %2756 = vmatpush1.msra.mxu0 0.0
      %2757 = vmatprep.subr.mxu0 0.0
      %2758 = vmatpush1.msra.mxu0 0.0
      %2759 = vmatprep.subr.mxu0 0.0
      %2760 = vmatpush1.msra.mxu0 0.0
      %2761 = vmatprep.subr.mxu0 0.0
      %2762 = vmatpush1.msra.mxu0 0.0
      %2763 = vmatprep.mubr.f32.mxu0 0.0
      %2764 = vmatmul.mubr.f32.gmra.mrb[0].mxu0 %v2599
      %v2765 = vpop.f32.mrb[0].mxu0
      %v2766 = vadd.f32 %v2677, %v2765
      %v2767 = vpop.f32.mrb[0].mxu0
      %v2768 = vadd.f32 %v2679, %v2767
      %2769 = vmatprep.mubr.f32.mxu0 0.0
      %2770 = vmatmul.mubr.f32.gmra.mrb[0].mxu0 %v2602
      %v2771 = vpop.f32.mrb[0].mxu0
      %v2772 = vadd.f32 %v2683, %v2771
      %v2773 = vpop.f32.mrb[0].mxu0
      %v2774 = vadd.f32 %v2685, %v2773
      %2775 = vmatprep.mubr.f32.mxu0 0.0
      %2776 = vmatmul.mubr.f32.gmra.mrb[0].mxu0 %v2605
      %v2777 = vpop.f32.mrb[0].mxu0
      %v2778 = vadd.f32 %v2689, %v2777
      %v2779 = vpop.f32.mrb[0].mxu0
      %v2780 = vadd.f32 %v2691, %v2779
      %2781 = vmatprep.mubr.f32.mxu0 0.0
      %2782 = vmatmul.mubr.f32.gmra.mrb[0].mxu0 %v2608
      %v2783 = vpop.f32.mrb[0].mxu0
      %v2784 = vadd.f32 %v2695, %v2783
      %v2785 = vpop.f32.mrb[0].mxu0
      %v2786 = vadd.f32 %v2697, %v2785
      %2787 = vdwg.mxu0
      %v2788 = vadd.f32 %v2766, %v2768
      %2789 = vadd.xlane.f32.xlu0 %v2788
      %v2790 = vpop.xlane.xlu0 %2789
      %v2791 = vadd.f32 %v2772, %v2774
      %2792 = vadd.xlane.f32.xlu0 %v2791
      %v2793 = vpop.xlane.xlu0 %2792
      %v2794 = vadd.f32 %v2778, %v2780
      %2795 = vadd.xlane.f32.xlu0 %v2794
      %v2796 = vpop.xlane.xlu0 %2795
      %v2797 = vadd.f32 %v2784, %v2786
      %2798 = vadd.xlane.f32.xlu0 %v2797
      %v2799 = vpop.xlane.xlu0 %2798
      %2800 = vmatprep.subr.mxu0 0.0
      %2801 = vmatpush1.msra.mxu0 %v2790
      %2802 = vmatprep.subr.mxu0 0.0
      %2803 = vmatpush1.msra.mxu0 %v2793
      %2804 = vmatprep.subr.mxu0 0.0
      %2805 = vmatpush1.msra.mxu0 %v2796
      %2806 = vmatprep.subr.mxu0 0.0
      %2807 = vmatpush1.msra.mxu0 %v2799
      %2808 = vmatprep.subr.mxu0 0.0
      %2809 = vmatpush1.msra.mxu0 0.0
      %2810 = vmatprep.subr.mxu0 0.0
      %2811 = vmatpush1.msra.mxu0 0.0
      %2812 = vmatprep.subr.mxu0 0.0
      %2813 = vmatpush1.msra.mxu0 0.0
      %2814 = vmatprep.subr.mxu0 0.0
      %2815 = vmatpush1.msra.mxu0 0.0
      %2816 = vmatprep.subr.mxu0 0.0
      %2817 = vmatpush1.msra.mxu0 0.0
      %2818 = vmatprep.subr.mxu0 0.0
      %2819 = vmatpush1.msra.mxu0 0.0
      %2820 = vmatprep.subr.mxu0 0.0
      %2821 = vmatpush1.msra.mxu0 0.0
      %2822 = vmatprep.subr.mxu0 0.0
      %2823 = vmatpush1.msra.mxu0 0.0
      %2824 = vmatprep.subr.mxu0 0.0
      %2825 = vmatpush1.msra.mxu0 0.0
      %2826 = vmatprep.subr.mxu0 0.0
      %2827 = vmatpush1.msra.mxu0 0.0
      %2828 = vmatprep.subr.mxu0 0.0
      %2829 = vmatpush1.msra.mxu0 0.0
      %2830 = vmatprep.subr.mxu0 0.0
      %2831 = vmatpush1.msra.mxu0 0.0
      %2832 = vmatprep.subr.mxu0 0.0
      %2833 = vmatpush1.msra.mxu0 0.0
      %2834 = vmatprep.subr.mxu0 0.0
      %2835 = vmatpush1.msra.mxu0 0.0
      %2836 = vmatprep.subr.mxu0 0.0
      %2837 = vmatpush1.msra.mxu0 0.0
      %2838 = vmatprep.subr.mxu0 0.0
      %2839 = vmatpush1.msra.mxu0 0.0
      %2840 = vmatprep.subr.mxu0 0.0
      %2841 = vmatpush1.msra.mxu0 0.0
      %2842 = vmatprep.subr.mxu0 0.0
      %2843 = vmatpush1.msra.mxu0 0.0
      %2844 = vmatprep.subr.mxu0 0.0
      %2845 = vmatpush1.msra.mxu0 0.0
      %2846 = vmatprep.subr.mxu0 0.0
      %2847 = vmatpush1.msra.mxu0 0.0
      %2848 = vmatprep.subr.mxu0 0.0
      %2849 = vmatpush1.msra.mxu0 0.0
      %2850 = vmatprep.subr.mxu0 0.0
      %2851 = vmatpush1.msra.mxu0 0.0
      %2852 = vmatprep.subr.mxu0 0.0
      %2853 = vmatpush1.msra.mxu0 0.0
      %2854 = vmatprep.subr.mxu0 0.0
      %2855 = vmatpush1.msra.mxu0 0.0
      %2856 = vmatprep.subr.mxu0 0.0
      %2857 = vmatpush1.msra.mxu0 0.0
      %2858 = vmatprep.subr.mxu0 0.0
      %2859 = vmatpush1.msra.mxu0 0.0
      %2860 = vmatprep.subr.mxu0 0.0
      %2861 = vmatpush1.msra.mxu0 0.0
      %2862 = vmatprep.subr.mxu0 0.0
      %2863 = vmatpush1.msra.mxu0 0.0
      %2864 = vmatprep.mubr.f32.mxu0 0.0
      %2865 = vmatmul.mubr.f32.gmra.mrb[0].mxu0 %v1081
      %v2866 = vpop.f32.mrb[0].mxu0
      %v2867 = vadd.f32 0.0, %v2866
      %v2868 = vpop.f32.mrb[0].mxu0
      %2869 = vmatprep.mubr.f32.mxu0 0.0
      %2870 = vmatmul.mubr.f32.gmra.mrb[0].mxu0 %v1084
      %v2871 = vpop.f32.mrb[0].mxu0
      %v2872 = vadd.f32 0.0, %v2871
      %v2873 = vpop.f32.mrb[0].mxu0
      %2874 = vmatprep.mubr.f32.mxu0 0.0
      %2875 = vmatmul.mubr.f32.gmra.mrb[0].mxu0 %v1087
      %v2876 = vpop.f32.mrb[0].mxu0
      %v2877 = vadd.f32 0.0, %v2876
      %v2878 = vpop.f32.mrb[0].mxu0
      %2879 = vmatprep.mubr.f32.mxu0 0.0
      %2880 = vmatmul.mubr.f32.gmra.mrb[0].mxu0 %v1090
      %v2881 = vpop.f32.mrb[0].mxu0
      %v2882 = vadd.f32 0.0, %v2881
      %v2883 = vpop.f32.mrb[0].mxu0
      %2884 = vdwg.mxu0
      %v2885 = vmul.f32 %v2867, 0.0009765625
      %v2886 = vmul.f32 %v2872, 0.0009765625
      %v2887 = vmul.f32 %v2877, 0.0009765625
      %v2888 = vmul.f32 %v2882, 0.0009765625
      %2890 = vset.pattern.permute.xlu0 0
      %2891 = vperm.xlu0 %2890, %v2885
      %v2892 = vpop.permute.xlu0 %2891
      %2895 = vset.pattern.permute.xlu0 0
      %2896 = vperm.xlu0 %2895, %v2886
      %v2897 = vpop.permute.xlu0 %2896
      %2900 = vset.pattern.permute.xlu0 0
      %2901 = vperm.xlu0 %2900, %v2887
      %v2902 = vpop.permute.xlu0 %2901
      %2905 = vset.pattern.permute.xlu0 0
      %2906 = vperm.xlu0 %2905, %v2888
      %v2907 = vpop.permute.xlu0 %2906
      %v2909 = vsub.f32 %v2766, %v2892
      %v2910 = vsub.f32 %v2768, %v2892
      %v2911 = vsub.f32 %v2772, %v2897
      %v2912 = vsub.f32 %v2774, %v2897
      %v2913 = vsub.f32 %v2778, %v2902
      %v2914 = vsub.f32 %v2780, %v2902
      %v2915 = vsub.f32 %v2784, %v2907
      %v2916 = vsub.f32 %v2786, %v2907
      %v2917 = vmul.f32 %v2909, %v2909
      %v2918 = vmul.f32 %v2910, %v2910
      %v2919 = vmul.f32 %v2911, %v2911
      %v2920 = vmul.f32 %v2912, %v2912
      %v2921 = vmul.f32 %v2913, %v2913
      %v2922 = vmul.f32 %v2914, %v2914
      %v2923 = vmul.f32 %v2915, %v2915
      %v2924 = vmul.f32 %v2916, %v2916
      %v2925 = vadd.f32 %v2917, %v2918
      %2926 = vadd.xlane.f32.xlu0 %v2925
      %v2927 = vpop.xlane.xlu0 %2926
      %v2928 = vadd.f32 %v2919, %v2920
      %2929 = vadd.xlane.f32.xlu0 %v2928
      %v2930 = vpop.xlane.xlu0 %2929
      %v2931 = vadd.f32 %v2921, %v2922
      %2932 = vadd.xlane.f32.xlu0 %v2931
      %v2933 = vpop.xlane.xlu0 %2932
      %v2934 = vadd.f32 %v2923, %v2924
      %2935 = vadd.xlane.f32.xlu0 %v2934
      %v2936 = vpop.xlane.xlu0 %2935
      %2937 = vmatprep.subr.mxu0 0.0
      %2938 = vmatpush1.msra.mxu0 %v2927
      %2939 = vmatprep.subr.mxu0 0.0
      %2940 = vmatpush1.msra.mxu0 %v2930
      %2941 = vmatprep.subr.mxu0 0.0
      %2942 = vmatpush1.msra.mxu0 %v2933
      %2943 = vmatprep.subr.mxu0 0.0
      %2944 = vmatpush1.msra.mxu0 %v2936
      %2945 = vmatprep.subr.mxu0 0.0
      %2946 = vmatpush1.msra.mxu0 0.0
      %2947 = vmatprep.subr.mxu0 0.0
      %2948 = vmatpush1.msra.mxu0 0.0
      %2949 = vmatprep.subr.mxu0 0.0
      %2950 = vmatpush1.msra.mxu0 0.0
      %2951 = vmatprep.subr.mxu0 0.0
      %2952 = vmatpush1.msra.mxu0 0.0
      %2953 = vmatprep.subr.mxu0 0.0
      %2954 = vmatpush1.msra.mxu0 0.0
      %2955 = vmatprep.subr.mxu0 0.0
      %2956 = vmatpush1.msra.mxu0 0.0
      %2957 = vmatprep.subr.mxu0 0.0
      %2958 = vmatpush1.msra.mxu0 0.0
      %2959 = vmatprep.subr.mxu0 0.0
      %2960 = vmatpush1.msra.mxu0 0.0
      %2961 = vmatprep.subr.mxu0 0.0
      %2962 = vmatpush1.msra.mxu0 0.0
      %2963 = vmatprep.subr.mxu0 0.0
      %2964 = vmatpush1.msra.mxu0 0.0
      %2965 = vmatprep.subr.mxu0 0.0
      %2966 = vmatpush1.msra.mxu0 0.0
      %2967 = vmatprep.subr.mxu0 0.0
      %2968 = vmatpush1.msra.mxu0 0.0
      %2969 = vmatprep.subr.mxu0 0.0
      %2970 = vmatpush1.msra.mxu0 0.0
      %2971 = vmatprep.subr.mxu0 0.0
      %2972 = vmatpush1.msra.mxu0 0.0
      %2973 = vmatprep.subr.mxu0 0.0
      %2974 = vmatpush1.msra.mxu0 0.0
      %2975 = vmatprep.subr.mxu0 0.0
      %2976 = vmatpush1.msra.mxu0 0.0
      %2977 = vmatprep.subr.mxu0 0.0
      %2978 = vmatpush1.msra.mxu0 0.0
      %2979 = vmatprep.subr.mxu0 0.0
      %2980 = vmatpush1.msra.mxu0 0.0
      %2981 = vmatprep.subr.mxu0 0.0
      %2982 = vmatpush1.msra.mxu0 0.0
      %2983 = vmatprep.subr.mxu0 0.0
      %2984 = vmatpush1.msra.mxu0 0.0
      %2985 = vmatprep.subr.mxu0 0.0
      %2986 = vmatpush1.msra.mxu0 0.0
      %2987 = vmatprep.subr.mxu0 0.0
      %2988 = vmatpush1.msra.mxu0 0.0
      %2989 = vmatprep.subr.mxu0 0.0
      %2990 = vmatpush1.msra.mxu0 0.0
      %2991 = vmatprep.subr.mxu0 0.0
      %2992 = vmatpush1.msra.mxu0 0.0
      %2993 = vmatprep.subr.mxu0 0.0
      %2994 = vmatpush1.msra.mxu0 0.0
      %2995 = vmatprep.subr.mxu0 0.0
      %2996 = vmatpush1.msra.mxu0 0.0
      %2997 = vmatprep.subr.mxu0 0.0
      %2998 = vmatpush1.msra.mxu0 0.0
      %2999 = vmatprep.subr.mxu0 0.0
      %3000 = vmatpush1.msra.mxu0 0.0
      %3001 = vmatprep.mubr.f32.mxu0 0.0
      %3002 = vmatmul.mubr.f32.gmra.mrb[0].mxu0 %v1081
      %v3003 = vpop.f32.mrb[0].mxu0
      %v3004 = vadd.f32 0.0, %v3003
      %v3005 = vpop.f32.mrb[0].mxu0
      %3006 = vmatprep.mubr.f32.mxu0 0.0
      %3007 = vmatmul.mubr.f32.gmra.mrb[0].mxu0 %v1084
      %v3008 = vpop.f32.mrb[0].mxu0
      %v3009 = vadd.f32 0.0, %v3008
      %v3010 = vpop.f32.mrb[0].mxu0
      %3011 = vmatprep.mubr.f32.mxu0 0.0
      %3012 = vmatmul.mubr.f32.gmra.mrb[0].mxu0 %v1087
      %v3013 = vpop.f32.mrb[0].mxu0
      %v3014 = vadd.f32 0.0, %v3013
      %v3015 = vpop.f32.mrb[0].mxu0
      %3016 = vmatprep.mubr.f32.mxu0 0.0
      %3017 = vmatmul.mubr.f32.gmra.mrb[0].mxu0 %v1090
      %v3018 = vpop.f32.mrb[0].mxu0
      %v3019 = vadd.f32 0.0, %v3018
      %v3020 = vpop.f32.mrb[0].mxu0
      %3021 = vdwg.mxu0
      %v3022 = vmul.f32 %v3004, 0.0009765625
      %v3023 = vmul.f32 %v3009, 0.0009765625
      %v3024 = vmul.f32 %v3014, 0.0009765625
      %v3025 = vmul.f32 %v3019, 0.0009765625
      %v3026 = vmax.f32 %v3022, 0.0
      %v3027 = vmax.f32 %v3023, 0.0
      %v3028 = vmax.f32 %v3024, 0.0
      %v3029 = vmax.f32 %v3025, 0.0
      %v3030 = vadd.f32 %v3026, 1e-05
      %v3031 = vadd.f32 %v3027, 1e-05
      %v3032 = vadd.f32 %v3028, 1e-05
      %v3033 = vadd.f32 %v3029, 1e-05
      %v3034 = vrsqrt.pop %v3030
      %v3035 = vrsqrt.pop %v3031
      %v3036 = vrsqrt.pop %v3032
      %v3037 = vrsqrt.pop %v3033
      %3039 = vset.pattern.permute.xlu0 0
      %3040 = vperm.xlu0 %3039, %v3034
      %v3041 = vpop.permute.xlu0 %3040
      %3044 = vset.pattern.permute.xlu0 0
      %3045 = vperm.xlu0 %3044, %v3035
      %v3046 = vpop.permute.xlu0 %3045
      %3049 = vset.pattern.permute.xlu0 0
      %3050 = vperm.xlu0 %3049, %v3036
      %v3051 = vpop.permute.xlu0 %3050
      %3054 = vset.pattern.permute.xlu0 0
      %3055 = vperm.xlu0 %3054, %v3037
      %v3056 = vpop.permute.xlu0 %3055
      %v3058 = vmul.f32 %v2909, %v3041
      %v3059 = vmul.f32 %v2910, %v3041
      %v3060 = vmul.f32 %v2911, %v3046
      %v3061 = vmul.f32 %v2912, %v3046
      %v3062 = vmul.f32 %v2913, %v3051
      %v3063 = vmul.f32 %v2914, %v3051
      %v3064 = vmul.f32 %v2915, %v3056
      %v3065 = vmul.f32 %v2916, %v3056
      %v3066 = vld [vmem:[%s12] sm:$0xff]
      %v3067 = vld [vmem:[%s12 + $0x8] sm:$0xff]
      %v3068 = vld [vmem:[%s12 + $0x10] sm:$0xff]
      %v3069 = vld [vmem:[%s12 + $0x18] sm:$0xff]
      %3071 = vset.pattern.permute.xlu0 0
      %3072 = vperm.xlu0 %3071, %v3066
      %v3073 = vpop.permute.xlu0 %3072
      %3076 = vset.pattern.permute.xlu0 0
      %3077 = vperm.xlu0 %3076, %v3067
      %v3078 = vpop.permute.xlu0 %3077
      %3081 = vset.pattern.permute.xlu0 0
      %3082 = vperm.xlu0 %3081, %v3068
      %v3083 = vpop.permute.xlu0 %3082
      %3086 = vset.pattern.permute.xlu0 0
      %3087 = vperm.xlu0 %3086, %v3069
      %v3088 = vpop.permute.xlu0 %3087
      %v3090 = vmul.f32 %v3058, %v3073
      %v3091 = vmul.f32 %v3059, %v3073
      %v3092 = vmul.f32 %v3060, %v3078
      %v3093 = vmul.f32 %v3061, %v3078
      %v3094 = vmul.f32 %v3062, %v3083
      %v3095 = vmul.f32 %v3063, %v3083
      %v3096 = vmul.f32 %v3064, %v3088
      %v3097 = vmul.f32 %v3065, %v3088
      %v3098 = vld [vmem:[%s13] sm:$0xff]
      %v3099 = vld [vmem:[%s13 + $0x8] sm:$0xff]
      %v3100 = vld [vmem:[%s13 + $0x10] sm:$0xff]
      %v3101 = vld [vmem:[%s13 + $0x18] sm:$0xff]
      %3103 = vset.pattern.permute.xlu0 0
      %3104 = vperm.xlu0 %3103, %v3098
      %v3105 = vpop.permute.xlu0 %3104
      %3108 = vset.pattern.permute.xlu0 0
      %3109 = vperm.xlu0 %3108, %v3099
      %v3110 = vpop.permute.xlu0 %3109
      %3113 = vset.pattern.permute.xlu0 0
      %3114 = vperm.xlu0 %3113, %v3100
      %v3115 = vpop.permute.xlu0 %3114
      %3118 = vset.pattern.permute.xlu0 0
      %3119 = vperm.xlu0 %3118, %v3101
      %v3120 = vpop.permute.xlu0 %3119
      %v3122 = vadd.f32 %v3090, %v3105
      %v3123 = vadd.f32 %v3091, %v3105
      %v3124 = vadd.f32 %v3092, %v3110
      %v3125 = vadd.f32 %v3093, %v3110
      %v3126 = vadd.f32 %v3094, %v3115
      %v3127 = vadd.f32 %v3095, %v3115
      %v3128 = vadd.f32 %v3096, %v3120
      %v3129 = vadd.f32 %v3097, %v3120
      %v3130 = vmul.f32 %v3122, 0.5
      %v3131 = vmul.f32 %v3123, 0.5
      %v3132 = vmul.f32 %v3124, 0.5
      %v3133 = vmul.f32 %v3125, 0.5
      %v3134 = vmul.f32 %v3126, 0.5
      %v3135 = vmul.f32 %v3127, 0.5
      %v3136 = vmul.f32 %v3128, 0.5
      %v3137 = vmul.f32 %v3129, 0.5
      %v3138 = vmul.f32 %v3122, 0.70710677
      %v3139 = vmul.f32 %v3123, 0.70710677
      %v3140 = vmul.f32 %v3124, 0.70710677
      %v3141 = vmul.f32 %v3125, 0.70710677
      %v3142 = vmul.f32 %v3126, 0.70710677
      %v3143 = vmul.f32 %v3127, 0.70710677
      %v3144 = vmul.f32 %v3128, 0.70710677
      %v3145 = vmul.f32 %v3129, 0.70710677
      %v3146 = verf.f32.pop %v3138
      %v3147 = verf.f32.pop %v3139
      %v3148 = verf.f32.pop %v3140
      %v3149 = verf.f32.pop %v3141
      %v3150 = verf.f32.pop %v3142
      %v3151 = verf.f32.pop %v3143
      %v3152 = verf.f32.pop %v3144
      %v3153 = verf.f32.pop %v3145
      %v3154 = vadd.f32 %v3146, 1.0
      %v3155 = vadd.f32 %v3147, 1.0
      %v3156 = vadd.f32 %v3148, 1.0
      %v3157 = vadd.f32 %v3149, 1.0
      %v3158 = vadd.f32 %v3150, 1.0
      %v3159 = vadd.f32 %v3151, 1.0
      %v3160 = vadd.f32 %v3152, 1.0
      %v3161 = vadd.f32 %v3153, 1.0
      %v3162 = vmul.f32 %v3130, %v3154
      %v3163 = vmul.f32 %v3131, %v3155
      %v3164 = vmul.f32 %v3132, %v3156
      %v3165 = vmul.f32 %v3133, %v3157
      %v3166 = vmul.f32 %v3134, %v3158
      %v3167 = vmul.f32 %v3135, %v3159
      %v3168 = vmul.f32 %v3136, %v3160
      %v3169 = vmul.f32 %v3137, %v3161
      %3178 = vrot.lane.b32.xlu0 %v3162, 17
      %v3179 = vpop.permute.xlu0 %3178
      %3180 = vrot.lane.b32.xlu0 %v3163, 17
      %v3181 = vpop.permute.xlu0 %3180
      %3182 = vrot.lane.b32.xlu0 %v3164, 17
      %v3183 = vpop.permute.xlu0 %3182
      %3184 = vrot.lane.b32.xlu0 %v3165, 17
      %v3185 = vpop.permute.xlu0 %3184
      %3186 = vrot.lane.b32.xlu0 %v3166, 17
      %v3187 = vpop.permute.xlu0 %3186
      %3188 = vrot.lane.b32.xlu0 %v3167, 17
      %v3189 = vpop.permute.xlu0 %3188
      %3190 = vrot.lane.b32.xlu0 %v3168, 17
      %v3191 = vpop.permute.xlu0 %3190
      %3192 = vrot.lane.b32.xlu0 %v3169, 17
      %v3193 = vpop.permute.xlu0 %3192
      %v3194 = vsel %vm2292, %v3179, %v3181
      %v3195 = vsel %vm2292, %v3183, %v3185
      %v3196 = vsel %vm2292, %v3187, %v3189
      %v3197 = vsel %vm2292, %v3191, %v3193
      %v3206 = vsel %vm2292, 0.0, %v3179
      %v3207 = vsel %vm2292, 0.0, %v3183
      %v3208 = vsel %vm2292, 0.0, %v3187
      %v3209 = vsel %vm2292, 0.0, %v3191
      %v3210 = vmul.f32 %v3206, %v2260
      %v3211 = vmul.f32 %v3194, %v2261
      %v3212 = vmul.f32 %v3207, %v2260
      %v3213 = vmul.f32 %v3195, %v2261
      %v3214 = vmul.f32 %v3208, %v2260
      %v3215 = vmul.f32 %v3196, %v2261
      %v3216 = vmul.f32 %v3209, %v2260
      %v3217 = vmul.f32 %v3197, %v2261
      %3218 = vrot.lane.b32.xlu0 %v3162, 16
      %v3219 = vpop.permute.xlu0 %3218
      %3220 = vrot.lane.b32.xlu0 %v3163, 16
      %v3221 = vpop.permute.xlu0 %3220
      %3222 = vrot.lane.b32.xlu0 %v3164, 16
      %v3223 = vpop.permute.xlu0 %3222
      %3224 = vrot.lane.b32.xlu0 %v3165, 16
      %v3225 = vpop.permute.xlu0 %3224
      %3226 = vrot.lane.b32.xlu0 %v3166, 16
      %v3227 = vpop.permute.xlu0 %3226
      %3228 = vrot.lane.b32.xlu0 %v3167, 16
      %v3229 = vpop.permute.xlu0 %3228
      %3230 = vrot.lane.b32.xlu0 %v3168, 16
      %v3231 = vpop.permute.xlu0 %3230
      %3232 = vrot.lane.b32.xlu0 %v3169, 16
      %v3233 = vpop.permute.xlu0 %3232
      %v3234 = vsel %vm769, %v3219, %v3221
      %v3235 = vsel %vm769, %v3223, %v3225
      %v3236 = vsel %vm769, %v3227, %v3229
      %v3237 = vsel %vm769, %v3231, %v3233
      %v3246 = vsel %vm769, 0.0, %v3219
      %v3247 = vsel %vm769, 0.0, %v3223
      %v3248 = vsel %vm769, 0.0, %v3227
      %v3249 = vsel %vm769, 0.0, %v3231
      %3250 = vrot.lane.b32.xlu0 %v3162, 15
      %v3251 = vpop.permute.xlu0 %3250
      %3252 = vrot.lane.b32.xlu0 %v3163, 15
      %v3253 = vpop.permute.xlu0 %3252
      %3254 = vrot.lane.b32.xlu0 %v3164, 15
      %v3255 = vpop.permute.xlu0 %3254
      %3256 = vrot.lane.b32.xlu0 %v3165, 15
      %v3257 = vpop.permute.xlu0 %3256
      %3258 = vrot.lane.b32.xlu0 %v3166, 15
      %v3259 = vpop.permute.xlu0 %3258
      %3260 = vrot.lane.b32.xlu0 %v3167, 15
      %v3261 = vpop.permute.xlu0 %3260
      %3262 = vrot.lane.b32.xlu0 %v3168, 15
      %v3263 = vpop.permute.xlu0 %3262
      %3264 = vrot.lane.b32.xlu0 %v3169, 15
      %v3265 = vpop.permute.xlu0 %3264
      %v3266 = vsel %vm2365, %v3251, %v3253
      %v3267 = vsel %vm2365, %v3255, %v3257
      %v3268 = vsel %vm2365, %v3259, %v3261
      %v3269 = vsel %vm2365, %v3263, %v3265
      %v3278 = vsel %vm2365, 0.0, %v3251
      %v3279 = vsel %vm2365, 0.0, %v3255
      %v3280 = vsel %vm2365, 0.0, %v3259
      %v3281 = vsel %vm2365, 0.0, %v3263
      %v3282 = vmul.f32 %v3278, %v2266
      %v3283 = vmul.f32 %v3266, %v2267
      %v3284 = vmul.f32 %v3279, %v2266
      %v3285 = vmul.f32 %v3267, %v2267
      %v3286 = vmul.f32 %v3280, %v2266
      %v3287 = vmul.f32 %v3268, %v2267
      %v3288 = vmul.f32 %v3281, %v2266
      %v3289 = vmul.f32 %v3269, %v2267
      %3290 = vrot.lane.b32.xlu0 %v3162, 1
      %v3291 = vpop.permute.xlu0 %3290
      %3292 = vrot.lane.b32.xlu0 %v3163, 1
      %v3293 = vpop.permute.xlu0 %3292
      %3294 = vrot.lane.b32.xlu0 %v3164, 1
      %v3295 = vpop.permute.xlu0 %3294
      %3296 = vrot.lane.b32.xlu0 %v3165, 1
      %v3297 = vpop.permute.xlu0 %3296
      %3298 = vrot.lane.b32.xlu0 %v3166, 1
      %v3299 = vpop.permute.xlu0 %3298
      %3300 = vrot.lane.b32.xlu0 %v3167, 1
      %v3301 = vpop.permute.xlu0 %3300
      %3302 = vrot.lane.b32.xlu0 %v3168, 1
      %v3303 = vpop.permute.xlu0 %3302
      %3304 = vrot.lane.b32.xlu0 %v3169, 1
      %v3305 = vpop.permute.xlu0 %3304
      %v3306 = vsel %vm910, %v3291, %v3293
      %v3307 = vsel %vm910, %v3295, %v3297
      %v3308 = vsel %vm910, %v3299, %v3301
      %v3309 = vsel %vm910, %v3303, %v3305
      %v3318 = vsel %vm910, 0.0, %v3291
      %v3319 = vsel %vm910, 0.0, %v3295
      %v3320 = vsel %vm910, 0.0, %v3299
      %v3321 = vsel %vm910, 0.0, %v3303
      %v3322 = vmul.f32 %v3318, %v2260
      %v3323 = vmul.f32 %v3306, %v2261
      %v3324 = vmul.f32 %v3319, %v2260
      %v3325 = vmul.f32 %v3307, %v2261
      %v3326 = vmul.f32 %v3320, %v2260
      %v3327 = vmul.f32 %v3308, %v2261
      %v3328 = vmul.f32 %v3321, %v2260
      %v3329 = vmul.f32 %v3309, %v2261
      %3330 = vrot.lane.b32.xlu0 %v3162, 127
      %v3331 = vpop.permute.xlu0 %3330
      %3332 = vrot.lane.b32.xlu0 %v3163, 127
      %v3333 = vpop.permute.xlu0 %3332
      %3334 = vrot.lane.b32.xlu0 %v3164, 127
      %v3335 = vpop.permute.xlu0 %3334
      %3336 = vrot.lane.b32.xlu0 %v3165, 127
      %v3337 = vpop.permute.xlu0 %3336
      %3338 = vrot.lane.b32.xlu0 %v3166, 127
      %v3339 = vpop.permute.xlu0 %3338
      %3340 = vrot.lane.b32.xlu0 %v3167, 127
      %v3341 = vpop.permute.xlu0 %3340
      %3342 = vrot.lane.b32.xlu0 %v3168, 127
      %v3343 = vpop.permute.xlu0 %3342
      %3344 = vrot.lane.b32.xlu0 %v3169, 127
      %v3345 = vpop.permute.xlu0 %3344
      %v3346 = vsel %vm2446, %v3331, %v3333
      %v3347 = vsel %vm2446, %v3335, %v3337
      %v3348 = vsel %vm2446, %v3339, %v3341
      %v3349 = vsel %vm2446, %v3343, %v3345
      %v3358 = vsel %vm2446, %v3333, 0.0
      %v3359 = vsel %vm2446, %v3337, 0.0
      %v3360 = vsel %vm2446, %v3341, 0.0
      %v3361 = vsel %vm2446, %v3345, 0.0
      %v3362 = vmul.f32 %v3346, %v2266
      %v3363 = vmul.f32 %v3358, %v2267
      %v3364 = vmul.f32 %v3347, %v2266
      %v3365 = vmul.f32 %v3359, %v2267
      %v3366 = vmul.f32 %v3348, %v2266
      %v3367 = vmul.f32 %v3360, %v2267
      %v3368 = vmul.f32 %v3349, %v2266
      %v3369 = vmul.f32 %v3361, %v2267
      %3370 = vrot.lane.b32.xlu0 %v3162, 113
      %v3371 = vpop.permute.xlu0 %3370
      %3372 = vrot.lane.b32.xlu0 %v3163, 113
      %v3373 = vpop.permute.xlu0 %3372
      %3374 = vrot.lane.b32.xlu0 %v3164, 113
      %v3375 = vpop.permute.xlu0 %3374
      %3376 = vrot.lane.b32.xlu0 %v3165, 113
      %v3377 = vpop.permute.xlu0 %3376
      %3378 = vrot.lane.b32.xlu0 %v3166, 113
      %v3379 = vpop.permute.xlu0 %3378
      %3380 = vrot.lane.b32.xlu0 %v3167, 113
      %v3381 = vpop.permute.xlu0 %3380
      %3382 = vrot.lane.b32.xlu0 %v3168, 113
      %v3383 = vpop.permute.xlu0 %3382
      %3384 = vrot.lane.b32.xlu0 %v3169, 113
      %v3385 = vpop.permute.xlu0 %3384
      %v3386 = vsel %vm2487, %v3371, %v3373
      %v3387 = vsel %vm2487, %v3375, %v3377
      %v3388 = vsel %vm2487, %v3379, %v3381
      %v3389 = vsel %vm2487, %v3383, %v3385
      %v3398 = vsel %vm2487, %v3373, 0.0
      %v3399 = vsel %vm2487, %v3377, 0.0
      %v3400 = vsel %vm2487, %v3381, 0.0
      %v3401 = vsel %vm2487, %v3385, 0.0
      %v3402 = vmul.f32 %v3386, %v2260
      %v3403 = vmul.f32 %v3398, %v2261
      %v3404 = vmul.f32 %v3387, %v2260
      %v3405 = vmul.f32 %v3399, %v2261
      %v3406 = vmul.f32 %v3388, %v2260
      %v3407 = vmul.f32 %v3400, %v2261
      %v3408 = vmul.f32 %v3389, %v2260
      %v3409 = vmul.f32 %v3401, %v2261
      %3410 = vrot.lane.b32.xlu0 %v3162, 112
      %v3411 = vpop.permute.xlu0 %3410
      %3412 = vrot.lane.b32.xlu0 %v3163, 112
      %v3413 = vpop.permute.xlu0 %3412
      %3414 = vrot.lane.b32.xlu0 %v3164, 112
      %v3415 = vpop.permute.xlu0 %3414
      %3416 = vrot.lane.b32.xlu0 %v3165, 112
      %v3417 = vpop.permute.xlu0 %3416
      %3418 = vrot.lane.b32.xlu0 %v3166, 112
      %v3419 = vpop.permute.xlu0 %3418
      %3420 = vrot.lane.b32.xlu0 %v3167, 112
      %v3421 = vpop.permute.xlu0 %3420
      %3422 = vrot.lane.b32.xlu0 %v3168, 112
      %v3423 = vpop.permute.xlu0 %3422
      %3424 = vrot.lane.b32.xlu0 %v3169, 112
      %v3425 = vpop.permute.xlu0 %3424
      %v3426 = vsel %vm2528, %v3411, %v3413
      %v3427 = vsel %vm2528, %v3415, %v3417
      %v3428 = vsel %vm2528, %v3419, %v3421
      %v3429 = vsel %vm2528, %v3423, %v3425
      %v3438 = vsel %vm2528, %v3413, 0.0
      %v3439 = vsel %vm2528, %v3417, 0.0
      %v3440 = vsel %vm2528, %v3421, 0.0
      %v3441 = vsel %vm2528, %v3425, 0.0
      %3442 = vrot.lane.b32.xlu0 %v3162, 111
      %v3443 = vpop.permute.xlu0 %3442
      %3444 = vrot.lane.b32.xlu0 %v3163, 111
      %v3445 = vpop.permute.xlu0 %3444
      %3446 = vrot.lane.b32.xlu0 %v3164, 111
      %v3447 = vpop.permute.xlu0 %3446
      %3448 = vrot.lane.b32.xlu0 %v3165, 111
      %v3449 = vpop.permute.xlu0 %3448
      %3450 = vrot.lane.b32.xlu0 %v3166, 111
      %v3451 = vpop.permute.xlu0 %3450
      %3452 = vrot.lane.b32.xlu0 %v3167, 111
      %v3453 = vpop.permute.xlu0 %3452
      %3454 = vrot.lane.b32.xlu0 %v3168, 111
      %v3455 = vpop.permute.xlu0 %3454
      %3456 = vrot.lane.b32.xlu0 %v3169, 111
      %v3457 = vpop.permute.xlu0 %3456
      %v3458 = vsel %vm2561, %v3443, %v3445
      %v3459 = vsel %vm2561, %v3447, %v3449
      %v3460 = vsel %vm2561, %v3451, %v3453
      %v3461 = vsel %vm2561, %v3455, %v3457
      %v3470 = vsel %vm2561, %v3445, 0.0
      %v3471 = vsel %vm2561, %v3449, 0.0
      %v3472 = vsel %vm2561, %v3453, 0.0
      %v3473 = vsel %vm2561, %v3457, 0.0
      %v3474 = vmul.f32 %v3458, %v2266
      %v3475 = vmul.f32 %v3470, %v2267
      %v3476 = vmul.f32 %v3459, %v2266
      %v3477 = vmul.f32 %v3471, %v2267
      %v3478 = vmul.f32 %v3460, %v2266
      %v3479 = vmul.f32 %v3472, %v2267
      %v3480 = vmul.f32 %v3461, %v2266
      %v3481 = vmul.f32 %v3473, %v2267
      %v3482 = vld [vmem:[%s14] sm:$0xff]
      %v3483 = vld [vmem:[%s14 + $0x8] sm:$0xff]
      %v3484 = vld [vmem:[%s14 + $0x10] sm:$0xff]
      %v3485 = vld [vmem:[%s14 + $0x18] sm:$0xff]
      %v3486 = vld [vmem:[%s14 + $0x20] sm:$0xff]
      %v3487 = vld [vmem:[%s14 + $0x28] sm:$0xff]
      %v3488 = vld [vmem:[%s14 + $0x30] sm:$0xff]
      %v3489 = vld [vmem:[%s14 + $0x38] sm:$0xff]
      %v3490 = vld [vmem:[%s14 + $0x40] sm:$0xff]
      %v3491 = vld [vmem:[%s14 + $0x48] sm:$0xff]
      %v3492 = vld [vmem:[%s14 + $0x50] sm:$0xff]
      %v3493 = vld [vmem:[%s14 + $0x58] sm:$0xff]
      %v3495 = vsel %vm1079, %v3484, 0
      %v3498 = vsel %vm1079, %v3487, 0
      %v3501 = vsel %vm1079, %v3490, 0
      %v3504 = vsel %vm1079, %v3493, 0
      %3506 = vmatprep.subr.mxu0 %v3211
      %3507 = vmatpush1.msra.mxu0 %v3210
      %3508 = vmatprep.subr.mxu0 %v3213
      %3509 = vmatpush1.msra.mxu0 %v3212
      %3510 = vmatprep.subr.mxu0 %v3215
      %3511 = vmatpush1.msra.mxu0 %v3214
      %3512 = vmatprep.subr.mxu0 %v3217
      %3513 = vmatpush1.msra.mxu0 %v3216
      %3514 = vmatprep.subr.mxu0 %v3234
      %3515 = vmatpush1.msra.mxu0 %v3246
      %3516 = vmatprep.subr.mxu0 %v3235
      %3517 = vmatpush1.msra.mxu0 %v3247
      %3518 = vmatprep.subr.mxu0 %v3236
      %3519 = vmatpush1.msra.mxu0 %v3248
      %3520 = vmatprep.subr.mxu0 %v3237
      %3521 = vmatpush1.msra.mxu0 %v3249
      %3522 = vmatprep.subr.mxu0 %v3283
      %3523 = vmatpush1.msra.mxu0 %v3282
      %3524 = vmatprep.subr.mxu0 %v3285
      %3525 = vmatpush1.msra.mxu0 %v3284
      %3526 = vmatprep.subr.mxu0 %v3287
      %3527 = vmatpush1.msra.mxu0 %v3286
      %3528 = vmatprep.subr.mxu0 %v3289
      %3529 = vmatpush1.msra.mxu0 %v3288
      %3530 = vmatprep.subr.mxu0 %v3323
      %3531 = vmatpush1.msra.mxu0 %v3322
      %3532 = vmatprep.subr.mxu0 %v3325
      %3533 = vmatpush1.msra.mxu0 %v3324
      %3534 = vmatprep.subr.mxu0 %v3327
      %3535 = vmatpush1.msra.mxu0 %v3326
      %3536 = vmatprep.subr.mxu0 %v3329
      %3537 = vmatpush1.msra.mxu0 %v3328
      %3538 = vmatprep.subr.mxu0 %v3163
      %3539 = vmatpush1.msra.mxu0 %v3162
      %3540 = vmatprep.subr.mxu0 %v3165
      %3541 = vmatpush1.msra.mxu0 %v3164
      %3542 = vmatprep.subr.mxu0 %v3167
      %3543 = vmatpush1.msra.mxu0 %v3166
      %3544 = vmatprep.subr.mxu0 %v3169
      %3545 = vmatpush1.msra.mxu0 %v3168
      %3546 = vmatprep.subr.mxu0 %v3363
      %3547 = vmatpush1.msra.mxu0 %v3362
      %3548 = vmatprep.subr.mxu0 %v3365
      %3549 = vmatpush1.msra.mxu0 %v3364
      %3550 = vmatprep.subr.mxu0 %v3367
      %3551 = vmatpush1.msra.mxu0 %v3366
      %3552 = vmatprep.subr.mxu0 %v3369
      %3553 = vmatpush1.msra.mxu0 %v3368
      %3554 = vmatprep.subr.mxu0 %v3403
      %3555 = vmatpush1.msra.mxu0 %v3402
      %3556 = vmatprep.subr.mxu0 %v3405
      %3557 = vmatpush1.msra.mxu0 %v3404
      %3558 = vmatprep.subr.mxu0 %v3407
      %3559 = vmatpush1.msra.mxu0 %v3406
      %3560 = vmatprep.subr.mxu0 %v3409
      %3561 = vmatpush1.msra.mxu0 %v3408
      %3562 = vmatprep.subr.mxu0 %v3438
      %3563 = vmatpush1.msra.mxu0 %v3426
      %3564 = vmatprep.subr.mxu0 %v3439
      %3565 = vmatpush1.msra.mxu0 %v3427
      %3566 = vmatprep.subr.mxu0 %v3440
      %3567 = vmatpush1.msra.mxu0 %v3428
      %3568 = vmatprep.subr.mxu0 %v3441
      %3569 = vmatpush1.msra.mxu0 %v3429
      %3570 = vmatprep.mubr.f32.mxu0 %v3483
      %3571 = vmatmul.mubr.f32.gmra.mrb[0].mxu0 %v3482
      %v3572 = vpop.f32.mrb[0].mxu0
      %v3573 = vadd.f32 0.0, %v3572
      %v3574 = vpop.f32.mrb[0].mxu0
      %v3575 = vadd.f32 0.0, %v3574
      %3576 = vmatprep.mubr.f32.mxu0 %v3486
      %3577 = vmatmul.mubr.f32.gmra.mrb[0].mxu0 %v3485
      %v3578 = vpop.f32.mrb[0].mxu0
      %v3579 = vadd.f32 0.0, %v3578
      %v3580 = vpop.f32.mrb[0].mxu0
      %v3581 = vadd.f32 0.0, %v3580
      %3582 = vmatprep.mubr.f32.mxu0 %v3489
      %3583 = vmatmul.mubr.f32.gmra.mrb[0].mxu0 %v3488
      %v3584 = vpop.f32.mrb[0].mxu0
      %v3585 = vadd.f32 0.0, %v3584
      %v3586 = vpop.f32.mrb[0].mxu0
      %v3587 = vadd.f32 0.0, %v3586
      %3588 = vmatprep.mubr.f32.mxu0 %v3492
      %3589 = vmatmul.mubr.f32.gmra.mrb[0].mxu0 %v3491
      %v3590 = vpop.f32.mrb[0].mxu0
      %v3591 = vadd.f32 0.0, %v3590
      %v3592 = vpop.f32.mrb[0].mxu0
      %v3593 = vadd.f32 0.0, %v3592
      %3594 = vdwg.mxu0
      %3595 = vmatprep.subr.mxu0 %v3475
      %3596 = vmatpush1.msra.mxu0 %v3474
      %3597 = vmatprep.subr.mxu0 %v3477
      %3598 = vmatpush1.msra.mxu0 %v3476
      %3599 = vmatprep.subr.mxu0 %v3479
      %3600 = vmatpush1.msra.mxu0 %v3478
      %3601 = vmatprep.subr.mxu0 %v3481
      %3602 = vmatpush1.msra.mxu0 %v3480
      %3603 = vmatprep.subr.mxu0 0.0
      %3604 = vmatpush1.msra.mxu0 0.0
      %3605 = vmatprep.subr.mxu0 0.0
      %3606 = vmatpush1.msra.mxu0 0.0
      %3607 = vmatprep.subr.mxu0 0.0
      %3608 = vmatpush1.msra.mxu0 0.0
      %3609 = vmatprep.subr.mxu0 0.0
      %3610 = vmatpush1.msra.mxu0 0.0
      %3611 = vmatprep.subr.mxu0 0.0
      %3612 = vmatpush1.msra.mxu0 0.0
      %3613 = vmatprep.subr.mxu0 0.0
      %3614 = vmatpush1.msra.mxu0 0.0
      %3615 = vmatprep.subr.mxu0 0.0
      %3616 = vmatpush1.msra.mxu0 0.0
      %3617 = vmatprep.subr.mxu0 0.0
      %3618 = vmatpush1.msra.mxu0 0.0
      %3619 = vmatprep.subr.mxu0 0.0
      %3620 = vmatpush1.msra.mxu0 0.0
      %3621 = vmatprep.subr.mxu0 0.0
      %3622 = vmatpush1.msra.mxu0 0.0
      %3623 = vmatprep.subr.mxu0 0.0
      %3624 = vmatpush1.msra.mxu0 0.0
      %3625 = vmatprep.subr.mxu0 0.0
      %3626 = vmatpush1.msra.mxu0 0.0
      %3627 = vmatprep.subr.mxu0 0.0
      %3628 = vmatpush1.msra.mxu0 0.0
      %3629 = vmatprep.subr.mxu0 0.0
      %3630 = vmatpush1.msra.mxu0 0.0
      %3631 = vmatprep.subr.mxu0 0.0
      %3632 = vmatpush1.msra.mxu0 0.0
      %3633 = vmatprep.subr.mxu0 0.0
      %3634 = vmatpush1.msra.mxu0 0.0
      %3635 = vmatprep.subr.mxu0 0.0
      %3636 = vmatpush1.msra.mxu0 0.0
      %3637 = vmatprep.subr.mxu0 0.0
      %3638 = vmatpush1.msra.mxu0 0.0
      %3639 = vmatprep.subr.mxu0 0.0
      %3640 = vmatpush1.msra.mxu0 0.0
      %3641 = vmatprep.subr.mxu0 0.0
      %3642 = vmatpush1.msra.mxu0 0.0
      %3643 = vmatprep.subr.mxu0 0.0
      %3644 = vmatpush1.msra.mxu0 0.0
      %3645 = vmatprep.subr.mxu0 0.0
      %3646 = vmatpush1.msra.mxu0 0.0
      %3647 = vmatprep.subr.mxu0 0.0
      %3648 = vmatpush1.msra.mxu0 0.0
      %3649 = vmatprep.subr.mxu0 0.0
      %3650 = vmatpush1.msra.mxu0 0.0
      %3651 = vmatprep.subr.mxu0 0.0
      %3652 = vmatpush1.msra.mxu0 0.0
      %3653 = vmatprep.subr.mxu0 0.0
      %3654 = vmatpush1.msra.mxu0 0.0
      %3655 = vmatprep.subr.mxu0 0.0
      %3656 = vmatpush1.msra.mxu0 0.0
      %3657 = vmatprep.subr.mxu0 0.0
      %3658 = vmatpush1.msra.mxu0 0.0
      %3659 = vmatprep.mubr.f32.mxu0 0.0
      %3660 = vmatmul.mubr.f32.gmra.mrb[0].mxu0 %v3495
      %v3661 = vpop.f32.mrb[0].mxu0
      %v3662 = vadd.f32 %v3573, %v3661
      %v3663 = vpop.f32.mrb[0].mxu0
      %v3664 = vadd.f32 %v3575, %v3663
      %3665 = vmatprep.mubr.f32.mxu0 0.0
      %3666 = vmatmul.mubr.f32.gmra.mrb[0].mxu0 %v3498
      %v3667 = vpop.f32.mrb[0].mxu0
      %v3668 = vadd.f32 %v3579, %v3667
      %v3669 = vpop.f32.mrb[0].mxu0
      %v3670 = vadd.f32 %v3581, %v3669
      %3671 = vmatprep.mubr.f32.mxu0 0.0
      %3672 = vmatmul.mubr.f32.gmra.mrb[0].mxu0 %v3501
      %v3673 = vpop.f32.mrb[0].mxu0
      %v3674 = vadd.f32 %v3585, %v3673
      %v3675 = vpop.f32.mrb[0].mxu0
      %v3676 = vadd.f32 %v3587, %v3675
      %3677 = vmatprep.mubr.f32.mxu0 0.0
      %3678 = vmatmul.mubr.f32.gmra.mrb[0].mxu0 %v3504
      %v3679 = vpop.f32.mrb[0].mxu0
      %v3680 = vadd.f32 %v3591, %v3679
      %v3681 = vpop.f32.mrb[0].mxu0
      %v3682 = vadd.f32 %v3593, %v3681
      %3683 = vdwg.mxu0
      %v3684 = vadd.f32 %v3662, %v3664
      %3685 = vadd.xlane.f32.xlu0 %v3684
      %v3686 = vpop.xlane.xlu0 %3685
      %v3687 = vadd.f32 %v3668, %v3670
      %3688 = vadd.xlane.f32.xlu0 %v3687
      %v3689 = vpop.xlane.xlu0 %3688
      %v3690 = vadd.f32 %v3674, %v3676
      %3691 = vadd.xlane.f32.xlu0 %v3690
      %v3692 = vpop.xlane.xlu0 %3691
      %v3693 = vadd.f32 %v3680, %v3682
      %3694 = vadd.xlane.f32.xlu0 %v3693
      %v3695 = vpop.xlane.xlu0 %3694
      %3696 = vmatprep.subr.mxu0 0.0
      %3697 = vmatpush1.msra.mxu0 %v3686
      %3698 = vmatprep.subr.mxu0 0.0
      %3699 = vmatpush1.msra.mxu0 %v3689
      %3700 = vmatprep.subr.mxu0 0.0
      %3701 = vmatpush1.msra.mxu0 %v3692
      %3702 = vmatprep.subr.mxu0 0.0
      %3703 = vmatpush1.msra.mxu0 %v3695
      %3704 = vmatprep.subr.mxu0 0.0
      %3705 = vmatpush1.msra.mxu0 0.0
      %3706 = vmatprep.subr.mxu0 0.0
      %3707 = vmatpush1.msra.mxu0 0.0
      %3708 = vmatprep.subr.mxu0 0.0
      %3709 = vmatpush1.msra.mxu0 0.0
      %3710 = vmatprep.subr.mxu0 0.0
      %3711 = vmatpush1.msra.mxu0 0.0
      %3712 = vmatprep.subr.mxu0 0.0
      %3713 = vmatpush1.msra.mxu0 0.0
      %3714 = vmatprep.subr.mxu0 0.0
      %3715 = vmatpush1.msra.mxu0 0.0
      %3716 = vmatprep.subr.mxu0 0.0
      %3717 = vmatpush1.msra.mxu0 0.0
      %3718 = vmatprep.subr.mxu0 0.0
      %3719 = vmatpush1.msra.mxu0 0.0
      %3720 = vmatprep.subr.mxu0 0.0
      %3721 = vmatpush1.msra.mxu0 0.0
      %3722 = vmatprep.subr.mxu0 0.0
      %3723 = vmatpush1.msra.mxu0 0.0
      %3724 = vmatprep.subr.mxu0 0.0
      %3725 = vmatpush1.msra.mxu0 0.0
      %3726 = vmatprep.subr.mxu0 0.0
      %3727 = vmatpush1.msra.mxu0 0.0
      %3728 = vmatprep.subr.mxu0 0.0
      %3729 = vmatpush1.msra.mxu0 0.0
      %3730 = vmatprep.subr.mxu0 0.0
      %3731 = vmatpush1.msra.mxu0 0.0
      %3732 = vmatprep.subr.mxu0 0.0
      %3733 = vmatpush1.msra.mxu0 0.0
      %3734 = vmatprep.subr.mxu0 0.0
      %3735 = vmatpush1.msra.mxu0 0.0
      %3736 = vmatprep.subr.mxu0 0.0
      %3737 = vmatpush1.msra.mxu0 0.0
      %3738 = vmatprep.subr.mxu0 0.0
      %3739 = vmatpush1.msra.mxu0 0.0
      %3740 = vmatprep.subr.mxu0 0.0
      %3741 = vmatpush1.msra.mxu0 0.0
      %3742 = vmatprep.subr.mxu0 0.0
      %3743 = vmatpush1.msra.mxu0 0.0
      %3744 = vmatprep.subr.mxu0 0.0
      %3745 = vmatpush1.msra.mxu0 0.0
      %3746 = vmatprep.subr.mxu0 0.0
      %3747 = vmatpush1.msra.mxu0 0.0
      %3748 = vmatprep.subr.mxu0 0.0
      %3749 = vmatpush1.msra.mxu0 0.0
      %3750 = vmatprep.subr.mxu0 0.0
      %3751 = vmatpush1.msra.mxu0 0.0
      %3752 = vmatprep.subr.mxu0 0.0
      %3753 = vmatpush1.msra.mxu0 0.0
      %3754 = vmatprep.subr.mxu0 0.0
      %3755 = vmatpush1.msra.mxu0 0.0
      %3756 = vmatprep.subr.mxu0 0.0
      %3757 = vmatpush1.msra.mxu0 0.0
      %3758 = vmatprep.subr.mxu0 0.0
      %3759 = vmatpush1.msra.mxu0 0.0
      %3760 = vmatprep.mubr.f32.mxu0 0.0
      %3761 = vmatmul.mubr.f32.gmra.mrb[0].mxu0 %v1081
      %v3762 = vpop.f32.mrb[0].mxu0
      %v3763 = vadd.f32 0.0, %v3762
      %v3764 = vpop.f32.mrb[0].mxu0
      %3765 = vmatprep.mubr.f32.mxu0 0.0
      %3766 = vmatmul.mubr.f32.gmra.mrb[0].mxu0 %v1084
      %v3767 = vpop.f32.mrb[0].mxu0
      %v3768 = vadd.f32 0.0, %v3767
      %v3769 = vpop.f32.mrb[0].mxu0
      %3770 = vmatprep.mubr.f32.mxu0 0.0
      %3771 = vmatmul.mubr.f32.gmra.mrb[0].mxu0 %v1087
      %v3772 = vpop.f32.mrb[0].mxu0
      %v3773 = vadd.f32 0.0, %v3772
      %v3774 = vpop.f32.mrb[0].mxu0
      %3775 = vmatprep.mubr.f32.mxu0 0.0
      %3776 = vmatmul.mubr.f32.gmra.mrb[0].mxu0 %v1090
      %v3777 = vpop.f32.mrb[0].mxu0
      %v3778 = vadd.f32 0.0, %v3777
      %v3779 = vpop.f32.mrb[0].mxu0
      %3780 = vdwg.mxu0
      %v3781 = vmul.f32 %v3763, 0.0009765625
      %v3782 = vmul.f32 %v3768, 0.0009765625
      %v3783 = vmul.f32 %v3773, 0.0009765625
      %v3784 = vmul.f32 %v3778, 0.0009765625
      %3786 = vset.pattern.permute.xlu0 0
      %3787 = vperm.xlu0 %3786, %v3781
      %v3788 = vpop.permute.xlu0 %3787
      %3791 = vset.pattern.permute.xlu0 0
      %3792 = vperm.xlu0 %3791, %v3782
      %v3793 = vpop.permute.xlu0 %3792
      %3796 = vset.pattern.permute.xlu0 0
      %3797 = vperm.xlu0 %3796, %v3783
      %v3798 = vpop.permute.xlu0 %3797
      %3801 = vset.pattern.permute.xlu0 0
      %3802 = vperm.xlu0 %3801, %v3784
      %v3803 = vpop.permute.xlu0 %3802
      %v3805 = vsub.f32 %v3662, %v3788
      %v3806 = vsub.f32 %v3664, %v3788
      %v3807 = vsub.f32 %v3668, %v3793
      %v3808 = vsub.f32 %v3670, %v3793
      %v3809 = vsub.f32 %v3674, %v3798
      %v3810 = vsub.f32 %v3676, %v3798
      %v3811 = vsub.f32 %v3680, %v3803
      %v3812 = vsub.f32 %v3682, %v3803
      %v3813 = vmul.f32 %v3805, %v3805
      %v3814 = vmul.f32 %v3806, %v3806
      %v3815 = vmul.f32 %v3807, %v3807
      %v3816 = vmul.f32 %v3808, %v3808
      %v3817 = vmul.f32 %v3809, %v3809
      %v3818 = vmul.f32 %v3810, %v3810
      %v3819 = vmul.f32 %v3811, %v3811
      %v3820 = vmul.f32 %v3812, %v3812
      %v3821 = vadd.f32 %v3813, %v3814
      %3822 = vadd.xlane.f32.xlu0 %v3821
      %v3823 = vpop.xlane.xlu0 %3822
      %v3824 = vadd.f32 %v3815, %v3816
      %3825 = vadd.xlane.f32.xlu0 %v3824
      %v3826 = vpop.xlane.xlu0 %3825
      %v3827 = vadd.f32 %v3817, %v3818
      %3828 = vadd.xlane.f32.xlu0 %v3827
      %v3829 = vpop.xlane.xlu0 %3828
      %v3830 = vadd.f32 %v3819, %v3820
      %3831 = vadd.xlane.f32.xlu0 %v3830
      %v3832 = vpop.xlane.xlu0 %3831
      %3833 = vmatprep.subr.mxu0 0.0
      %3834 = vmatpush1.msra.mxu0 %v3823
      %3835 = vmatprep.subr.mxu0 0.0
      %3836 = vmatpush1.msra.mxu0 %v3826
      %3837 = vmatprep.subr.mxu0 0.0
      %3838 = vmatpush1.msra.mxu0 %v3829
      %3839 = vmatprep.subr.mxu0 0.0
      %3840 = vmatpush1.msra.mxu0 %v3832
      %3841 = vmatprep.subr.mxu0 0.0
      %3842 = vmatpush1.msra.mxu0 0.0
      %3843 = vmatprep.subr.mxu0 0.0
      %3844 = vmatpush1.msra.mxu0 0.0
      %3845 = vmatprep.subr.mxu0 0.0
      %3846 = vmatpush1.msra.mxu0 0.0
      %3847 = vmatprep.subr.mxu0 0.0
      %3848 = vmatpush1.msra.mxu0 0.0
      %3849 = vmatprep.subr.mxu0 0.0
      %3850 = vmatpush1.msra.mxu0 0.0
      %3851 = vmatprep.subr.mxu0 0.0
      %3852 = vmatpush1.msra.mxu0 0.0
      %3853 = vmatprep.subr.mxu0 0.0
      %3854 = vmatpush1.msra.mxu0 0.0
      %3855 = vmatprep.subr.mxu0 0.0
      %3856 = vmatpush1.msra.mxu0 0.0
      %3857 = vmatprep.subr.mxu0 0.0
      %3858 = vmatpush1.msra.mxu0 0.0
      %3859 = vmatprep.subr.mxu0 0.0
      %3860 = vmatpush1.msra.mxu0 0.0
      %3861 = vmatprep.subr.mxu0 0.0
      %3862 = vmatpush1.msra.mxu0 0.0
      %3863 = vmatprep.subr.mxu0 0.0
      %3864 = vmatpush1.msra.mxu0 0.0
      %3865 = vmatprep.subr.mxu0 0.0
      %3866 = vmatpush1.msra.mxu0 0.0
      %3867 = vmatprep.subr.mxu0 0.0
      %3868 = vmatpush1.msra.mxu0 0.0
      %3869 = vmatprep.subr.mxu0 0.0
      %3870 = vmatpush1.msra.mxu0 0.0
      %3871 = vmatprep.subr.mxu0 0.0
      %3872 = vmatpush1.msra.mxu0 0.0
      %3873 = vmatprep.subr.mxu0 0.0
      %3874 = vmatpush1.msra.mxu0 0.0
      %3875 = vmatprep.subr.mxu0 0.0
      %3876 = vmatpush1.msra.mxu0 0.0
      %3877 = vmatprep.subr.mxu0 0.0
      %3878 = vmatpush1.msra.mxu0 0.0
      %3879 = vmatprep.subr.mxu0 0.0
      %3880 = vmatpush1.msra.mxu0 0.0
      %3881 = vmatprep.subr.mxu0 0.0
      %3882 = vmatpush1.msra.mxu0 0.0
      %3883 = vmatprep.subr.mxu0 0.0
      %3884 = vmatpush1.msra.mxu0 0.0
      %3885 = vmatprep.subr.mxu0 0.0
      %3886 = vmatpush1.msra.mxu0 0.0
      %3887 = vmatprep.subr.mxu0 0.0
      %3888 = vmatpush1.msra.mxu0 0.0
      %3889 = vmatprep.subr.mxu0 0.0
      %3890 = vmatpush1.msra.mxu0 0.0
      %3891 = vmatprep.subr.mxu0 0.0
      %3892 = vmatpush1.msra.mxu0 0.0
      %3893 = vmatprep.subr.mxu0 0.0
      %3894 = vmatpush1.msra.mxu0 0.0
      %3895 = vmatprep.subr.mxu0 0.0
      %3896 = vmatpush1.msra.mxu0 0.0
      %3897 = vmatprep.mubr.f32.mxu0 0.0
      %3898 = vmatmul.mubr.f32.gmra.mrb[0].mxu0 %v1081
      %v3899 = vpop.f32.mrb[0].mxu0
      %v3900 = vadd.f32 0.0, %v3899
      %v3901 = vpop.f32.mrb[0].mxu0
      %3902 = vmatprep.mubr.f32.mxu0 0.0
      %3903 = vmatmul.mubr.f32.gmra.mrb[0].mxu0 %v1084
      %v3904 = vpop.f32.mrb[0].mxu0
      %v3905 = vadd.f32 0.0, %v3904
      %v3906 = vpop.f32.mrb[0].mxu0
      %3907 = vmatprep.mubr.f32.mxu0 0.0
      %3908 = vmatmul.mubr.f32.gmra.mrb[0].mxu0 %v1087
      %v3909 = vpop.f32.mrb[0].mxu0
      %v3910 = vadd.f32 0.0, %v3909
      %v3911 = vpop.f32.mrb[0].mxu0
      %3912 = vmatprep.mubr.f32.mxu0 0.0
      %3913 = vmatmul.mubr.f32.gmra.mrb[0].mxu0 %v1090
      %v3914 = vpop.f32.mrb[0].mxu0
      %v3915 = vadd.f32 0.0, %v3914
      %v3916 = vpop.f32.mrb[0].mxu0
      %3917 = vdwg.mxu0
      %v3918 = vmul.f32 %v3900, 0.0009765625
      %v3919 = vmul.f32 %v3905, 0.0009765625
      %v3920 = vmul.f32 %v3910, 0.0009765625
      %v3921 = vmul.f32 %v3915, 0.0009765625
      %v3922 = vmax.f32 %v3918, 0.0
      %v3923 = vmax.f32 %v3919, 0.0
      %v3924 = vmax.f32 %v3920, 0.0
      %v3925 = vmax.f32 %v3921, 0.0
      %v3926 = vadd.f32 %v3922, 1e-05
      %v3927 = vadd.f32 %v3923, 1e-05
      %v3928 = vadd.f32 %v3924, 1e-05
      %v3929 = vadd.f32 %v3925, 1e-05
      %v3930 = vrsqrt.pop %v3926
      %v3931 = vrsqrt.pop %v3927
      %v3932 = vrsqrt.pop %v3928
      %v3933 = vrsqrt.pop %v3929
      %3935 = vset.pattern.permute.xlu0 0
      %3936 = vperm.xlu0 %3935, %v3930
      %v3937 = vpop.permute.xlu0 %3936
      %3940 = vset.pattern.permute.xlu0 0
      %3941 = vperm.xlu0 %3940, %v3931
      %v3942 = vpop.permute.xlu0 %3941
      %3945 = vset.pattern.permute.xlu0 0
      %3946 = vperm.xlu0 %3945, %v3932
      %v3947 = vpop.permute.xlu0 %3946
      %3950 = vset.pattern.permute.xlu0 0
      %3951 = vperm.xlu0 %3950, %v3933
      %v3952 = vpop.permute.xlu0 %3951
      %v3954 = vmul.f32 %v3805, %v3937
      %v3955 = vmul.f32 %v3806, %v3937
      %v3956 = vmul.f32 %v3807, %v3942
      %v3957 = vmul.f32 %v3808, %v3942
      %v3958 = vmul.f32 %v3809, %v3947
      %v3959 = vmul.f32 %v3810, %v3947
      %v3960 = vmul.f32 %v3811, %v3952
      %v3961 = vmul.f32 %v3812, %v3952
      %v3962 = vld [vmem:[%s15] sm:$0xff]
      %v3963 = vld [vmem:[%s15 + $0x8] sm:$0xff]
      %v3964 = vld [vmem:[%s15 + $0x10] sm:$0xff]
      %v3965 = vld [vmem:[%s15 + $0x18] sm:$0xff]
      %3967 = vset.pattern.permute.xlu0 0
      %3968 = vperm.xlu0 %3967, %v3962
      %v3969 = vpop.permute.xlu0 %3968
      %3972 = vset.pattern.permute.xlu0 0
      %3973 = vperm.xlu0 %3972, %v3963
      %v3974 = vpop.permute.xlu0 %3973
      %3977 = vset.pattern.permute.xlu0 0
      %3978 = vperm.xlu0 %3977, %v3964
      %v3979 = vpop.permute.xlu0 %3978
      %3982 = vset.pattern.permute.xlu0 0
      %3983 = vperm.xlu0 %3982, %v3965
      %v3984 = vpop.permute.xlu0 %3983
      %v3986 = vmul.f32 %v3954, %v3969
      %v3987 = vmul.f32 %v3955, %v3969
      %v3988 = vmul.f32 %v3956, %v3974
      %v3989 = vmul.f32 %v3957, %v3974
      %v3990 = vmul.f32 %v3958, %v3979
      %v3991 = vmul.f32 %v3959, %v3979
      %v3992 = vmul.f32 %v3960, %v3984
      %v3993 = vmul.f32 %v3961, %v3984
      %v3994 = vld [vmem:[%s16] sm:$0xff]
      %v3995 = vld [vmem:[%s16 + $0x8] sm:$0xff]
      %v3996 = vld [vmem:[%s16 + $0x10] sm:$0xff]
      %v3997 = vld [vmem:[%s16 + $0x18] sm:$0xff]
      %3999 = vset.pattern.permute.xlu0 0
      %4000 = vperm.xlu0 %3999, %v3994
      %v4001 = vpop.permute.xlu0 %4000
      %4004 = vset.pattern.permute.xlu0 0
      %4005 = vperm.xlu0 %4004, %v3995
      %v4006 = vpop.permute.xlu0 %4005
      %4009 = vset.pattern.permute.xlu0 0
      %4010 = vperm.xlu0 %4009, %v3996
      %v4011 = vpop.permute.xlu0 %4010
      %4014 = vset.pattern.permute.xlu0 0
      %4015 = vperm.xlu0 %4014, %v3997
      %v4016 = vpop.permute.xlu0 %4015
      %v4018 = vadd.f32 %v3986, %v4001
      %v4019 = vadd.f32 %v3987, %v4001
      %v4020 = vadd.f32 %v3988, %v4006
      %v4021 = vadd.f32 %v3989, %v4006
      %v4022 = vadd.f32 %v3990, %v4011
      %v4023 = vadd.f32 %v3991, %v4011
      %v4024 = vadd.f32 %v3992, %v4016
      %v4025 = vadd.f32 %v3993, %v4016
      %v4026 = vmul.f32 %v4018, 0.5
      %v4027 = vmul.f32 %v4019, 0.5
      %v4028 = vmul.f32 %v4020, 0.5
      %v4029 = vmul.f32 %v4021, 0.5
      %v4030 = vmul.f32 %v4022, 0.5
      %v4031 = vmul.f32 %v4023, 0.5
      %v4032 = vmul.f32 %v4024, 0.5
      %v4033 = vmul.f32 %v4025, 0.5
      %v4034 = vmul.f32 %v4018, 0.70710677
      %v4035 = vmul.f32 %v4019, 0.70710677
      %v4036 = vmul.f32 %v4020, 0.70710677
      %v4037 = vmul.f32 %v4021, 0.70710677
      %v4038 = vmul.f32 %v4022, 0.70710677
      %v4039 = vmul.f32 %v4023, 0.70710677
      %v4040 = vmul.f32 %v4024, 0.70710677
      %v4041 = vmul.f32 %v4025, 0.70710677
      %v4042 = verf.f32.pop %v4034
      %v4043 = verf.f32.pop %v4035
      %v4044 = verf.f32.pop %v4036
      %v4045 = verf.f32.pop %v4037
      %v4046 = verf.f32.pop %v4038
      %v4047 = verf.f32.pop %v4039
      %v4048 = verf.f32.pop %v4040
      %v4049 = verf.f32.pop %v4041
      %v4050 = vadd.f32 %v4042, 1.0
      %v4051 = vadd.f32 %v4043, 1.0
      %v4052 = vadd.f32 %v4044, 1.0
      %v4053 = vadd.f32 %v4045, 1.0
      %v4054 = vadd.f32 %v4046, 1.0
      %v4055 = vadd.f32 %v4047, 1.0
      %v4056 = vadd.f32 %v4048, 1.0
      %v4057 = vadd.f32 %v4049, 1.0
      %v4058 = vmul.f32 %v4026, %v4050
      %v4059 = vmul.f32 %v4027, %v4051
      %v4060 = vmul.f32 %v4028, %v4052
      %v4061 = vmul.f32 %v4029, %v4053
      %v4062 = vmul.f32 %v4030, %v4054
      %v4063 = vmul.f32 %v4031, %v4055
      %v4064 = vmul.f32 %v4032, %v4056
      %v4065 = vmul.f32 %v4033, %v4057
      %v4066 = vld [vmem:[%s3] sm:$0xff]
      %v4067 = vld [vmem:[%s3 + $0x8] sm:$0xff]
      %v4068 = vld [vmem:[%s3 + $0x10] sm:$0xff]
      %v4069 = vld [vmem:[%s3 + $0x18] sm:$0xff]
      %v4070 = vld [vmem:[%s3 + $0x20] sm:$0xff]
      %v4071 = vld [vmem:[%s3 + $0x28] sm:$0xff]
      %v4072 = vld [vmem:[%s3 + $0x30] sm:$0xff]
      %v4073 = vld [vmem:[%s3 + $0x38] sm:$0xff]
      %v4074 = vld [vmem:[%s3 + $0x40] sm:$0xff]
      %v4075 = vld [vmem:[%s3 + $0x48] sm:$0xff]
      %v4076 = vld [vmem:[%s3 + $0x50] sm:$0xff]
      %v4077 = vld [vmem:[%s3 + $0x58] sm:$0xff]
      %v4078 = vld [vmem:[%s3 + $0x60] sm:$0xff]
      %v4079 = vld [vmem:[%s3 + $0x68] sm:$0xff]
      %v4080 = vld [vmem:[%s3 + $0x70] sm:$0xff]
      %v4081 = vld [vmem:[%s3 + $0x78] sm:$0xff]
      %v4082 = vld [vmem:[%s3 + $0x80] sm:$0xff]
      %v4083 = vld [vmem:[%s3 + $0x88] sm:$0xff]
      %v4084 = vld [vmem:[%s3 + $0x90] sm:$0xff]
      %v4085 = vld [vmem:[%s3 + $0x98] sm:$0xff]
      %v4086 = vld [vmem:[%s3 + $0xa0] sm:$0xff]
      %v4087 = vld [vmem:[%s3 + $0xa8] sm:$0xff]
      %v4088 = vld [vmem:[%s3 + $0xb0] sm:$0xff]
      %v4089 = vld [vmem:[%s3 + $0xb8] sm:$0xff]
      %v4090 = vld [vmem:[%s3 + $0xc0] sm:$0xff]
      %v4091 = vld [vmem:[%s3 + $0xc8] sm:$0xff]
      %v4092 = vld [vmem:[%s3 + $0xd0] sm:$0xff]
      %v4093 = vld [vmem:[%s3 + $0xd8] sm:$0xff]
      %v4094 = vld [vmem:[%s3 + $0xe0] sm:$0xff]
      %v4095 = vld [vmem:[%s3 + $0xe8] sm:$0xff]
      %v4096 = vld [vmem:[%s3 + $0xf0] sm:$0xff]
      %v4097 = vld [vmem:[%s3 + $0xf8] sm:$0xff]
      %v4098 = vld [vmem:[%s3 + $0x100] sm:$0xff]
      %v4099 = vld [vmem:[%s3 + $0x108] sm:$0xff]
      %v4100 = vld [vmem:[%s3 + $0x110] sm:$0xff]
      %v4101 = vld [vmem:[%s3 + $0x118] sm:$0xff]
      %v4102 = vld [vmem:[%s3 + $0x120] sm:$0xff]
      %v4103 = vld [vmem:[%s3 + $0x128] sm:$0xff]
      %v4104 = vld [vmem:[%s3 + $0x130] sm:$0xff]
      %v4105 = vld [vmem:[%s3 + $0x138] sm:$0xff]
      %v4106 = vld [vmem:[%s3 + $0x140] sm:$0xff]
      %v4107 = vld [vmem:[%s3 + $0x148] sm:$0xff]
      %v4108 = vld [vmem:[%s3 + $0x150] sm:$0xff]
      %v4109 = vld [vmem:[%s3 + $0x158] sm:$0xff]
      %v4110 = vld [vmem:[%s3 + $0x160] sm:$0xff]
      %v4111 = vld [vmem:[%s3 + $0x168] sm:$0xff]
      %v4112 = vld [vmem:[%s3 + $0x170] sm:$0xff]
      %v4113 = vld [vmem:[%s3 + $0x178] sm:$0xff]
      %v4114 = vld [vmem:[%s3 + $0x180] sm:$0xff]
      %v4115 = vld [vmem:[%s3 + $0x188] sm:$0xff]
      %v4116 = vld [vmem:[%s3 + $0x190] sm:$0xff]
      %v4117 = vld [vmem:[%s3 + $0x198] sm:$0xff]
      %v4118 = vld [vmem:[%s3 + $0x1a0] sm:$0xff]
      %v4119 = vld [vmem:[%s3 + $0x1a8] sm:$0xff]
      %v4120 = vld [vmem:[%s3 + $0x1b0] sm:$0xff]
      %v4121 = vld [vmem:[%s3 + $0x1b8] sm:$0xff]
      %v4122 = vld [vmem:[%s3 + $0x1c0] sm:$0xff]
      %v4123 = vld [vmem:[%s3 + $0x1c8] sm:$0xff]
      %v4124 = vld [vmem:[%s3 + $0x1d0] sm:$0xff]
      %v4125 = vld [vmem:[%s3 + $0x1d8] sm:$0xff]
      %v4126 = vld [vmem:[%s3 + $0x1e0] sm:$0xff]
      %v4127 = vld [vmem:[%s3 + $0x1e8] sm:$0xff]
      %v4128 = vld [vmem:[%s3 + $0x1f0] sm:$0xff]
      %v4129 = vld [vmem:[%s3 + $0x1f8] sm:$0xff]
      %v4130 = vld [vmem:[%s3 + $0x200] sm:$0xff]
      %v4131 = vld [vmem:[%s3 + $0x208] sm:$0xff]
      %v4132 = vld [vmem:[%s3 + $0x210] sm:$0xff]
      %v4133 = vld [vmem:[%s3 + $0x218] sm:$0xff]
      %v4134 = vld [vmem:[%s3 + $0x220] sm:$0xff]
      %v4135 = vld [vmem:[%s3 + $0x228] sm:$0xff]
      %v4136 = vld [vmem:[%s3 + $0x230] sm:$0xff]
      %v4137 = vld [vmem:[%s3 + $0x238] sm:$0xff]
      %v4138 = vld [vmem:[%s3 + $0x240] sm:$0xff]
      %v4139 = vld [vmem:[%s3 + $0x248] sm:$0xff]
      %v4140 = vld [vmem:[%s3 + $0x250] sm:$0xff]
      %v4141 = vld [vmem:[%s3 + $0x258] sm:$0xff]
      %v4142 = vld [vmem:[%s3 + $0x260] sm:$0xff]
      %v4143 = vld [vmem:[%s3 + $0x268] sm:$0xff]
      %v4144 = vld [vmem:[%s3 + $0x270] sm:$0xff]
      %v4145 = vld [vmem:[%s3 + $0x278] sm:$0xff]
      %v4146 = vld [vmem:[%s3 + $0x280] sm:$0xff]
      %v4147 = vld [vmem:[%s3 + $0x288] sm:$0xff]
      %v4148 = vld [vmem:[%s3 + $0x290] sm:$0xff]
      %v4149 = vld [vmem:[%s3 + $0x298] sm:$0xff]
      %v4150 = vld [vmem:[%s3 + $0x2a0] sm:$0xff]
      %v4151 = vld [vmem:[%s3 + $0x2a8] sm:$0xff]
      %v4152 = vld [vmem:[%s3 + $0x2b0] sm:$0xff]
      %v4153 = vld [vmem:[%s3 + $0x2b8] sm:$0xff]
      %v4154 = vld [vmem:[%s3 + $0x2c0] sm:$0xff]
      %v4155 = vld [vmem:[%s3 + $0x2c8] sm:$0xff]
      %v4156 = vld [vmem:[%s3 + $0x2d0] sm:$0xff]
      %v4157 = vld [vmem:[%s3 + $0x2d8] sm:$0xff]
      %v4158 = vld [vmem:[%s3 + $0x2e0] sm:$0xff]
      %v4159 = vld [vmem:[%s3 + $0x2e8] sm:$0xff]
      %v4160 = vld [vmem:[%s3 + $0x2f0] sm:$0xff]
      %v4161 = vld [vmem:[%s3 + $0x2f8] sm:$0xff]
      %v4162 = vld [vmem:[%s3 + $0x300] sm:$0xff]
      %v4163 = vld [vmem:[%s3 + $0x308] sm:$0xff]
      %v4164 = vld [vmem:[%s3 + $0x310] sm:$0xff]
      %v4165 = vld [vmem:[%s3 + $0x318] sm:$0xff]
      %v4166 = vld [vmem:[%s3 + $0x320] sm:$0xff]
      %v4167 = vld [vmem:[%s3 + $0x328] sm:$0xff]
      %v4168 = vld [vmem:[%s3 + $0x330] sm:$0xff]
      %v4169 = vld [vmem:[%s3 + $0x338] sm:$0xff]
      %v4170 = vld [vmem:[%s3 + $0x340] sm:$0xff]
      %v4171 = vld [vmem:[%s3 + $0x348] sm:$0xff]
      %v4172 = vld [vmem:[%s3 + $0x350] sm:$0xff]
      %v4173 = vld [vmem:[%s3 + $0x358] sm:$0xff]
      %v4174 = vld [vmem:[%s3 + $0x360] sm:$0xff]
      %v4175 = vld [vmem:[%s3 + $0x368] sm:$0xff]
      %v4176 = vld [vmem:[%s3 + $0x370] sm:$0xff]
      %v4177 = vld [vmem:[%s3 + $0x378] sm:$0xff]
      %v4178 = vld [vmem:[%s3 + $0x380] sm:$0xff]
      %v4179 = vld [vmem:[%s3 + $0x388] sm:$0xff]
      %v4180 = vld [vmem:[%s3 + $0x390] sm:$0xff]
      %v4181 = vld [vmem:[%s3 + $0x398] sm:$0xff]
      %v4182 = vld [vmem:[%s3 + $0x3a0] sm:$0xff]
      %v4183 = vld [vmem:[%s3 + $0x3a8] sm:$0xff]
      %v4184 = vld [vmem:[%s3 + $0x3b0] sm:$0xff]
      %v4185 = vld [vmem:[%s3 + $0x3b8] sm:$0xff]
      %v4186 = vld [vmem:[%s3 + $0x3c0] sm:$0xff]
      %v4187 = vld [vmem:[%s3 + $0x3c8] sm:$0xff]
      %v4188 = vld [vmem:[%s3 + $0x3d0] sm:$0xff]
      %v4189 = vld [vmem:[%s3 + $0x3d8] sm:$0xff]
      %v4190 = vld [vmem:[%s3 + $0x3e0] sm:$0xff]
      %v4191 = vld [vmem:[%s3 + $0x3e8] sm:$0xff]
      %v4192 = vld [vmem:[%s3 + $0x3f0] sm:$0xff]
      %v4193 = vld [vmem:[%s3 + $0x3f8] sm:$0xff]
      %v4194 = vld [vmem:[%s3 + $0x400] sm:$0xff]
      %v4195 = vld [vmem:[%s3 + $0x408] sm:$0xff]
      %v4196 = vld [vmem:[%s3 + $0x410] sm:$0xff]
      %v4197 = vld [vmem:[%s3 + $0x418] sm:$0xff]
      %v4198 = vld [vmem:[%s3 + $0x420] sm:$0xff]
      %v4199 = vld [vmem:[%s3 + $0x428] sm:$0xff]
      %v4200 = vld [vmem:[%s3 + $0x430] sm:$0xff]
      %v4201 = vld [vmem:[%s3 + $0x438] sm:$0xff]
      %v4202 = vld [vmem:[%s3 + $0x440] sm:$0xff]
      %v4203 = vld [vmem:[%s3 + $0x448] sm:$0xff]
      %v4204 = vld [vmem:[%s3 + $0x450] sm:$0xff]
      %v4205 = vld [vmem:[%s3 + $0x458] sm:$0xff]
      %v4206 = vld [vmem:[%s3 + $0x460] sm:$0xff]
      %v4207 = vld [vmem:[%s3 + $0x468] sm:$0xff]
      %v4208 = vld [vmem:[%s3 + $0x470] sm:$0xff]
      %v4209 = vld [vmem:[%s3 + $0x478] sm:$0xff]
      %v4210 = vld [vmem:[%s3 + $0x480] sm:$0xff]
      %v4211 = vld [vmem:[%s3 + $0x488] sm:$0xff]
      %v4212 = vld [vmem:[%s3 + $0x490] sm:$0xff]
      %v4213 = vld [vmem:[%s3 + $0x498] sm:$0xff]
      %v4214 = vld [vmem:[%s3 + $0x4a0] sm:$0xff]
      %v4215 = vld [vmem:[%s3 + $0x4a8] sm:$0xff]
      %v4216 = vld [vmem:[%s3 + $0x4b0] sm:$0xff]
      %v4217 = vld [vmem:[%s3 + $0x4b8] sm:$0xff]
      %v4218 = vld [vmem:[%s3 + $0x4c0] sm:$0xff]
      %v4219 = vld [vmem:[%s3 + $0x4c8] sm:$0xff]
      %v4220 = vld [vmem:[%s3 + $0x4d0] sm:$0xff]
      %v4221 = vld [vmem:[%s3 + $0x4d8] sm:$0xff]
      %v4222 = vld [vmem:[%s3 + $0x4e0] sm:$0xff]
      %v4223 = vld [vmem:[%s3 + $0x4e8] sm:$0xff]
      %v4224 = vld [vmem:[%s3 + $0x4f0] sm:$0xff]
      %v4225 = vld [vmem:[%s3 + $0x4f8] sm:$0xff]
      %v4226 = vld [vmem:[%s3 + $0x500] sm:$0xff]
      %v4227 = vld [vmem:[%s3 + $0x508] sm:$0xff]
      %v4228 = vld [vmem:[%s3 + $0x510] sm:$0xff]
      %v4229 = vld [vmem:[%s3 + $0x518] sm:$0xff]
      %v4230 = vld [vmem:[%s3 + $0x520] sm:$0xff]
      %v4231 = vld [vmem:[%s3 + $0x528] sm:$0xff]
      %v4232 = vld [vmem:[%s3 + $0x530] sm:$0xff]
      %v4233 = vld [vmem:[%s3 + $0x538] sm:$0xff]
      %v4234 = vld [vmem:[%s3 + $0x540] sm:$0xff]
      %v4235 = vld [vmem:[%s3 + $0x548] sm:$0xff]
      %v4236 = vld [vmem:[%s3 + $0x550] sm:$0xff]
      %v4237 = vld [vmem:[%s3 + $0x558] sm:$0xff]
      %v4238 = vld [vmem:[%s3 + $0x560] sm:$0xff]
      %v4239 = vld [vmem:[%s3 + $0x568] sm:$0xff]
      %v4240 = vld [vmem:[%s3 + $0x570] sm:$0xff]
      %v4241 = vld [vmem:[%s3 + $0x578] sm:$0xff]
      %v4242 = vld [vmem:[%s3 + $0x580] sm:$0xff]
      %v4243 = vld [vmem:[%s3 + $0x588] sm:$0xff]
      %v4244 = vld [vmem:[%s3 + $0x590] sm:$0xff]
      %v4245 = vld [vmem:[%s3 + $0x598] sm:$0xff]
      %v4246 = vld [vmem:[%s3 + $0x5a0] sm:$0xff]
      %v4247 = vld [vmem:[%s3 + $0x5a8] sm:$0xff]
      %v4248 = vld [vmem:[%s3 + $0x5b0] sm:$0xff]
      %v4249 = vld [vmem:[%s3 + $0x5b8] sm:$0xff]
      %v4250 = vld [vmem:[%s3 + $0x5c0] sm:$0xff]
      %v4251 = vld [vmem:[%s3 + $0x5c8] sm:$0xff]
      %v4252 = vld [vmem:[%s3 + $0x5d0] sm:$0xff]
      %v4253 = vld [vmem:[%s3 + $0x5d8] sm:$0xff]
      %v4254 = vld [vmem:[%s3 + $0x5e0] sm:$0xff]
      %v4255 = vld [vmem:[%s3 + $0x5e8] sm:$0xff]
      %v4256 = vld [vmem:[%s3 + $0x5f0] sm:$0xff]
      %v4257 = vld [vmem:[%s3 + $0x5f8] sm:$0xff]
      %v4258 = vld [vmem:[%s3 + $0x600] sm:$0xff]
      %v4259 = vld [vmem:[%s3 + $0x608] sm:$0xff]
      %v4260 = vld [vmem:[%s3 + $0x610] sm:$0xff]
      %v4261 = vld [vmem:[%s3 + $0x618] sm:$0xff]
      %v4262 = vld [vmem:[%s3 + $0x620] sm:$0xff]
      %v4263 = vld [vmem:[%s3 + $0x628] sm:$0xff]
      %v4264 = vld [vmem:[%s3 + $0x630] sm:$0xff]
      %v4265 = vld [vmem:[%s3 + $0x638] sm:$0xff]
      %v4266 = vld [vmem:[%s3 + $0x640] sm:$0xff]
      %v4267 = vld [vmem:[%s3 + $0x648] sm:$0xff]
      %v4268 = vld [vmem:[%s3 + $0x650] sm:$0xff]
      %v4269 = vld [vmem:[%s3 + $0x658] sm:$0xff]
      %v4270 = vld [vmem:[%s3 + $0x660] sm:$0xff]
      %v4271 = vld [vmem:[%s3 + $0x668] sm:$0xff]
      %v4272 = vld [vmem:[%s3 + $0x670] sm:$0xff]
      %v4273 = vld [vmem:[%s3 + $0x678] sm:$0xff]
      %v4274 = vld [vmem:[%s3 + $0x680] sm:$0xff]
      %v4275 = vld [vmem:[%s3 + $0x688] sm:$0xff]
      %v4276 = vld [vmem:[%s3 + $0x690] sm:$0xff]
      %v4277 = vld [vmem:[%s3 + $0x698] sm:$0xff]
      %v4278 = vld [vmem:[%s3 + $0x6a0] sm:$0xff]
      %v4279 = vld [vmem:[%s3 + $0x6a8] sm:$0xff]
      %v4280 = vld [vmem:[%s3 + $0x6b0] sm:$0xff]
      %v4281 = vld [vmem:[%s3 + $0x6b8] sm:$0xff]
      %v4282 = vld [vmem:[%s3 + $0x6c0] sm:$0xff]
      %v4283 = vld [vmem:[%s3 + $0x6c8] sm:$0xff]
      %v4284 = vld [vmem:[%s3 + $0x6d0] sm:$0xff]
      %v4285 = vld [vmem:[%s3 + $0x6d8] sm:$0xff]
      %v4286 = vld [vmem:[%s3 + $0x6e0] sm:$0xff]
      %v4287 = vld [vmem:[%s3 + $0x6e8] sm:$0xff]
      %v4288 = vld [vmem:[%s3 + $0x6f0] sm:$0xff]
      %v4289 = vld [vmem:[%s3 + $0x6f8] sm:$0xff]
      %v4290 = vld [vmem:[%s3 + $0x700] sm:$0xff]
      %v4291 = vld [vmem:[%s3 + $0x708] sm:$0xff]
      %v4292 = vld [vmem:[%s3 + $0x710] sm:$0xff]
      %v4293 = vld [vmem:[%s3 + $0x718] sm:$0xff]
      %v4294 = vld [vmem:[%s3 + $0x720] sm:$0xff]
      %v4295 = vld [vmem:[%s3 + $0x728] sm:$0xff]
      %v4296 = vld [vmem:[%s3 + $0x730] sm:$0xff]
      %v4297 = vld [vmem:[%s3 + $0x738] sm:$0xff]
      %v4298 = vld [vmem:[%s3 + $0x740] sm:$0xff]
      %v4299 = vld [vmem:[%s3 + $0x748] sm:$0xff]
      %v4300 = vld [vmem:[%s3 + $0x750] sm:$0xff]
      %v4301 = vld [vmem:[%s3 + $0x758] sm:$0xff]
      %v4302 = vld [vmem:[%s3 + $0x760] sm:$0xff]
      %v4303 = vld [vmem:[%s3 + $0x768] sm:$0xff]
      %v4304 = vld [vmem:[%s3 + $0x770] sm:$0xff]
      %v4305 = vld [vmem:[%s3 + $0x778] sm:$0xff]
      %v4306 = vld [vmem:[%s3 + $0x780] sm:$0xff]
      %v4307 = vld [vmem:[%s3 + $0x788] sm:$0xff]
      %v4308 = vld [vmem:[%s3 + $0x790] sm:$0xff]
      %v4309 = vld [vmem:[%s3 + $0x798] sm:$0xff]
      %v4310 = vld [vmem:[%s3 + $0x7a0] sm:$0xff]
      %v4311 = vld [vmem:[%s3 + $0x7a8] sm:$0xff]
      %v4312 = vld [vmem:[%s3 + $0x7b0] sm:$0xff]
      %v4313 = vld [vmem:[%s3 + $0x7b8] sm:$0xff]
      %v4314 = vld [vmem:[%s3 + $0x7c0] sm:$0xff]
      %v4315 = vld [vmem:[%s3 + $0x7c8] sm:$0xff]
      %v4316 = vld [vmem:[%s3 + $0x7d0] sm:$0xff]
      %v4317 = vld [vmem:[%s3 + $0x7d8] sm:$0xff]
      %v4318 = vld [vmem:[%s3 + $0x7e0] sm:$0xff]
      %v4319 = vld [vmem:[%s3 + $0x7e8] sm:$0xff]
      %v4320 = vld [vmem:[%s3 + $0x7f0] sm:$0xff]
      %v4321 = vld [vmem:[%s3 + $0x7f8] sm:$0xff]
      %4322 = vmatprep.subr.mxu0 %v4067
      %4323 = vmatpush1.msra.mxu0 %v4066
      %4324 = vmatprep.subr.mxu0 %v4075
      %4325 = vmatpush1.msra.mxu0 %v4074
      %4326 = vmatprep.subr.mxu0 %v4083
      %4327 = vmatpush1.msra.mxu0 %v4082
      %4328 = vmatprep.subr.mxu0 %v4091
      %4329 = vmatpush1.msra.mxu0 %v4090
      %4330 = vmatprep.subr.mxu0 %v4099
      %4331 = vmatpush1.msra.mxu0 %v4098
      %4332 = vmatprep.subr.mxu0 %v4107
      %4333 = vmatpush1.msra.mxu0 %v4106
      %4334 = vmatprep.subr.mxu0 %v4115
      %4335 = vmatpush1.msra.mxu0 %v4114
      %4336 = vmatprep.subr.mxu0 %v4123
      %4337 = vmatpush1.msra.mxu0 %v4122
      %4338 = vmatprep.subr.mxu0 %v4131
      %4339 = vmatpush1.msra.mxu0 %v4130
      %4340 = vmatprep.subr.mxu0 %v4139
      %4341 = vmatpush1.msra.mxu0 %v4138
      %4342 = vmatprep.subr.mxu0 %v4147
      %4343 = vmatpush1.msra.mxu0 %v4146
      %4344 = vmatprep.subr.mxu0 %v4155
      %4345 = vmatpush1.msra.mxu0 %v4154
      %4346 = vmatprep.subr.mxu0 %v4163
      %4347 = vmatpush1.msra.mxu0 %v4162
      %4348 = vmatprep.subr.mxu0 %v4171
      %4349 = vmatpush1.msra.mxu0 %v4170
      %4350 = vmatprep.subr.mxu0 %v4179
      %4351 = vmatpush1.msra.mxu0 %v4178
      %4352 = vmatprep.subr.mxu0 %v4187
      %4353 = vmatpush1.msra.mxu0 %v4186
      %4354 = vmatprep.subr.mxu0 %v4195
      %4355 = vmatpush1.msra.mxu0 %v4194
      %4356 = vmatprep.subr.mxu0 %v4203
      %4357 = vmatpush1.msra.mxu0 %v4202
      %4358 = vmatprep.subr.mxu0 %v4211
      %4359 = vmatpush1.msra.mxu0 %v4210
      %4360 = vmatprep.subr.mxu0 %v4219
      %4361 = vmatpush1.msra.mxu0 %v4218
      %4362 = vmatprep.subr.mxu0 %v4227
      %4363 = vmatpush1.msra.mxu0 %v4226
      %4364 = vmatprep.subr.mxu0 %v4235
      %4365 = vmatpush1.msra.mxu0 %v4234
      %4366 = vmatprep.subr.mxu0 %v4243
      %4367 = vmatpush1.msra.mxu0 %v4242
      %4368 = vmatprep.subr.mxu0 %v4251
      %4369 = vmatpush1.msra.mxu0 %v4250
      %4370 = vmatprep.subr.mxu0 %v4259
      %4371 = vmatpush1.msra.mxu0 %v4258
      %4372 = vmatprep.subr.mxu0 %v4267
      %4373 = vmatpush1.msra.mxu0 %v4266
      %4374 = vmatprep.subr.mxu0 %v4275
      %4375 = vmatpush1.msra.mxu0 %v4274
      %4376 = vmatprep.subr.mxu0 %v4283
      %4377 = vmatpush1.msra.mxu0 %v4282
      %4378 = vmatprep.subr.mxu0 %v4291
      %4379 = vmatpush1.msra.mxu0 %v4290
      %4380 = vmatprep.subr.mxu0 %v4299
      %4381 = vmatpush1.msra.mxu0 %v4298
      %4382 = vmatprep.subr.mxu0 %v4307
      %4383 = vmatpush1.msra.mxu0 %v4306
      %4384 = vmatprep.subr.mxu0 %v4315
      %4385 = vmatpush1.msra.mxu0 %v4314
      %4386 = vmatprep.mubr.f32.mxu0 %v4059
      %4387 = vmatmul.mubr.f32.gmra.mrb[0].mxu0 %v4058
      %v4388 = vpop.f32.mrb[0].mxu0
      %v4389 = vadd.f32 0.0, %v4388
      %v4390 = vpop.f32.mrb[0].mxu0
      %v4391 = vadd.f32 0.0, %v4390
      %4392 = vmatprep.mubr.f32.mxu0 %v4061
      %4393 = vmatmul.mubr.f32.gmra.mrb[0].mxu0 %v4060
      %v4394 = vpop.f32.mrb[0].mxu0
      %v4395 = vadd.f32 0.0, %v4394
      %v4396 = vpop.f32.mrb[0].mxu0
      %v4397 = vadd.f32 0.0, %v4396
      %4398 = vmatprep.mubr.f32.mxu0 %v4063
      %4399 = vmatmul.mubr.f32.gmra.mrb[0].mxu0 %v4062
      %v4400 = vpop.f32.mrb[0].mxu0
      %v4401 = vadd.f32 0.0, %v4400
      %v4402 = vpop.f32.mrb[0].mxu0
      %v4403 = vadd.f32 0.0, %v4402
      %4404 = vmatprep.mubr.f32.mxu0 %v4065
      %4405 = vmatmul.mubr.f32.gmra.mrb[0].mxu0 %v4064
      %v4406 = vpop.f32.mrb[0].mxu0
      %v4407 = vadd.f32 0.0, %v4406
      %v4408 = vpop.f32.mrb[0].mxu0
      %v4409 = vadd.f32 0.0, %v4408
      %4410 = vdwg.mxu0
      %4411 = vmatprep.subr.mxu0 %v4069
      %4412 = vmatpush1.msra.mxu0 %v4068
      %4413 = vmatprep.subr.mxu0 %v4077
      %4414 = vmatpush1.msra.mxu0 %v4076
      %4415 = vmatprep.subr.mxu0 %v4085
      %4416 = vmatpush1.msra.mxu0 %v4084
      %4417 = vmatprep.subr.mxu0 %v4093
      %4418 = vmatpush1.msra.mxu0 %v4092
      %4419 = vmatprep.subr.mxu0 %v4101
      %4420 = vmatpush1.msra.mxu0 %v4100
      %4421 = vmatprep.subr.mxu0 %v4109
      %4422 = vmatpush1.msra.mxu0 %v4108
      %4423 = vmatprep.subr.mxu0 %v4117
      %4424 = vmatpush1.msra.mxu0 %v4116
      %4425 = vmatprep.subr.mxu0 %v4125
      %4426 = vmatpush1.msra.mxu0 %v4124
      %4427 = vmatprep.subr.mxu0 %v4133
      %4428 = vmatpush1.msra.mxu0 %v4132
      %4429 = vmatprep.subr.mxu0 %v4141
      %4430 = vmatpush1.msra.mxu0 %v4140
      %4431 = vmatprep.subr.mxu0 %v4149
      %4432 = vmatpush1.msra.mxu0 %v4148
      %4433 = vmatprep.subr.mxu0 %v4157
      %4434 = vmatpush1.msra.mxu0 %v4156
      %4435 = vmatprep.subr.mxu0 %v4165
      %4436 = vmatpush1.msra.mxu0 %v4164
      %4437 = vmatprep.subr.mxu0 %v4173
      %4438 = vmatpush1.msra.mxu0 %v4172
      %4439 = vmatprep.subr.mxu0 %v4181
      %4440 = vmatpush1.msra.mxu0 %v4180
      %4441 = vmatprep.subr.mxu0 %v4189
      %4442 = vmatpush1.msra.mxu0 %v4188
      %4443 = vmatprep.subr.mxu0 %v4197
      %4444 = vmatpush1.msra.mxu0 %v4196
      %4445 = vmatprep.subr.mxu0 %v4205
      %4446 = vmatpush1.msra.mxu0 %v4204
      %4447 = vmatprep.subr.mxu0 %v4213
      %4448 = vmatpush1.msra.mxu0 %v4212
      %4449 = vmatprep.subr.mxu0 %v4221
      %4450 = vmatpush1.msra.mxu0 %v4220
      %4451 = vmatprep.subr.mxu0 %v4229
      %4452 = vmatpush1.msra.mxu0 %v4228
      %4453 = vmatprep.subr.mxu0 %v4237
      %4454 = vmatpush1.msra.mxu0 %v4236
      %4455 = vmatprep.subr.mxu0 %v4245
      %4456 = vmatpush1.msra.mxu0 %v4244
      %4457 = vmatprep.subr.mxu0 %v4253
      %4458 = vmatpush1.msra.mxu0 %v4252
      %4459 = vmatprep.subr.mxu0 %v4261
      %4460 = vmatpush1.msra.mxu0 %v4260
      %4461 = vmatprep.subr.mxu0 %v4269
      %4462 = vmatpush1.msra.mxu0 %v4268
      %4463 = vmatprep.subr.mxu0 %v4277
      %4464 = vmatpush1.msra.mxu0 %v4276
      %4465 = vmatprep.subr.mxu0 %v4285
      %4466 = vmatpush1.msra.mxu0 %v4284
      %4467 = vmatprep.subr.mxu0 %v4293
      %4468 = vmatpush1.msra.mxu0 %v4292
      %4469 = vmatprep.subr.mxu0 %v4301
      %4470 = vmatpush1.msra.mxu0 %v4300
      %4471 = vmatprep.subr.mxu0 %v4309
      %4472 = vmatpush1.msra.mxu0 %v4308
      %4473 = vmatprep.subr.mxu0 %v4317
      %4474 = vmatpush1.msra.mxu0 %v4316
      %4475 = vmatprep.mubr.f32.mxu0 %v4059
      %4476 = vmatmul.mubr.f32.gmra.mrb[0].mxu0 %v4058
      %v4477 = vpop.f32.mrb[0].mxu0
      %v4478 = vadd.f32 0.0, %v4477
      %v4479 = vpop.f32.mrb[0].mxu0
      %v4480 = vadd.f32 0.0, %v4479
      %4481 = vmatprep.mubr.f32.mxu0 %v4061
      %4482 = vmatmul.mubr.f32.gmra.mrb[0].mxu0 %v4060
      %v4483 = vpop.f32.mrb[0].mxu0
      %v4484 = vadd.f32 0.0, %v4483
      %v4485 = vpop.f32.mrb[0].mxu0
      %v4486 = vadd.f32 0.0, %v4485
      %4487 = vmatprep.mubr.f32.mxu0 %v4063
      %4488 = vmatmul.mubr.f32.gmra.mrb[0].mxu0 %v4062
      %v4489 = vpop.f32.mrb[0].mxu0
      %v4490 = vadd.f32 0.0, %v4489
      %v4491 = vpop.f32.mrb[0].mxu0
      %v4492 = vadd.f32 0.0, %v4491
      %4493 = vmatprep.mubr.f32.mxu0 %v4065
      %4494 = vmatmul.mubr.f32.gmra.mrb[0].mxu0 %v4064
      %v4495 = vpop.f32.mrb[0].mxu0
      %v4496 = vadd.f32 0.0, %v4495
      %v4497 = vpop.f32.mrb[0].mxu0
      %v4498 = vadd.f32 0.0, %v4497
      %4499 = vdwg.mxu0
      %4500 = vmatprep.subr.mxu0 %v4071
      %4501 = vmatpush1.msra.mxu0 %v4070
      %4502 = vmatprep.subr.mxu0 %v4079
      %4503 = vmatpush1.msra.mxu0 %v4078
      %4504 = vmatprep.subr.mxu0 %v4087
      %4505 = vmatpush1.msra.mxu0 %v4086
      %4506 = vmatprep.subr.mxu0 %v4095
      %4507 = vmatpush1.msra.mxu0 %v4094
      %4508 = vmatprep.subr.mxu0 %v4103
      %4509 = vmatpush1.msra.mxu0 %v4102
      %4510 = vmatprep.subr.mxu0 %v4111
      %4511 = vmatpush1.msra.mxu0 %v4110
      %4512 = vmatprep.subr.mxu0 %v4119
      %4513 = vmatpush1.msra.mxu0 %v4118
      %4514 = vmatprep.subr.mxu0 %v4127
      %4515 = vmatpush1.msra.mxu0 %v4126
      %4516 = vmatprep.subr.mxu0 %v4135
      %4517 = vmatpush1.msra.mxu0 %v4134
      %4518 = vmatprep.subr.mxu0 %v4143
      %4519 = vmatpush1.msra.mxu0 %v4142
      %4520 = vmatprep.subr.mxu0 %v4151
      %4521 = vmatpush1.msra.mxu0 %v4150
      %4522 = vmatprep.subr.mxu0 %v4159
      %4523 = vmatpush1.msra.mxu0 %v4158
      %4524 = vmatprep.subr.mxu0 %v4167
      %4525 = vmatpush1.msra.mxu0 %v4166
      %4526 = vmatprep.subr.mxu0 %v4175
      %4527 = vmatpush1.msra.mxu0 %v4174
      %4528 = vmatprep.subr.mxu0 %v4183
      %4529 = vmatpush1.msra.mxu0 %v4182
      %4530 = vmatprep.subr.mxu0 %v4191
      %4531 = vmatpush1.msra.mxu0 %v4190
      %4532 = vmatprep.subr.mxu0 %v4199
      %4533 = vmatpush1.msra.mxu0 %v4198
      %4534 = vmatprep.subr.mxu0 %v4207
      %4535 = vmatpush1.msra.mxu0 %v4206
      %4536 = vmatprep.subr.mxu0 %v4215
      %4537 = vmatpush1.msra.mxu0 %v4214
      %4538 = vmatprep.subr.mxu0 %v4223
      %4539 = vmatpush1.msra.mxu0 %v4222
      %4540 = vmatprep.subr.mxu0 %v4231
      %4541 = vmatpush1.msra.mxu0 %v4230
      %4542 = vmatprep.subr.mxu0 %v4239
      %4543 = vmatpush1.msra.mxu0 %v4238
      %4544 = vmatprep.subr.mxu0 %v4247
      %4545 = vmatpush1.msra.mxu0 %v4246
      %4546 = vmatprep.subr.mxu0 %v4255
      %4547 = vmatpush1.msra.mxu0 %v4254
      %4548 = vmatprep.subr.mxu0 %v4263
      %4549 = vmatpush1.msra.mxu0 %v4262
      %4550 = vmatprep.subr.mxu0 %v4271
      %4551 = vmatpush1.msra.mxu0 %v4270
      %4552 = vmatprep.subr.mxu0 %v4279
      %4553 = vmatpush1.msra.mxu0 %v4278
      %4554 = vmatprep.subr.mxu0 %v4287
      %4555 = vmatpush1.msra.mxu0 %v4286
      %4556 = vmatprep.subr.mxu0 %v4295
      %4557 = vmatpush1.msra.mxu0 %v4294
      %4558 = vmatprep.subr.mxu0 %v4303
      %4559 = vmatpush1.msra.mxu0 %v4302
      %4560 = vmatprep.subr.mxu0 %v4311
      %4561 = vmatpush1.msra.mxu0 %v4310
      %4562 = vmatprep.subr.mxu0 %v4319
      %4563 = vmatpush1.msra.mxu0 %v4318
      %4564 = vmatprep.mubr.f32.mxu0 %v4059
      %4565 = vmatmul.mubr.f32.gmra.mrb[0].mxu0 %v4058
      %v4566 = vpop.f32.mrb[0].mxu0
      %v4567 = vadd.f32 0.0, %v4566
      %v4568 = vpop.f32.mrb[0].mxu0
      %v4569 = vadd.f32 0.0, %v4568
      %4570 = vmatprep.mubr.f32.mxu0 %v4061
      %4571 = vmatmul.mubr.f32.gmra.mrb[0].mxu0 %v4060
      %v4572 = vpop.f32.mrb[0].mxu0
      %v4573 = vadd.f32 0.0, %v4572
      %v4574 = vpop.f32.mrb[0].mxu0
      %v4575 = vadd.f32 0.0, %v4574
      %4576 = vmatprep.mubr.f32.mxu0 %v4063
      %4577 = vmatmul.mubr.f32.gmra.mrb[0].mxu0 %v4062
      %v4578 = vpop.f32.mrb[0].mxu0
      %v4579 = vadd.f32 0.0, %v4578
      %v4580 = vpop.f32.mrb[0].mxu0
      %v4581 = vadd.f32 0.0, %v4580
      %4582 = vmatprep.mubr.f32.mxu0 %v4065
      %4583 = vmatmul.mubr.f32.gmra.mrb[0].mxu0 %v4064
      %v4584 = vpop.f32.mrb[0].mxu0
      %v4585 = vadd.f32 0.0, %v4584
      %v4586 = vpop.f32.mrb[0].mxu0
      %v4587 = vadd.f32 0.0, %v4586
      %4588 = vdwg.mxu0
      %4589 = vmatprep.subr.mxu0 %v4073
      %4590 = vmatpush1.msra.mxu0 %v4072
      %4591 = vmatprep.subr.mxu0 %v4081
      %4592 = vmatpush1.msra.mxu0 %v4080
      %4593 = vmatprep.subr.mxu0 %v4089
      %4594 = vmatpush1.msra.mxu0 %v4088
      %4595 = vmatprep.subr.mxu0 %v4097
      %4596 = vmatpush1.msra.mxu0 %v4096
      %4597 = vmatprep.subr.mxu0 %v4105
      %4598 = vmatpush1.msra.mxu0 %v4104
      %4599 = vmatprep.subr.mxu0 %v4113
      %4600 = vmatpush1.msra.mxu0 %v4112
      %4601 = vmatprep.subr.mxu0 %v4121
      %4602 = vmatpush1.msra.mxu0 %v4120
      %4603 = vmatprep.subr.mxu0 %v4129
      %4604 = vmatpush1.msra.mxu0 %v4128
      %4605 = vmatprep.subr.mxu0 %v4137
      %4606 = vmatpush1.msra.mxu0 %v4136
      %4607 = vmatprep.subr.mxu0 %v4145
      %4608 = vmatpush1.msra.mxu0 %v4144
      %4609 = vmatprep.subr.mxu0 %v4153
      %4610 = vmatpush1.msra.mxu0 %v4152
      %4611 = vmatprep.subr.mxu0 %v4161
      %4612 = vmatpush1.msra.mxu0 %v4160
      %4613 = vmatprep.subr.mxu0 %v4169
      %4614 = vmatpush1.msra.mxu0 %v4168
      %4615 = vmatprep.subr.mxu0 %v4177
      %4616 = vmatpush1.msra.mxu0 %v4176
      %4617 = vmatprep.subr.mxu0 %v4185
      %4618 = vmatpush1.msra.mxu0 %v4184
      %4619 = vmatprep.subr.mxu0 %v4193
      %4620 = vmatpush1.msra.mxu0 %v4192
      %4621 = vmatprep.subr.mxu0 %v4201
      %4622 = vmatpush1.msra.mxu0 %v4200
      %4623 = vmatprep.subr.mxu0 %v4209
      %4624 = vmatpush1.msra.mxu0 %v4208
      %4625 = vmatprep.subr.mxu0 %v4217
      %4626 = vmatpush1.msra.mxu0 %v4216
      %4627 = vmatprep.subr.mxu0 %v4225
      %4628 = vmatpush1.msra.mxu0 %v4224
      %4629 = vmatprep.subr.mxu0 %v4233
      %4630 = vmatpush1.msra.mxu0 %v4232
      %4631 = vmatprep.subr.mxu0 %v4241
      %4632 = vmatpush1.msra.mxu0 %v4240
      %4633 = vmatprep.subr.mxu0 %v4249
      %4634 = vmatpush1.msra.mxu0 %v4248
      %4635 = vmatprep.subr.mxu0 %v4257
      %4636 = vmatpush1.msra.mxu0 %v4256
      %4637 = vmatprep.subr.mxu0 %v4265
      %4638 = vmatpush1.msra.mxu0 %v4264
      %4639 = vmatprep.subr.mxu0 %v4273
      %4640 = vmatpush1.msra.mxu0 %v4272
      %4641 = vmatprep.subr.mxu0 %v4281
      %4642 = vmatpush1.msra.mxu0 %v4280
      %4643 = vmatprep.subr.mxu0 %v4289
      %4644 = vmatpush1.msra.mxu0 %v4288
      %4645 = vmatprep.subr.mxu0 %v4297
      %4646 = vmatpush1.msra.mxu0 %v4296
      %4647 = vmatprep.subr.mxu0 %v4305
      %4648 = vmatpush1.msra.mxu0 %v4304
      %4649 = vmatprep.subr.mxu0 %v4313
      %4650 = vmatpush1.msra.mxu0 %v4312
      %4651 = vmatprep.subr.mxu0 %v4321
      %4652 = vmatpush1.msra.mxu0 %v4320
      %4653 = vmatprep.mubr.f32.mxu0 %v4059
      %4654 = vmatmul.mubr.f32.gmra.mrb[0].mxu0 %v4058
      %v4655 = vpop.f32.mrb[0].mxu0
      %v4656 = vadd.f32 0.0, %v4655
      %v4657 = vpop.f32.mrb[0].mxu0
      %v4658 = vadd.f32 0.0, %v4657
      %4659 = vmatprep.mubr.f32.mxu0 %v4061
      %4660 = vmatmul.mubr.f32.gmra.mrb[0].mxu0 %v4060
      %v4661 = vpop.f32.mrb[0].mxu0
      %v4662 = vadd.f32 0.0, %v4661
      %v4663 = vpop.f32.mrb[0].mxu0
      %v4664 = vadd.f32 0.0, %v4663
      %4665 = vmatprep.mubr.f32.mxu0 %v4063
      %4666 = vmatmul.mubr.f32.gmra.mrb[0].mxu0 %v4062
      %v4667 = vpop.f32.mrb[0].mxu0
      %v4668 = vadd.f32 0.0, %v4667
      %v4669 = vpop.f32.mrb[0].mxu0
      %v4670 = vadd.f32 0.0, %v4669
      %4671 = vmatprep.mubr.f32.mxu0 %v4065
      %4672 = vmatmul.mubr.f32.gmra.mrb[0].mxu0 %v4064
      %v4673 = vpop.f32.mrb[0].mxu0
      %v4674 = vadd.f32 0.0, %v4673
      %v4675 = vpop.f32.mrb[0].mxu0
      %v4676 = vadd.f32 0.0, %v4675
      %4677 = vdwg.mxu0
      %v4678 = vadd.s32 %v852, 256
      %v4679 = vadd.s32 %v852, 384
      %v4680 = vadd.s32 %v852, 512
      %v4681 = vadd.s32 %v852, 640
      %v4682 = vadd.s32 %v852, 768
      %v4683 = vadd.s32 %v852, 896
      %vm4684 = vcmp.lt.s32.totalorder %v852, 0
      %v4685 = vsub.s32 0, %v852
      %v4686 = vsel %vm4684, %v4685, %v852
      %v4687 = vshrl.u32 %v4686, 5
      %v4688 = vand.u32 %v4686, 31
      %v4689 = vsub.s32 0, %v4688
      %v4690 = vsel %vm4684, %v4689, %v4688
      %vm4691 = vcmp.lt.s32.totalorder %v2231, 0
      %v4692 = vsub.s32 0, %v2231
      %v4693 = vsel %vm4691, %v4692, %v2231
      %v4694 = vshrl.u32 %v4693, 5
      %v4695 = vand.u32 %v4693, 31
      %v4696 = vsub.s32 0, %v4695
      %v4697 = vsel %vm4691, %v4696, %v4695
      %vm4698 = vcmp.lt.s32.totalorder %v4678, 0
      %v4699 = vsub.s32 0, %v4678
      %v4700 = vsel %vm4698, %v4699, %v4678
      %v4701 = vshrl.u32 %v4700, 5
      %v4702 = vand.u32 %v4700, 31
      %v4703 = vsub.s32 0, %v4702
      %v4704 = vsel %vm4698, %v4703, %v4702
      %vm4705 = vcmp.lt.s32.totalorder %v4679, 0
      %v4706 = vsub.s32 0, %v4679
      %v4707 = vsel %vm4705, %v4706, %v4679
      %v4708 = vshrl.u32 %v4707, 5
      %v4709 = vand.u32 %v4707, 31
      %v4710 = vsub.s32 0, %v4709
      %v4711 = vsel %vm4705, %v4710, %v4709
      %vm4712 = vcmp.lt.s32.totalorder %v4680, 0
      %v4713 = vsub.s32 0, %v4680
      %v4714 = vsel %vm4712, %v4713, %v4680
      %v4715 = vshrl.u32 %v4714, 5
      %v4716 = vand.u32 %v4714, 31
      %v4717 = vsub.s32 0, %v4716
      %v4718 = vsel %vm4712, %v4717, %v4716
      %vm4719 = vcmp.lt.s32.totalorder %v4681, 0
      %v4720 = vsub.s32 0, %v4681
      %v4721 = vsel %vm4719, %v4720, %v4681
      %v4722 = vshrl.u32 %v4721, 5
      %v4723 = vand.u32 %v4721, 31
      %v4724 = vsub.s32 0, %v4723
      %v4725 = vsel %vm4719, %v4724, %v4723
      %vm4726 = vcmp.lt.s32.totalorder %v4682, 0
      %v4727 = vsub.s32 0, %v4682
      %v4728 = vsel %vm4726, %v4727, %v4682
      %v4729 = vshrl.u32 %v4728, 5
      %v4730 = vand.u32 %v4728, 31
      %v4731 = vsub.s32 0, %v4730
      %v4732 = vsel %vm4726, %v4731, %v4730
      %vm4733 = vcmp.lt.s32.totalorder %v4683, 0
      %v4734 = vsub.s32 0, %v4683
      %v4735 = vsel %vm4733, %v4734, %v4683
      %v4736 = vshrl.u32 %v4735, 5
      %v4737 = vand.u32 %v4735, 31
      %v4738 = vsub.s32 0, %v4737
      %v4739 = vsel %vm4733, %v4738, %v4737
      %vm4740 = vcmp.ne.s32.totalorder %v4690, 0
      %vm4741 = vcmp.ne.s32.totalorder %v4697, 0
      %vm4742 = vcmp.ne.s32.totalorder %v4704, 0
      %vm4743 = vcmp.ne.s32.totalorder %v4711, 0
      %vm4744 = vcmp.ne.s32.totalorder %v4718, 0
      %vm4745 = vcmp.ne.s32.totalorder %v4725, 0
      %vm4746 = vcmp.ne.s32.totalorder %v4732, 0
      %vm4747 = vcmp.ne.s32.totalorder %v4739, 0
      %vm4748 = vcmp.lt.s32.totalorder %v4690, 0
      %vm4749 = vcmp.lt.s32.totalorder %v4697, 0
      %vm4750 = vcmp.lt.s32.totalorder %v4704, 0
      %vm4751 = vcmp.lt.s32.totalorder %v4711, 0
      %vm4752 = vcmp.lt.s32.totalorder %v4718, 0
      %vm4753 = vcmp.lt.s32.totalorder %v4725, 0
      %vm4754 = vcmp.lt.s32.totalorder %v4732, 0
      %vm4755 = vcmp.lt.s32.totalorder %v4739, 0
      %vm4756 = vmand %vm4748, %vm4740
      %vm4757 = vmand %vm4749, %vm4741
      %vm4758 = vmand %vm4750, %vm4742
      %vm4759 = vmand %vm4751, %vm4743
      %vm4760 = vmand %vm4752, %vm4744
      %vm4761 = vmand %vm4753, %vm4745
      %vm4762 = vmand %vm4754, %vm4746
      %vm4763 = vmand %vm4755, %vm4747
      %v4764 = vadd.s32 %v4690, 32
      %v4765 = vadd.s32 %v4697, 32
      %v4766 = vadd.s32 %v4704, 32
      %v4767 = vadd.s32 %v4711, 32
      %v4768 = vadd.s32 %v4718, 32
      %v4769 = vadd.s32 %v4725, 32
      %v4770 = vadd.s32 %v4732, 32
      %v4771 = vadd.s32 %v4739, 32
      %v4772 = vsel %vm4756, %v4764, %v4690
      %v4773 = vsel %vm4757, %v4765, %v4697
      %v4774 = vsel %vm4758, %v4766, %v4704
      %v4775 = vsel %vm4759, %v4767, %v4711
      %v4776 = vsel %vm4760, %v4768, %v4718
      %v4777 = vsel %vm4761, %v4769, %v4725
      %v4778 = vsel %vm4762, %v4770, %v4732
      %v4779 = vsel %vm4763, %v4771, %v4739
      %vm4780 = vcmp.ge.s32.totalorder %v4772, 1
      %vm4781 = vcmp.ge.s32.totalorder %v4773, 1
      %vm4782 = vcmp.ge.s32.totalorder %v4774, 1
      %vm4783 = vcmp.ge.s32.totalorder %v4775, 1
      %vm4784 = vcmp.ge.s32.totalorder %v4776, 1
      %vm4785 = vcmp.ge.s32.totalorder %v4777, 1
      %vm4786 = vcmp.ge.s32.totalorder %v4778, 1
      %vm4787 = vcmp.ge.s32.totalorder %v4779, 1
      %v4788 = vsel %vm4780, 1, 0
      %v4789 = vsel %vm4781, 1, 0
      %v4790 = vsel %vm4782, 1, 0
      %v4791 = vsel %vm4783, 1, 0
      %v4792 = vsel %vm4784, 1, 0
      %v4793 = vsel %vm4785, 1, 0
      %v4794 = vsel %vm4786, 1, 0
      %v4795 = vsel %vm4787, 1, 0
      %v4796 = vcvt.s32.f32 %v4788
      %v4797 = vcvt.s32.f32 %v4789
      %v4798 = vcvt.s32.f32 %v4790
      %v4799 = vcvt.s32.f32 %v4791
      %v4800 = vcvt.s32.f32 %v4792
      %v4801 = vcvt.s32.f32 %v4793
      %v4802 = vcvt.s32.f32 %v4794
      %v4803 = vcvt.s32.f32 %v4795
      %vm4804 = vcmp.le.s32.totalorder %v4772, 30
      %vm4805 = vcmp.le.s32.totalorder %v4773, 30
      %vm4806 = vcmp.le.s32.totalorder %v4774, 30
      %vm4807 = vcmp.le.s32.totalorder %v4775, 30
      %vm4808 = vcmp.le.s32.totalorder %v4776, 30
      %vm4809 = vcmp.le.s32.totalorder %v4777, 30
      %vm4810 = vcmp.le.s32.totalorder %v4778, 30
      %vm4811 = vcmp.le.s32.totalorder %v4779, 30
      %v4812 = vsel %vm4804, 1, 0
      %v4813 = vsel %vm4805, 1, 0
      %v4814 = vsel %vm4806, 1, 0
      %v4815 = vsel %vm4807, 1, 0
      %v4816 = vsel %vm4808, 1, 0
      %v4817 = vsel %vm4809, 1, 0
      %v4818 = vsel %vm4810, 1, 0
      %v4819 = vsel %vm4811, 1, 0
      %v4820 = vcvt.s32.f32 %v4812
      %v4821 = vcvt.s32.f32 %v4813
      %v4822 = vcvt.s32.f32 %v4814
      %v4823 = vcvt.s32.f32 %v4815
      %v4824 = vcvt.s32.f32 %v4816
      %v4825 = vcvt.s32.f32 %v4817
      %v4826 = vcvt.s32.f32 %v4818
      %v4827 = vcvt.s32.f32 %v4819
      %4860 = vrot.lane.b32.xlu0 %v4389, 33
      %v4861 = vpop.permute.xlu0 %4860
      %4862 = vrot.lane.b32.xlu0 %v4391, 33
      %v4863 = vpop.permute.xlu0 %4862
      %4864 = vrot.lane.b32.xlu0 %v4478, 33
      %v4865 = vpop.permute.xlu0 %4864
      %4866 = vrot.lane.b32.xlu0 %v4480, 33
      %v4867 = vpop.permute.xlu0 %4866
      %4868 = vrot.lane.b32.xlu0 %v4567, 33
      %v4869 = vpop.permute.xlu0 %4868
      %4870 = vrot.lane.b32.xlu0 %v4569, 33
      %v4871 = vpop.permute.xlu0 %4870
      %4872 = vrot.lane.b32.xlu0 %v4656, 33
      %v4873 = vpop.permute.xlu0 %4872
      %4874 = vrot.lane.b32.xlu0 %v4658, 33
      %v4875 = vpop.permute.xlu0 %4874
      %4876 = vrot.lane.b32.xlu0 %v4395, 33
      %v4877 = vpop.permute.xlu0 %4876
      %4878 = vrot.lane.b32.xlu0 %v4397, 33
      %v4879 = vpop.permute.xlu0 %4878
      %4880 = vrot.lane.b32.xlu0 %v4484, 33
      %v4881 = vpop.permute.xlu0 %4880
      %4882 = vrot.lane.b32.xlu0 %v4486, 33
      %v4883 = vpop.permute.xlu0 %4882
      %4884 = vrot.lane.b32.xlu0 %v4573, 33
      %v4885 = vpop.permute.xlu0 %4884
      %4886 = vrot.lane.b32.xlu0 %v4575, 33
      %v4887 = vpop.permute.xlu0 %4886
      %4888 = vrot.lane.b32.xlu0 %v4662, 33
      %v4889 = vpop.permute.xlu0 %4888
      %4890 = vrot.lane.b32.xlu0 %v4664, 33
      %v4891 = vpop.permute.xlu0 %4890
      %4892 = vrot.lane.b32.xlu0 %v4401, 33
      %v4893 = vpop.permute.xlu0 %4892
      %4894 = vrot.lane.b32.xlu0 %v4403, 33
      %v4895 = vpop.permute.xlu0 %4894
      %4896 = vrot.lane.b32.xlu0 %v4490, 33
      %v4897 = vpop.permute.xlu0 %4896
      %4898 = vrot.lane.b32.xlu0 %v4492, 33
      %v4899 = vpop.permute.xlu0 %4898
      %4900 = vrot.lane.b32.xlu0 %v4579, 33
      %v4901 = vpop.permute.xlu0 %4900
      %4902 = vrot.lane.b32.xlu0 %v4581, 33
      %v4903 = vpop.permute.xlu0 %4902
      %4904 = vrot.lane.b32.xlu0 %v4668, 33
      %v4905 = vpop.permute.xlu0 %4904
      %4906 = vrot.lane.b32.xlu0 %v4670, 33
      %v4907 = vpop.permute.xlu0 %4906
      %4908 = vrot.lane.b32.xlu0 %v4407, 33
      %v4909 = vpop.permute.xlu0 %4908
      %4910 = vrot.lane.b32.xlu0 %v4409, 33
      %v4911 = vpop.permute.xlu0 %4910
      %4912 = vrot.lane.b32.xlu0 %v4496, 33
      %v4913 = vpop.permute.xlu0 %4912
      %4914 = vrot.lane.b32.xlu0 %v4498, 33
      %v4915 = vpop.permute.xlu0 %4914
      %4916 = vrot.lane.b32.xlu0 %v4585, 33
      %v4917 = vpop.permute.xlu0 %4916
      %4918 = vrot.lane.b32.xlu0 %v4587, 33
      %v4919 = vpop.permute.xlu0 %4918
      %4920 = vrot.lane.b32.xlu0 %v4674, 33
      %v4921 = vpop.permute.xlu0 %4920
      %4922 = vrot.lane.b32.xlu0 %v4676, 33
      %v4923 = vpop.permute.xlu0 %4922
      %vm4924 = vcmask 269312
      %v4925 = vsel %vm4924, %v4861, %v4863
      %v4926 = vsel %vm4924, %v4863, %v4865
      %v4927 = vsel %vm4924, %v4865, %v4867
      %v4928 = vsel %vm4924, %v4867, %v4869
      %v4929 = vsel %vm4924, %v4869, %v4871
      %v4930 = vsel %vm4924, %v4871, %v4873
      %v4931 = vsel %vm4924, %v4873, %v4875
      %v4932 = vsel %vm4924, %v4877, %v4879
      %v4933 = vsel %vm4924, %v4879, %v4881
      %v4934 = vsel %vm4924, %v4881, %v4883
      %v4935 = vsel %vm4924, %v4883, %v4885
      %v4936 = vsel %vm4924, %v4885, %v4887
      %v4937 = vsel %vm4924, %v4887, %v4889
      %v4938 = vsel %vm4924, %v4889, %v4891
      %v4939 = vsel %vm4924, %v4893, %v4895
      %v4940 = vsel %vm4924, %v4895, %v4897
      %v4941 = vsel %vm4924, %v4897, %v4899
      %v4942 = vsel %vm4924, %v4899, %v4901
      %v4943 = vsel %vm4924, %v4901, %v4903
      %v4944 = vsel %vm4924, %v4903, %v4905
      %v4945 = vsel %vm4924, %v4905, %v4907
      %v4946 = vsel %vm4924, %v4909, %v4911
      %v4947 = vsel %vm4924, %v4911, %v4913
      %v4948 = vsel %vm4924, %v4913, %v4915
      %v4949 = vsel %vm4924, %v4915, %v4917
      %v4950 = vsel %vm4924, %v4917, %v4919
      %v4951 = vsel %vm4924, %v4919, %v4921
      %v4952 = vsel %vm4924, %v4921, %v4923
      %v4985 = vsel %vm4924, 0.0, %v4861
      %v4986 = vsel %vm4924, 0.0, %v4877
      %v4987 = vsel %vm4924, 0.0, %v4893
      %v4988 = vsel %vm4924, 0.0, %v4909
      %v4989 = vmul.f32 %v4985, %v4796
      %v4990 = vmul.f32 %v4925, %v4797
      %v4991 = vmul.f32 %v4926, %v4798
      %v4992 = vmul.f32 %v4927, %v4799
      %v4993 = vmul.f32 %v4928, %v4800
      %v4994 = vmul.f32 %v4929, %v4801
      %v4995 = vmul.f32 %v4930, %v4802
      %v4996 = vmul.f32 %v4931, %v4803
      %v4997 = vmul.f32 %v4986, %v4796
      %v4998 = vmul.f32 %v4932, %v4797
      %v4999 = vmul.f32 %v4933, %v4798
      %v5000 = vmul.f32 %v4934, %v4799
      %v5001 = vmul.f32 %v4935, %v4800
      %v5002 = vmul.f32 %v4936, %v4801
      %v5003 = vmul.f32 %v4937, %v4802
      %v5004 = vmul.f32 %v4938, %v4803
      %v5005 = vmul.f32 %v4987, %v4796
      %v5006 = vmul.f32 %v4939, %v4797
      %v5007 = vmul.f32 %v4940, %v4798
      %v5008 = vmul.f32 %v4941, %v4799
      %v5009 = vmul.f32 %v4942, %v4800
      %v5010 = vmul.f32 %v4943, %v4801
      %v5011 = vmul.f32 %v4944, %v4802
      %v5012 = vmul.f32 %v4945, %v4803
      %v5013 = vmul.f32 %v4988, %v4796
      %v5014 = vmul.f32 %v4946, %v4797
      %v5015 = vmul.f32 %v4947, %v4798
      %v5016 = vmul.f32 %v4948, %v4799
      %v5017 = vmul.f32 %v4949, %v4800
      %v5018 = vmul.f32 %v4950, %v4801
      %v5019 = vmul.f32 %v4951, %v4802
      %v5020 = vmul.f32 %v4952, %v4803
      %5021 = vrot.lane.b32.xlu0 %v4389, 32
      %v5022 = vpop.permute.xlu0 %5021
      %5023 = vrot.lane.b32.xlu0 %v4391, 32
      %v5024 = vpop.permute.xlu0 %5023
      %5025 = vrot.lane.b32.xlu0 %v4478, 32
      %v5026 = vpop.permute.xlu0 %5025
      %5027 = vrot.lane.b32.xlu0 %v4480, 32
      %v5028 = vpop.permute.xlu0 %5027
      %5029 = vrot.lane.b32.xlu0 %v4567, 32
      %v5030 = vpop.permute.xlu0 %5029
      %5031 = vrot.lane.b32.xlu0 %v4569, 32
      %v5032 = vpop.permute.xlu0 %5031
      %5033 = vrot.lane.b32.xlu0 %v4656, 32
      %v5034 = vpop.permute.xlu0 %5033
      %5035 = vrot.lane.b32.xlu0 %v4658, 32
      %v5036 = vpop.permute.xlu0 %5035
      %5037 = vrot.lane.b32.xlu0 %v4395, 32
      %v5038 = vpop.permute.xlu0 %5037
      %5039 = vrot.lane.b32.xlu0 %v4397, 32
      %v5040 = vpop.permute.xlu0 %5039
      %5041 = vrot.lane.b32.xlu0 %v4484, 32
      %v5042 = vpop.permute.xlu0 %5041
      %5043 = vrot.lane.b32.xlu0 %v4486, 32
      %v5044 = vpop.permute.xlu0 %5043
      %5045 = vrot.lane.b32.xlu0 %v4573, 32
      %v5046 = vpop.permute.xlu0 %5045
      %5047 = vrot.lane.b32.xlu0 %v4575, 32
      %v5048 = vpop.permute.xlu0 %5047
      %5049 = vrot.lane.b32.xlu0 %v4662, 32
      %v5050 = vpop.permute.xlu0 %5049
      %5051 = vrot.lane.b32.xlu0 %v4664, 32
      %v5052 = vpop.permute.xlu0 %5051
      %5053 = vrot.lane.b32.xlu0 %v4401, 32
      %v5054 = vpop.permute.xlu0 %5053
      %5055 = vrot.lane.b32.xlu0 %v4403, 32
      %v5056 = vpop.permute.xlu0 %5055
      %5057 = vrot.lane.b32.xlu0 %v4490, 32
      %v5058 = vpop.permute.xlu0 %5057
      %5059 = vrot.lane.b32.xlu0 %v4492, 32
      %v5060 = vpop.permute.xlu0 %5059
      %5061 = vrot.lane.b32.xlu0 %v4579, 32
      %v5062 = vpop.permute.xlu0 %5061
      %5063 = vrot.lane.b32.xlu0 %v4581, 32
      %v5064 = vpop.permute.xlu0 %5063
      %5065 = vrot.lane.b32.xlu0 %v4668, 32
      %v5066 = vpop.permute.xlu0 %5065
      %5067 = vrot.lane.b32.xlu0 %v4670, 32
      %v5068 = vpop.permute.xlu0 %5067
      %5069 = vrot.lane.b32.xlu0 %v4407, 32
      %v5070 = vpop.permute.xlu0 %5069
      %5071 = vrot.lane.b32.xlu0 %v4409, 32
      %v5072 = vpop.permute.xlu0 %5071
      %5073 = vrot.lane.b32.xlu0 %v4496, 32
      %v5074 = vpop.permute.xlu0 %5073
      %5075 = vrot.lane.b32.xlu0 %v4498, 32
      %v5076 = vpop.permute.xlu0 %5075
      %5077 = vrot.lane.b32.xlu0 %v4585, 32
      %v5078 = vpop.permute.xlu0 %5077
      %5079 = vrot.lane.b32.xlu0 %v4587, 32
      %v5080 = vpop.permute.xlu0 %5079
      %5081 = vrot.lane.b32.xlu0 %v4674, 32
      %v5082 = vpop.permute.xlu0 %5081
      %5083 = vrot.lane.b32.xlu0 %v4676, 32
      %v5084 = vpop.permute.xlu0 %5083
      %v5085 = vsel %vm1079, %v5022, %v5024
      %v5086 = vsel %vm1079, %v5024, %v5026
      %v5087 = vsel %vm1079, %v5026, %v5028
      %v5088 = vsel %vm1079, %v5028, %v5030
      %v5089 = vsel %vm1079, %v5030, %v5032
      %v5090 = vsel %vm1079, %v5032, %v5034
      %v5091 = vsel %vm1079, %v5034, %v5036
      %v5092 = vsel %vm1079, %v5038, %v5040
      %v5093 = vsel %vm1079, %v5040, %v5042
      %v5094 = vsel %vm1079, %v5042, %v5044
      %v5095 = vsel %vm1079, %v5044, %v5046
      %v5096 = vsel %vm1079, %v5046, %v5048
      %v5097 = vsel %vm1079, %v5048, %v5050
      %v5098 = vsel %vm1079, %v5050, %v5052
      %v5099 = vsel %vm1079, %v5054, %v5056
      %v5100 = vsel %vm1079, %v5056, %v5058
      %v5101 = vsel %vm1079, %v5058, %v5060
      %v5102 = vsel %vm1079, %v5060, %v5062
      %v5103 = vsel %vm1079, %v5062, %v5064
      %v5104 = vsel %vm1079, %v5064, %v5066
      %v5105 = vsel %vm1079, %v5066, %v5068
      %v5106 = vsel %vm1079, %v5070, %v5072
      %v5107 = vsel %vm1079, %v5072, %v5074
      %v5108 = vsel %vm1079, %v5074, %v5076
      %v5109 = vsel %vm1079, %v5076, %v5078
      %v5110 = vsel %vm1079, %v5078, %v5080
      %v5111 = vsel %vm1079, %v5080, %v5082
      %v5112 = vsel %vm1079, %v5082, %v5084
      %v5145 = vsel %vm1079, 0.0, %v5022
      %v5146 = vsel %vm1079, 0.0, %v5038
      %v5147 = vsel %vm1079, 0.0, %v5054
      %v5148 = vsel %vm1079, 0.0, %v5070
      %5149 = vrot.lane.b32.xlu0 %v4389, 31
      %v5150 = vpop.permute.xlu0 %5149
      %5151 = vrot.lane.b32.xlu0 %v4391, 31
      %v5152 = vpop.permute.xlu0 %5151
      %5153 = vrot.lane.b32.xlu0 %v4478, 31
      %v5154 = vpop.permute.xlu0 %5153
      %5155 = vrot.lane.b32.xlu0 %v4480, 31
      %v5156 = vpop.permute.xlu0 %5155
      %5157 = vrot.lane.b32.xlu0 %v4567, 31
      %v5158 = vpop.permute.xlu0 %5157
      %5159 = vrot.lane.b32.xlu0 %v4569, 31
      %v5160 = vpop.permute.xlu0 %5159
      %5161 = vrot.lane.b32.xlu0 %v4656, 31
      %v5162 = vpop.permute.xlu0 %5161
      %5163 = vrot.lane.b32.xlu0 %v4658, 31
      %v5164 = vpop.permute.xlu0 %5163
      %5165 = vrot.lane.b32.xlu0 %v4395, 31
      %v5166 = vpop.permute.xlu0 %5165
      %5167 = vrot.lane.b32.xlu0 %v4397, 31
      %v5168 = vpop.permute.xlu0 %5167
      %5169 = vrot.lane.b32.xlu0 %v4484, 31
      %v5170 = vpop.permute.xlu0 %5169
      %5171 = vrot.lane.b32.xlu0 %v4486, 31
      %v5172 = vpop.permute.xlu0 %5171
      %5173 = vrot.lane.b32.xlu0 %v4573, 31
      %v5174 = vpop.permute.xlu0 %5173
      %5175 = vrot.lane.b32.xlu0 %v4575, 31
      %v5176 = vpop.permute.xlu0 %5175
      %5177 = vrot.lane.b32.xlu0 %v4662, 31
      %v5178 = vpop.permute.xlu0 %5177
      %5179 = vrot.lane.b32.xlu0 %v4664, 31
      %v5180 = vpop.permute.xlu0 %5179
      %5181 = vrot.lane.b32.xlu0 %v4401, 31
      %v5182 = vpop.permute.xlu0 %5181
      %5183 = vrot.lane.b32.xlu0 %v4403, 31
      %v5184 = vpop.permute.xlu0 %5183
      %5185 = vrot.lane.b32.xlu0 %v4490, 31
      %v5186 = vpop.permute.xlu0 %5185
      %5187 = vrot.lane.b32.xlu0 %v4492, 31
      %v5188 = vpop.permute.xlu0 %5187
      %5189 = vrot.lane.b32.xlu0 %v4579, 31
      %v5190 = vpop.permute.xlu0 %5189
      %5191 = vrot.lane.b32.xlu0 %v4581, 31
      %v5192 = vpop.permute.xlu0 %5191
      %5193 = vrot.lane.b32.xlu0 %v4668, 31
      %v5194 = vpop.permute.xlu0 %5193
      %5195 = vrot.lane.b32.xlu0 %v4670, 31
      %v5196 = vpop.permute.xlu0 %5195
      %5197 = vrot.lane.b32.xlu0 %v4407, 31
      %v5198 = vpop.permute.xlu0 %5197
      %5199 = vrot.lane.b32.xlu0 %v4409, 31
      %v5200 = vpop.permute.xlu0 %5199
      %5201 = vrot.lane.b32.xlu0 %v4496, 31
      %v5202 = vpop.permute.xlu0 %5201
      %5203 = vrot.lane.b32.xlu0 %v4498, 31
      %v5204 = vpop.permute.xlu0 %5203
      %5205 = vrot.lane.b32.xlu0 %v4585, 31
      %v5206 = vpop.permute.xlu0 %5205
      %5207 = vrot.lane.b32.xlu0 %v4587, 31
      %v5208 = vpop.permute.xlu0 %5207
      %5209 = vrot.lane.b32.xlu0 %v4674, 31
      %v5210 = vpop.permute.xlu0 %5209
      %5211 = vrot.lane.b32.xlu0 %v4676, 31
      %v5212 = vpop.permute.xlu0 %5211
      %vm5213 = vcmask 252928
      %v5214 = vsel %vm5213, %v5150, %v5152
      %v5215 = vsel %vm5213, %v5152, %v5154
      %v5216 = vsel %vm5213, %v5154, %v5156
      %v5217 = vsel %vm5213, %v5156, %v5158
      %v5218 = vsel %vm5213, %v5158, %v5160
      %v5219 = vsel %vm5213, %v5160, %v5162
      %v5220 = vsel %vm5213, %v5162, %v5164
      %v5221 = vsel %vm5213, %v5166, %v5168
      %v5222 = vsel %vm5213, %v5168, %v5170
      %v5223 = vsel %vm5213, %v5170, %v5172
      %v5224 = vsel %vm5213, %v5172, %v5174
      %v5225 = vsel %vm5213, %v5174, %v5176
      %v5226 = vsel %vm5213, %v5176, %v5178
      %v5227 = vsel %vm5213, %v5178, %v5180
      %v5228 = vsel %vm5213, %v5182, %v5184
      %v5229 = vsel %vm5213, %v5184, %v5186
      %v5230 = vsel %vm5213, %v5186, %v5188
      %v5231 = vsel %vm5213, %v5188, %v5190
      %v5232 = vsel %vm5213, %v5190, %v5192
      %v5233 = vsel %vm5213, %v5192, %v5194
      %v5234 = vsel %vm5213, %v5194, %v5196
      %v5235 = vsel %vm5213, %v5198, %v5200
      %v5236 = vsel %vm5213, %v5200, %v5202
      %v5237 = vsel %vm5213, %v5202, %v5204
      %v5238 = vsel %vm5213, %v5204, %v5206
      %v5239 = vsel %vm5213, %v5206, %v5208
      %v5240 = vsel %vm5213, %v5208, %v5210
      %v5241 = vsel %vm5213, %v5210, %v5212
      %v5274 = vsel %vm5213, 0.0, %v5150
      %v5275 = vsel %vm5213, 0.0, %v5166
      %v5276 = vsel %vm5213, 0.0, %v5182
      %v5277 = vsel %vm5213, 0.0, %v5198
      %v5278 = vmul.f32 %v5274, %v4820
      %v5279 = vmul.f32 %v5214, %v4821
      %v5280 = vmul.f32 %v5215, %v4822
      %v5281 = vmul.f32 %v5216, %v4823
      %v5282 = vmul.f32 %v5217, %v4824
      %v5283 = vmul.f32 %v5218, %v4825
      %v5284 = vmul.f32 %v5219, %v4826
      %v5285 = vmul.f32 %v5220, %v4827
      %v5286 = vmul.f32 %v5275, %v4820
      %v5287 = vmul.f32 %v5221, %v4821
      %v5288 = vmul.f32 %v5222, %v4822
      %v5289 = vmul.f32 %v5223, %v4823
      %v5290 = vmul.f32 %v5224, %v4824
      %v5291 = vmul.f32 %v5225, %v4825
      %v5292 = vmul.f32 %v5226, %v4826
      %v5293 = vmul.f32 %v5227, %v4827
      %v5294 = vmul.f32 %v5276, %v4820
      %v5295 = vmul.f32 %v5228, %v4821
      %v5296 = vmul.f32 %v5229, %v4822
      %v5297 = vmul.f32 %v5230, %v4823
      %v5298 = vmul.f32 %v5231, %v4824
      %v5299 = vmul.f32 %v5232, %v4825
      %v5300 = vmul.f32 %v5233, %v4826
      %v5301 = vmul.f32 %v5234, %v4827
      %v5302 = vmul.f32 %v5277, %v4820
      %v5303 = vmul.f32 %v5235, %v4821
      %v5304 = vmul.f32 %v5236, %v4822
      %v5305 = vmul.f32 %v5237, %v4823
      %v5306 = vmul.f32 %v5238, %v4824
      %v5307 = vmul.f32 %v5239, %v4825
      %v5308 = vmul.f32 %v5240, %v4826
      %v5309 = vmul.f32 %v5241, %v4827
      %5310 = vrot.lane.b32.xlu0 %v4389, 1
      %v5311 = vpop.permute.xlu0 %5310
      %5312 = vrot.lane.b32.xlu0 %v4391, 1
      %v5313 = vpop.permute.xlu0 %5312
      %5314 = vrot.lane.b32.xlu0 %v4478, 1
      %v5315 = vpop.permute.xlu0 %5314
      %5316 = vrot.lane.b32.xlu0 %v4480, 1
      %v5317 = vpop.permute.xlu0 %5316
      %5318 = vrot.lane.b32.xlu0 %v4567, 1
      %v5319 = vpop.permute.xlu0 %5318
      %5320 = vrot.lane.b32.xlu0 %v4569, 1
      %v5321 = vpop.permute.xlu0 %5320
      %5322 = vrot.lane.b32.xlu0 %v4656, 1
      %v5323 = vpop.permute.xlu0 %5322
      %5324 = vrot.lane.b32.xlu0 %v4658, 1
      %v5325 = vpop.permute.xlu0 %5324
      %5326 = vrot.lane.b32.xlu0 %v4395, 1
      %v5327 = vpop.permute.xlu0 %5326
      %5328 = vrot.lane.b32.xlu0 %v4397, 1
      %v5329 = vpop.permute.xlu0 %5328
      %5330 = vrot.lane.b32.xlu0 %v4484, 1
      %v5331 = vpop.permute.xlu0 %5330
      %5332 = vrot.lane.b32.xlu0 %v4486, 1
      %v5333 = vpop.permute.xlu0 %5332
      %5334 = vrot.lane.b32.xlu0 %v4573, 1
      %v5335 = vpop.permute.xlu0 %5334
      %5336 = vrot.lane.b32.xlu0 %v4575, 1
      %v5337 = vpop.permute.xlu0 %5336
      %5338 = vrot.lane.b32.xlu0 %v4662, 1
      %v5339 = vpop.permute.xlu0 %5338
      %5340 = vrot.lane.b32.xlu0 %v4664, 1
      %v5341 = vpop.permute.xlu0 %5340
      %5342 = vrot.lane.b32.xlu0 %v4401, 1
      %v5343 = vpop.permute.xlu0 %5342
      %5344 = vrot.lane.b32.xlu0 %v4403, 1
      %v5345 = vpop.permute.xlu0 %5344
      %5346 = vrot.lane.b32.xlu0 %v4490, 1
      %v5347 = vpop.permute.xlu0 %5346
      %5348 = vrot.lane.b32.xlu0 %v4492, 1
      %v5349 = vpop.permute.xlu0 %5348
      %5350 = vrot.lane.b32.xlu0 %v4579, 1
      %v5351 = vpop.permute.xlu0 %5350
      %5352 = vrot.lane.b32.xlu0 %v4581, 1
      %v5353 = vpop.permute.xlu0 %5352
      %5354 = vrot.lane.b32.xlu0 %v4668, 1
      %v5355 = vpop.permute.xlu0 %5354
      %5356 = vrot.lane.b32.xlu0 %v4670, 1
      %v5357 = vpop.permute.xlu0 %5356
      %5358 = vrot.lane.b32.xlu0 %v4407, 1
      %v5359 = vpop.permute.xlu0 %5358
      %5360 = vrot.lane.b32.xlu0 %v4409, 1
      %v5361 = vpop.permute.xlu0 %5360
      %5362 = vrot.lane.b32.xlu0 %v4496, 1
      %v5363 = vpop.permute.xlu0 %5362
      %5364 = vrot.lane.b32.xlu0 %v4498, 1
      %v5365 = vpop.permute.xlu0 %5364
      %5366 = vrot.lane.b32.xlu0 %v4585, 1
      %v5367 = vpop.permute.xlu0 %5366
      %5368 = vrot.lane.b32.xlu0 %v4587, 1
      %v5369 = vpop.permute.xlu0 %5368
      %5370 = vrot.lane.b32.xlu0 %v4674, 1
      %v5371 = vpop.permute.xlu0 %5370
      %5372 = vrot.lane.b32.xlu0 %v4676, 1
      %v5373 = vpop.permute.xlu0 %5372
      %v5374 = vsel %vm910, %v5311, %v5313
      %v5375 = vsel %vm910, %v5313, %v5315
      %v5376 = vsel %vm910, %v5315, %v5317
      %v5377 = vsel %vm910, %v5317, %v5319
      %v5378 = vsel %vm910, %v5319, %v5321
      %v5379 = vsel %vm910, %v5321, %v5323
      %v5380 = vsel %vm910, %v5323, %v5325
      %v5381 = vsel %vm910, %v5327, %v5329
      %v5382 = vsel %vm910, %v5329, %v5331
      %v5383 = vsel %vm910, %v5331, %v5333
      %v5384 = vsel %vm910, %v5333, %v5335
      %v5385 = vsel %vm910, %v5335, %v5337
      %v5386 = vsel %vm910, %v5337, %v5339
      %v5387 = vsel %vm910, %v5339, %v5341
      %v5388 = vsel %vm910, %v5343, %v5345
      %v5389 = vsel %vm910, %v5345, %v5347
      %v5390 = vsel %vm910, %v5347, %v5349
      %v5391 = vsel %vm910, %v5349, %v5351
      %v5392 = vsel %vm910, %v5351, %v5353
      %v5393 = vsel %vm910, %v5353, %v5355
      %v5394 = vsel %vm910, %v5355, %v5357
      %v5395 = vsel %vm910, %v5359, %v5361
      %v5396 = vsel %vm910, %v5361, %v5363
      %v5397 = vsel %vm910, %v5363, %v5365
      %v5398 = vsel %vm910, %v5365, %v5367
      %v5399 = vsel %vm910, %v5367, %v5369
      %v5400 = vsel %vm910, %v5369, %v5371
      %v5401 = vsel %vm910, %v5371, %v5373
      %v5434 = vsel %vm910, 0.0, %v5311
      %v5435 = vsel %vm910, 0.0, %v5327
      %v5436 = vsel %vm910, 0.0, %v5343
      %v5437 = vsel %vm910, 0.0, %v5359
      %v5438 = vmul.f32 %v5434, %v4796
      %v5439 = vmul.f32 %v5374, %v4797
      %v5440 = vmul.f32 %v5375, %v4798
      %v5441 = vmul.f32 %v5376, %v4799
      %v5442 = vmul.f32 %v5377, %v4800
      %v5443 = vmul.f32 %v5378, %v4801
      %v5444 = vmul.f32 %v5379, %v4802
      %v5445 = vmul.f32 %v5380, %v4803
      %v5446 = vmul.f32 %v5435, %v4796
      %v5447 = vmul.f32 %v5381, %v4797
      %v5448 = vmul.f32 %v5382, %v4798
      %v5449 = vmul.f32 %v5383, %v4799
      %v5450 = vmul.f32 %v5384, %v4800
      %v5451 = vmul.f32 %v5385, %v4801
      %v5452 = vmul.f32 %v5386, %v4802
      %v5453 = vmul.f32 %v5387, %v4803
      %v5454 = vmul.f32 %v5436, %v4796
      %v5455 = vmul.f32 %v5388, %v4797
      %v5456 = vmul.f32 %v5389, %v4798
      %v5457 = vmul.f32 %v5390, %v4799
      %v5458 = vmul.f32 %v5391, %v4800
      %v5459 = vmul.f32 %v5392, %v4801
      %v5460 = vmul.f32 %v5393, %v4802
      %v5461 = vmul.f32 %v5394, %v4803
      %v5462 = vmul.f32 %v5437, %v4796
      %v5463 = vmul.f32 %v5395, %v4797
      %v5464 = vmul.f32 %v5396, %v4798
      %v5465 = vmul.f32 %v5397, %v4799
      %v5466 = vmul.f32 %v5398, %v4800
      %v5467 = vmul.f32 %v5399, %v4801
      %v5468 = vmul.f32 %v5400, %v4802
      %v5469 = vmul.f32 %v5401, %v4803
      %5470 = vrot.lane.b32.xlu0 %v4389, 127
      %v5471 = vpop.permute.xlu0 %5470
      %5472 = vrot.lane.b32.xlu0 %v4391, 127
      %v5473 = vpop.permute.xlu0 %5472
      %5474 = vrot.lane.b32.xlu0 %v4478, 127
      %v5475 = vpop.permute.xlu0 %5474
      %5476 = vrot.lane.b32.xlu0 %v4480, 127
      %v5477 = vpop.permute.xlu0 %5476
      %5478 = vrot.lane.b32.xlu0 %v4567, 127
      %v5479 = vpop.permute.xlu0 %5478
      %5480 = vrot.lane.b32.xlu0 %v4569, 127
      %v5481 = vpop.permute.xlu0 %5480
      %5482 = vrot.lane.b32.xlu0 %v4656, 127
      %v5483 = vpop.permute.xlu0 %5482
      %5484 = vrot.lane.b32.xlu0 %v4658, 127
      %v5485 = vpop.permute.xlu0 %5484
      %5486 = vrot.lane.b32.xlu0 %v4395, 127
      %v5487 = vpop.permute.xlu0 %5486
      %5488 = vrot.lane.b32.xlu0 %v4397, 127
      %v5489 = vpop.permute.xlu0 %5488
      %5490 = vrot.lane.b32.xlu0 %v4484, 127
      %v5491 = vpop.permute.xlu0 %5490
      %5492 = vrot.lane.b32.xlu0 %v4486, 127
      %v5493 = vpop.permute.xlu0 %5492
      %5494 = vrot.lane.b32.xlu0 %v4573, 127
      %v5495 = vpop.permute.xlu0 %5494
      %5496 = vrot.lane.b32.xlu0 %v4575, 127
      %v5497 = vpop.permute.xlu0 %5496
      %5498 = vrot.lane.b32.xlu0 %v4662, 127
      %v5499 = vpop.permute.xlu0 %5498
      %5500 = vrot.lane.b32.xlu0 %v4664, 127
      %v5501 = vpop.permute.xlu0 %5500
      %5502 = vrot.lane.b32.xlu0 %v4401, 127
      %v5503 = vpop.permute.xlu0 %5502
      %5504 = vrot.lane.b32.xlu0 %v4403, 127
      %v5505 = vpop.permute.xlu0 %5504
      %5506 = vrot.lane.b32.xlu0 %v4490, 127
      %v5507 = vpop.permute.xlu0 %5506
      %5508 = vrot.lane.b32.xlu0 %v4492, 127
      %v5509 = vpop.permute.xlu0 %5508
      %5510 = vrot.lane.b32.xlu0 %v4579, 127
      %v5511 = vpop.permute.xlu0 %5510
      %5512 = vrot.lane.b32.xlu0 %v4581, 127
      %v5513 = vpop.permute.xlu0 %5512
      %5514 = vrot.lane.b32.xlu0 %v4668, 127
      %v5515 = vpop.permute.xlu0 %5514
      %5516 = vrot.lane.b32.xlu0 %v4670, 127
      %v5517 = vpop.permute.xlu0 %5516
      %5518 = vrot.lane.b32.xlu0 %v4407, 127
      %v5519 = vpop.permute.xlu0 %5518
      %5520 = vrot.lane.b32.xlu0 %v4409, 127
      %v5521 = vpop.permute.xlu0 %5520
      %5522 = vrot.lane.b32.xlu0 %v4496, 127
      %v5523 = vpop.permute.xlu0 %5522
      %5524 = vrot.lane.b32.xlu0 %v4498, 127
      %v5525 = vpop.permute.xlu0 %5524
      %5526 = vrot.lane.b32.xlu0 %v4585, 127
      %v5527 = vpop.permute.xlu0 %5526
      %5528 = vrot.lane.b32.xlu0 %v4587, 127
      %v5529 = vpop.permute.xlu0 %5528
      %5530 = vrot.lane.b32.xlu0 %v4674, 127
      %v5531 = vpop.permute.xlu0 %5530
      %5532 = vrot.lane.b32.xlu0 %v4676, 127
      %v5533 = vpop.permute.xlu0 %5532
      %v5534 = vsel %vm2446, %v5471, %v5473
      %v5535 = vsel %vm2446, %v5473, %v5475
      %v5536 = vsel %vm2446, %v5475, %v5477
      %v5537 = vsel %vm2446, %v5477, %v5479
      %v5538 = vsel %vm2446, %v5479, %v5481
      %v5539 = vsel %vm2446, %v5481, %v5483
      %v5540 = vsel %vm2446, %v5483, %v5485
      %v5541 = vsel %vm2446, %v5487, %v5489
      %v5542 = vsel %vm2446, %v5489, %v5491
      %v5543 = vsel %vm2446, %v5491, %v5493
      %v5544 = vsel %vm2446, %v5493, %v5495
      %v5545 = vsel %vm2446, %v5495, %v5497
      %v5546 = vsel %vm2446, %v5497, %v5499
      %v5547 = vsel %vm2446, %v5499, %v5501
      %v5548 = vsel %vm2446, %v5503, %v5505
      %v5549 = vsel %vm2446, %v5505, %v5507
      %v5550 = vsel %vm2446, %v5507, %v5509
      %v5551 = vsel %vm2446, %v5509, %v5511
      %v5552 = vsel %vm2446, %v5511, %v5513
      %v5553 = vsel %vm2446, %v5513, %v5515
      %v5554 = vsel %vm2446, %v5515, %v5517
      %v5555 = vsel %vm2446, %v5519, %v5521
      %v5556 = vsel %vm2446, %v5521, %v5523
      %v5557 = vsel %vm2446, %v5523, %v5525
      %v5558 = vsel %vm2446, %v5525, %v5527
      %v5559 = vsel %vm2446, %v5527, %v5529
      %v5560 = vsel %vm2446, %v5529, %v5531
      %v5561 = vsel %vm2446, %v5531, %v5533
      %v5594 = vsel %vm2446, %v5485, 0.0
      %v5595 = vsel %vm2446, %v5501, 0.0
      %v5596 = vsel %vm2446, %v5517, 0.0
      %v5597 = vsel %vm2446, %v5533, 0.0
      %v5598 = vmul.f32 %v5534, %v4820
      %v5599 = vmul.f32 %v5535, %v4821
      %v5600 = vmul.f32 %v5536, %v4822
      %v5601 = vmul.f32 %v5537, %v4823
      %v5602 = vmul.f32 %v5538, %v4824
      %v5603 = vmul.f32 %v5539, %v4825
      %v5604 = vmul.f32 %v5540, %v4826
      %v5605 = vmul.f32 %v5594, %v4827
      %v5606 = vmul.f32 %v5541, %v4820
      %v5607 = vmul.f32 %v5542, %v4821
      %v5608 = vmul.f32 %v5543, %v4822
      %v5609 = vmul.f32 %v5544, %v4823
      %v5610 = vmul.f32 %v5545, %v4824
      %v5611 = vmul.f32 %v5546, %v4825
      %v5612 = vmul.f32 %v5547, %v4826
      %v5613 = vmul.f32 %v5595, %v4827
      %v5614 = vmul.f32 %v5548, %v4820
      %v5615 = vmul.f32 %v5549, %v4821
      %v5616 = vmul.f32 %v5550, %v4822
      %v5617 = vmul.f32 %v5551, %v4823
      %v5618 = vmul.f32 %v5552, %v4824
      %v5619 = vmul.f32 %v5553, %v4825
      %v5620 = vmul.f32 %v5554, %v4826
      %v5621 = vmul.f32 %v5596, %v4827
      %v5622 = vmul.f32 %v5555, %v4820
      %v5623 = vmul.f32 %v5556, %v4821
      %v5624 = vmul.f32 %v5557, %v4822
      %v5625 = vmul.f32 %v5558, %v4823
      %v5626 = vmul.f32 %v5559, %v4824
      %v5627 = vmul.f32 %v5560, %v4825
      %v5628 = vmul.f32 %v5561, %v4826
      %v5629 = vmul.f32 %v5597, %v4827
      %5630 = vrot.lane.b32.xlu0 %v4389, 97
      %v5631 = vpop.permute.xlu0 %5630
      %5632 = vrot.lane.b32.xlu0 %v4391, 97
      %v5633 = vpop.permute.xlu0 %5632
      %5634 = vrot.lane.b32.xlu0 %v4478, 97
      %v5635 = vpop.permute.xlu0 %5634
      %5636 = vrot.lane.b32.xlu0 %v4480, 97
      %v5637 = vpop.permute.xlu0 %5636
      %5638 = vrot.lane.b32.xlu0 %v4567, 97
      %v5639 = vpop.permute.xlu0 %5638
      %5640 = vrot.lane.b32.xlu0 %v4569, 97
      %v5641 = vpop.permute.xlu0 %5640
      %5642 = vrot.lane.b32.xlu0 %v4656, 97
      %v5643 = vpop.permute.xlu0 %5642
      %5644 = vrot.lane.b32.xlu0 %v4658, 97
      %v5645 = vpop.permute.xlu0 %5644
      %5646 = vrot.lane.b32.xlu0 %v4395, 97
      %v5647 = vpop.permute.xlu0 %5646
      %5648 = vrot.lane.b32.xlu0 %v4397, 97
      %v5649 = vpop.permute.xlu0 %5648
      %5650 = vrot.lane.b32.xlu0 %v4484, 97
      %v5651 = vpop.permute.xlu0 %5650
      %5652 = vrot.lane.b32.xlu0 %v4486, 97
      %v5653 = vpop.permute.xlu0 %5652
      %5654 = vrot.lane.b32.xlu0 %v4573, 97
      %v5655 = vpop.permute.xlu0 %5654
      %5656 = vrot.lane.b32.xlu0 %v4575, 97
      %v5657 = vpop.permute.xlu0 %5656
      %5658 = vrot.lane.b32.xlu0 %v4662, 97
      %v5659 = vpop.permute.xlu0 %5658
      %5660 = vrot.lane.b32.xlu0 %v4664, 97
      %v5661 = vpop.permute.xlu0 %5660
      %5662 = vrot.lane.b32.xlu0 %v4401, 97
      %v5663 = vpop.permute.xlu0 %5662
      %5664 = vrot.lane.b32.xlu0 %v4403, 97
      %v5665 = vpop.permute.xlu0 %5664
      %5666 = vrot.lane.b32.xlu0 %v4490, 97
      %v5667 = vpop.permute.xlu0 %5666
      %5668 = vrot.lane.b32.xlu0 %v4492, 97
      %v5669 = vpop.permute.xlu0 %5668
      %5670 = vrot.lane.b32.xlu0 %v4579, 97
      %v5671 = vpop.permute.xlu0 %5670
      %5672 = vrot.lane.b32.xlu0 %v4581, 97
      %v5673 = vpop.permute.xlu0 %5672
      %5674 = vrot.lane.b32.xlu0 %v4668, 97
      %v5675 = vpop.permute.xlu0 %5674
      %5676 = vrot.lane.b32.xlu0 %v4670, 97
      %v5677 = vpop.permute.xlu0 %5676
      %5678 = vrot.lane.b32.xlu0 %v4407, 97
      %v5679 = vpop.permute.xlu0 %5678
      %5680 = vrot.lane.b32.xlu0 %v4409, 97
      %v5681 = vpop.permute.xlu0 %5680
      %5682 = vrot.lane.b32.xlu0 %v4496, 97
      %v5683 = vpop.permute.xlu0 %5682
      %5684 = vrot.lane.b32.xlu0 %v4498, 97
      %v5685 = vpop.permute.xlu0 %5684
      %5686 = vrot.lane.b32.xlu0 %v4585, 97
      %v5687 = vpop.permute.xlu0 %5686
      %5688 = vrot.lane.b32.xlu0 %v4587, 97
      %v5689 = vpop.permute.xlu0 %5688
      %5690 = vrot.lane.b32.xlu0 %v4674, 97
      %v5691 = vpop.permute.xlu0 %5690
      %5692 = vrot.lane.b32.xlu0 %v4676, 97
      %v5693 = vpop.permute.xlu0 %5692
      %vm5694 = vcmask 793600
      %v5695 = vsel %vm5694, %v5631, %v5633
      %v5696 = vsel %vm5694, %v5633, %v5635
      %v5697 = vsel %vm5694, %v5635, %v5637
      %v5698 = vsel %vm5694, %v5637, %v5639
      %v5699 = vsel %vm5694, %v5639, %v5641
      %v5700 = vsel %vm5694, %v5641, %v5643
      %v5701 = vsel %vm5694, %v5643, %v5645
      %v5702 = vsel %vm5694, %v5647, %v5649
      %v5703 = vsel %vm5694, %v5649, %v5651
      %v5704 = vsel %vm5694, %v5651, %v5653
      %v5705 = vsel %vm5694, %v5653, %v5655
      %v5706 = vsel %vm5694, %v5655, %v5657
      %v5707 = vsel %vm5694, %v5657, %v5659
      %v5708 = vsel %vm5694, %v5659, %v5661
      %v5709 = vsel %vm5694, %v5663, %v5665
      %v5710 = vsel %vm5694, %v5665, %v5667
      %v5711 = vsel %vm5694, %v5667, %v5669
      %v5712 = vsel %vm5694, %v5669, %v5671
      %v5713 = vsel %vm5694, %v5671, %v5673
      %v5714 = vsel %vm5694, %v5673, %v5675
      %v5715 = vsel %vm5694, %v5675, %v5677
      %v5716 = vsel %vm5694, %v5679, %v5681
      %v5717 = vsel %vm5694, %v5681, %v5683
      %v5718 = vsel %vm5694, %v5683, %v5685
      %v5719 = vsel %vm5694, %v5685, %v5687
      %v5720 = vsel %vm5694, %v5687, %v5689
      %v5721 = vsel %vm5694, %v5689, %v5691
      %v5722 = vsel %vm5694, %v5691, %v5693
      %v5755 = vsel %vm5694, %v5645, 0.0
      %v5756 = vsel %vm5694, %v5661, 0.0
      %v5757 = vsel %vm5694, %v5677, 0.0
      %v5758 = vsel %vm5694, %v5693, 0.0
      %v5759 = vmul.f32 %v5695, %v4796
      %v5760 = vmul.f32 %v5696, %v4797
      %v5761 = vmul.f32 %v5697, %v4798
      %v5762 = vmul.f32 %v5698, %v4799
      %v5763 = vmul.f32 %v5699, %v4800
      %v5764 = vmul.f32 %v5700, %v4801
      %v5765 = vmul.f32 %v5701, %v4802
      %v5766 = vmul.f32 %v5755, %v4803
      %v5767 = vmul.f32 %v5702, %v4796
      %v5768 = vmul.f32 %v5703, %v4797
      %v5769 = vmul.f32 %v5704, %v4798
      %v5770 = vmul.f32 %v5705, %v4799
      %v5771 = vmul.f32 %v5706, %v4800
      %v5772 = vmul.f32 %v5707, %v4801
      %v5773 = vmul.f32 %v5708, %v4802
      %v5774 = vmul.f32 %v5756, %v4803
      %v5775 = vmul.f32 %v5709, %v4796
      %v5776 = vmul.f32 %v5710, %v4797
      %v5777 = vmul.f32 %v5711, %v4798
      %v5778 = vmul.f32 %v5712, %v4799
      %v5779 = vmul.f32 %v5713, %v4800
      %v5780 = vmul.f32 %v5714, %v4801
      %v5781 = vmul.f32 %v5715, %v4802
      %v5782 = vmul.f32 %v5757, %v4803
      %v5783 = vmul.f32 %v5716, %v4796
      %v5784 = vmul.f32 %v5717, %v4797
      %v5785 = vmul.f32 %v5718, %v4798
      %v5786 = vmul.f32 %v5719, %v4799
      %v5787 = vmul.f32 %v5720, %v4800
      %v5788 = vmul.f32 %v5721, %v4801
      %v5789 = vmul.f32 %v5722, %v4802
      %v5790 = vmul.f32 %v5758, %v4803
      %5791 = vrot.lane.b32.xlu0 %v4389, 96
      %v5792 = vpop.permute.xlu0 %5791
      %5793 = vrot.lane.b32.xlu0 %v4391, 96
      %v5794 = vpop.permute.xlu0 %5793
      %5795 = vrot.lane.b32.xlu0 %v4478, 96
      %v5796 = vpop.permute.xlu0 %5795
      %5797 = vrot.lane.b32.xlu0 %v4480, 96
      %v5798 = vpop.permute.xlu0 %5797
      %5799 = vrot.lane.b32.xlu0 %v4567, 96
      %v5800 = vpop.permute.xlu0 %5799
      %5801 = vrot.lane.b32.xlu0 %v4569, 96
      %v5802 = vpop.permute.xlu0 %5801
      %5803 = vrot.lane.b32.xlu0 %v4656, 96
      %v5804 = vpop.permute.xlu0 %5803
      %5805 = vrot.lane.b32.xlu0 %v4658, 96
      %v5806 = vpop.permute.xlu0 %5805
      %5807 = vrot.lane.b32.xlu0 %v4395, 96
      %v5808 = vpop.permute.xlu0 %5807
      %5809 = vrot.lane.b32.xlu0 %v4397, 96
      %v5810 = vpop.permute.xlu0 %5809
      %5811 = vrot.lane.b32.xlu0 %v4484, 96
      %v5812 = vpop.permute.xlu0 %5811
      %5813 = vrot.lane.b32.xlu0 %v4486, 96
      %v5814 = vpop.permute.xlu0 %5813
      %5815 = vrot.lane.b32.xlu0 %v4573, 96
      %v5816 = vpop.permute.xlu0 %5815
      %5817 = vrot.lane.b32.xlu0 %v4575, 96
      %v5818 = vpop.permute.xlu0 %5817
      %5819 = vrot.lane.b32.xlu0 %v4662, 96
      %v5820 = vpop.permute.xlu0 %5819
      %5821 = vrot.lane.b32.xlu0 %v4664, 96
      %v5822 = vpop.permute.xlu0 %5821
      %5823 = vrot.lane.b32.xlu0 %v4401, 96
      %v5824 = vpop.permute.xlu0 %5823
      %5825 = vrot.lane.b32.xlu0 %v4403, 96
      %v5826 = vpop.permute.xlu0 %5825
      %5827 = vrot.lane.b32.xlu0 %v4490, 96
      %v5828 = vpop.permute.xlu0 %5827
      %5829 = vrot.lane.b32.xlu0 %v4492, 96
      %v5830 = vpop.permute.xlu0 %5829
      %5831 = vrot.lane.b32.xlu0 %v4579, 96
      %v5832 = vpop.permute.xlu0 %5831
      %5833 = vrot.lane.b32.xlu0 %v4581, 96
      %v5834 = vpop.permute.xlu0 %5833
      %5835 = vrot.lane.b32.xlu0 %v4668, 96
      %v5836 = vpop.permute.xlu0 %5835
      %5837 = vrot.lane.b32.xlu0 %v4670, 96
      %v5838 = vpop.permute.xlu0 %5837
      %5839 = vrot.lane.b32.xlu0 %v4407, 96
      %v5840 = vpop.permute.xlu0 %5839
      %5841 = vrot.lane.b32.xlu0 %v4409, 96
      %v5842 = vpop.permute.xlu0 %5841
      %5843 = vrot.lane.b32.xlu0 %v4496, 96
      %v5844 = vpop.permute.xlu0 %5843
      %5845 = vrot.lane.b32.xlu0 %v4498, 96
      %v5846 = vpop.permute.xlu0 %5845
      %5847 = vrot.lane.b32.xlu0 %v4585, 96
      %v5848 = vpop.permute.xlu0 %5847
      %5849 = vrot.lane.b32.xlu0 %v4587, 96
      %v5850 = vpop.permute.xlu0 %5849
      %5851 = vrot.lane.b32.xlu0 %v4674, 96
      %v5852 = vpop.permute.xlu0 %5851
      %5853 = vrot.lane.b32.xlu0 %v4676, 96
      %v5854 = vpop.permute.xlu0 %5853
      %vm5855 = vcmask 785408
      %v5856 = vsel %vm5855, %v5792, %v5794
      %v5857 = vsel %vm5855, %v5794, %v5796
      %v5858 = vsel %vm5855, %v5796, %v5798
      %v5859 = vsel %vm5855, %v5798, %v5800
      %v5860 = vsel %vm5855, %v5800, %v5802
      %v5861 = vsel %vm5855, %v5802, %v5804
      %v5862 = vsel %vm5855, %v5804, %v5806
      %v5863 = vsel %vm5855, %v5808, %v5810
      %v5864 = vsel %vm5855, %v5810, %v5812
      %v5865 = vsel %vm5855, %v5812, %v5814
      %v5866 = vsel %vm5855, %v5814, %v5816
      %v5867 = vsel %vm5855, %v5816, %v5818
      %v5868 = vsel %vm5855, %v5818, %v5820
      %v5869 = vsel %vm5855, %v5820, %v5822
      %v5870 = vsel %vm5855, %v5824, %v5826
      %v5871 = vsel %vm5855, %v5826, %v5828
      %v5872 = vsel %vm5855, %v5828, %v5830
      %v5873 = vsel %vm5855, %v5830, %v5832
      %v5874 = vsel %vm5855, %v5832, %v5834
      %v5875 = vsel %vm5855, %v5834, %v5836
      %v5876 = vsel %vm5855, %v5836, %v5838
      %v5877 = vsel %vm5855, %v5840, %v5842
      %v5878 = vsel %vm5855, %v5842, %v5844
      %v5879 = vsel %vm5855, %v5844, %v5846
      %v5880 = vsel %vm5855, %v5846, %v5848
      %v5881 = vsel %vm5855, %v5848, %v5850
      %v5882 = vsel %vm5855, %v5850, %v5852
      %v5883 = vsel %vm5855, %v5852, %v5854
      %v5916 = vsel %vm5855, %v5806, 0.0
      %v5917 = vsel %vm5855, %v5822, 0.0
      %v5918 = vsel %vm5855, %v5838, 0.0
      %v5919 = vsel %vm5855, %v5854, 0.0
      %5920 = vrot.lane.b32.xlu0 %v4389, 95
      %v5921 = vpop.permute.xlu0 %5920
      %5922 = vrot.lane.b32.xlu0 %v4391, 95
      %v5923 = vpop.permute.xlu0 %5922
      %5924 = vrot.lane.b32.xlu0 %v4478, 95
      %v5925 = vpop.permute.xlu0 %5924
      %5926 = vrot.lane.b32.xlu0 %v4480, 95
      %v5927 = vpop.permute.xlu0 %5926
      %5928 = vrot.lane.b32.xlu0 %v4567, 95
      %v5929 = vpop.permute.xlu0 %5928
      %5930 = vrot.lane.b32.xlu0 %v4569, 95
      %v5931 = vpop.permute.xlu0 %5930
      %5932 = vrot.lane.b32.xlu0 %v4656, 95
      %v5933 = vpop.permute.xlu0 %5932
      %5934 = vrot.lane.b32.xlu0 %v4658, 95
      %v5935 = vpop.permute.xlu0 %5934
      %5936 = vrot.lane.b32.xlu0 %v4395, 95
      %v5937 = vpop.permute.xlu0 %5936
      %5938 = vrot.lane.b32.xlu0 %v4397, 95
      %v5939 = vpop.permute.xlu0 %5938
      %5940 = vrot.lane.b32.xlu0 %v4484, 95
      %v5941 = vpop.permute.xlu0 %5940
      %5942 = vrot.lane.b32.xlu0 %v4486, 95
      %v5943 = vpop.permute.xlu0 %5942
      %5944 = vrot.lane.b32.xlu0 %v4573, 95
      %v5945 = vpop.permute.xlu0 %5944
      %5946 = vrot.lane.b32.xlu0 %v4575, 95
      %v5947 = vpop.permute.xlu0 %5946
      %5948 = vrot.lane.b32.xlu0 %v4662, 95
      %v5949 = vpop.permute.xlu0 %5948
      %5950 = vrot.lane.b32.xlu0 %v4664, 95
      %v5951 = vpop.permute.xlu0 %5950
      %5952 = vrot.lane.b32.xlu0 %v4401, 95
      %v5953 = vpop.permute.xlu0 %5952
      %5954 = vrot.lane.b32.xlu0 %v4403, 95
      %v5955 = vpop.permute.xlu0 %5954
      %5956 = vrot.lane.b32.xlu0 %v4490, 95
      %v5957 = vpop.permute.xlu0 %5956
      %5958 = vrot.lane.b32.xlu0 %v4492, 95
      %v5959 = vpop.permute.xlu0 %5958
      %5960 = vrot.lane.b32.xlu0 %v4579, 95
      %v5961 = vpop.permute.xlu0 %5960
      %5962 = vrot.lane.b32.xlu0 %v4581, 95
      %v5963 = vpop.permute.xlu0 %5962
      %5964 = vrot.lane.b32.xlu0 %v4668, 95
      %v5965 = vpop.permute.xlu0 %5964
      %5966 = vrot.lane.b32.xlu0 %v4670, 95
      %v5967 = vpop.permute.xlu0 %5966
      %5968 = vrot.lane.b32.xlu0 %v4407, 95
      %v5969 = vpop.permute.xlu0 %5968
      %5970 = vrot.lane.b32.xlu0 %v4409, 95
      %v5971 = vpop.permute.xlu0 %5970
      %5972 = vrot.lane.b32.xlu0 %v4496, 95
      %v5973 = vpop.permute.xlu0 %5972
      %5974 = vrot.lane.b32.xlu0 %v4498, 95
      %v5975 = vpop.permute.xlu0 %5974
      %5976 = vrot.lane.b32.xlu0 %v4585, 95
      %v5977 = vpop.permute.xlu0 %5976
      %5978 = vrot.lane.b32.xlu0 %v4587, 95
      %v5979 = vpop.permute.xlu0 %5978
      %5980 = vrot.lane.b32.xlu0 %v4674, 95
      %v5981 = vpop.permute.xlu0 %5980
      %5982 = vrot.lane.b32.xlu0 %v4676, 95
      %v5983 = vpop.permute.xlu0 %5982
      %vm5984 = vcmask 777216
      %v5985 = vsel %vm5984, %v5921, %v5923
      %v5986 = vsel %vm5984, %v5923, %v5925
      %v5987 = vsel %vm5984, %v5925, %v5927
      %v5988 = vsel %vm5984, %v5927, %v5929
      %v5989 = vsel %vm5984, %v5929, %v5931
      %v5990 = vsel %vm5984, %v5931, %v5933
      %v5991 = vsel %vm5984, %v5933, %v5935
      %v5992 = vsel %vm5984, %v5937, %v5939
      %v5993 = vsel %vm5984, %v5939, %v5941
      %v5994 = vsel %vm5984, %v5941, %v5943
      %v5995 = vsel %vm5984, %v5943, %v5945
      %v5996 = vsel %vm5984, %v5945, %v5947
      %v5997 = vsel %vm5984, %v5947, %v5949
      %v5998 = vsel %vm5984, %v5949, %v5951
      %v5999 = vsel %vm5984, %v5953, %v5955
      %v6000 = vsel %vm5984, %v5955, %v5957
      %v6001 = vsel %vm5984, %v5957, %v5959
      %v6002 = vsel %vm5984, %v5959, %v5961
      %v6003 = vsel %vm5984, %v5961, %v5963
      %v6004 = vsel %vm5984, %v5963, %v5965
      %v6005 = vsel %vm5984, %v5965, %v5967
      %v6006 = vsel %vm5984, %v5969, %v5971
      %v6007 = vsel %vm5984, %v5971, %v5973
      %v6008 = vsel %vm5984, %v5973, %v5975
      %v6009 = vsel %vm5984, %v5975, %v5977
      %v6010 = vsel %vm5984, %v5977, %v5979
      %v6011 = vsel %vm5984, %v5979, %v5981
      %v6012 = vsel %vm5984, %v5981, %v5983
      %v6045 = vsel %vm5984, %v5935, 0.0
      %v6046 = vsel %vm5984, %v5951, 0.0
      %v6047 = vsel %vm5984, %v5967, 0.0
      %v6048 = vsel %vm5984, %v5983, 0.0
      %v6049 = vmul.f32 %v5985, %v4820
      %v6050 = vmul.f32 %v5986, %v4821
      %v6051 = vmul.f32 %v5987, %v4822
      %v6052 = vmul.f32 %v5988, %v4823
      %v6053 = vmul.f32 %v5989, %v4824
      %v6054 = vmul.f32 %v5990, %v4825
      %v6055 = vmul.f32 %v5991, %v4826
      %v6056 = vmul.f32 %v6045, %v4827
      %v6057 = vmul.f32 %v5992, %v4820
      %v6058 = vmul.f32 %v5993, %v4821
      %v6059 = vmul.f32 %v5994, %v4822
      %v6060 = vmul.f32 %v5995, %v4823
      %v6061 = vmul.f32 %v5996, %v4824
      %v6062 = vmul.f32 %v5997, %v4825
      %v6063 = vmul.f32 %v5998, %v4826
      %v6064 = vmul.f32 %v6046, %v4827
      %v6065 = vmul.f32 %v5999, %v4820
      %v6066 = vmul.f32 %v6000, %v4821
      %v6067 = vmul.f32 %v6001, %v4822
      %v6068 = vmul.f32 %v6002, %v4823
      %v6069 = vmul.f32 %v6003, %v4824
      %v6070 = vmul.f32 %v6004, %v4825
      %v6071 = vmul.f32 %v6005, %v4826
      %v6072 = vmul.f32 %v6047, %v4827
      %v6073 = vmul.f32 %v6006, %v4820
      %v6074 = vmul.f32 %v6007, %v4821
      %v6075 = vmul.f32 %v6008, %v4822
      %v6076 = vmul.f32 %v6009, %v4823
      %v6077 = vmul.f32 %v6010, %v4824
      %v6078 = vmul.f32 %v6011, %v4825
      %v6079 = vmul.f32 %v6012, %v4826
      %v6080 = vmul.f32 %v6048, %v4827
      %v6081 = vld [vmem:[%s17] sm:$0xff]
      %v6082 = vld [vmem:[%s17 + $0x8] sm:$0xff]
      %v6083 = vld [vmem:[%s17 + $0x10] sm:$0xff]
      %v6084 = vld [vmem:[%s17 + $0x18] sm:$0xff]
      %v6085 = vld [vmem:[%s17 + $0x20] sm:$0xff]
      %v6086 = vld [vmem:[%s17 + $0x28] sm:$0xff]
      %v6087 = vld [vmem:[%s17 + $0x30] sm:$0xff]
      %v6088 = vld [vmem:[%s17 + $0x38] sm:$0xff]
      %v6089 = vld [vmem:[%s17 + $0x40] sm:$0xff]
      %v6090 = vld [vmem:[%s17 + $0x48] sm:$0xff]
      %v6091 = vld [vmem:[%s17 + $0x50] sm:$0xff]
      %v6092 = vld [vmem:[%s17 + $0x58] sm:$0xff]
      %v6094 = vsel %vm1079, %v6083, 0
      %v6097 = vsel %vm1079, %v6086, 0
      %v6100 = vsel %vm1079, %v6089, 0
      %v6103 = vsel %vm1079, %v6092, 0
      %6105 = vmatprep.subr.mxu0 %v4990
      %6106 = vmatpush1.msra.mxu0 %v4989
      %6107 = vmatprep.subr.mxu0 %v4998
      %6108 = vmatpush1.msra.mxu0 %v4997
      %6109 = vmatprep.subr.mxu0 %v5006
      %6110 = vmatpush1.msra.mxu0 %v5005
      %6111 = vmatprep.subr.mxu0 %v5014
      %6112 = vmatpush1.msra.mxu0 %v5013
      %6113 = vmatprep.subr.mxu0 %v5085
      %6114 = vmatpush1.msra.mxu0 %v5145
      %6115 = vmatprep.subr.mxu0 %v5092
      %6116 = vmatpush1.msra.mxu0 %v5146
      %6117 = vmatprep.subr.mxu0 %v5099
      %6118 = vmatpush1.msra.mxu0 %v5147
      %6119 = vmatprep.subr.mxu0 %v5106
      %6120 = vmatpush1.msra.mxu0 %v5148
      %6121 = vmatprep.subr.mxu0 %v5279
      %6122 = vmatpush1.msra.mxu0 %v5278
      %6123 = vmatprep.subr.mxu0 %v5287
      %6124 = vmatpush1.msra.mxu0 %v5286
      %6125 = vmatprep.subr.mxu0 %v5295
      %6126 = vmatpush1.msra.mxu0 %v5294
      %6127 = vmatprep.subr.mxu0 %v5303
      %6128 = vmatpush1.msra.mxu0 %v5302
      %6129 = vmatprep.subr.mxu0 %v5439
      %6130 = vmatpush1.msra.mxu0 %v5438
      %6131 = vmatprep.subr.mxu0 %v5447
      %6132 = vmatpush1.msra.mxu0 %v5446
      %6133 = vmatprep.subr.mxu0 %v5455
      %6134 = vmatpush1.msra.mxu0 %v5454
      %6135 = vmatprep.subr.mxu0 %v5463
      %6136 = vmatpush1.msra.mxu0 %v5462
      %6137 = vmatprep.subr.mxu0 %v4391
      %6138 = vmatpush1.msra.mxu0 %v4389
      %6139 = vmatprep.subr.mxu0 %v4397
      %6140 = vmatpush1.msra.mxu0 %v4395
      %6141 = vmatprep.subr.mxu0 %v4403
      %6142 = vmatpush1.msra.mxu0 %v4401
      %6143 = vmatprep.subr.mxu0 %v4409
      %6144 = vmatpush1.msra.mxu0 %v4407
      %6145 = vmatprep.subr.mxu0 %v5599
      %6146 = vmatpush1.msra.mxu0 %v5598
      %6147 = vmatprep.subr.mxu0 %v5607
      %6148 = vmatpush1.msra.mxu0 %v5606
      %6149 = vmatprep.subr.mxu0 %v5615
      %6150 = vmatpush1.msra.mxu0 %v5614
      %6151 = vmatprep.subr.mxu0 %v5623
      %6152 = vmatpush1.msra.mxu0 %v5622
      %6153 = vmatprep.subr.mxu0 %v5760
      %6154 = vmatpush1.msra.mxu0 %v5759
      %6155 = vmatprep.subr.mxu0 %v5768
      %6156 = vmatpush1.msra.mxu0 %v5767
      %6157 = vmatprep.subr.mxu0 %v5776
      %6158 = vmatpush1.msra.mxu0 %v5775
      %6159 = vmatprep.subr.mxu0 %v5784
      %6160 = vmatpush1.msra.mxu0 %v5783
      %6161 = vmatprep.subr.mxu0 %v5857
      %6162 = vmatpush1.msra.mxu0 %v5856
      %6163 = vmatprep.subr.mxu0 %v5864
      %6164 = vmatpush1.msra.mxu0 %v5863
      %6165 = vmatprep.subr.mxu0 %v5871
      %6166 = vmatpush1.msra.mxu0 %v5870
      %6167 = vmatprep.subr.mxu0 %v5878
      %6168 = vmatpush1.msra.mxu0 %v5877
      %6169 = vmatprep.mubr.f32.mxu0 %v6082
      %6170 = vmatmul.mubr.f32.gmra.mrb[0].mxu0 %v6081
      %v6171 = vpop.f32.mrb[0].mxu0
      %v6172 = vadd.f32 0.0, %v6171
      %v6173 = vpop.f32.mrb[0].mxu0
      %v6174 = vadd.f32 0.0, %v6173
      %6175 = vmatprep.mubr.f32.mxu0 %v6085
      %6176 = vmatmul.mubr.f32.gmra.mrb[0].mxu0 %v6084
      %v6177 = vpop.f32.mrb[0].mxu0
      %v6178 = vadd.f32 0.0, %v6177
      %v6179 = vpop.f32.mrb[0].mxu0
      %v6180 = vadd.f32 0.0, %v6179
      %6181 = vmatprep.mubr.f32.mxu0 %v6088
      %6182 = vmatmul.mubr.f32.gmra.mrb[0].mxu0 %v6087
      %v6183 = vpop.f32.mrb[0].mxu0
      %v6184 = vadd.f32 0.0, %v6183
      %v6185 = vpop.f32.mrb[0].mxu0
      %v6186 = vadd.f32 0.0, %v6185
      %6187 = vmatprep.mubr.f32.mxu0 %v6091
      %6188 = vmatmul.mubr.f32.gmra.mrb[0].mxu0 %v6090
      %v6189 = vpop.f32.mrb[0].mxu0
      %v6190 = vadd.f32 0.0, %v6189
      %v6191 = vpop.f32.mrb[0].mxu0
      %v6192 = vadd.f32 0.0, %v6191
      %6193 = vdwg.mxu0
      %6194 = vmatprep.subr.mxu0 %v6050
      %6195 = vmatpush1.msra.mxu0 %v6049
      %6196 = vmatprep.subr.mxu0 %v6058
      %6197 = vmatpush1.msra.mxu0 %v6057
      %6198 = vmatprep.subr.mxu0 %v6066
      %6199 = vmatpush1.msra.mxu0 %v6065
      %6200 = vmatprep.subr.mxu0 %v6074
      %6201 = vmatpush1.msra.mxu0 %v6073
      %6202 = vmatprep.subr.mxu0 0.0
      %6203 = vmatpush1.msra.mxu0 0.0
      %6204 = vmatprep.subr.mxu0 0.0
      %6205 = vmatpush1.msra.mxu0 0.0
      %6206 = vmatprep.subr.mxu0 0.0
      %6207 = vmatpush1.msra.mxu0 0.0
      %6208 = vmatprep.subr.mxu0 0.0
      %6209 = vmatpush1.msra.mxu0 0.0
      %6210 = vmatprep.subr.mxu0 0.0
      %6211 = vmatpush1.msra.mxu0 0.0
      %6212 = vmatprep.subr.mxu0 0.0
      %6213 = vmatpush1.msra.mxu0 0.0
      %6214 = vmatprep.subr.mxu0 0.0
      %6215 = vmatpush1.msra.mxu0 0.0
      %6216 = vmatprep.subr.mxu0 0.0
      %6217 = vmatpush1.msra.mxu0 0.0
      %6218 = vmatprep.subr.mxu0 0.0
      %6219 = vmatpush1.msra.mxu0 0.0
      %6220 = vmatprep.subr.mxu0 0.0
      %6221 = vmatpush1.msra.mxu0 0.0
      %6222 = vmatprep.subr.mxu0 0.0
      %6223 = vmatpush1.msra.mxu0 0.0
      %6224 = vmatprep.subr.mxu0 0.0
      %6225 = vmatpush1.msra.mxu0 0.0
      %6226 = vmatprep.subr.mxu0 0.0
      %6227 = vmatpush1.msra.mxu0 0.0
      %6228 = vmatprep.subr.mxu0 0.0
      %6229 = vmatpush1.msra.mxu0 0.0
      %6230 = vmatprep.subr.mxu0 0.0
      %6231 = vmatpush1.msra.mxu0 0.0
      %6232 = vmatprep.subr.mxu0 0.0
      %6233 = vmatpush1.msra.mxu0 0.0
      %6234 = vmatprep.subr.mxu0 0.0
      %6235 = vmatpush1.msra.mxu0 0.0
      %6236 = vmatprep.subr.mxu0 0.0
      %6237 = vmatpush1.msra.mxu0 0.0
      %6238 = vmatprep.subr.mxu0 0.0
      %6239 = vmatpush1.msra.mxu0 0.0
      %6240 = vmatprep.subr.mxu0 0.0
      %6241 = vmatpush1.msra.mxu0 0.0
      %6242 = vmatprep.subr.mxu0 0.0
      %6243 = vmatpush1.msra.mxu0 0.0
      %6244 = vmatprep.subr.mxu0 0.0
      %6245 = vmatpush1.msra.mxu0 0.0
      %6246 = vmatprep.subr.mxu0 0.0
      %6247 = vmatpush1.msra.mxu0 0.0
      %6248 = vmatprep.subr.mxu0 0.0
      %6249 = vmatpush1.msra.mxu0 0.0
      %6250 = vmatprep.subr.mxu0 0.0
      %6251 = vmatpush1.msra.mxu0 0.0
      %6252 = vmatprep.subr.mxu0 0.0
      %6253 = vmatpush1.msra.mxu0 0.0
      %6254 = vmatprep.subr.mxu0 0.0
      %6255 = vmatpush1.msra.mxu0 0.0
      %6256 = vmatprep.subr.mxu0 0.0
      %6257 = vmatpush1.msra.mxu0 0.0
      %6258 = vmatprep.mubr.f32.mxu0 0.0
      %6259 = vmatmul.mubr.f32.gmra.mrb[0].mxu0 %v6094
      %v6260 = vpop.f32.mrb[0].mxu0
      %v6261 = vadd.f32 %v6172, %v6260
      %v6262 = vpop.f32.mrb[0].mxu0
      %v6263 = vadd.f32 %v6174, %v6262
      %6264 = vmatprep.mubr.f32.mxu0 0.0
      %6265 = vmatmul.mubr.f32.gmra.mrb[0].mxu0 %v6097
      %v6266 = vpop.f32.mrb[0].mxu0
      %v6267 = vadd.f32 %v6178, %v6266
      %v6268 = vpop.f32.mrb[0].mxu0
      %v6269 = vadd.f32 %v6180, %v6268
      %6270 = vmatprep.mubr.f32.mxu0 0.0
      %6271 = vmatmul.mubr.f32.gmra.mrb[0].mxu0 %v6100
      %v6272 = vpop.f32.mrb[0].mxu0
      %v6273 = vadd.f32 %v6184, %v6272
      %v6274 = vpop.f32.mrb[0].mxu0
      %v6275 = vadd.f32 %v6186, %v6274
      %6276 = vmatprep.mubr.f32.mxu0 0.0
      %6277 = vmatmul.mubr.f32.gmra.mrb[0].mxu0 %v6103
      %v6278 = vpop.f32.mrb[0].mxu0
      %v6279 = vadd.f32 %v6190, %v6278
      %v6280 = vpop.f32.mrb[0].mxu0
      %v6281 = vadd.f32 %v6192, %v6280
      %6282 = vdwg.mxu0
      %6283 = vmatprep.subr.mxu0 %v4992
      %6284 = vmatpush1.msra.mxu0 %v4991
      %6285 = vmatprep.subr.mxu0 %v5000
      %6286 = vmatpush1.msra.mxu0 %v4999
      %6287 = vmatprep.subr.mxu0 %v5008
      %6288 = vmatpush1.msra.mxu0 %v5007
      %6289 = vmatprep.subr.mxu0 %v5016
      %6290 = vmatpush1.msra.mxu0 %v5015
      %6291 = vmatprep.subr.mxu0 %v5087
      %6292 = vmatpush1.msra.mxu0 %v5086
      %6293 = vmatprep.subr.mxu0 %v5094
      %6294 = vmatpush1.msra.mxu0 %v5093
      %6295 = vmatprep.subr.mxu0 %v5101
      %6296 = vmatpush1.msra.mxu0 %v5100
      %6297 = vmatprep.subr.mxu0 %v5108
      %6298 = vmatpush1.msra.mxu0 %v5107
      %6299 = vmatprep.subr.mxu0 %v5281
      %6300 = vmatpush1.msra.mxu0 %v5280
      %6301 = vmatprep.subr.mxu0 %v5289
      %6302 = vmatpush1.msra.mxu0 %v5288
      %6303 = vmatprep.subr.mxu0 %v5297
      %6304 = vmatpush1.msra.mxu0 %v5296
      %6305 = vmatprep.subr.mxu0 %v5305
      %6306 = vmatpush1.msra.mxu0 %v5304
      %6307 = vmatprep.subr.mxu0 %v5441
      %6308 = vmatpush1.msra.mxu0 %v5440
      %6309 = vmatprep.subr.mxu0 %v5449
      %6310 = vmatpush1.msra.mxu0 %v5448
      %6311 = vmatprep.subr.mxu0 %v5457
      %6312 = vmatpush1.msra.mxu0 %v5456
      %6313 = vmatprep.subr.mxu0 %v5465
      %6314 = vmatpush1.msra.mxu0 %v5464
      %6315 = vmatprep.subr.mxu0 %v4480
      %6316 = vmatpush1.msra.mxu0 %v4478
      %6317 = vmatprep.subr.mxu0 %v4486
      %6318 = vmatpush1.msra.mxu0 %v4484
      %6319 = vmatprep.subr.mxu0 %v4492
      %6320 = vmatpush1.msra.mxu0 %v4490
      %6321 = vmatprep.subr.mxu0 %v4498
      %6322 = vmatpush1.msra.mxu0 %v4496
      %6323 = vmatprep.subr.mxu0 %v5601
      %6324 = vmatpush1.msra.mxu0 %v5600
      %6325 = vmatprep.subr.mxu0 %v5609
      %6326 = vmatpush1.msra.mxu0 %v5608
      %6327 = vmatprep.subr.mxu0 %v5617
      %6328 = vmatpush1.msra.mxu0 %v5616
      %6329 = vmatprep.subr.mxu0 %v5625
      %6330 = vmatpush1.msra.mxu0 %v5624
      %6331 = vmatprep.subr.mxu0 %v5762
      %6332 = vmatpush1.msra.mxu0 %v5761
      %6333 = vmatprep.subr.mxu0 %v5770
      %6334 = vmatpush1.msra.mxu0 %v5769
      %6335 = vmatprep.subr.mxu0 %v5778
      %6336 = vmatpush1.msra.mxu0 %v5777
      %6337 = vmatprep.subr.mxu0 %v5786
      %6338 = vmatpush1.msra.mxu0 %v5785
      %6339 = vmatprep.subr.mxu0 %v5859
      %6340 = vmatpush1.msra.mxu0 %v5858
      %6341 = vmatprep.subr.mxu0 %v5866
      %6342 = vmatpush1.msra.mxu0 %v5865
      %6343 = vmatprep.subr.mxu0 %v5873
      %6344 = vmatpush1.msra.mxu0 %v5872
      %6345 = vmatprep.subr.mxu0 %v5880
      %6346 = vmatpush1.msra.mxu0 %v5879
      %6347 = vmatprep.mubr.f32.mxu0 %v6082
      %6348 = vmatmul.mubr.f32.gmra.mrb[0].mxu0 %v6081
      %v6349 = vpop.f32.mrb[0].mxu0
      %v6350 = vadd.f32 0.0, %v6349
      %v6351 = vpop.f32.mrb[0].mxu0
      %v6352 = vadd.f32 0.0, %v6351
      %6353 = vmatprep.mubr.f32.mxu0 %v6085
      %6354 = vmatmul.mubr.f32.gmra.mrb[0].mxu0 %v6084
      %v6355 = vpop.f32.mrb[0].mxu0
      %v6356 = vadd.f32 0.0, %v6355
      %v6357 = vpop.f32.mrb[0].mxu0
      %v6358 = vadd.f32 0.0, %v6357
      %6359 = vmatprep.mubr.f32.mxu0 %v6088
      %6360 = vmatmul.mubr.f32.gmra.mrb[0].mxu0 %v6087
      %v6361 = vpop.f32.mrb[0].mxu0
      %v6362 = vadd.f32 0.0, %v6361
      %v6363 = vpop.f32.mrb[0].mxu0
      %v6364 = vadd.f32 0.0, %v6363
      %6365 = vmatprep.mubr.f32.mxu0 %v6091
      %6366 = vmatmul.mubr.f32.gmra.mrb[0].mxu0 %v6090
      %v6367 = vpop.f32.mrb[0].mxu0
      %v6368 = vadd.f32 0.0, %v6367
      %v6369 = vpop.f32.mrb[0].mxu0
      %v6370 = vadd.f32 0.0, %v6369
      %6371 = vdwg.mxu0
      %6372 = vmatprep.subr.mxu0 %v6052
      %6373 = vmatpush1.msra.mxu0 %v6051
      %6374 = vmatprep.subr.mxu0 %v6060
      %6375 = vmatpush1.msra.mxu0 %v6059
      %6376 = vmatprep.subr.mxu0 %v6068
      %6377 = vmatpush1.msra.mxu0 %v6067
      %6378 = vmatprep.subr.mxu0 %v6076
      %6379 = vmatpush1.msra.mxu0 %v6075
      %6380 = vmatprep.subr.mxu0 0.0
      %6381 = vmatpush1.msra.mxu0 0.0
      %6382 = vmatprep.subr.mxu0 0.0
      %6383 = vmatpush1.msra.mxu0 0.0
      %6384 = vmatprep.subr.mxu0 0.0
      %6385 = vmatpush1.msra.mxu0 0.0
      %6386 = vmatprep.subr.mxu0 0.0
      %6387 = vmatpush1.msra.mxu0 0.0
      %6388 = vmatprep.subr.mxu0 0.0
      %6389 = vmatpush1.msra.mxu0 0.0
      %6390 = vmatprep.subr.mxu0 0.0
      %6391 = vmatpush1.msra.mxu0 0.0
      %6392 = vmatprep.subr.mxu0 0.0
      %6393 = vmatpush1.msra.mxu0 0.0
      %6394 = vmatprep.subr.mxu0 0.0
      %6395 = vmatpush1.msra.mxu0 0.0
      %6396 = vmatprep.subr.mxu0 0.0
      %6397 = vmatpush1.msra.mxu0 0.0
      %6398 = vmatprep.subr.mxu0 0.0
      %6399 = vmatpush1.msra.mxu0 0.0
      %6400 = vmatprep.subr.mxu0 0.0
      %6401 = vmatpush1.msra.mxu0 0.0
      %6402 = vmatprep.subr.mxu0 0.0
      %6403 = vmatpush1.msra.mxu0 0.0
      %6404 = vmatprep.subr.mxu0 0.0
      %6405 = vmatpush1.msra.mxu0 0.0
      %6406 = vmatprep.subr.mxu0 0.0
      %6407 = vmatpush1.msra.mxu0 0.0
      %6408 = vmatprep.subr.mxu0 0.0
      %6409 = vmatpush1.msra.mxu0 0.0
      %6410 = vmatprep.subr.mxu0 0.0
      %6411 = vmatpush1.msra.mxu0 0.0
      %6412 = vmatprep.subr.mxu0 0.0
      %6413 = vmatpush1.msra.mxu0 0.0
      %6414 = vmatprep.subr.mxu0 0.0
      %6415 = vmatpush1.msra.mxu0 0.0
      %6416 = vmatprep.subr.mxu0 0.0
      %6417 = vmatpush1.msra.mxu0 0.0
      %6418 = vmatprep.subr.mxu0 0.0
      %6419 = vmatpush1.msra.mxu0 0.0
      %6420 = vmatprep.subr.mxu0 0.0
      %6421 = vmatpush1.msra.mxu0 0.0
      %6422 = vmatprep.subr.mxu0 0.0
      %6423 = vmatpush1.msra.mxu0 0.0
      %6424 = vmatprep.subr.mxu0 0.0
      %6425 = vmatpush1.msra.mxu0 0.0
      %6426 = vmatprep.subr.mxu0 0.0
      %6427 = vmatpush1.msra.mxu0 0.0
      %6428 = vmatprep.subr.mxu0 0.0
      %6429 = vmatpush1.msra.mxu0 0.0
      %6430 = vmatprep.subr.mxu0 0.0
      %6431 = vmatpush1.msra.mxu0 0.0
      %6432 = vmatprep.subr.mxu0 0.0
      %6433 = vmatpush1.msra.mxu0 0.0
      %6434 = vmatprep.subr.mxu0 0.0
      %6435 = vmatpush1.msra.mxu0 0.0
      %6436 = vmatprep.mubr.f32.mxu0 0.0
      %6437 = vmatmul.mubr.f32.gmra.mrb[0].mxu0 %v6094
      %v6438 = vpop.f32.mrb[0].mxu0
      %v6439 = vadd.f32 %v6350, %v6438
      %v6440 = vpop.f32.mrb[0].mxu0
      %v6441 = vadd.f32 %v6352, %v6440
      %6442 = vmatprep.mubr.f32.mxu0 0.0
      %6443 = vmatmul.mubr.f32.gmra.mrb[0].mxu0 %v6097
      %v6444 = vpop.f32.mrb[0].mxu0
      %v6445 = vadd.f32 %v6356, %v6444
      %v6446 = vpop.f32.mrb[0].mxu0
      %v6447 = vadd.f32 %v6358, %v6446
      %6448 = vmatprep.mubr.f32.mxu0 0.0
      %6449 = vmatmul.mubr.f32.gmra.mrb[0].mxu0 %v6100
      %v6450 = vpop.f32.mrb[0].mxu0
      %v6451 = vadd.f32 %v6362, %v6450
      %v6452 = vpop.f32.mrb[0].mxu0
      %v6453 = vadd.f32 %v6364, %v6452
      %6454 = vmatprep.mubr.f32.mxu0 0.0
      %6455 = vmatmul.mubr.f32.gmra.mrb[0].mxu0 %v6103
      %v6456 = vpop.f32.mrb[0].mxu0
      %v6457 = vadd.f32 %v6368, %v6456
      %v6458 = vpop.f32.mrb[0].mxu0
      %v6459 = vadd.f32 %v6370, %v6458
      %6460 = vdwg.mxu0
      %6461 = vmatprep.subr.mxu0 %v4994
      %6462 = vmatpush1.msra.mxu0 %v4993
      %6463 = vmatprep.subr.mxu0 %v5002
      %6464 = vmatpush1.msra.mxu0 %v5001
      %6465 = vmatprep.subr.mxu0 %v5010
      %6466 = vmatpush1.msra.mxu0 %v5009
      %6467 = vmatprep.subr.mxu0 %v5018
      %6468 = vmatpush1.msra.mxu0 %v5017
      %6469 = vmatprep.subr.mxu0 %v5089
      %6470 = vmatpush1.msra.mxu0 %v5088
      %6471 = vmatprep.subr.mxu0 %v5096
      %6472 = vmatpush1.msra.mxu0 %v5095
      %6473 = vmatprep.subr.mxu0 %v5103
      %6474 = vmatpush1.msra.mxu0 %v5102
      %6475 = vmatprep.subr.mxu0 %v5110
      %6476 = vmatpush1.msra.mxu0 %v5109
      %6477 = vmatprep.subr.mxu0 %v5283
      %6478 = vmatpush1.msra.mxu0 %v5282
      %6479 = vmatprep.subr.mxu0 %v5291
      %6480 = vmatpush1.msra.mxu0 %v5290
      %6481 = vmatprep.subr.mxu0 %v5299
      %6482 = vmatpush1.msra.mxu0 %v5298
      %6483 = vmatprep.subr.mxu0 %v5307
      %6484 = vmatpush1.msra.mxu0 %v5306
      %6485 = vmatprep.subr.mxu0 %v5443
      %6486 = vmatpush1.msra.mxu0 %v5442
      %6487 = vmatprep.subr.mxu0 %v5451
      %6488 = vmatpush1.msra.mxu0 %v5450
      %6489 = vmatprep.subr.mxu0 %v5459
      %6490 = vmatpush1.msra.mxu0 %v5458
      %6491 = vmatprep.subr.mxu0 %v5467
      %6492 = vmatpush1.msra.mxu0 %v5466
      %6493 = vmatprep.subr.mxu0 %v4569
      %6494 = vmatpush1.msra.mxu0 %v4567
      %6495 = vmatprep.subr.mxu0 %v4575
      %6496 = vmatpush1.msra.mxu0 %v4573
      %6497 = vmatprep.subr.mxu0 %v4581
      %6498 = vmatpush1.msra.mxu0 %v4579
      %6499 = vmatprep.subr.mxu0 %v4587
      %6500 = vmatpush1.msra.mxu0 %v4585
      %6501 = vmatprep.subr.mxu0 %v5603
      %6502 = vmatpush1.msra.mxu0 %v5602
      %6503 = vmatprep.subr.mxu0 %v5611
      %6504 = vmatpush1.msra.mxu0 %v5610
      %6505 = vmatprep.subr.mxu0 %v5619
      %6506 = vmatpush1.msra.mxu0 %v5618
      %6507 = vmatprep.subr.mxu0 %v5627
      %6508 = vmatpush1.msra.mxu0 %v5626
      %6509 = vmatprep.subr.mxu0 %v5764
      %6510 = vmatpush1.msra.mxu0 %v5763
      %6511 = vmatprep.subr.mxu0 %v5772
      %6512 = vmatpush1.msra.mxu0 %v5771
      %6513 = vmatprep.subr.mxu0 %v5780
      %6514 = vmatpush1.msra.mxu0 %v5779
      %6515 = vmatprep.subr.mxu0 %v5788
      %6516 = vmatpush1.msra.mxu0 %v5787
      %6517 = vmatprep.subr.mxu0 %v5861
      %6518 = vmatpush1.msra.mxu0 %v5860
      %6519 = vmatprep.subr.mxu0 %v5868
      %6520 = vmatpush1.msra.mxu0 %v5867
      %6521 = vmatprep.subr.mxu0 %v5875
      %6522 = vmatpush1.msra.mxu0 %v5874
      %6523 = vmatprep.subr.mxu0 %v5882
      %6524 = vmatpush1.msra.mxu0 %v5881
      %6525 = vmatprep.mubr.f32.mxu0 %v6082
      %6526 = vmatmul.mubr.f32.gmra.mrb[0].mxu0 %v6081
      %v6527 = vpop.f32.mrb[0].mxu0
      %v6528 = vadd.f32 0.0, %v6527
      %v6529 = vpop.f32.mrb[0].mxu0
      %v6530 = vadd.f32 0.0, %v6529
      %6531 = vmatprep.mubr.f32.mxu0 %v6085
      %6532 = vmatmul.mubr.f32.gmra.mrb[0].mxu0 %v6084
      %v6533 = vpop.f32.mrb[0].mxu0
      %v6534 = vadd.f32 0.0, %v6533
      %v6535 = vpop.f32.mrb[0].mxu0
      %v6536 = vadd.f32 0.0, %v6535
      %6537 = vmatprep.mubr.f32.mxu0 %v6088
      %6538 = vmatmul.mubr.f32.gmra.mrb[0].mxu0 %v6087
      %v6539 = vpop.f32.mrb[0].mxu0
      %v6540 = vadd.f32 0.0, %v6539
      %v6541 = vpop.f32.mrb[0].mxu0
      %v6542 = vadd.f32 0.0, %v6541
      %6543 = vmatprep.mubr.f32.mxu0 %v6091
      %6544 = vmatmul.mubr.f32.gmra.mrb[0].mxu0 %v6090
      %v6545 = vpop.f32.mrb[0].mxu0
      %v6546 = vadd.f32 0.0, %v6545
      %v6547 = vpop.f32.mrb[0].mxu0
      %v6548 = vadd.f32 0.0, %v6547
      %6549 = vdwg.mxu0
      %6550 = vmatprep.subr.mxu0 %v6054
      %6551 = vmatpush1.msra.mxu0 %v6053
      %6552 = vmatprep.subr.mxu0 %v6062
      %6553 = vmatpush1.msra.mxu0 %v6061
      %6554 = vmatprep.subr.mxu0 %v6070
      %6555 = vmatpush1.msra.mxu0 %v6069
      %6556 = vmatprep.subr.mxu0 %v6078
      %6557 = vmatpush1.msra.mxu0 %v6077
      %6558 = vmatprep.subr.mxu0 0.0
      %6559 = vmatpush1.msra.mxu0 0.0
      %6560 = vmatprep.subr.mxu0 0.0
      %6561 = vmatpush1.msra.mxu0 0.0
      %6562 = vmatprep.subr.mxu0 0.0
      %6563 = vmatpush1.msra.mxu0 0.0
      %6564 = vmatprep.subr.mxu0 0.0
      %6565 = vmatpush1.msra.mxu0 0.0
      %6566 = vmatprep.subr.mxu0 0.0
      %6567 = vmatpush1.msra.mxu0 0.0
      %6568 = vmatprep.subr.mxu0 0.0
      %6569 = vmatpush1.msra.mxu0 0.0
      %6570 = vmatprep.subr.mxu0 0.0
      %6571 = vmatpush1.msra.mxu0 0.0
      %6572 = vmatprep.subr.mxu0 0.0
      %6573 = vmatpush1.msra.mxu0 0.0
      %6574 = vmatprep.subr.mxu0 0.0
      %6575 = vmatpush1.msra.mxu0 0.0
      %6576 = vmatprep.subr.mxu0 0.0
      %6577 = vmatpush1.msra.mxu0 0.0
      %6578 = vmatprep.subr.mxu0 0.0
      %6579 = vmatpush1.msra.mxu0 0.0
      %6580 = vmatprep.subr.mxu0 0.0
      %6581 = vmatpush1.msra.mxu0 0.0
      %6582 = vmatprep.subr.mxu0 0.0
      %6583 = vmatpush1.msra.mxu0 0.0
      %6584 = vmatprep.subr.mxu0 0.0
      %6585 = vmatpush1.msra.mxu0 0.0
      %6586 = vmatprep.subr.mxu0 0.0
      %6587 = vmatpush1.msra.mxu0 0.0
      %6588 = vmatprep.subr.mxu0 0.0
      %6589 = vmatpush1.msra.mxu0 0.0
      %6590 = vmatprep.subr.mxu0 0.0
      %6591 = vmatpush1.msra.mxu0 0.0
      %6592 = vmatprep.subr.mxu0 0.0
      %6593 = vmatpush1.msra.mxu0 0.0
      %6594 = vmatprep.subr.mxu0 0.0
      %6595 = vmatpush1.msra.mxu0 0.0
      %6596 = vmatprep.subr.mxu0 0.0
      %6597 = vmatpush1.msra.mxu0 0.0
      %6598 = vmatprep.subr.mxu0 0.0
      %6599 = vmatpush1.msra.mxu0 0.0
      %6600 = vmatprep.subr.mxu0 0.0
      %6601 = vmatpush1.msra.mxu0 0.0
      %6602 = vmatprep.subr.mxu0 0.0
      %6603 = vmatpush1.msra.mxu0 0.0
      %6604 = vmatprep.subr.mxu0 0.0
      %6605 = vmatpush1.msra.mxu0 0.0
      %6606 = vmatprep.subr.mxu0 0.0
      %6607 = vmatpush1.msra.mxu0 0.0
      %6608 = vmatprep.subr.mxu0 0.0
      %6609 = vmatpush1.msra.mxu0 0.0
      %6610 = vmatprep.subr.mxu0 0.0
      %6611 = vmatpush1.msra.mxu0 0.0
      %6612 = vmatprep.subr.mxu0 0.0
      %6613 = vmatpush1.msra.mxu0 0.0
      %6614 = vmatprep.mubr.f32.mxu0 0.0
      %6615 = vmatmul.mubr.f32.gmra.mrb[0].mxu0 %v6094
      %v6616 = vpop.f32.mrb[0].mxu0
      %v6617 = vadd.f32 %v6528, %v6616
      %v6618 = vpop.f32.mrb[0].mxu0
      %v6619 = vadd.f32 %v6530, %v6618
      %6620 = vmatprep.mubr.f32.mxu0 0.0
      %6621 = vmatmul.mubr.f32.gmra.mrb[0].mxu0 %v6097
      %v6622 = vpop.f32.mrb[0].mxu0
      %v6623 = vadd.f32 %v6534, %v6622
      %v6624 = vpop.f32.mrb[0].mxu0
      %v6625 = vadd.f32 %v6536, %v6624
      %6626 = vmatprep.mubr.f32.mxu0 0.0
      %6627 = vmatmul.mubr.f32.gmra.mrb[0].mxu0 %v6100
      %v6628 = vpop.f32.mrb[0].mxu0
      %v6629 = vadd.f32 %v6540, %v6628
      %v6630 = vpop.f32.mrb[0].mxu0
      %v6631 = vadd.f32 %v6542, %v6630
      %6632 = vmatprep.mubr.f32.mxu0 0.0
      %6633 = vmatmul.mubr.f32.gmra.mrb[0].mxu0 %v6103
      %v6634 = vpop.f32.mrb[0].mxu0
      %v6635 = vadd.f32 %v6546, %v6634
      %v6636 = vpop.f32.mrb[0].mxu0
      %v6637 = vadd.f32 %v6548, %v6636
      %6638 = vdwg.mxu0
      %6639 = vmatprep.subr.mxu0 %v4996
      %6640 = vmatpush1.msra.mxu0 %v4995
      %6641 = vmatprep.subr.mxu0 %v5004
      %6642 = vmatpush1.msra.mxu0 %v5003
      %6643 = vmatprep.subr.mxu0 %v5012
      %6644 = vmatpush1.msra.mxu0 %v5011
      %6645 = vmatprep.subr.mxu0 %v5020
      %6646 = vmatpush1.msra.mxu0 %v5019
      %6647 = vmatprep.subr.mxu0 %v5091
      %6648 = vmatpush1.msra.mxu0 %v5090
      %6649 = vmatprep.subr.mxu0 %v5098
      %6650 = vmatpush1.msra.mxu0 %v5097
      %6651 = vmatprep.subr.mxu0 %v5105
      %6652 = vmatpush1.msra.mxu0 %v5104
      %6653 = vmatprep.subr.mxu0 %v5112
      %6654 = vmatpush1.msra.mxu0 %v5111
      %6655 = vmatprep.subr.mxu0 %v5285
      %6656 = vmatpush1.msra.mxu0 %v5284
      %6657 = vmatprep.subr.mxu0 %v5293
      %6658 = vmatpush1.msra.mxu0 %v5292
      %6659 = vmatprep.subr.mxu0 %v5301
      %6660 = vmatpush1.msra.mxu0 %v5300
      %6661 = vmatprep.subr.mxu0 %v5309
      %6662 = vmatpush1.msra.mxu0 %v5308
      %6663 = vmatprep.subr.mxu0 %v5445
      %6664 = vmatpush1.msra.mxu0 %v5444
      %6665 = vmatprep.subr.mxu0 %v5453
      %6666 = vmatpush1.msra.mxu0 %v5452
      %6667 = vmatprep.subr.mxu0 %v5461
      %6668 = vmatpush1.msra.mxu0 %v5460
      %6669 = vmatprep.subr.mxu0 %v5469
      %6670 = vmatpush1.msra.mxu0 %v5468
      %6671 = vmatprep.subr.mxu0 %v4658
      %6672 = vmatpush1.msra.mxu0 %v4656
      %6673 = vmatprep.subr.mxu0 %v4664
      %6674 = vmatpush1.msra.mxu0 %v4662
      %6675 = vmatprep.subr.mxu0 %v4670
      %6676 = vmatpush1.msra.mxu0 %v4668
      %6677 = vmatprep.subr.mxu0 %v4676
      %6678 = vmatpush1.msra.mxu0 %v4674
      %6679 = vmatprep.subr.mxu0 %v5605
      %6680 = vmatpush1.msra.mxu0 %v5604
      %6681 = vmatprep.subr.mxu0 %v5613
      %6682 = vmatpush1.msra.mxu0 %v5612
      %6683 = vmatprep.subr.mxu0 %v5621
      %6684 = vmatpush1.msra.mxu0 %v5620
      %6685 = vmatprep.subr.mxu0 %v5629
      %6686 = vmatpush1.msra.mxu0 %v5628
      %6687 = vmatprep.subr.mxu0 %v5766
      %6688 = vmatpush1.msra.mxu0 %v5765
      %6689 = vmatprep.subr.mxu0 %v5774
      %6690 = vmatpush1.msra.mxu0 %v5773
      %6691 = vmatprep.subr.mxu0 %v5782
      %6692 = vmatpush1.msra.mxu0 %v5781
      %6693 = vmatprep.subr.mxu0 %v5790
      %6694 = vmatpush1.msra.mxu0 %v5789
      %6695 = vmatprep.subr.mxu0 %v5916
      %6696 = vmatpush1.msra.mxu0 %v5862
      %6697 = vmatprep.subr.mxu0 %v5917
      %6698 = vmatpush1.msra.mxu0 %v5869
      %6699 = vmatprep.subr.mxu0 %v5918
      %6700 = vmatpush1.msra.mxu0 %v5876
      %6701 = vmatprep.subr.mxu0 %v5919
      %6702 = vmatpush1.msra.mxu0 %v5883
      %6703 = vmatprep.mubr.f32.mxu0 %v6082
      %6704 = vmatmul.mubr.f32.gmra.mrb[0].mxu0 %v6081
      %v6705 = vpop.f32.mrb[0].mxu0
      %v6706 = vadd.f32 0.0, %v6705
      %v6707 = vpop.f32.mrb[0].mxu0
      %v6708 = vadd.f32 0.0, %v6707
      %6709 = vmatprep.mubr.f32.mxu0 %v6085
      %6710 = vmatmul.mubr.f32.gmra.mrb[0].mxu0 %v6084
      %v6711 = vpop.f32.mrb[0].mxu0
      %v6712 = vadd.f32 0.0, %v6711
      %v6713 = vpop.f32.mrb[0].mxu0
      %v6714 = vadd.f32 0.0, %v6713
      %6715 = vmatprep.mubr.f32.mxu0 %v6088
      %6716 = vmatmul.mubr.f32.gmra.mrb[0].mxu0 %v6087
      %v6717 = vpop.f32.mrb[0].mxu0
      %v6718 = vadd.f32 0.0, %v6717
      %v6719 = vpop.f32.mrb[0].mxu0
      %v6720 = vadd.f32 0.0, %v6719
      %6721 = vmatprep.mubr.f32.mxu0 %v6091
      %6722 = vmatmul.mubr.f32.gmra.mrb[0].mxu0 %v6090
      %v6723 = vpop.f32.mrb[0].mxu0
      %v6724 = vadd.f32 0.0, %v6723
      %v6725 = vpop.f32.mrb[0].mxu0
      %v6726 = vadd.f32 0.0, %v6725
      %6727 = vdwg.mxu0
      %6728 = vmatprep.subr.mxu0 %v6056
      %6729 = vmatpush1.msra.mxu0 %v6055
      %6730 = vmatprep.subr.mxu0 %v6064
      %6731 = vmatpush1.msra.mxu0 %v6063
      %6732 = vmatprep.subr.mxu0 %v6072
      %6733 = vmatpush1.msra.mxu0 %v6071
      %6734 = vmatprep.subr.mxu0 %v6080
      %6735 = vmatpush1.msra.mxu0 %v6079
      %6736 = vmatprep.subr.mxu0 0.0
      %6737 = vmatpush1.msra.mxu0 0.0
      %6738 = vmatprep.subr.mxu0 0.0
      %6739 = vmatpush1.msra.mxu0 0.0
      %6740 = vmatprep.subr.mxu0 0.0
      %6741 = vmatpush1.msra.mxu0 0.0
      %6742 = vmatprep.subr.mxu0 0.0
      %6743 = vmatpush1.msra.mxu0 0.0
      %6744 = vmatprep.subr.mxu0 0.0
      %6745 = vmatpush1.msra.mxu0 0.0
      %6746 = vmatprep.subr.mxu0 0.0
      %6747 = vmatpush1.msra.mxu0 0.0
      %6748 = vmatprep.subr.mxu0 0.0
      %6749 = vmatpush1.msra.mxu0 0.0
      %6750 = vmatprep.subr.mxu0 0.0
      %6751 = vmatpush1.msra.mxu0 0.0
      %6752 = vmatprep.subr.mxu0 0.0
      %6753 = vmatpush1.msra.mxu0 0.0
      %6754 = vmatprep.subr.mxu0 0.0
      %6755 = vmatpush1.msra.mxu0 0.0
      %6756 = vmatprep.subr.mxu0 0.0
      %6757 = vmatpush1.msra.mxu0 0.0
      %6758 = vmatprep.subr.mxu0 0.0
      %6759 = vmatpush1.msra.mxu0 0.0
      %6760 = vmatprep.subr.mxu0 0.0
      %6761 = vmatpush1.msra.mxu0 0.0
      %6762 = vmatprep.subr.mxu0 0.0
      %6763 = vmatpush1.msra.mxu0 0.0
      %6764 = vmatprep.subr.mxu0 0.0
      %6765 = vmatpush1.msra.mxu0 0.0
      %6766 = vmatprep.subr.mxu0 0.0
      %6767 = vmatpush1.msra.mxu0 0.0
      %6768 = vmatprep.subr.mxu0 0.0
      %6769 = vmatpush1.msra.mxu0 0.0
      %6770 = vmatprep.subr.mxu0 0.0
      %6771 = vmatpush1.msra.mxu0 0.0
      %6772 = vmatprep.subr.mxu0 0.0
      %6773 = vmatpush1.msra.mxu0 0.0
      %6774 = vmatprep.subr.mxu0 0.0
      %6775 = vmatpush1.msra.mxu0 0.0
      %6776 = vmatprep.subr.mxu0 0.0
      %6777 = vmatpush1.msra.mxu0 0.0
      %6778 = vmatprep.subr.mxu0 0.0
      %6779 = vmatpush1.msra.mxu0 0.0
      %6780 = vmatprep.subr.mxu0 0.0
      %6781 = vmatpush1.msra.mxu0 0.0
      %6782 = vmatprep.subr.mxu0 0.0
      %6783 = vmatpush1.msra.mxu0 0.0
      %6784 = vmatprep.subr.mxu0 0.0
      %6785 = vmatpush1.msra.mxu0 0.0
      %6786 = vmatprep.subr.mxu0 0.0
      %6787 = vmatpush1.msra.mxu0 0.0
      %6788 = vmatprep.subr.mxu0 0.0
      %6789 = vmatpush1.msra.mxu0 0.0
      %6790 = vmatprep.subr.mxu0 0.0
      %6791 = vmatpush1.msra.mxu0 0.0
      %6792 = vmatprep.mubr.f32.mxu0 0.0
      %6793 = vmatmul.mubr.f32.gmra.mrb[0].mxu0 %v6094
      %v6794 = vpop.f32.mrb[0].mxu0
      %v6795 = vadd.f32 %v6706, %v6794
      %v6796 = vpop.f32.mrb[0].mxu0
      %v6797 = vadd.f32 %v6708, %v6796
      %6798 = vmatprep.mubr.f32.mxu0 0.0
      %6799 = vmatmul.mubr.f32.gmra.mrb[0].mxu0 %v6097
      %v6800 = vpop.f32.mrb[0].mxu0
      %v6801 = vadd.f32 %v6712, %v6800
      %v6802 = vpop.f32.mrb[0].mxu0
      %v6803 = vadd.f32 %v6714, %v6802
      %6804 = vmatprep.mubr.f32.mxu0 0.0
      %6805 = vmatmul.mubr.f32.gmra.mrb[0].mxu0 %v6100
      %v6806 = vpop.f32.mrb[0].mxu0
      %v6807 = vadd.f32 %v6718, %v6806
      %v6808 = vpop.f32.mrb[0].mxu0
      %v6809 = vadd.f32 %v6720, %v6808
      %6810 = vmatprep.mubr.f32.mxu0 0.0
      %6811 = vmatmul.mubr.f32.gmra.mrb[0].mxu0 %v6103
      %v6812 = vpop.f32.mrb[0].mxu0
      %v6813 = vadd.f32 %v6724, %v6812
      %v6814 = vpop.f32.mrb[0].mxu0
      %v6815 = vadd.f32 %v6726, %v6814
      %6816 = vdwg.mxu0
      %v6817 = vadd.f32 %v6261, %v6263
      %v6818 = vadd.f32 %v6817, %v6439
      %v6819 = vadd.f32 %v6818, %v6441
      %v6820 = vadd.f32 %v6819, %v6617
      %v6821 = vadd.f32 %v6820, %v6619
      %v6822 = vadd.f32 %v6821, %v6795
      %v6823 = vadd.f32 %v6822, %v6797
      %6824 = vadd.xlane.f32.xlu0 %v6823
      %v6825 = vpop.xlane.xlu0 %6824
      %v6826 = vadd.f32 %v6267, %v6269
      %v6827 = vadd.f32 %v6826, %v6445
      %v6828 = vadd.f32 %v6827, %v6447
      %v6829 = vadd.f32 %v6828, %v6623
      %v6830 = vadd.f32 %v6829, %v6625
      %v6831 = vadd.f32 %v6830, %v6801
      %v6832 = vadd.f32 %v6831, %v6803
      %6833 = vadd.xlane.f32.xlu0 %v6832
      %v6834 = vpop.xlane.xlu0 %6833
      %v6835 = vadd.f32 %v6273, %v6275
      %v6836 = vadd.f32 %v6835, %v6451
      %v6837 = vadd.f32 %v6836, %v6453
      %v6838 = vadd.f32 %v6837, %v6629
      %v6839 = vadd.f32 %v6838, %v6631
      %v6840 = vadd.f32 %v6839, %v6807
      %v6841 = vadd.f32 %v6840, %v6809
      %6842 = vadd.xlane.f32.xlu0 %v6841
      %v6843 = vpop.xlane.xlu0 %6842
      %v6844 = vadd.f32 %v6279, %v6281
      %v6845 = vadd.f32 %v6844, %v6457
      %v6846 = vadd.f32 %v6845, %v6459
      %v6847 = vadd.f32 %v6846, %v6635
      %v6848 = vadd.f32 %v6847, %v6637
      %v6849 = vadd.f32 %v6848, %v6813
      %v6850 = vadd.f32 %v6849, %v6815
      %6851 = vadd.xlane.f32.xlu0 %v6850
      %v6852 = vpop.xlane.xlu0 %6851
      %6853 = vmatprep.subr.mxu0 0.0
      %6854 = vmatpush1.msra.mxu0 %v6825
      %6855 = vmatprep.subr.mxu0 0.0
      %6856 = vmatpush1.msra.mxu0 %v6834
      %6857 = vmatprep.subr.mxu0 0.0
      %6858 = vmatpush1.msra.mxu0 %v6843
      %6859 = vmatprep.subr.mxu0 0.0
      %6860 = vmatpush1.msra.mxu0 %v6852
      %6861 = vmatprep.subr.mxu0 0.0
      %6862 = vmatpush1.msra.mxu0 0.0
      %6863 = vmatprep.subr.mxu0 0.0
      %6864 = vmatpush1.msra.mxu0 0.0
      %6865 = vmatprep.subr.mxu0 0.0
      %6866 = vmatpush1.msra.mxu0 0.0
      %6867 = vmatprep.subr.mxu0 0.0
      %6868 = vmatpush1.msra.mxu0 0.0
      %6869 = vmatprep.subr.mxu0 0.0
      %6870 = vmatpush1.msra.mxu0 0.0
      %6871 = vmatprep.subr.mxu0 0.0
      %6872 = vmatpush1.msra.mxu0 0.0
      %6873 = vmatprep.subr.mxu0 0.0
      %6874 = vmatpush1.msra.mxu0 0.0
      %6875 = vmatprep.subr.mxu0 0.0
      %6876 = vmatpush1.msra.mxu0 0.0
      %6877 = vmatprep.subr.mxu0 0.0
      %6878 = vmatpush1.msra.mxu0 0.0
      %6879 = vmatprep.subr.mxu0 0.0
      %6880 = vmatpush1.msra.mxu0 0.0
      %6881 = vmatprep.subr.mxu0 0.0
      %6882 = vmatpush1.msra.mxu0 0.0
      %6883 = vmatprep.subr.mxu0 0.0
      %6884 = vmatpush1.msra.mxu0 0.0
      %6885 = vmatprep.subr.mxu0 0.0
      %6886 = vmatpush1.msra.mxu0 0.0
      %6887 = vmatprep.subr.mxu0 0.0
      %6888 = vmatpush1.msra.mxu0 0.0
      %6889 = vmatprep.subr.mxu0 0.0
      %6890 = vmatpush1.msra.mxu0 0.0
      %6891 = vmatprep.subr.mxu0 0.0
      %6892 = vmatpush1.msra.mxu0 0.0
      %6893 = vmatprep.subr.mxu0 0.0
      %6894 = vmatpush1.msra.mxu0 0.0
      %6895 = vmatprep.subr.mxu0 0.0
      %6896 = vmatpush1.msra.mxu0 0.0
      %6897 = vmatprep.subr.mxu0 0.0
      %6898 = vmatpush1.msra.mxu0 0.0
      %6899 = vmatprep.subr.mxu0 0.0
      %6900 = vmatpush1.msra.mxu0 0.0
      %6901 = vmatprep.subr.mxu0 0.0
      %6902 = vmatpush1.msra.mxu0 0.0
      %6903 = vmatprep.subr.mxu0 0.0
      %6904 = vmatpush1.msra.mxu0 0.0
      %6905 = vmatprep.subr.mxu0 0.0
      %6906 = vmatpush1.msra.mxu0 0.0
      %6907 = vmatprep.subr.mxu0 0.0
      %6908 = vmatpush1.msra.mxu0 0.0
      %6909 = vmatprep.subr.mxu0 0.0
      %6910 = vmatpush1.msra.mxu0 0.0
      %6911 = vmatprep.subr.mxu0 0.0
      %6912 = vmatpush1.msra.mxu0 0.0
      %6913 = vmatprep.subr.mxu0 0.0
      %6914 = vmatpush1.msra.mxu0 0.0
      %6915 = vmatprep.subr.mxu0 0.0
      %6916 = vmatpush1.msra.mxu0 0.0
      %6917 = vmatprep.mubr.f32.mxu0 0.0
      %6918 = vmatmul.mubr.f32.gmra.mrb[0].mxu0 %v1081
      %v6919 = vpop.f32.mrb[0].mxu0
      %v6920 = vadd.f32 0.0, %v6919
      %v6921 = vpop.f32.mrb[0].mxu0
      %6922 = vmatprep.mubr.f32.mxu0 0.0
      %6923 = vmatmul.mubr.f32.gmra.mrb[0].mxu0 %v1084
      %v6924 = vpop.f32.mrb[0].mxu0
      %v6925 = vadd.f32 0.0, %v6924
      %v6926 = vpop.f32.mrb[0].mxu0
      %6927 = vmatprep.mubr.f32.mxu0 0.0
      %6928 = vmatmul.mubr.f32.gmra.mrb[0].mxu0 %v1087
      %v6929 = vpop.f32.mrb[0].mxu0
      %v6930 = vadd.f32 0.0, %v6929
      %v6931 = vpop.f32.mrb[0].mxu0
      %6932 = vmatprep.mubr.f32.mxu0 0.0
      %6933 = vmatmul.mubr.f32.gmra.mrb[0].mxu0 %v1090
      %v6934 = vpop.f32.mrb[0].mxu0
      %v6935 = vadd.f32 0.0, %v6934
      %v6936 = vpop.f32.mrb[0].mxu0
      %6937 = vdwg.mxu0
      %v6938 = vmul.f32 %v6920, 0.00024414063
      %v6939 = vmul.f32 %v6925, 0.00024414063
      %v6940 = vmul.f32 %v6930, 0.00024414063
      %v6941 = vmul.f32 %v6935, 0.00024414063
      %6943 = vset.pattern.permute.xlu0 0
      %6944 = vperm.xlu0 %6943, %v6938
      %v6945 = vpop.permute.xlu0 %6944
      %6948 = vset.pattern.permute.xlu0 0
      %6949 = vperm.xlu0 %6948, %v6939
      %v6950 = vpop.permute.xlu0 %6949
      %6953 = vset.pattern.permute.xlu0 0
      %6954 = vperm.xlu0 %6953, %v6940
      %v6955 = vpop.permute.xlu0 %6954
      %6958 = vset.pattern.permute.xlu0 0
      %6959 = vperm.xlu0 %6958, %v6941
      %v6960 = vpop.permute.xlu0 %6959
      %v6962 = vsub.f32 %v6261, %v6945
      %v6963 = vsub.f32 %v6263, %v6945
      %v6964 = vsub.f32 %v6439, %v6945
      %v6965 = vsub.f32 %v6441, %v6945
      %v6966 = vsub.f32 %v6617, %v6945
      %v6967 = vsub.f32 %v6619, %v6945
      %v6968 = vsub.f32 %v6795, %v6945
      %v6969 = vsub.f32 %v6797, %v6945
      %v6970 = vsub.f32 %v6267, %v6950
      %v6971 = vsub.f32 %v6269, %v6950
      %v6972 = vsub.f32 %v6445, %v6950
      %v6973 = vsub.f32 %v6447, %v6950
      %v6974 = vsub.f32 %v6623, %v6950
      %v6975 = vsub.f32 %v6625, %v6950
      %v6976 = vsub.f32 %v6801, %v6950
      %v6977 = vsub.f32 %v6803, %v6950
      %v6978 = vsub.f32 %v6273, %v6955
      %v6979 = vsub.f32 %v6275, %v6955
      %v6980 = vsub.f32 %v6451, %v6955
      %v6981 = vsub.f32 %v6453, %v6955
      %v6982 = vsub.f32 %v6629, %v6955
      %v6983 = vsub.f32 %v6631, %v6955
      %v6984 = vsub.f32 %v6807, %v6955
      %v6985 = vsub.f32 %v6809, %v6955
      %v6986 = vsub.f32 %v6279, %v6960
      %v6987 = vsub.f32 %v6281, %v6960
      %v6988 = vsub.f32 %v6457, %v6960
      %v6989 = vsub.f32 %v6459, %v6960
      %v6990 = vsub.f32 %v6635, %v6960
      %v6991 = vsub.f32 %v6637, %v6960
      %v6992 = vsub.f32 %v6813, %v6960
      %v6993 = vsub.f32 %v6815, %v6960
      %v6994 = vmul.f32 %v6962, %v6962
      %v6995 = vmul.f32 %v6963, %v6963
      %v6996 = vmul.f32 %v6964, %v6964
      %v6997 = vmul.f32 %v6965, %v6965
      %v6998 = vmul.f32 %v6966, %v6966
      %v6999 = vmul.f32 %v6967, %v6967
      %v7000 = vmul.f32 %v6968, %v6968
      %v7001 = vmul.f32 %v6969, %v6969
      %v7002 = vmul.f32 %v6970, %v6970
      %v7003 = vmul.f32 %v6971, %v6971
      %v7004 = vmul.f32 %v6972, %v6972
      %v7005 = vmul.f32 %v6973, %v6973
      %v7006 = vmul.f32 %v6974, %v6974
      %v7007 = vmul.f32 %v6975, %v6975
      %v7008 = vmul.f32 %v6976, %v6976
      %v7009 = vmul.f32 %v6977, %v6977
      %v7010 = vmul.f32 %v6978, %v6978
      %v7011 = vmul.f32 %v6979, %v6979
      %v7012 = vmul.f32 %v6980, %v6980
      %v7013 = vmul.f32 %v6981, %v6981
      %v7014 = vmul.f32 %v6982, %v6982
      %v7015 = vmul.f32 %v6983, %v6983
      %v7016 = vmul.f32 %v6984, %v6984
      %v7017 = vmul.f32 %v6985, %v6985
      %v7018 = vmul.f32 %v6986, %v6986
      %v7019 = vmul.f32 %v6987, %v6987
      %v7020 = vmul.f32 %v6988, %v6988
      %v7021 = vmul.f32 %v6989, %v6989
      %v7022 = vmul.f32 %v6990, %v6990
      %v7023 = vmul.f32 %v6991, %v6991
      %v7024 = vmul.f32 %v6992, %v6992
      %v7025 = vmul.f32 %v6993, %v6993
      %v7026 = vadd.f32 %v6994, %v6995
      %v7027 = vadd.f32 %v7026, %v6996
      %v7028 = vadd.f32 %v7027, %v6997
      %v7029 = vadd.f32 %v7028, %v6998
      %v7030 = vadd.f32 %v7029, %v6999
      %v7031 = vadd.f32 %v7030, %v7000
      %v7032 = vadd.f32 %v7031, %v7001
      %7033 = vadd.xlane.f32.xlu0 %v7032
      %v7034 = vpop.xlane.xlu0 %7033
      %v7035 = vadd.f32 %v7002, %v7003
      %v7036 = vadd.f32 %v7035, %v7004
      %v7037 = vadd.f32 %v7036, %v7005
      %v7038 = vadd.f32 %v7037, %v7006
      %v7039 = vadd.f32 %v7038, %v7007
      %v7040 = vadd.f32 %v7039, %v7008
      %v7041 = vadd.f32 %v7040, %v7009
      %7042 = vadd.xlane.f32.xlu0 %v7041
      %v7043 = vpop.xlane.xlu0 %7042
      %v7044 = vadd.f32 %v7010, %v7011
      %v7045 = vadd.f32 %v7044, %v7012
      %v7046 = vadd.f32 %v7045, %v7013
      %v7047 = vadd.f32 %v7046, %v7014
      %v7048 = vadd.f32 %v7047, %v7015
      %v7049 = vadd.f32 %v7048, %v7016
      %v7050 = vadd.f32 %v7049, %v7017
      %7051 = vadd.xlane.f32.xlu0 %v7050
      %v7052 = vpop.xlane.xlu0 %7051
      %v7053 = vadd.f32 %v7018, %v7019
      %v7054 = vadd.f32 %v7053, %v7020
      %v7055 = vadd.f32 %v7054, %v7021
      %v7056 = vadd.f32 %v7055, %v7022
      %v7057 = vadd.f32 %v7056, %v7023
      %v7058 = vadd.f32 %v7057, %v7024
      %v7059 = vadd.f32 %v7058, %v7025
      %7060 = vadd.xlane.f32.xlu0 %v7059
      %v7061 = vpop.xlane.xlu0 %7060
      %7062 = vmatprep.subr.mxu0 0.0
      %7063 = vmatpush1.msra.mxu0 %v7034
      %7064 = vmatprep.subr.mxu0 0.0
      %7065 = vmatpush1.msra.mxu0 %v7043
      %7066 = vmatprep.subr.mxu0 0.0
      %7067 = vmatpush1.msra.mxu0 %v7052
      %7068 = vmatprep.subr.mxu0 0.0
      %7069 = vmatpush1.msra.mxu0 %v7061
      %7070 = vmatprep.subr.mxu0 0.0
      %7071 = vmatpush1.msra.mxu0 0.0
      %7072 = vmatprep.subr.mxu0 0.0
      %7073 = vmatpush1.msra.mxu0 0.0
      %7074 = vmatprep.subr.mxu0 0.0
      %7075 = vmatpush1.msra.mxu0 0.0
      %7076 = vmatprep.subr.mxu0 0.0
      %7077 = vmatpush1.msra.mxu0 0.0
      %7078 = vmatprep.subr.mxu0 0.0
      %7079 = vmatpush1.msra.mxu0 0.0
      %7080 = vmatprep.subr.mxu0 0.0
      %7081 = vmatpush1.msra.mxu0 0.0
      %7082 = vmatprep.subr.mxu0 0.0
      %7083 = vmatpush1.msra.mxu0 0.0
      %7084 = vmatprep.subr.mxu0 0.0
      %7085 = vmatpush1.msra.mxu0 0.0
      %7086 = vmatprep.subr.mxu0 0.0
      %7087 = vmatpush1.msra.mxu0 0.0
      %7088 = vmatprep.subr.mxu0 0.0
      %7089 = vmatpush1.msra.mxu0 0.0
      %7090 = vmatprep.subr.mxu0 0.0
      %7091 = vmatpush1.msra.mxu0 0.0
      %7092 = vmatprep.subr.mxu0 0.0
      %7093 = vmatpush1.msra.mxu0 0.0
      %7094 = vmatprep.subr.mxu0 0.0
      %7095 = vmatpush1.msra.mxu0 0.0
      %7096 = vmatprep.subr.mxu0 0.0
      %7097 = vmatpush1.msra.mxu0 0.0
      %7098 = vmatprep.subr.mxu0 0.0
      %7099 = vmatpush1.msra.mxu0 0.0
      %7100 = vmatprep.subr.mxu0 0.0
      %7101 = vmatpush1.msra.mxu0 0.0
      %7102 = vmatprep.subr.mxu0 0.0
      %7103 = vmatpush1.msra.mxu0 0.0
      %7104 = vmatprep.subr.mxu0 0.0
      %7105 = vmatpush1.msra.mxu0 0.0
      %7106 = vmatprep.subr.mxu0 0.0
      %7107 = vmatpush1.msra.mxu0 0.0
      %7108 = vmatprep.subr.mxu0 0.0
      %7109 = vmatpush1.msra.mxu0 0.0
      %7110 = vmatprep.subr.mxu0 0.0
      %7111 = vmatpush1.msra.mxu0 0.0
      %7112 = vmatprep.subr.mxu0 0.0
      %7113 = vmatpush1.msra.mxu0 0.0
      %7114 = vmatprep.subr.mxu0 0.0
      %7115 = vmatpush1.msra.mxu0 0.0
      %7116 = vmatprep.subr.mxu0 0.0
      %7117 = vmatpush1.msra.mxu0 0.0
      %7118 = vmatprep.subr.mxu0 0.0
      %7119 = vmatpush1.msra.mxu0 0.0
      %7120 = vmatprep.subr.mxu0 0.0
      %7121 = vmatpush1.msra.mxu0 0.0
      %7122 = vmatprep.subr.mxu0 0.0
      %7123 = vmatpush1.msra.mxu0 0.0
      %7124 = vmatprep.subr.mxu0 0.0
      %7125 = vmatpush1.msra.mxu0 0.0
      %7126 = vmatprep.mubr.f32.mxu0 0.0
      %7127 = vmatmul.mubr.f32.gmra.mrb[0].mxu0 %v1081
      %v7128 = vpop.f32.mrb[0].mxu0
      %v7129 = vadd.f32 0.0, %v7128
      %v7130 = vpop.f32.mrb[0].mxu0
      %7131 = vmatprep.mubr.f32.mxu0 0.0
      %7132 = vmatmul.mubr.f32.gmra.mrb[0].mxu0 %v1084
      %v7133 = vpop.f32.mrb[0].mxu0
      %v7134 = vadd.f32 0.0, %v7133
      %v7135 = vpop.f32.mrb[0].mxu0
      %7136 = vmatprep.mubr.f32.mxu0 0.0
      %7137 = vmatmul.mubr.f32.gmra.mrb[0].mxu0 %v1087
      %v7138 = vpop.f32.mrb[0].mxu0
      %v7139 = vadd.f32 0.0, %v7138
      %v7140 = vpop.f32.mrb[0].mxu0
      %7141 = vmatprep.mubr.f32.mxu0 0.0
      %7142 = vmatmul.mubr.f32.gmra.mrb[0].mxu0 %v1090
      %v7143 = vpop.f32.mrb[0].mxu0
      %v7144 = vadd.f32 0.0, %v7143
      %v7145 = vpop.f32.mrb[0].mxu0
      %7146 = vdwg.mxu0
      %v7147 = vmul.f32 %v7129, 0.00024414063
      %v7148 = vmul.f32 %v7134, 0.00024414063
      %v7149 = vmul.f32 %v7139, 0.00024414063
      %v7150 = vmul.f32 %v7144, 0.00024414063
      %v7151 = vmax.f32 %v7147, 0.0
      %v7152 = vmax.f32 %v7148, 0.0
      %v7153 = vmax.f32 %v7149, 0.0
      %v7154 = vmax.f32 %v7150, 0.0
      %v7155 = vadd.f32 %v7151, 1e-05
      %v7156 = vadd.f32 %v7152, 1e-05
      %v7157 = vadd.f32 %v7153, 1e-05
      %v7158 = vadd.f32 %v7154, 1e-05
      %v7159 = vrsqrt.pop %v7155
      %v7160 = vrsqrt.pop %v7156
      %v7161 = vrsqrt.pop %v7157
      %v7162 = vrsqrt.pop %v7158
      %7164 = vset.pattern.permute.xlu0 0
      %7165 = vperm.xlu0 %7164, %v7159
      %v7166 = vpop.permute.xlu0 %7165
      %7169 = vset.pattern.permute.xlu0 0
      %7170 = vperm.xlu0 %7169, %v7160
      %v7171 = vpop.permute.xlu0 %7170
      %7174 = vset.pattern.permute.xlu0 0
      %7175 = vperm.xlu0 %7174, %v7161
      %v7176 = vpop.permute.xlu0 %7175
      %7179 = vset.pattern.permute.xlu0 0
      %7180 = vperm.xlu0 %7179, %v7162
      %v7181 = vpop.permute.xlu0 %7180
      %v7183 = vmul.f32 %v6962, %v7166
      %v7184 = vmul.f32 %v6963, %v7166
      %v7185 = vmul.f32 %v6964, %v7166
      %v7186 = vmul.f32 %v6965, %v7166
      %v7187 = vmul.f32 %v6966, %v7166
      %v7188 = vmul.f32 %v6967, %v7166
      %v7189 = vmul.f32 %v6968, %v7166
      %v7190 = vmul.f32 %v6969, %v7166
      %v7191 = vmul.f32 %v6970, %v7171
      %v7192 = vmul.f32 %v6971, %v7171
      %v7193 = vmul.f32 %v6972, %v7171
      %v7194 = vmul.f32 %v6973, %v7171
      %v7195 = vmul.f32 %v6974, %v7171
      %v7196 = vmul.f32 %v6975, %v7171
      %v7197 = vmul.f32 %v6976, %v7171
      %v7198 = vmul.f32 %v6977, %v7171
      %v7199 = vmul.f32 %v6978, %v7176
      %v7200 = vmul.f32 %v6979, %v7176
      %v7201 = vmul.f32 %v6980, %v7176
      %v7202 = vmul.f32 %v6981, %v7176
      %v7203 = vmul.f32 %v6982, %v7176
      %v7204 = vmul.f32 %v6983, %v7176
      %v7205 = vmul.f32 %v6984, %v7176
      %v7206 = vmul.f32 %v6985, %v7176
      %v7207 = vmul.f32 %v6986, %v7181
      %v7208 = vmul.f32 %v6987, %v7181
      %v7209 = vmul.f32 %v6988, %v7181
      %v7210 = vmul.f32 %v6989, %v7181
      %v7211 = vmul.f32 %v6990, %v7181
      %v7212 = vmul.f32 %v6991, %v7181
      %v7213 = vmul.f32 %v6992, %v7181
      %v7214 = vmul.f32 %v6993, %v7181
      %v7215 = vld [vmem:[%s18] sm:$0xff]
      %v7216 = vld [vmem:[%s18 + $0x8] sm:$0xff]
      %v7217 = vld [vmem:[%s18 + $0x10] sm:$0xff]
      %v7218 = vld [vmem:[%s18 + $0x18] sm:$0xff]
      %7220 = vset.pattern.permute.xlu0 0
      %7221 = vperm.xlu0 %7220, %v7215
      %v7222 = vpop.permute.xlu0 %7221
      %7225 = vset.pattern.permute.xlu0 0
      %7226 = vperm.xlu0 %7225, %v7216
      %v7227 = vpop.permute.xlu0 %7226
      %7230 = vset.pattern.permute.xlu0 0
      %7231 = vperm.xlu0 %7230, %v7217
      %v7232 = vpop.permute.xlu0 %7231
      %7235 = vset.pattern.permute.xlu0 0
      %7236 = vperm.xlu0 %7235, %v7218
      %v7237 = vpop.permute.xlu0 %7236
      %v7239 = vmul.f32 %v7183, %v7222
      %v7240 = vmul.f32 %v7184, %v7222
      %v7241 = vmul.f32 %v7185, %v7222
      %v7242 = vmul.f32 %v7186, %v7222
      %v7243 = vmul.f32 %v7187, %v7222
      %v7244 = vmul.f32 %v7188, %v7222
      %v7245 = vmul.f32 %v7189, %v7222
      %v7246 = vmul.f32 %v7190, %v7222
      %v7247 = vmul.f32 %v7191, %v7227
      %v7248 = vmul.f32 %v7192, %v7227
      %v7249 = vmul.f32 %v7193, %v7227
      %v7250 = vmul.f32 %v7194, %v7227
      %v7251 = vmul.f32 %v7195, %v7227
      %v7252 = vmul.f32 %v7196, %v7227
      %v7253 = vmul.f32 %v7197, %v7227
      %v7254 = vmul.f32 %v7198, %v7227
      %v7255 = vmul.f32 %v7199, %v7232
      %v7256 = vmul.f32 %v7200, %v7232
      %v7257 = vmul.f32 %v7201, %v7232
      %v7258 = vmul.f32 %v7202, %v7232
      %v7259 = vmul.f32 %v7203, %v7232
      %v7260 = vmul.f32 %v7204, %v7232
      %v7261 = vmul.f32 %v7205, %v7232
      %v7262 = vmul.f32 %v7206, %v7232
      %v7263 = vmul.f32 %v7207, %v7237
      %v7264 = vmul.f32 %v7208, %v7237
      %v7265 = vmul.f32 %v7209, %v7237
      %v7266 = vmul.f32 %v7210, %v7237
      %v7267 = vmul.f32 %v7211, %v7237
      %v7268 = vmul.f32 %v7212, %v7237
      %v7269 = vmul.f32 %v7213, %v7237
      %v7270 = vmul.f32 %v7214, %v7237
      %v7271 = vld [vmem:[%s19] sm:$0xff]
      %v7272 = vld [vmem:[%s19 + $0x8] sm:$0xff]
      %v7273 = vld [vmem:[%s19 + $0x10] sm:$0xff]
      %v7274 = vld [vmem:[%s19 + $0x18] sm:$0xff]
      %7276 = vset.pattern.permute.xlu0 0
      %7277 = vperm.xlu0 %7276, %v7271
      %v7278 = vpop.permute.xlu0 %7277
      %7281 = vset.pattern.permute.xlu0 0
      %7282 = vperm.xlu0 %7281, %v7272
      %v7283 = vpop.permute.xlu0 %7282
      %7286 = vset.pattern.permute.xlu0 0
      %7287 = vperm.xlu0 %7286, %v7273
      %v7288 = vpop.permute.xlu0 %7287
      %7291 = vset.pattern.permute.xlu0 0
      %7292 = vperm.xlu0 %7291, %v7274
      %v7293 = vpop.permute.xlu0 %7292
      %v7295 = vadd.f32 %v7239, %v7278
      %v7296 = vadd.f32 %v7240, %v7278
      %v7297 = vadd.f32 %v7241, %v7278
      %v7298 = vadd.f32 %v7242, %v7278
      %v7299 = vadd.f32 %v7243, %v7278
      %v7300 = vadd.f32 %v7244, %v7278
      %v7301 = vadd.f32 %v7245, %v7278
      %v7302 = vadd.f32 %v7246, %v7278
      %v7303 = vadd.f32 %v7247, %v7283
      %v7304 = vadd.f32 %v7248, %v7283
      %v7305 = vadd.f32 %v7249, %v7283
      %v7306 = vadd.f32 %v7250, %v7283
      %v7307 = vadd.f32 %v7251, %v7283
      %v7308 = vadd.f32 %v7252, %v7283
      %v7309 = vadd.f32 %v7253, %v7283
      %v7310 = vadd.f32 %v7254, %v7283
      %v7311 = vadd.f32 %v7255, %v7288
      %v7312 = vadd.f32 %v7256, %v7288
      %v7313 = vadd.f32 %v7257, %v7288
      %v7314 = vadd.f32 %v7258, %v7288
      %v7315 = vadd.f32 %v7259, %v7288
      %v7316 = vadd.f32 %v7260, %v7288
      %v7317 = vadd.f32 %v7261, %v7288
      %v7318 = vadd.f32 %v7262, %v7288
      %v7319 = vadd.f32 %v7263, %v7293
      %v7320 = vadd.f32 %v7264, %v7293
      %v7321 = vadd.f32 %v7265, %v7293
      %v7322 = vadd.f32 %v7266, %v7293
      %v7323 = vadd.f32 %v7267, %v7293
      %v7324 = vadd.f32 %v7268, %v7293
      %v7325 = vadd.f32 %v7269, %v7293
      %v7326 = vadd.f32 %v7270, %v7293
      %v7327 = vmul.f32 %v7295, 0.5
      %v7328 = vmul.f32 %v7296, 0.5
      %v7329 = vmul.f32 %v7297, 0.5
      %v7330 = vmul.f32 %v7298, 0.5
      %v7331 = vmul.f32 %v7299, 0.5
      %v7332 = vmul.f32 %v7300, 0.5
      %v7333 = vmul.f32 %v7301, 0.5
      %v7334 = vmul.f32 %v7302, 0.5
      %v7335 = vmul.f32 %v7303, 0.5
      %v7336 = vmul.f32 %v7304, 0.5
      %v7337 = vmul.f32 %v7305, 0.5
      %v7338 = vmul.f32 %v7306, 0.5
      %v7339 = vmul.f32 %v7307, 0.5
      %v7340 = vmul.f32 %v7308, 0.5
      %v7341 = vmul.f32 %v7309, 0.5
      %v7342 = vmul.f32 %v7310, 0.5
      %v7343 = vmul.f32 %v7311, 0.5
      %v7344 = vmul.f32 %v7312, 0.5
      %v7345 = vmul.f32 %v7313, 0.5
      %v7346 = vmul.f32 %v7314, 0.5
      %v7347 = vmul.f32 %v7315, 0.5
      %v7348 = vmul.f32 %v7316, 0.5
      %v7349 = vmul.f32 %v7317, 0.5
      %v7350 = vmul.f32 %v7318, 0.5
      %v7351 = vmul.f32 %v7319, 0.5
      %v7352 = vmul.f32 %v7320, 0.5
      %v7353 = vmul.f32 %v7321, 0.5
      %v7354 = vmul.f32 %v7322, 0.5
      %v7355 = vmul.f32 %v7323, 0.5
      %v7356 = vmul.f32 %v7324, 0.5
      %v7357 = vmul.f32 %v7325, 0.5
      %v7358 = vmul.f32 %v7326, 0.5
      %v7359 = vmul.f32 %v7295, 0.70710677
      %v7360 = vmul.f32 %v7296, 0.70710677
      %v7361 = vmul.f32 %v7297, 0.70710677
      %v7362 = vmul.f32 %v7298, 0.70710677
      %v7363 = vmul.f32 %v7299, 0.70710677
      %v7364 = vmul.f32 %v7300, 0.70710677
      %v7365 = vmul.f32 %v7301, 0.70710677
      %v7366 = vmul.f32 %v7302, 0.70710677
      %v7367 = vmul.f32 %v7303, 0.70710677
      %v7368 = vmul.f32 %v7304, 0.70710677
      %v7369 = vmul.f32 %v7305, 0.70710677
      %v7370 = vmul.f32 %v7306, 0.70710677
      %v7371 = vmul.f32 %v7307, 0.70710677
      %v7372 = vmul.f32 %v7308, 0.70710677
      %v7373 = vmul.f32 %v7309, 0.70710677
      %v7374 = vmul.f32 %v7310, 0.70710677
      %v7375 = vmul.f32 %v7311, 0.70710677
      %v7376 = vmul.f32 %v7312, 0.70710677
      %v7377 = vmul.f32 %v7313, 0.70710677
      %v7378 = vmul.f32 %v7314, 0.70710677
      %v7379 = vmul.f32 %v7315, 0.70710677
      %v7380 = vmul.f32 %v7316, 0.70710677
      %v7381 = vmul.f32 %v7317, 0.70710677
      %v7382 = vmul.f32 %v7318, 0.70710677
      %v7383 = vmul.f32 %v7319, 0.70710677
      %v7384 = vmul.f32 %v7320, 0.70710677
      %v7385 = vmul.f32 %v7321, 0.70710677
      %v7386 = vmul.f32 %v7322, 0.70710677
      %v7387 = vmul.f32 %v7323, 0.70710677
      %v7388 = vmul.f32 %v7324, 0.70710677
      %v7389 = vmul.f32 %v7325, 0.70710677
      %v7390 = vmul.f32 %v7326, 0.70710677
      %v7391 = verf.f32.pop %v7359
      %v7392 = verf.f32.pop %v7360
      %v7393 = verf.f32.pop %v7361
      %v7394 = verf.f32.pop %v7362
      %v7395 = verf.f32.pop %v7363
      %v7396 = verf.f32.pop %v7364
      %v7397 = verf.f32.pop %v7365
      %v7398 = verf.f32.pop %v7366
      %v7399 = verf.f32.pop %v7367
      %v7400 = verf.f32.pop %v7368
      %v7401 = verf.f32.pop %v7369
      %v7402 = verf.f32.pop %v7370
      %v7403 = verf.f32.pop %v7371
      %v7404 = verf.f32.pop %v7372
      %v7405 = verf.f32.pop %v7373
      %v7406 = verf.f32.pop %v7374
      %v7407 = verf.f32.pop %v7375
      %v7408 = verf.f32.pop %v7376
      %v7409 = verf.f32.pop %v7377
      %v7410 = verf.f32.pop %v7378
      %v7411 = verf.f32.pop %v7379
      %v7412 = verf.f32.pop %v7380
      %v7413 = verf.f32.pop %v7381
      %v7414 = verf.f32.pop %v7382
      %v7415 = verf.f32.pop %v7383
      %v7416 = verf.f32.pop %v7384
      %v7417 = verf.f32.pop %v7385
      %v7418 = verf.f32.pop %v7386
      %v7419 = verf.f32.pop %v7387
      %v7420 = verf.f32.pop %v7388
      %v7421 = verf.f32.pop %v7389
      %v7422 = verf.f32.pop %v7390
      %v7423 = vadd.f32 %v7391, 1.0
      %v7424 = vadd.f32 %v7392, 1.0
      %v7425 = vadd.f32 %v7393, 1.0
      %v7426 = vadd.f32 %v7394, 1.0
      %v7427 = vadd.f32 %v7395, 1.0
      %v7428 = vadd.f32 %v7396, 1.0
      %v7429 = vadd.f32 %v7397, 1.0
      %v7430 = vadd.f32 %v7398, 1.0
      %v7431 = vadd.f32 %v7399, 1.0
      %v7432 = vadd.f32 %v7400, 1.0
      %v7433 = vadd.f32 %v7401, 1.0
      %v7434 = vadd.f32 %v7402, 1.0
      %v7435 = vadd.f32 %v7403, 1.0
      %v7436 = vadd.f32 %v7404, 1.0
      %v7437 = vadd.f32 %v7405, 1.0
      %v7438 = vadd.f32 %v7406, 1.0
      %v7439 = vadd.f32 %v7407, 1.0
      %v7440 = vadd.f32 %v7408, 1.0
      %v7441 = vadd.f32 %v7409, 1.0
      %v7442 = vadd.f32 %v7410, 1.0
      %v7443 = vadd.f32 %v7411, 1.0
      %v7444 = vadd.f32 %v7412, 1.0
      %v7445 = vadd.f32 %v7413, 1.0
      %v7446 = vadd.f32 %v7414, 1.0
      %v7447 = vadd.f32 %v7415, 1.0
      %v7448 = vadd.f32 %v7416, 1.0
      %v7449 = vadd.f32 %v7417, 1.0
      %v7450 = vadd.f32 %v7418, 1.0
      %v7451 = vadd.f32 %v7419, 1.0
      %v7452 = vadd.f32 %v7420, 1.0
      %v7453 = vadd.f32 %v7421, 1.0
      %v7454 = vadd.f32 %v7422, 1.0
      %v7455 = vmul.f32 %v7327, %v7423
      %v7456 = vmul.f32 %v7328, %v7424
      %v7457 = vmul.f32 %v7329, %v7425
      %v7458 = vmul.f32 %v7330, %v7426
      %v7459 = vmul.f32 %v7331, %v7427
      %v7460 = vmul.f32 %v7332, %v7428
      %v7461 = vmul.f32 %v7333, %v7429
      %v7462 = vmul.f32 %v7334, %v7430
      %v7463 = vmul.f32 %v7335, %v7431
      %v7464 = vmul.f32 %v7336, %v7432
      %v7465 = vmul.f32 %v7337, %v7433
      %v7466 = vmul.f32 %v7338, %v7434
      %v7467 = vmul.f32 %v7339, %v7435
      %v7468 = vmul.f32 %v7340, %v7436
      %v7469 = vmul.f32 %v7341, %v7437
      %v7470 = vmul.f32 %v7342, %v7438
      %v7471 = vmul.f32 %v7343, %v7439
      %v7472 = vmul.f32 %v7344, %v7440
      %v7473 = vmul.f32 %v7345, %v7441
      %v7474 = vmul.f32 %v7346, %v7442
      %v7475 = vmul.f32 %v7347, %v7443
      %v7476 = vmul.f32 %v7348, %v7444
      %v7477 = vmul.f32 %v7349, %v7445
      %v7478 = vmul.f32 %v7350, %v7446
      %v7479 = vmul.f32 %v7351, %v7447
      %v7480 = vmul.f32 %v7352, %v7448
      %v7481 = vmul.f32 %v7353, %v7449
      %v7482 = vmul.f32 %v7354, %v7450
      %v7483 = vmul.f32 %v7355, %v7451
      %v7484 = vmul.f32 %v7356, %v7452
      %v7485 = vmul.f32 %v7357, %v7453
      %v7486 = vmul.f32 %v7358, %v7454
      %7519 = vrot.lane.b32.xlu0 %v7455, 33
      %v7520 = vpop.permute.xlu0 %7519
      %7521 = vrot.lane.b32.xlu0 %v7456, 33
      %v7522 = vpop.permute.xlu0 %7521
      %7523 = vrot.lane.b32.xlu0 %v7457, 33
      %v7524 = vpop.permute.xlu0 %7523
      %7525 = vrot.lane.b32.xlu0 %v7458, 33
      %v7526 = vpop.permute.xlu0 %7525
      %7527 = vrot.lane.b32.xlu0 %v7459, 33
      %v7528 = vpop.permute.xlu0 %7527
      %7529 = vrot.lane.b32.xlu0 %v7460, 33
      %v7530 = vpop.permute.xlu0 %7529
      %7531 = vrot.lane.b32.xlu0 %v7461, 33
      %v7532 = vpop.permute.xlu0 %7531
      %7533 = vrot.lane.b32.xlu0 %v7462, 33
      %v7534 = vpop.permute.xlu0 %7533
      %7535 = vrot.lane.b32.xlu0 %v7463, 33
      %v7536 = vpop.permute.xlu0 %7535
      %7537 = vrot.lane.b32.xlu0 %v7464, 33
      %v7538 = vpop.permute.xlu0 %7537
      %7539 = vrot.lane.b32.xlu0 %v7465, 33
      %v7540 = vpop.permute.xlu0 %7539
      %7541 = vrot.lane.b32.xlu0 %v7466, 33
      %v7542 = vpop.permute.xlu0 %7541
      %7543 = vrot.lane.b32.xlu0 %v7467, 33
      %v7544 = vpop.permute.xlu0 %7543
      %7545 = vrot.lane.b32.xlu0 %v7468, 33
      %v7546 = vpop.permute.xlu0 %7545
      %7547 = vrot.lane.b32.xlu0 %v7469, 33
      %v7548 = vpop.permute.xlu0 %7547
      %7549 = vrot.lane.b32.xlu0 %v7470, 33
      %v7550 = vpop.permute.xlu0 %7549
      %7551 = vrot.lane.b32.xlu0 %v7471, 33
      %v7552 = vpop.permute.xlu0 %7551
      %7553 = vrot.lane.b32.xlu0 %v7472, 33
      %v7554 = vpop.permute.xlu0 %7553
      %7555 = vrot.lane.b32.xlu0 %v7473, 33
      %v7556 = vpop.permute.xlu0 %7555
      %7557 = vrot.lane.b32.xlu0 %v7474, 33
      %v7558 = vpop.permute.xlu0 %7557
      %7559 = vrot.lane.b32.xlu0 %v7475, 33
      %v7560 = vpop.permute.xlu0 %7559
      %7561 = vrot.lane.b32.xlu0 %v7476, 33
      %v7562 = vpop.permute.xlu0 %7561
      %7563 = vrot.lane.b32.xlu0 %v7477, 33
      %v7564 = vpop.permute.xlu0 %7563
      %7565 = vrot.lane.b32.xlu0 %v7478, 33
      %v7566 = vpop.permute.xlu0 %7565
      %7567 = vrot.lane.b32.xlu0 %v7479, 33
      %v7568 = vpop.permute.xlu0 %7567
      %7569 = vrot.lane.b32.xlu0 %v7480, 33
      %v7570 = vpop.permute.xlu0 %7569
      %7571 = vrot.lane.b32.xlu0 %v7481, 33
      %v7572 = vpop.permute.xlu0 %7571
      %7573 = vrot.lane.b32.xlu0 %v7482, 33
      %v7574 = vpop.permute.xlu0 %7573
      %7575 = vrot.lane.b32.xlu0 %v7483, 33
      %v7576 = vpop.permute.xlu0 %7575
      %7577 = vrot.lane.b32.xlu0 %v7484, 33
      %v7578 = vpop.permute.xlu0 %7577
      %7579 = vrot.lane.b32.xlu0 %v7485, 33
      %v7580 = vpop.permute.xlu0 %7579
      %7581 = vrot.lane.b32.xlu0 %v7486, 33
      %v7582 = vpop.permute.xlu0 %7581
      %v7583 = vsel %vm4924, %v7520, %v7522
      %v7584 = vsel %vm4924, %v7522, %v7524
      %v7585 = vsel %vm4924, %v7524, %v7526
      %v7586 = vsel %vm4924, %v7526, %v7528
      %v7587 = vsel %vm4924, %v7528, %v7530
      %v7588 = vsel %vm4924, %v7530, %v7532
      %v7589 = vsel %vm4924, %v7532, %v7534
      %v7590 = vsel %vm4924, %v7536, %v7538
      %v7591 = vsel %vm4924, %v7538, %v7540
      %v7592 = vsel %vm4924, %v7540, %v7542
      %v7593 = vsel %vm4924, %v7542, %v7544
      %v7594 = vsel %vm4924, %v7544, %v7546
      %v7595 = vsel %vm4924, %v7546, %v7548
      %v7596 = vsel %vm4924, %v7548, %v7550
      %v7597 = vsel %vm4924, %v7552, %v7554
      %v7598 = vsel %vm4924, %v7554, %v7556
      %v7599 = vsel %vm4924, %v7556, %v7558
      %v7600 = vsel %vm4924, %v7558, %v7560
      %v7601 = vsel %vm4924, %v7560, %v7562
      %v7602 = vsel %vm4924, %v7562, %v7564
      %v7603 = vsel %vm4924, %v7564, %v7566
      %v7604 = vsel %vm4924, %v7568, %v7570
      %v7605 = vsel %vm4924, %v7570, %v7572
      %v7606 = vsel %vm4924, %v7572, %v7574
      %v7607 = vsel %vm4924, %v7574, %v7576
      %v7608 = vsel %vm4924, %v7576, %v7578
      %v7609 = vsel %vm4924, %v7578, %v7580
      %v7610 = vsel %vm4924, %v7580, %v7582
      %v7643 = vsel %vm4924, 0.0, %v7520
      %v7644 = vsel %vm4924, 0.0, %v7536
      %v7645 = vsel %vm4924, 0.0, %v7552
      %v7646 = vsel %vm4924, 0.0, %v7568
      %v7647 = vmul.f32 %v7643, %v4796
      %v7648 = vmul.f32 %v7583, %v4797
      %v7649 = vmul.f32 %v7584, %v4798
      %v7650 = vmul.f32 %v7585, %v4799
      %v7651 = vmul.f32 %v7586, %v4800
      %v7652 = vmul.f32 %v7587, %v4801
      %v7653 = vmul.f32 %v7588, %v4802
      %v7654 = vmul.f32 %v7589, %v4803
      %v7655 = vmul.f32 %v7644, %v4796
      %v7656 = vmul.f32 %v7590, %v4797
      %v7657 = vmul.f32 %v7591, %v4798
      %v7658 = vmul.f32 %v7592, %v4799
      %v7659 = vmul.f32 %v7593, %v4800
      %v7660 = vmul.f32 %v7594, %v4801
      %v7661 = vmul.f32 %v7595, %v4802
      %v7662 = vmul.f32 %v7596, %v4803
      %v7663 = vmul.f32 %v7645, %v4796
      %v7664 = vmul.f32 %v7597, %v4797
      %v7665 = vmul.f32 %v7598, %v4798
      %v7666 = vmul.f32 %v7599, %v4799
      %v7667 = vmul.f32 %v7600, %v4800
      %v7668 = vmul.f32 %v7601, %v4801
      %v7669 = vmul.f32 %v7602, %v4802
      %v7670 = vmul.f32 %v7603, %v4803
      %v7671 = vmul.f32 %v7646, %v4796
      %v7672 = vmul.f32 %v7604, %v4797
      %v7673 = vmul.f32 %v7605, %v4798
      %v7674 = vmul.f32 %v7606, %v4799
      %v7675 = vmul.f32 %v7607, %v4800
      %v7676 = vmul.f32 %v7608, %v4801
      %v7677 = vmul.f32 %v7609, %v4802
      %v7678 = vmul.f32 %v7610, %v4803
      %7679 = vrot.lane.b32.xlu0 %v7455, 32
      %v7680 = vpop.permute.xlu0 %7679
      %7681 = vrot.lane.b32.xlu0 %v7456, 32
      %v7682 = vpop.permute.xlu0 %7681
      %7683 = vrot.lane.b32.xlu0 %v7457, 32
      %v7684 = vpop.permute.xlu0 %7683
      %7685 = vrot.lane.b32.xlu0 %v7458, 32
      %v7686 = vpop.permute.xlu0 %7685
      %7687 = vrot.lane.b32.xlu0 %v7459, 32
      %v7688 = vpop.permute.xlu0 %7687
      %7689 = vrot.lane.b32.xlu0 %v7460, 32
      %v7690 = vpop.permute.xlu0 %7689
      %7691 = vrot.lane.b32.xlu0 %v7461, 32
      %v7692 = vpop.permute.xlu0 %7691
      %7693 = vrot.lane.b32.xlu0 %v7462, 32
      %v7694 = vpop.permute.xlu0 %7693
      %7695 = vrot.lane.b32.xlu0 %v7463, 32
      %v7696 = vpop.permute.xlu0 %7695
      %7697 = vrot.lane.b32.xlu0 %v7464, 32
      %v7698 = vpop.permute.xlu0 %7697
      %7699 = vrot.lane.b32.xlu0 %v7465, 32
      %v7700 = vpop.permute.xlu0 %7699
      %7701 = vrot.lane.b32.xlu0 %v7466, 32
      %v7702 = vpop.permute.xlu0 %7701
      %7703 = vrot.lane.b32.xlu0 %v7467, 32
      %v7704 = vpop.permute.xlu0 %7703
      %7705 = vrot.lane.b32.xlu0 %v7468, 32
      %v7706 = vpop.permute.xlu0 %7705
      %7707 = vrot.lane.b32.xlu0 %v7469, 32
      %v7708 = vpop.permute.xlu0 %7707
      %7709 = vrot.lane.b32.xlu0 %v7470, 32
      %v7710 = vpop.permute.xlu0 %7709
      %7711 = vrot.lane.b32.xlu0 %v7471, 32
      %v7712 = vpop.permute.xlu0 %7711
      %7713 = vrot.lane.b32.xlu0 %v7472, 32
      %v7714 = vpop.permute.xlu0 %7713
      %7715 = vrot.lane.b32.xlu0 %v7473, 32
      %v7716 = vpop.permute.xlu0 %7715
      %7717 = vrot.lane.b32.xlu0 %v7474, 32
      %v7718 = vpop.permute.xlu0 %7717
      %7719 = vrot.lane.b32.xlu0 %v7475, 32
      %v7720 = vpop.permute.xlu0 %7719
      %7721 = vrot.lane.b32.xlu0 %v7476, 32
      %v7722 = vpop.permute.xlu0 %7721
      %7723 = vrot.lane.b32.xlu0 %v7477, 32
      %v7724 = vpop.permute.xlu0 %7723
      %7725 = vrot.lane.b32.xlu0 %v7478, 32
      %v7726 = vpop.permute.xlu0 %7725
      %7727 = vrot.lane.b32.xlu0 %v7479, 32
      %v7728 = vpop.permute.xlu0 %7727
      %7729 = vrot.lane.b32.xlu0 %v7480, 32
      %v7730 = vpop.permute.xlu0 %7729
      %7731 = vrot.lane.b32.xlu0 %v7481, 32
      %v7732 = vpop.permute.xlu0 %7731
      %7733 = vrot.lane.b32.xlu0 %v7482, 32
      %v7734 = vpop.permute.xlu0 %7733
      %7735 = vrot.lane.b32.xlu0 %v7483, 32
      %v7736 = vpop.permute.xlu0 %7735
      %7737 = vrot.lane.b32.xlu0 %v7484, 32
      %v7738 = vpop.permute.xlu0 %7737
      %7739 = vrot.lane.b32.xlu0 %v7485, 32
      %v7740 = vpop.permute.xlu0 %7739
      %7741 = vrot.lane.b32.xlu0 %v7486, 32
      %v7742 = vpop.permute.xlu0 %7741
      %v7743 = vsel %vm1079, %v7680, %v7682
      %v7744 = vsel %vm1079, %v7682, %v7684
      %v7745 = vsel %vm1079, %v7684, %v7686
      %v7746 = vsel %vm1079, %v7686, %v7688
      %v7747 = vsel %vm1079, %v7688, %v7690
      %v7748 = vsel %vm1079, %v7690, %v7692
      %v7749 = vsel %vm1079, %v7692, %v7694
      %v7750 = vsel %vm1079, %v7696, %v7698
      %v7751 = vsel %vm1079, %v7698, %v7700
      %v7752 = vsel %vm1079, %v7700, %v7702
      %v7753 = vsel %vm1079, %v7702, %v7704
      %v7754 = vsel %vm1079, %v7704, %v7706
      %v7755 = vsel %vm1079, %v7706, %v7708
      %v7756 = vsel %vm1079, %v7708, %v7710
      %v7757 = vsel %vm1079, %v7712, %v7714
      %v7758 = vsel %vm1079, %v7714, %v7716
      %v7759 = vsel %vm1079, %v7716, %v7718
      %v7760 = vsel %vm1079, %v7718, %v7720
      %v7761 = vsel %vm1079, %v7720, %v7722
      %v7762 = vsel %vm1079, %v7722, %v7724
      %v7763 = vsel %vm1079, %v7724, %v7726
      %v7764 = vsel %vm1079, %v7728, %v7730
      %v7765 = vsel %vm1079, %v7730, %v7732
      %v7766 = vsel %vm1079, %v7732, %v7734
      %v7767 = vsel %vm1079, %v7734, %v7736
      %v7768 = vsel %vm1079, %v7736, %v7738
      %v7769 = vsel %vm1079, %v7738, %v7740
      %v7770 = vsel %vm1079, %v7740, %v7742
      %v7803 = vsel %vm1079, 0.0, %v7680
      %v7804 = vsel %vm1079, 0.0, %v7696
      %v7805 = vsel %vm1079, 0.0, %v7712
      %v7806 = vsel %vm1079, 0.0, %v7728
      %7807 = vrot.lane.b32.xlu0 %v7455, 31
      %v7808 = vpop.permute.xlu0 %7807
      %7809 = vrot.lane.b32.xlu0 %v7456, 31
      %v7810 = vpop.permute.xlu0 %7809
      %7811 = vrot.lane.b32.xlu0 %v7457, 31
      %v7812 = vpop.permute.xlu0 %7811
      %7813 = vrot.lane.b32.xlu0 %v7458, 31
      %v7814 = vpop.permute.xlu0 %7813
      %7815 = vrot.lane.b32.xlu0 %v7459, 31
      %v7816 = vpop.permute.xlu0 %7815
      %7817 = vrot.lane.b32.xlu0 %v7460, 31
      %v7818 = vpop.permute.xlu0 %7817
      %7819 = vrot.lane.b32.xlu0 %v7461, 31
      %v7820 = vpop.permute.xlu0 %7819
      %7821 = vrot.lane.b32.xlu0 %v7462, 31
      %v7822 = vpop.permute.xlu0 %7821
      %7823 = vrot.lane.b32.xlu0 %v7463, 31
      %v7824 = vpop.permute.xlu0 %7823
      %7825 = vrot.lane.b32.xlu0 %v7464, 31
      %v7826 = vpop.permute.xlu0 %7825
      %7827 = vrot.lane.b32.xlu0 %v7465, 31
      %v7828 = vpop.permute.xlu0 %7827
      %7829 = vrot.lane.b32.xlu0 %v7466, 31
      %v7830 = vpop.permute.xlu0 %7829
      %7831 = vrot.lane.b32.xlu0 %v7467, 31
      %v7832 = vpop.permute.xlu0 %7831
      %7833 = vrot.lane.b32.xlu0 %v7468, 31
      %v7834 = vpop.permute.xlu0 %7833
      %7835 = vrot.lane.b32.xlu0 %v7469, 31
      %v7836 = vpop.permute.xlu0 %7835
      %7837 = vrot.lane.b32.xlu0 %v7470, 31
      %v7838 = vpop.permute.xlu0 %7837
      %7839 = vrot.lane.b32.xlu0 %v7471, 31
      %v7840 = vpop.permute.xlu0 %7839
      %7841 = vrot.lane.b32.xlu0 %v7472, 31
      %v7842 = vpop.permute.xlu0 %7841
      %7843 = vrot.lane.b32.xlu0 %v7473, 31
      %v7844 = vpop.permute.xlu0 %7843
      %7845 = vrot.lane.b32.xlu0 %v7474, 31
      %v7846 = vpop.permute.xlu0 %7845
      %7847 = vrot.lane.b32.xlu0 %v7475, 31
      %v7848 = vpop.permute.xlu0 %7847
      %7849 = vrot.lane.b32.xlu0 %v7476, 31
      %v7850 = vpop.permute.xlu0 %7849
      %7851 = vrot.lane.b32.xlu0 %v7477, 31
      %v7852 = vpop.permute.xlu0 %7851
      %7853 = vrot.lane.b32.xlu0 %v7478, 31
      %v7854 = vpop.permute.xlu0 %7853
      %7855 = vrot.lane.b32.xlu0 %v7479, 31
      %v7856 = vpop.permute.xlu0 %7855
      %7857 = vrot.lane.b32.xlu0 %v7480, 31
      %v7858 = vpop.permute.xlu0 %7857
      %7859 = vrot.lane.b32.xlu0 %v7481, 31
      %v7860 = vpop.permute.xlu0 %7859
      %7861 = vrot.lane.b32.xlu0 %v7482, 31
      %v7862 = vpop.permute.xlu0 %7861
      %7863 = vrot.lane.b32.xlu0 %v7483, 31
      %v7864 = vpop.permute.xlu0 %7863
      %7865 = vrot.lane.b32.xlu0 %v7484, 31
      %v7866 = vpop.permute.xlu0 %7865
      %7867 = vrot.lane.b32.xlu0 %v7485, 31
      %v7868 = vpop.permute.xlu0 %7867
      %7869 = vrot.lane.b32.xlu0 %v7486, 31
      %v7870 = vpop.permute.xlu0 %7869
      %v7871 = vsel %vm5213, %v7808, %v7810
      %v7872 = vsel %vm5213, %v7810, %v7812
      %v7873 = vsel %vm5213, %v7812, %v7814
      %v7874 = vsel %vm5213, %v7814, %v7816
      %v7875 = vsel %vm5213, %v7816, %v7818
      %v7876 = vsel %vm5213, %v7818, %v7820
      %v7877 = vsel %vm5213, %v7820, %v7822
      %v7878 = vsel %vm5213, %v7824, %v7826
      %v7879 = vsel %vm5213, %v7826, %v7828
      %v7880 = vsel %vm5213, %v7828, %v7830
      %v7881 = vsel %vm5213, %v7830, %v7832
      %v7882 = vsel %vm5213, %v7832, %v7834
      %v7883 = vsel %vm5213, %v7834, %v7836
      %v7884 = vsel %vm5213, %v7836, %v7838
      %v7885 = vsel %vm5213, %v7840, %v7842
      %v7886 = vsel %vm5213, %v7842, %v7844
      %v7887 = vsel %vm5213, %v7844, %v7846
      %v7888 = vsel %vm5213, %v7846, %v7848
      %v7889 = vsel %vm5213, %v7848, %v7850
      %v7890 = vsel %vm5213, %v7850, %v7852
      %v7891 = vsel %vm5213, %v7852, %v7854
      %v7892 = vsel %vm5213, %v7856, %v7858
      %v7893 = vsel %vm5213, %v7858, %v7860
      %v7894 = vsel %vm5213, %v7860, %v7862
      %v7895 = vsel %vm5213, %v7862, %v7864
      %v7896 = vsel %vm5213, %v7864, %v7866
      %v7897 = vsel %vm5213, %v7866, %v7868
      %v7898 = vsel %vm5213, %v7868, %v7870
      %v7931 = vsel %vm5213, 0.0, %v7808
      %v7932 = vsel %vm5213, 0.0, %v7824
      %v7933 = vsel %vm5213, 0.0, %v7840
      %v7934 = vsel %vm5213, 0.0, %v7856
      %v7935 = vmul.f32 %v7931, %v4820
      %v7936 = vmul.f32 %v7871, %v4821
      %v7937 = vmul.f32 %v7872, %v4822
      %v7938 = vmul.f32 %v7873, %v4823
      %v7939 = vmul.f32 %v7874, %v4824
      %v7940 = vmul.f32 %v7875, %v4825
      %v7941 = vmul.f32 %v7876, %v4826
      %v7942 = vmul.f32 %v7877, %v4827
      %v7943 = vmul.f32 %v7932, %v4820
      %v7944 = vmul.f32 %v7878, %v4821
      %v7945 = vmul.f32 %v7879, %v4822
      %v7946 = vmul.f32 %v7880, %v4823
      %v7947 = vmul.f32 %v7881, %v4824
      %v7948 = vmul.f32 %v7882, %v4825
      %v7949 = vmul.f32 %v7883, %v4826
      %v7950 = vmul.f32 %v7884, %v4827
      %v7951 = vmul.f32 %v7933, %v4820
      %v7952 = vmul.f32 %v7885, %v4821
      %v7953 = vmul.f32 %v7886, %v4822
      %v7954 = vmul.f32 %v7887, %v4823
      %v7955 = vmul.f32 %v7888, %v4824
      %v7956 = vmul.f32 %v7889, %v4825
      %v7957 = vmul.f32 %v7890, %v4826
      %v7958 = vmul.f32 %v7891, %v4827
      %v7959 = vmul.f32 %v7934, %v4820
      %v7960 = vmul.f32 %v7892, %v4821
      %v7961 = vmul.f32 %v7893, %v4822
      %v7962 = vmul.f32 %v7894, %v4823
      %v7963 = vmul.f32 %v7895, %v4824
      %v7964 = vmul.f32 %v7896, %v4825
      %v7965 = vmul.f32 %v7897, %v4826
      %v7966 = vmul.f32 %v7898, %v4827
      %7967 = vrot.lane.b32.xlu0 %v7455, 1
      %v7968 = vpop.permute.xlu0 %7967
      %7969 = vrot.lane.b32.xlu0 %v7456, 1
      %v7970 = vpop.permute.xlu0 %7969
      %7971 = vrot.lane.b32.xlu0 %v7457, 1
      %v7972 = vpop.permute.xlu0 %7971
      %7973 = vrot.lane.b32.xlu0 %v7458, 1
      %v7974 = vpop.permute.xlu0 %7973
      %7975 = vrot.lane.b32.xlu0 %v7459, 1
      %v7976 = vpop.permute.xlu0 %7975
      %7977 = vrot.lane.b32.xlu0 %v7460, 1
      %v7978 = vpop.permute.xlu0 %7977
      %7979 = vrot.lane.b32.xlu0 %v7461, 1
      %v7980 = vpop.permute.xlu0 %7979
      %7981 = vrot.lane.b32.xlu0 %v7462, 1
      %v7982 = vpop.permute.xlu0 %7981
      %7983 = vrot.lane.b32.xlu0 %v7463, 1
      %v7984 = vpop.permute.xlu0 %7983
      %7985 = vrot.lane.b32.xlu0 %v7464, 1
      %v7986 = vpop.permute.xlu0 %7985
      %7987 = vrot.lane.b32.xlu0 %v7465, 1
      %v7988 = vpop.permute.xlu0 %7987
      %7989 = vrot.lane.b32.xlu0 %v7466, 1
      %v7990 = vpop.permute.xlu0 %7989
      %7991 = vrot.lane.b32.xlu0 %v7467, 1
      %v7992 = vpop.permute.xlu0 %7991
      %7993 = vrot.lane.b32.xlu0 %v7468, 1
      %v7994 = vpop.permute.xlu0 %7993
      %7995 = vrot.lane.b32.xlu0 %v7469, 1
      %v7996 = vpop.permute.xlu0 %7995
      %7997 = vrot.lane.b32.xlu0 %v7470, 1
      %v7998 = vpop.permute.xlu0 %7997
      %7999 = vrot.lane.b32.xlu0 %v7471, 1
      %v8000 = vpop.permute.xlu0 %7999
      %8001 = vrot.lane.b32.xlu0 %v7472, 1
      %v8002 = vpop.permute.xlu0 %8001
      %8003 = vrot.lane.b32.xlu0 %v7473, 1
      %v8004 = vpop.permute.xlu0 %8003
      %8005 = vrot.lane.b32.xlu0 %v7474, 1
      %v8006 = vpop.permute.xlu0 %8005
      %8007 = vrot.lane.b32.xlu0 %v7475, 1
      %v8008 = vpop.permute.xlu0 %8007
      %8009 = vrot.lane.b32.xlu0 %v7476, 1
      %v8010 = vpop.permute.xlu0 %8009
      %8011 = vrot.lane.b32.xlu0 %v7477, 1
      %v8012 = vpop.permute.xlu0 %8011
      %8013 = vrot.lane.b32.xlu0 %v7478, 1
      %v8014 = vpop.permute.xlu0 %8013
      %8015 = vrot.lane.b32.xlu0 %v7479, 1
      %v8016 = vpop.permute.xlu0 %8015
      %8017 = vrot.lane.b32.xlu0 %v7480, 1
      %v8018 = vpop.permute.xlu0 %8017
      %8019 = vrot.lane.b32.xlu0 %v7481, 1
      %v8020 = vpop.permute.xlu0 %8019
      %8021 = vrot.lane.b32.xlu0 %v7482, 1
      %v8022 = vpop.permute.xlu0 %8021
      %8023 = vrot.lane.b32.xlu0 %v7483, 1
      %v8024 = vpop.permute.xlu0 %8023
      %8025 = vrot.lane.b32.xlu0 %v7484, 1
      %v8026 = vpop.permute.xlu0 %8025
      %8027 = vrot.lane.b32.xlu0 %v7485, 1
      %v8028 = vpop.permute.xlu0 %8027
      %8029 = vrot.lane.b32.xlu0 %v7486, 1
      %v8030 = vpop.permute.xlu0 %8029
      %v8031 = vsel %vm910, %v7968, %v7970
      %v8032 = vsel %vm910, %v7970, %v7972
      %v8033 = vsel %vm910, %v7972, %v7974
      %v8034 = vsel %vm910, %v7974, %v7976
      %v8035 = vsel %vm910, %v7976, %v7978
      %v8036 = vsel %vm910, %v7978, %v7980
      %v8037 = vsel %vm910, %v7980, %v7982
      %v8038 = vsel %vm910, %v7984, %v7986
      %v8039 = vsel %vm910, %v7986, %v7988
      %v8040 = vsel %vm910, %v7988, %v7990
      %v8041 = vsel %vm910, %v7990, %v7992
      %v8042 = vsel %vm910, %v7992, %v7994
      %v8043 = vsel %vm910, %v7994, %v7996
      %v8044 = vsel %vm910, %v7996, %v7998
      %v8045 = vsel %vm910, %v8000, %v8002
      %v8046 = vsel %vm910, %v8002, %v8004
      %v8047 = vsel %vm910, %v8004, %v8006
      %v8048 = vsel %vm910, %v8006, %v8008
      %v8049 = vsel %vm910, %v8008, %v8010
      %v8050 = vsel %vm910, %v8010, %v8012
      %v8051 = vsel %vm910, %v8012, %v8014
      %v8052 = vsel %vm910, %v8016, %v8018
      %v8053 = vsel %vm910, %v8018, %v8020
      %v8054 = vsel %vm910, %v8020, %v8022
      %v8055 = vsel %vm910, %v8022, %v8024
      %v8056 = vsel %vm910, %v8024, %v8026
      %v8057 = vsel %vm910, %v8026, %v8028
      %v8058 = vsel %vm910, %v8028, %v8030
      %v8091 = vsel %vm910, 0.0, %v7968
      %v8092 = vsel %vm910, 0.0, %v7984
      %v8093 = vsel %vm910, 0.0, %v8000
      %v8094 = vsel %vm910, 0.0, %v8016
      %v8095 = vmul.f32 %v8091, %v4796
      %v8096 = vmul.f32 %v8031, %v4797
      %v8097 = vmul.f32 %v8032, %v4798
      %v8098 = vmul.f32 %v8033, %v4799
      %v8099 = vmul.f32 %v8034, %v4800
      %v8100 = vmul.f32 %v8035, %v4801
      %v8101 = vmul.f32 %v8036, %v4802
      %v8102 = vmul.f32 %v8037, %v4803
      %v8103 = vmul.f32 %v8092, %v4796
      %v8104 = vmul.f32 %v8038, %v4797
      %v8105 = vmul.f32 %v8039, %v4798
      %v8106 = vmul.f32 %v8040, %v4799
      %v8107 = vmul.f32 %v8041, %v4800
      %v8108 = vmul.f32 %v8042, %v4801
      %v8109 = vmul.f32 %v8043, %v4802
      %v8110 = vmul.f32 %v8044, %v4803
      %v8111 = vmul.f32 %v8093, %v4796
      %v8112 = vmul.f32 %v8045, %v4797
      %v8113 = vmul.f32 %v8046, %v4798
      %v8114 = vmul.f32 %v8047, %v4799
      %v8115 = vmul.f32 %v8048, %v4800
      %v8116 = vmul.f32 %v8049, %v4801
      %v8117 = vmul.f32 %v8050, %v4802
      %v8118 = vmul.f32 %v8051, %v4803
      %v8119 = vmul.f32 %v8094, %v4796
      %v8120 = vmul.f32 %v8052, %v4797
      %v8121 = vmul.f32 %v8053, %v4798
      %v8122 = vmul.f32 %v8054, %v4799
      %v8123 = vmul.f32 %v8055, %v4800
      %v8124 = vmul.f32 %v8056, %v4801
      %v8125 = vmul.f32 %v8057, %v4802
      %v8126 = vmul.f32 %v8058, %v4803
      %8127 = vrot.lane.b32.xlu0 %v7455, 127
      %v8128 = vpop.permute.xlu0 %8127
      %8129 = vrot.lane.b32.xlu0 %v7456, 127
      %v8130 = vpop.permute.xlu0 %8129
      %8131 = vrot.lane.b32.xlu0 %v7457, 127
      %v8132 = vpop.permute.xlu0 %8131
      %8133 = vrot.lane.b32.xlu0 %v7458, 127
      %v8134 = vpop.permute.xlu0 %8133
      %8135 = vrot.lane.b32.xlu0 %v7459, 127
      %v8136 = vpop.permute.xlu0 %8135
      %8137 = vrot.lane.b32.xlu0 %v7460, 127
      %v8138 = vpop.permute.xlu0 %8137
      %8139 = vrot.lane.b32.xlu0 %v7461, 127
      %v8140 = vpop.permute.xlu0 %8139
      %8141 = vrot.lane.b32.xlu0 %v7462, 127
      %v8142 = vpop.permute.xlu0 %8141
      %8143 = vrot.lane.b32.xlu0 %v7463, 127
      %v8144 = vpop.permute.xlu0 %8143
      %8145 = vrot.lane.b32.xlu0 %v7464, 127
      %v8146 = vpop.permute.xlu0 %8145
      %8147 = vrot.lane.b32.xlu0 %v7465, 127
      %v8148 = vpop.permute.xlu0 %8147
      %8149 = vrot.lane.b32.xlu0 %v7466, 127
      %v8150 = vpop.permute.xlu0 %8149
      %8151 = vrot.lane.b32.xlu0 %v7467, 127
      %v8152 = vpop.permute.xlu0 %8151
      %8153 = vrot.lane.b32.xlu0 %v7468, 127
      %v8154 = vpop.permute.xlu0 %8153
      %8155 = vrot.lane.b32.xlu0 %v7469, 127
      %v8156 = vpop.permute.xlu0 %8155
      %8157 = vrot.lane.b32.xlu0 %v7470, 127
      %v8158 = vpop.permute.xlu0 %8157
      %8159 = vrot.lane.b32.xlu0 %v7471, 127
      %v8160 = vpop.permute.xlu0 %8159
      %8161 = vrot.lane.b32.xlu0 %v7472, 127
      %v8162 = vpop.permute.xlu0 %8161
      %8163 = vrot.lane.b32.xlu0 %v7473, 127
      %v8164 = vpop.permute.xlu0 %8163
      %8165 = vrot.lane.b32.xlu0 %v7474, 127
      %v8166 = vpop.permute.xlu0 %8165
      %8167 = vrot.lane.b32.xlu0 %v7475, 127
      %v8168 = vpop.permute.xlu0 %8167
      %8169 = vrot.lane.b32.xlu0 %v7476, 127
      %v8170 = vpop.permute.xlu0 %8169
      %8171 = vrot.lane.b32.xlu0 %v7477, 127
      %v8172 = vpop.permute.xlu0 %8171
      %8173 = vrot.lane.b32.xlu0 %v7478, 127
      %v8174 = vpop.permute.xlu0 %8173
      %8175 = vrot.lane.b32.xlu0 %v7479, 127
      %v8176 = vpop.permute.xlu0 %8175
      %8177 = vrot.lane.b32.xlu0 %v7480, 127
      %v8178 = vpop.permute.xlu0 %8177
      %8179 = vrot.lane.b32.xlu0 %v7481, 127
      %v8180 = vpop.permute.xlu0 %8179
      %8181 = vrot.lane.b32.xlu0 %v7482, 127
      %v8182 = vpop.permute.xlu0 %8181
      %8183 = vrot.lane.b32.xlu0 %v7483, 127
      %v8184 = vpop.permute.xlu0 %8183
      %8185 = vrot.lane.b32.xlu0 %v7484, 127
      %v8186 = vpop.permute.xlu0 %8185
      %8187 = vrot.lane.b32.xlu0 %v7485, 127
      %v8188 = vpop.permute.xlu0 %8187
      %8189 = vrot.lane.b32.xlu0 %v7486, 127
      %v8190 = vpop.permute.xlu0 %8189
      %v8191 = vsel %vm2446, %v8128, %v8130
      %v8192 = vsel %vm2446, %v8130, %v8132
      %v8193 = vsel %vm2446, %v8132, %v8134
      %v8194 = vsel %vm2446, %v8134, %v8136
      %v8195 = vsel %vm2446, %v8136, %v8138
      %v8196 = vsel %vm2446, %v8138, %v8140
      %v8197 = vsel %vm2446, %v8140, %v8142
      %v8198 = vsel %vm2446, %v8144, %v8146
      %v8199 = vsel %vm2446, %v8146, %v8148
      %v8200 = vsel %vm2446, %v8148, %v8150
      %v8201 = vsel %vm2446, %v8150, %v8152
      %v8202 = vsel %vm2446, %v8152, %v8154
      %v8203 = vsel %vm2446, %v8154, %v8156
      %v8204 = vsel %vm2446, %v8156, %v8158
      %v8205 = vsel %vm2446, %v8160, %v8162
      %v8206 = vsel %vm2446, %v8162, %v8164
      %v8207 = vsel %vm2446, %v8164, %v8166
      %v8208 = vsel %vm2446, %v8166, %v8168
      %v8209 = vsel %vm2446, %v8168, %v8170
      %v8210 = vsel %vm2446, %v8170, %v8172
      %v8211 = vsel %vm2446, %v8172, %v8174
      %v8212 = vsel %vm2446, %v8176, %v8178
      %v8213 = vsel %vm2446, %v8178, %v8180
      %v8214 = vsel %vm2446, %v8180, %v8182
      %v8215 = vsel %vm2446, %v8182, %v8184
      %v8216 = vsel %vm2446, %v8184, %v8186
      %v8217 = vsel %vm2446, %v8186, %v8188
      %v8218 = vsel %vm2446, %v8188, %v8190
      %v8251 = vsel %vm2446, %v8142, 0.0
      %v8252 = vsel %vm2446, %v8158, 0.0
      %v8253 = vsel %vm2446, %v8174, 0.0
      %v8254 = vsel %vm2446, %v8190, 0.0
      %v8255 = vmul.f32 %v8191, %v4820
      %v8256 = vmul.f32 %v8192, %v4821
      %v8257 = vmul.f32 %v8193, %v4822
      %v8258 = vmul.f32 %v8194, %v4823
      %v8259 = vmul.f32 %v8195, %v4824
      %v8260 = vmul.f32 %v8196, %v4825
      %v8261 = vmul.f32 %v8197, %v4826
      %v8262 = vmul.f32 %v8251, %v4827
      %v8263 = vmul.f32 %v8198, %v4820
      %v8264 = vmul.f32 %v8199, %v4821
      %v8265 = vmul.f32 %v8200, %v4822
      %v8266 = vmul.f32 %v8201, %v4823
      %v8267 = vmul.f32 %v8202, %v4824
      %v8268 = vmul.f32 %v8203, %v4825
      %v8269 = vmul.f32 %v8204, %v4826
      %v8270 = vmul.f32 %v8252, %v4827
      %v8271 = vmul.f32 %v8205, %v4820
      %v8272 = vmul.f32 %v8206, %v4821
      %v8273 = vmul.f32 %v8207, %v4822
      %v8274 = vmul.f32 %v8208, %v4823
      %v8275 = vmul.f32 %v8209, %v4824
      %v8276 = vmul.f32 %v8210, %v4825
      %v8277 = vmul.f32 %v8211, %v4826
      %v8278 = vmul.f32 %v8253, %v4827
      %v8279 = vmul.f32 %v8212, %v4820
      %v8280 = vmul.f32 %v8213, %v4821
      %v8281 = vmul.f32 %v8214, %v4822
      %v8282 = vmul.f32 %v8215, %v4823
      %v8283 = vmul.f32 %v8216, %v4824
      %v8284 = vmul.f32 %v8217, %v4825
      %v8285 = vmul.f32 %v8218, %v4826
      %v8286 = vmul.f32 %v8254, %v4827
      %8287 = vrot.lane.b32.xlu0 %v7455, 97
      %v8288 = vpop.permute.xlu0 %8287
      %8289 = vrot.lane.b32.xlu0 %v7456, 97
      %v8290 = vpop.permute.xlu0 %8289
      %8291 = vrot.lane.b32.xlu0 %v7457, 97
      %v8292 = vpop.permute.xlu0 %8291
      %8293 = vrot.lane.b32.xlu0 %v7458, 97
      %v8294 = vpop.permute.xlu0 %8293
      %8295 = vrot.lane.b32.xlu0 %v7459, 97
      %v8296 = vpop.permute.xlu0 %8295
      %8297 = vrot.lane.b32.xlu0 %v7460, 97
      %v8298 = vpop.permute.xlu0 %8297
      %8299 = vrot.lane.b32.xlu0 %v7461, 97
      %v8300 = vpop.permute.xlu0 %8299
      %8301 = vrot.lane.b32.xlu0 %v7462, 97
      %v8302 = vpop.permute.xlu0 %8301
      %8303 = vrot.lane.b32.xlu0 %v7463, 97
      %v8304 = vpop.permute.xlu0 %8303
      %8305 = vrot.lane.b32.xlu0 %v7464, 97
      %v8306 = vpop.permute.xlu0 %8305
      %8307 = vrot.lane.b32.xlu0 %v7465, 97
      %v8308 = vpop.permute.xlu0 %8307
      %8309 = vrot.lane.b32.xlu0 %v7466, 97
      %v8310 = vpop.permute.xlu0 %8309
      %8311 = vrot.lane.b32.xlu0 %v7467, 97
      %v8312 = vpop.permute.xlu0 %8311
      %8313 = vrot.lane.b32.xlu0 %v7468, 97
      %v8314 = vpop.permute.xlu0 %8313
      %8315 = vrot.lane.b32.xlu0 %v7469, 97
      %v8316 = vpop.permute.xlu0 %8315
      %8317 = vrot.lane.b32.xlu0 %v7470, 97
      %v8318 = vpop.permute.xlu0 %8317
      %8319 = vrot.lane.b32.xlu0 %v7471, 97
      %v8320 = vpop.permute.xlu0 %8319
      %8321 = vrot.lane.b32.xlu0 %v7472, 97
      %v8322 = vpop.permute.xlu0 %8321
      %8323 = vrot.lane.b32.xlu0 %v7473, 97
      %v8324 = vpop.permute.xlu0 %8323
      %8325 = vrot.lane.b32.xlu0 %v7474, 97
      %v8326 = vpop.permute.xlu0 %8325
      %8327 = vrot.lane.b32.xlu0 %v7475, 97
      %v8328 = vpop.permute.xlu0 %8327
      %8329 = vrot.lane.b32.xlu0 %v7476, 97
      %v8330 = vpop.permute.xlu0 %8329
      %8331 = vrot.lane.b32.xlu0 %v7477, 97
      %v8332 = vpop.permute.xlu0 %8331
      %8333 = vrot.lane.b32.xlu0 %v7478, 97
      %v8334 = vpop.permute.xlu0 %8333
      %8335 = vrot.lane.b32.xlu0 %v7479, 97
      %v8336 = vpop.permute.xlu0 %8335
      %8337 = vrot.lane.b32.xlu0 %v7480, 97
      %v8338 = vpop.permute.xlu0 %8337
      %8339 = vrot.lane.b32.xlu0 %v7481, 97
      %v8340 = vpop.permute.xlu0 %8339
      %8341 = vrot.lane.b32.xlu0 %v7482, 97
      %v8342 = vpop.permute.xlu0 %8341
      %8343 = vrot.lane.b32.xlu0 %v7483, 97
      %v8344 = vpop.permute.xlu0 %8343
      %8345 = vrot.lane.b32.xlu0 %v7484, 97
      %v8346 = vpop.permute.xlu0 %8345
      %8347 = vrot.lane.b32.xlu0 %v7485, 97
      %v8348 = vpop.permute.xlu0 %8347
      %8349 = vrot.lane.b32.xlu0 %v7486, 97
      %v8350 = vpop.permute.xlu0 %8349
      %v8351 = vsel %vm5694, %v8288, %v8290
      %v8352 = vsel %vm5694, %v8290, %v8292
      %v8353 = vsel %vm5694, %v8292, %v8294
      %v8354 = vsel %vm5694, %v8294, %v8296
      %v8355 = vsel %vm5694, %v8296, %v8298
      %v8356 = vsel %vm5694, %v8298, %v8300
      %v8357 = vsel %vm5694, %v8300, %v8302
      %v8358 = vsel %vm5694, %v8304, %v8306
      %v8359 = vsel %vm5694, %v8306, %v8308
      %v8360 = vsel %vm5694, %v8308, %v8310
      %v8361 = vsel %vm5694, %v8310, %v8312
      %v8362 = vsel %vm5694, %v8312, %v8314
      %v8363 = vsel %vm5694, %v8314, %v8316
      %v8364 = vsel %vm5694, %v8316, %v8318
      %v8365 = vsel %vm5694, %v8320, %v8322
      %v8366 = vsel %vm5694, %v8322, %v8324
      %v8367 = vsel %vm5694, %v8324, %v8326
      %v8368 = vsel %vm5694, %v8326, %v8328
      %v8369 = vsel %vm5694, %v8328, %v8330
      %v8370 = vsel %vm5694, %v8330, %v8332
      %v8371 = vsel %vm5694, %v8332, %v8334
      %v8372 = vsel %vm5694, %v8336, %v8338
      %v8373 = vsel %vm5694, %v8338, %v8340
      %v8374 = vsel %vm5694, %v8340, %v8342
      %v8375 = vsel %vm5694, %v8342, %v8344
      %v8376 = vsel %vm5694, %v8344, %v8346
      %v8377 = vsel %vm5694, %v8346, %v8348
      %v8378 = vsel %vm5694, %v8348, %v8350
      %v8411 = vsel %vm5694, %v8302, 0.0
      %v8412 = vsel %vm5694, %v8318, 0.0
      %v8413 = vsel %vm5694, %v8334, 0.0
      %v8414 = vsel %vm5694, %v8350, 0.0
      %v8415 = vmul.f32 %v8351, %v4796
      %v8416 = vmul.f32 %v8352, %v4797
      %v8417 = vmul.f32 %v8353, %v4798
      %v8418 = vmul.f32 %v8354, %v4799
      %v8419 = vmul.f32 %v8355, %v4800
      %v8420 = vmul.f32 %v8356, %v4801
      %v8421 = vmul.f32 %v8357, %v4802
      %v8422 = vmul.f32 %v8411, %v4803
      %v8423 = vmul.f32 %v8358, %v4796
      %v8424 = vmul.f32 %v8359, %v4797
      %v8425 = vmul.f32 %v8360, %v4798
      %v8426 = vmul.f32 %v8361, %v4799
      %v8427 = vmul.f32 %v8362, %v4800
      %v8428 = vmul.f32 %v8363, %v4801
      %v8429 = vmul.f32 %v8364, %v4802
      %v8430 = vmul.f32 %v8412, %v4803
      %v8431 = vmul.f32 %v8365, %v4796
      %v8432 = vmul.f32 %v8366, %v4797
      %v8433 = vmul.f32 %v8367, %v4798
      %v8434 = vmul.f32 %v8368, %v4799
      %v8435 = vmul.f32 %v8369, %v4800
      %v8436 = vmul.f32 %v8370, %v4801
      %v8437 = vmul.f32 %v8371, %v4802
      %v8438 = vmul.f32 %v8413, %v4803
      %v8439 = vmul.f32 %v8372, %v4796
      %v8440 = vmul.f32 %v8373, %v4797
      %v8441 = vmul.f32 %v8374, %v4798
      %v8442 = vmul.f32 %v8375, %v4799
      %v8443 = vmul.f32 %v8376, %v4800
      %v8444 = vmul.f32 %v8377, %v4801
      %v8445 = vmul.f32 %v8378, %v4802
      %v8446 = vmul.f32 %v8414, %v4803
      %8447 = vrot.lane.b32.xlu0 %v7455, 96
      %v8448 = vpop.permute.xlu0 %8447
      %8449 = vrot.lane.b32.xlu0 %v7456, 96
      %v8450 = vpop.permute.xlu0 %8449
      %8451 = vrot.lane.b32.xlu0 %v7457, 96
      %v8452 = vpop.permute.xlu0 %8451
      %8453 = vrot.lane.b32.xlu0 %v7458, 96
      %v8454 = vpop.permute.xlu0 %8453
      %8455 = vrot.lane.b32.xlu0 %v7459, 96
      %v8456 = vpop.permute.xlu0 %8455
      %8457 = vrot.lane.b32.xlu0 %v7460, 96
      %v8458 = vpop.permute.xlu0 %8457
      %8459 = vrot.lane.b32.xlu0 %v7461, 96
      %v8460 = vpop.permute.xlu0 %8459
      %8461 = vrot.lane.b32.xlu0 %v7462, 96
      %v8462 = vpop.permute.xlu0 %8461
      %8463 = vrot.lane.b32.xlu0 %v7463, 96
      %v8464 = vpop.permute.xlu0 %8463
      %8465 = vrot.lane.b32.xlu0 %v7464, 96
      %v8466 = vpop.permute.xlu0 %8465
      %8467 = vrot.lane.b32.xlu0 %v7465, 96
      %v8468 = vpop.permute.xlu0 %8467
      %8469 = vrot.lane.b32.xlu0 %v7466, 96
      %v8470 = vpop.permute.xlu0 %8469
      %8471 = vrot.lane.b32.xlu0 %v7467, 96
      %v8472 = vpop.permute.xlu0 %8471
      %8473 = vrot.lane.b32.xlu0 %v7468, 96
      %v8474 = vpop.permute.xlu0 %8473
      %8475 = vrot.lane.b32.xlu0 %v7469, 96
      %v8476 = vpop.permute.xlu0 %8475
      %8477 = vrot.lane.b32.xlu0 %v7470, 96
      %v8478 = vpop.permute.xlu0 %8477
      %8479 = vrot.lane.b32.xlu0 %v7471, 96
      %v8480 = vpop.permute.xlu0 %8479
      %8481 = vrot.lane.b32.xlu0 %v7472, 96
      %v8482 = vpop.permute.xlu0 %8481
      %8483 = vrot.lane.b32.xlu0 %v7473, 96
      %v8484 = vpop.permute.xlu0 %8483
      %8485 = vrot.lane.b32.xlu0 %v7474, 96
      %v8486 = vpop.permute.xlu0 %8485
      %8487 = vrot.lane.b32.xlu0 %v7475, 96
      %v8488 = vpop.permute.xlu0 %8487
      %8489 = vrot.lane.b32.xlu0 %v7476, 96
      %v8490 = vpop.permute.xlu0 %8489
      %8491 = vrot.lane.b32.xlu0 %v7477, 96
      %v8492 = vpop.permute.xlu0 %8491
      %8493 = vrot.lane.b32.xlu0 %v7478, 96
      %v8494 = vpop.permute.xlu0 %8493
      %8495 = vrot.lane.b32.xlu0 %v7479, 96
      %v8496 = vpop.permute.xlu0 %8495
      %8497 = vrot.lane.b32.xlu0 %v7480, 96
      %v8498 = vpop.permute.xlu0 %8497
      %8499 = vrot.lane.b32.xlu0 %v7481, 96
      %v8500 = vpop.permute.xlu0 %8499
      %8501 = vrot.lane.b32.xlu0 %v7482, 96
      %v8502 = vpop.permute.xlu0 %8501
      %8503 = vrot.lane.b32.xlu0 %v7483, 96
      %v8504 = vpop.permute.xlu0 %8503
      %8505 = vrot.lane.b32.xlu0 %v7484, 96
      %v8506 = vpop.permute.xlu0 %8505
      %8507 = vrot.lane.b32.xlu0 %v7485, 96
      %v8508 = vpop.permute.xlu0 %8507
      %8509 = vrot.lane.b32.xlu0 %v7486, 96
      %v8510 = vpop.permute.xlu0 %8509
      %v8511 = vsel %vm5855, %v8448, %v8450
      %v8512 = vsel %vm5855, %v8450, %v8452
      %v8513 = vsel %vm5855, %v8452, %v8454
      %v8514 = vsel %vm5855, %v8454, %v8456
      %v8515 = vsel %vm5855, %v8456, %v8458
      %v8516 = vsel %vm5855, %v8458, %v8460
      %v8517 = vsel %vm5855, %v8460, %v8462
      %v8518 = vsel %vm5855, %v8464, %v8466
      %v8519 = vsel %vm5855, %v8466, %v8468
      %v8520 = vsel %vm5855, %v8468, %v8470
      %v8521 = vsel %vm5855, %v8470, %v8472
      %v8522 = vsel %vm5855, %v8472, %v8474
      %v8523 = vsel %vm5855, %v8474, %v8476
      %v8524 = vsel %vm5855, %v8476, %v8478
      %v8525 = vsel %vm5855, %v8480, %v8482
      %v8526 = vsel %vm5855, %v8482, %v8484
      %v8527 = vsel %vm5855, %v8484, %v8486
      %v8528 = vsel %vm5855, %v8486, %v8488
      %v8529 = vsel %vm5855, %v8488, %v8490
      %v8530 = vsel %vm5855, %v8490, %v8492
      %v8531 = vsel %vm5855, %v8492, %v8494
      %v8532 = vsel %vm5855, %v8496, %v8498
      %v8533 = vsel %vm5855, %v8498, %v8500
      %v8534 = vsel %vm5855, %v8500, %v8502
      %v8535 = vsel %vm5855, %v8502, %v8504
      %v8536 = vsel %vm5855, %v8504, %v8506
      %v8537 = vsel %vm5855, %v8506, %v8508
      %v8538 = vsel %vm5855, %v8508, %v8510
      %v8571 = vsel %vm5855, %v8462, 0.0
      %v8572 = vsel %vm5855, %v8478, 0.0
      %v8573 = vsel %vm5855, %v8494, 0.0
      %v8574 = vsel %vm5855, %v8510, 0.0
      %8575 = vrot.lane.b32.xlu0 %v7455, 95
      %v8576 = vpop.permute.xlu0 %8575
      %8577 = vrot.lane.b32.xlu0 %v7456, 95
      %v8578 = vpop.permute.xlu0 %8577
      %8579 = vrot.lane.b32.xlu0 %v7457, 95
      %v8580 = vpop.permute.xlu0 %8579
      %8581 = vrot.lane.b32.xlu0 %v7458, 95
      %v8582 = vpop.permute.xlu0 %8581
      %8583 = vrot.lane.b32.xlu0 %v7459, 95
      %v8584 = vpop.permute.xlu0 %8583
      %8585 = vrot.lane.b32.xlu0 %v7460, 95
      %v8586 = vpop.permute.xlu0 %8585
      %8587 = vrot.lane.b32.xlu0 %v7461, 95
      %v8588 = vpop.permute.xlu0 %8587
      %8589 = vrot.lane.b32.xlu0 %v7462, 95
      %v8590 = vpop.permute.xlu0 %8589
      %8591 = vrot.lane.b32.xlu0 %v7463, 95
      %v8592 = vpop.permute.xlu0 %8591
      %8593 = vrot.lane.b32.xlu0 %v7464, 95
      %v8594 = vpop.permute.xlu0 %8593
      %8595 = vrot.lane.b32.xlu0 %v7465, 95
      %v8596 = vpop.permute.xlu0 %8595
      %8597 = vrot.lane.b32.xlu0 %v7466, 95
      %v8598 = vpop.permute.xlu0 %8597
      %8599 = vrot.lane.b32.xlu0 %v7467, 95
      %v8600 = vpop.permute.xlu0 %8599
      %8601 = vrot.lane.b32.xlu0 %v7468, 95
      %v8602 = vpop.permute.xlu0 %8601
      %8603 = vrot.lane.b32.xlu0 %v7469, 95
      %v8604 = vpop.permute.xlu0 %8603
      %8605 = vrot.lane.b32.xlu0 %v7470, 95
      %v8606 = vpop.permute.xlu0 %8605
      %8607 = vrot.lane.b32.xlu0 %v7471, 95
      %v8608 = vpop.permute.xlu0 %8607
      %8609 = vrot.lane.b32.xlu0 %v7472, 95
      %v8610 = vpop.permute.xlu0 %8609
      %8611 = vrot.lane.b32.xlu0 %v7473, 95
      %v8612 = vpop.permute.xlu0 %8611
      %8613 = vrot.lane.b32.xlu0 %v7474, 95
      %v8614 = vpop.permute.xlu0 %8613
      %8615 = vrot.lane.b32.xlu0 %v7475, 95
      %v8616 = vpop.permute.xlu0 %8615
      %8617 = vrot.lane.b32.xlu0 %v7476, 95
      %v8618 = vpop.permute.xlu0 %8617
      %8619 = vrot.lane.b32.xlu0 %v7477, 95
      %v8620 = vpop.permute.xlu0 %8619
      %8621 = vrot.lane.b32.xlu0 %v7478, 95
      %v8622 = vpop.permute.xlu0 %8621
      %8623 = vrot.lane.b32.xlu0 %v7479, 95
      %v8624 = vpop.permute.xlu0 %8623
      %8625 = vrot.lane.b32.xlu0 %v7480, 95
      %v8626 = vpop.permute.xlu0 %8625
      %8627 = vrot.lane.b32.xlu0 %v7481, 95
      %v8628 = vpop.permute.xlu0 %8627
      %8629 = vrot.lane.b32.xlu0 %v7482, 95
      %v8630 = vpop.permute.xlu0 %8629
      %8631 = vrot.lane.b32.xlu0 %v7483, 95
      %v8632 = vpop.permute.xlu0 %8631
      %8633 = vrot.lane.b32.xlu0 %v7484, 95
      %v8634 = vpop.permute.xlu0 %8633
      %8635 = vrot.lane.b32.xlu0 %v7485, 95
      %v8636 = vpop.permute.xlu0 %8635
      %8637 = vrot.lane.b32.xlu0 %v7486, 95
      %v8638 = vpop.permute.xlu0 %8637
      %v8639 = vsel %vm5984, %v8576, %v8578
      %v8640 = vsel %vm5984, %v8578, %v8580
      %v8641 = vsel %vm5984, %v8580, %v8582
      %v8642 = vsel %vm5984, %v8582, %v8584
      %v8643 = vsel %vm5984, %v8584, %v8586
      %v8644 = vsel %vm5984, %v8586, %v8588
      %v8645 = vsel %vm5984, %v8588, %v8590
      %v8646 = vsel %vm5984, %v8592, %v8594
      %v8647 = vsel %vm5984, %v8594, %v8596
      %v8648 = vsel %vm5984, %v8596, %v8598
      %v8649 = vsel %vm5984, %v8598, %v8600
      %v8650 = vsel %vm5984, %v8600, %v8602
      %v8651 = vsel %vm5984, %v8602, %v8604
      %v8652 = vsel %vm5984, %v8604, %v8606
      %v8653 = vsel %vm5984, %v8608, %v8610
      %v8654 = vsel %vm5984, %v8610, %v8612
      %v8655 = vsel %vm5984, %v8612, %v8614
      %v8656 = vsel %vm5984, %v8614, %v8616
      %v8657 = vsel %vm5984, %v8616, %v8618
      %v8658 = vsel %vm5984, %v8618, %v8620
      %v8659 = vsel %vm5984, %v8620, %v8622
      %v8660 = vsel %vm5984, %v8624, %v8626
      %v8661 = vsel %vm5984, %v8626, %v8628
      %v8662 = vsel %vm5984, %v8628, %v8630
      %v8663 = vsel %vm5984, %v8630, %v8632
      %v8664 = vsel %vm5984, %v8632, %v8634
      %v8665 = vsel %vm5984, %v8634, %v8636
      %v8666 = vsel %vm5984, %v8636, %v8638
      %v8699 = vsel %vm5984, %v8590, 0.0
      %v8700 = vsel %vm5984, %v8606, 0.0
      %v8701 = vsel %vm5984, %v8622, 0.0
      %v8702 = vsel %vm5984, %v8638, 0.0
      %v8703 = vmul.f32 %v8639, %v4820
      %v8704 = vmul.f32 %v8640, %v4821
      %v8705 = vmul.f32 %v8641, %v4822
      %v8706 = vmul.f32 %v8642, %v4823
      %v8707 = vmul.f32 %v8643, %v4824
      %v8708 = vmul.f32 %v8644, %v4825
      %v8709 = vmul.f32 %v8645, %v4826
      %v8710 = vmul.f32 %v8699, %v4827
      %v8711 = vmul.f32 %v8646, %v4820
      %v8712 = vmul.f32 %v8647, %v4821
      %v8713 = vmul.f32 %v8648, %v4822
      %v8714 = vmul.f32 %v8649, %v4823
      %v8715 = vmul.f32 %v8650, %v4824
      %v8716 = vmul.f32 %v8651, %v4825
      %v8717 = vmul.f32 %v8652, %v4826
      %v8718 = vmul.f32 %v8700, %v4827
      %v8719 = vmul.f32 %v8653, %v4820
      %v8720 = vmul.f32 %v8654, %v4821
      %v8721 = vmul.f32 %v8655, %v4822
      %v8722 = vmul.f32 %v8656, %v4823
      %v8723 = vmul.f32 %v8657, %v4824
      %v8724 = vmul.f32 %v8658, %v4825
      %v8725 = vmul.f32 %v8659, %v4826
      %v8726 = vmul.f32 %v8701, %v4827
      %v8727 = vmul.f32 %v8660, %v4820
      %v8728 = vmul.f32 %v8661, %v4821
      %v8729 = vmul.f32 %v8662, %v4822
      %v8730 = vmul.f32 %v8663, %v4823
      %v8731 = vmul.f32 %v8664, %v4824
      %v8732 = vmul.f32 %v8665, %v4825
      %v8733 = vmul.f32 %v8666, %v4826
      %v8734 = vmul.f32 %v8702, %v4827
      %v8735 = vld [vmem:[%s20] sm:$0xff]
      %v8736 = vld [vmem:[%s20 + $0x8] sm:$0xff]
      %v8737 = vld [vmem:[%s20 + $0x10] sm:$0xff]
      %v8738 = vld [vmem:[%s20 + $0x18] sm:$0xff]
      %v8739 = vld [vmem:[%s20 + $0x20] sm:$0xff]
      %v8740 = vld [vmem:[%s20 + $0x28] sm:$0xff]
      %v8741 = vld [vmem:[%s20 + $0x30] sm:$0xff]
      %v8742 = vld [vmem:[%s20 + $0x38] sm:$0xff]
      %v8743 = vld [vmem:[%s20 + $0x40] sm:$0xff]
      %v8744 = vld [vmem:[%s20 + $0x48] sm:$0xff]
      %v8745 = vld [vmem:[%s20 + $0x50] sm:$0xff]
      %v8746 = vld [vmem:[%s20 + $0x58] sm:$0xff]
      %v8748 = vsel %vm1079, %v8737, 0
      %v8751 = vsel %vm1079, %v8740, 0
      %v8754 = vsel %vm1079, %v8743, 0
      %v8757 = vsel %vm1079, %v8746, 0
      %8759 = vmatprep.subr.mxu0 %v7648
      %8760 = vmatpush1.msra.mxu0 %v7647
      %8761 = vmatprep.subr.mxu0 %v7656
      %8762 = vmatpush1.msra.mxu0 %v7655
      %8763 = vmatprep.subr.mxu0 %v7664
      %8764 = vmatpush1.msra.mxu0 %v7663
      %8765 = vmatprep.subr.mxu0 %v7672
      %8766 = vmatpush1.msra.mxu0 %v7671
      %8767 = vmatprep.subr.mxu0 %v7743
      %8768 = vmatpush1.msra.mxu0 %v7803
      %8769 = vmatprep.subr.mxu0 %v7750
      %8770 = vmatpush1.msra.mxu0 %v7804
      %8771 = vmatprep.subr.mxu0 %v7757
      %8772 = vmatpush1.msra.mxu0 %v7805
      %8773 = vmatprep.subr.mxu0 %v7764
      %8774 = vmatpush1.msra.mxu0 %v7806
      %8775 = vmatprep.subr.mxu0 %v7936
      %8776 = vmatpush1.msra.mxu0 %v7935
      %8777 = vmatprep.subr.mxu0 %v7944
      %8778 = vmatpush1.msra.mxu0 %v7943
      %8779 = vmatprep.subr.mxu0 %v7952
      %8780 = vmatpush1.msra.mxu0 %v7951
      %8781 = vmatprep.subr.mxu0 %v7960
      %8782 = vmatpush1.msra.mxu0 %v7959
      %8783 = vmatprep.subr.mxu0 %v8096
      %8784 = vmatpush1.msra.mxu0 %v8095
      %8785 = vmatprep.subr.mxu0 %v8104
      %8786 = vmatpush1.msra.mxu0 %v8103
      %8787 = vmatprep.subr.mxu0 %v8112
      %8788 = vmatpush1.msra.mxu0 %v8111
      %8789 = vmatprep.subr.mxu0 %v8120
      %8790 = vmatpush1.msra.mxu0 %v8119
      %8791 = vmatprep.subr.mxu0 %v7456
      %8792 = vmatpush1.msra.mxu0 %v7455
      %8793 = vmatprep.subr.mxu0 %v7464
      %8794 = vmatpush1.msra.mxu0 %v7463
      %8795 = vmatprep.subr.mxu0 %v7472
      %8796 = vmatpush1.msra.mxu0 %v7471
      %8797 = vmatprep.subr.mxu0 %v7480
      %8798 = vmatpush1.msra.mxu0 %v7479
      %8799 = vmatprep.subr.mxu0 %v8256
      %8800 = vmatpush1.msra.mxu0 %v8255
      %8801 = vmatprep.subr.mxu0 %v8264
      %8802 = vmatpush1.msra.mxu0 %v8263
      %8803 = vmatprep.subr.mxu0 %v8272
      %8804 = vmatpush1.msra.mxu0 %v8271
      %8805 = vmatprep.subr.mxu0 %v8280
      %8806 = vmatpush1.msra.mxu0 %v8279
      %8807 = vmatprep.subr.mxu0 %v8416
      %8808 = vmatpush1.msra.mxu0 %v8415
      %8809 = vmatprep.subr.mxu0 %v8424
      %8810 = vmatpush1.msra.mxu0 %v8423
      %8811 = vmatprep.subr.mxu0 %v8432
      %8812 = vmatpush1.msra.mxu0 %v8431
      %8813 = vmatprep.subr.mxu0 %v8440
      %8814 = vmatpush1.msra.mxu0 %v8439
      %8815 = vmatprep.subr.mxu0 %v8512
      %8816 = vmatpush1.msra.mxu0 %v8511
      %8817 = vmatprep.subr.mxu0 %v8519
      %8818 = vmatpush1.msra.mxu0 %v8518
      %8819 = vmatprep.subr.mxu0 %v8526
      %8820 = vmatpush1.msra.mxu0 %v8525
      %8821 = vmatprep.subr.mxu0 %v8533
      %8822 = vmatpush1.msra.mxu0 %v8532
      %8823 = vmatprep.mubr.f32.mxu0 %v8736
      %8824 = vmatmul.mubr.f32.gmra.mrb[0].mxu0 %v8735
      %v8825 = vpop.f32.mrb[0].mxu0
      %v8826 = vadd.f32 0.0, %v8825
      %v8827 = vpop.f32.mrb[0].mxu0
      %v8828 = vadd.f32 0.0, %v8827
      %8829 = vmatprep.mubr.f32.mxu0 %v8739
      %8830 = vmatmul.mubr.f32.gmra.mrb[0].mxu0 %v8738
      %v8831 = vpop.f32.mrb[0].mxu0
      %v8832 = vadd.f32 0.0, %v8831
      %v8833 = vpop.f32.mrb[0].mxu0
      %v8834 = vadd.f32 0.0, %v8833
      %8835 = vmatprep.mubr.f32.mxu0 %v8742
      %8836 = vmatmul.mubr.f32.gmra.mrb[0].mxu0 %v8741
      %v8837 = vpop.f32.mrb[0].mxu0
      %v8838 = vadd.f32 0.0, %v8837
      %v8839 = vpop.f32.mrb[0].mxu0
      %v8840 = vadd.f32 0.0, %v8839
      %8841 = vmatprep.mubr.f32.mxu0 %v8745
      %8842 = vmatmul.mubr.f32.gmra.mrb[0].mxu0 %v8744
      %v8843 = vpop.f32.mrb[0].mxu0
      %v8844 = vadd.f32 0.0, %v8843
      %v8845 = vpop.f32.mrb[0].mxu0
      %v8846 = vadd.f32 0.0, %v8845
      %8847 = vdwg.mxu0
      %8848 = vmatprep.subr.mxu0 %v8704
      %8849 = vmatpush1.msra.mxu0 %v8703
      %8850 = vmatprep.subr.mxu0 %v8712
      %8851 = vmatpush1.msra.mxu0 %v8711
      %8852 = vmatprep.subr.mxu0 %v8720
      %8853 = vmatpush1.msra.mxu0 %v8719
      %8854 = vmatprep.subr.mxu0 %v8728
      %8855 = vmatpush1.msra.mxu0 %v8727
      %8856 = vmatprep.subr.mxu0 0.0
      %8857 = vmatpush1.msra.mxu0 0.0
      %8858 = vmatprep.subr.mxu0 0.0
      %8859 = vmatpush1.msra.mxu0 0.0
      %8860 = vmatprep.subr.mxu0 0.0
      %8861 = vmatpush1.msra.mxu0 0.0
      %8862 = vmatprep.subr.mxu0 0.0
      %8863 = vmatpush1.msra.mxu0 0.0
      %8864 = vmatprep.subr.mxu0 0.0
      %8865 = vmatpush1.msra.mxu0 0.0
      %8866 = vmatprep.subr.mxu0 0.0
      %8867 = vmatpush1.msra.mxu0 0.0
      %8868 = vmatprep.subr.mxu0 0.0
      %8869 = vmatpush1.msra.mxu0 0.0
      %8870 = vmatprep.subr.mxu0 0.0
      %8871 = vmatpush1.msra.mxu0 0.0
      %8872 = vmatprep.subr.mxu0 0.0
      %8873 = vmatpush1.msra.mxu0 0.0
      %8874 = vmatprep.subr.mxu0 0.0
      %8875 = vmatpush1.msra.mxu0 0.0
      %8876 = vmatprep.subr.mxu0 0.0
      %8877 = vmatpush1.msra.mxu0 0.0
      %8878 = vmatprep.subr.mxu0 0.0
      %8879 = vmatpush1.msra.mxu0 0.0
      %8880 = vmatprep.subr.mxu0 0.0
      %8881 = vmatpush1.msra.mxu0 0.0
      %8882 = vmatprep.subr.mxu0 0.0
      %8883 = vmatpush1.msra.mxu0 0.0
      %8884 = vmatprep.subr.mxu0 0.0
      %8885 = vmatpush1.msra.mxu0 0.0
      %8886 = vmatprep.subr.mxu0 0.0
      %8887 = vmatpush1.msra.mxu0 0.0
      %8888 = vmatprep.subr.mxu0 0.0
      %8889 = vmatpush1.msra.mxu0 0.0
      %8890 = vmatprep.subr.mxu0 0.0
      %8891 = vmatpush1.msra.mxu0 0.0
      %8892 = vmatprep.subr.mxu0 0.0
      %8893 = vmatpush1.msra.mxu0 0.0
      %8894 = vmatprep.subr.mxu0 0.0
      %8895 = vmatpush1.msra.mxu0 0.0
      %8896 = vmatprep.subr.mxu0 0.0
      %8897 = vmatpush1.msra.mxu0 0.0
      %8898 = vmatprep.subr.mxu0 0.0
      %8899 = vmatpush1.msra.mxu0 0.0
      %8900 = vmatprep.subr.mxu0 0.0
      %8901 = vmatpush1.msra.mxu0 0.0
      %8902 = vmatprep.subr.mxu0 0.0
      %8903 = vmatpush1.msra.mxu0 0.0
      %8904 = vmatprep.subr.mxu0 0.0
      %8905 = vmatpush1.msra.mxu0 0.0
      %8906 = vmatprep.subr.mxu0 0.0
      %8907 = vmatpush1.msra.mxu0 0.0
      %8908 = vmatprep.subr.mxu0 0.0
      %8909 = vmatpush1.msra.mxu0 0.0
      %8910 = vmatprep.subr.mxu0 0.0
      %8911 = vmatpush1.msra.mxu0 0.0
      %8912 = vmatprep.mubr.f32.mxu0 0.0
      %8913 = vmatmul.mubr.f32.gmra.mrb[0].mxu0 %v8748
      %v8914 = vpop.f32.mrb[0].mxu0
      %v8915 = vadd.f32 %v8826, %v8914
      %v8916 = vpop.f32.mrb[0].mxu0
      %v8917 = vadd.f32 %v8828, %v8916
      %8918 = vmatprep.mubr.f32.mxu0 0.0
      %8919 = vmatmul.mubr.f32.gmra.mrb[0].mxu0 %v8751
      %v8920 = vpop.f32.mrb[0].mxu0
      %v8921 = vadd.f32 %v8832, %v8920
      %v8922 = vpop.f32.mrb[0].mxu0
      %v8923 = vadd.f32 %v8834, %v8922
      %8924 = vmatprep.mubr.f32.mxu0 0.0
      %8925 = vmatmul.mubr.f32.gmra.mrb[0].mxu0 %v8754
      %v8926 = vpop.f32.mrb[0].mxu0
      %v8927 = vadd.f32 %v8838, %v8926
      %v8928 = vpop.f32.mrb[0].mxu0
      %v8929 = vadd.f32 %v8840, %v8928
      %8930 = vmatprep.mubr.f32.mxu0 0.0
      %8931 = vmatmul.mubr.f32.gmra.mrb[0].mxu0 %v8757
      %v8932 = vpop.f32.mrb[0].mxu0
      %v8933 = vadd.f32 %v8844, %v8932
      %v8934 = vpop.f32.mrb[0].mxu0
      %v8935 = vadd.f32 %v8846, %v8934
      %8936 = vdwg.mxu0
      %8937 = vmatprep.subr.mxu0 %v7650
      %8938 = vmatpush1.msra.mxu0 %v7649
      %8939 = vmatprep.subr.mxu0 %v7658
      %8940 = vmatpush1.msra.mxu0 %v7657
      %8941 = vmatprep.subr.mxu0 %v7666
      %8942 = vmatpush1.msra.mxu0 %v7665
      %8943 = vmatprep.subr.mxu0 %v7674
      %8944 = vmatpush1.msra.mxu0 %v7673
      %8945 = vmatprep.subr.mxu0 %v7745
      %8946 = vmatpush1.msra.mxu0 %v7744
      %8947 = vmatprep.subr.mxu0 %v7752
      %8948 = vmatpush1.msra.mxu0 %v7751
      %8949 = vmatprep.subr.mxu0 %v7759
      %8950 = vmatpush1.msra.mxu0 %v7758
      %8951 = vmatprep.subr.mxu0 %v7766
      %8952 = vmatpush1.msra.mxu0 %v7765
      %8953 = vmatprep.subr.mxu0 %v7938
      %8954 = vmatpush1.msra.mxu0 %v7937
      %8955 = vmatprep.subr.mxu0 %v7946
      %8956 = vmatpush1.msra.mxu0 %v7945
      %8957 = vmatprep.subr.mxu0 %v7954
      %8958 = vmatpush1.msra.mxu0 %v7953
      %8959 = vmatprep.subr.mxu0 %v7962
      %8960 = vmatpush1.msra.mxu0 %v7961
      %8961 = vmatprep.subr.mxu0 %v8098
      %8962 = vmatpush1.msra.mxu0 %v8097
      %8963 = vmatprep.subr.mxu0 %v8106
      %8964 = vmatpush1.msra.mxu0 %v8105
      %8965 = vmatprep.subr.mxu0 %v8114
      %8966 = vmatpush1.msra.mxu0 %v8113
      %8967 = vmatprep.subr.mxu0 %v8122
      %8968 = vmatpush1.msra.mxu0 %v8121
      %8969 = vmatprep.subr.mxu0 %v7458
      %8970 = vmatpush1.msra.mxu0 %v7457
      %8971 = vmatprep.subr.mxu0 %v7466
      %8972 = vmatpush1.msra.mxu0 %v7465
      %8973 = vmatprep.subr.mxu0 %v7474
      %8974 = vmatpush1.msra.mxu0 %v7473
      %8975 = vmatprep.subr.mxu0 %v7482
      %8976 = vmatpush1.msra.mxu0 %v7481
      %8977 = vmatprep.subr.mxu0 %v8258
      %8978 = vmatpush1.msra.mxu0 %v8257
      %8979 = vmatprep.subr.mxu0 %v8266
      %8980 = vmatpush1.msra.mxu0 %v8265
      %8981 = vmatprep.subr.mxu0 %v8274
      %8982 = vmatpush1.msra.mxu0 %v8273
      %8983 = vmatprep.subr.mxu0 %v8282
      %8984 = vmatpush1.msra.mxu0 %v8281
      %8985 = vmatprep.subr.mxu0 %v8418
      %8986 = vmatpush1.msra.mxu0 %v8417
      %8987 = vmatprep.subr.mxu0 %v8426
      %8988 = vmatpush1.msra.mxu0 %v8425
      %8989 = vmatprep.subr.mxu0 %v8434
      %8990 = vmatpush1.msra.mxu0 %v8433
      %8991 = vmatprep.subr.mxu0 %v8442
      %8992 = vmatpush1.msra.mxu0 %v8441
      %8993 = vmatprep.subr.mxu0 %v8514
      %8994 = vmatpush1.msra.mxu0 %v8513
      %8995 = vmatprep.subr.mxu0 %v8521
      %8996 = vmatpush1.msra.mxu0 %v8520
      %8997 = vmatprep.subr.mxu0 %v8528
      %8998 = vmatpush1.msra.mxu0 %v8527
      %8999 = vmatprep.subr.mxu0 %v8535
      %9000 = vmatpush1.msra.mxu0 %v8534
      %9001 = vmatprep.mubr.f32.mxu0 %v8736
      %9002 = vmatmul.mubr.f32.gmra.mrb[0].mxu0 %v8735
      %v9003 = vpop.f32.mrb[0].mxu0
      %v9004 = vadd.f32 0.0, %v9003
      %v9005 = vpop.f32.mrb[0].mxu0
      %v9006 = vadd.f32 0.0, %v9005
      %9007 = vmatprep.mubr.f32.mxu0 %v8739
      %9008 = vmatmul.mubr.f32.gmra.mrb[0].mxu0 %v8738
      %v9009 = vpop.f32.mrb[0].mxu0
      %v9010 = vadd.f32 0.0, %v9009
      %v9011 = vpop.f32.mrb[0].mxu0
      %v9012 = vadd.f32 0.0, %v9011
      %9013 = vmatprep.mubr.f32.mxu0 %v8742
      %9014 = vmatmul.mubr.f32.gmra.mrb[0].mxu0 %v8741
      %v9015 = vpop.f32.mrb[0].mxu0
      %v9016 = vadd.f32 0.0, %v9015
      %v9017 = vpop.f32.mrb[0].mxu0
      %v9018 = vadd.f32 0.0, %v9017
      %9019 = vmatprep.mubr.f32.mxu0 %v8745
      %9020 = vmatmul.mubr.f32.gmra.mrb[0].mxu0 %v8744
      %v9021 = vpop.f32.mrb[0].mxu0
      %v9022 = vadd.f32 0.0, %v9021
      %v9023 = vpop.f32.mrb[0].mxu0
      %v9024 = vadd.f32 0.0, %v9023
      %9025 = vdwg.mxu0
      %9026 = vmatprep.subr.mxu0 %v8706
      %9027 = vmatpush1.msra.mxu0 %v8705
      %9028 = vmatprep.subr.mxu0 %v8714
      %9029 = vmatpush1.msra.mxu0 %v8713
      %9030 = vmatprep.subr.mxu0 %v8722
      %9031 = vmatpush1.msra.mxu0 %v8721
      %9032 = vmatprep.subr.mxu0 %v8730
      %9033 = vmatpush1.msra.mxu0 %v8729
      %9034 = vmatprep.subr.mxu0 0.0
      %9035 = vmatpush1.msra.mxu0 0.0
      %9036 = vmatprep.subr.mxu0 0.0
      %9037 = vmatpush1.msra.mxu0 0.0
      %9038 = vmatprep.subr.mxu0 0.0
      %9039 = vmatpush1.msra.mxu0 0.0
      %9040 = vmatprep.subr.mxu0 0.0
      %9041 = vmatpush1.msra.mxu0 0.0
      %9042 = vmatprep.subr.mxu0 0.0
      %9043 = vmatpush1.msra.mxu0 0.0
      %9044 = vmatprep.subr.mxu0 0.0
      %9045 = vmatpush1.msra.mxu0 0.0
      %9046 = vmatprep.subr.mxu0 0.0
      %9047 = vmatpush1.msra.mxu0 0.0
      %9048 = vmatprep.subr.mxu0 0.0
      %9049 = vmatpush1.msra.mxu0 0.0
      %9050 = vmatprep.subr.mxu0 0.0
      %9051 = vmatpush1.msra.mxu0 0.0
      %9052 = vmatprep.subr.mxu0 0.0
      %9053 = vmatpush1.msra.mxu0 0.0
      %9054 = vmatprep.subr.mxu0 0.0
      %9055 = vmatpush1.msra.mxu0 0.0
      %9056 = vmatprep.subr.mxu0 0.0
      %9057 = vmatpush1.msra.mxu0 0.0
      %9058 = vmatprep.subr.mxu0 0.0
      %9059 = vmatpush1.msra.mxu0 0.0
      %9060 = vmatprep.subr.mxu0 0.0
      %9061 = vmatpush1.msra.mxu0 0.0
      %9062 = vmatprep.subr.mxu0 0.0
      %9063 = vmatpush1.msra.mxu0 0.0
      %9064 = vmatprep.subr.mxu0 0.0
      %9065 = vmatpush1.msra.mxu0 0.0
      %9066 = vmatprep.subr.mxu0 0.0
      %9067 = vmatpush1.msra.mxu0 0.0
      %9068 = vmatprep.subr.mxu0 0.0
      %9069 = vmatpush1.msra.mxu0 0.0
      %9070 = vmatprep.subr.mxu0 0.0
      %9071 = vmatpush1.msra.mxu0 0.0
      %9072 = vmatprep.subr.mxu0 0.0
      %9073 = vmatpush1.msra.mxu0 0.0
      %9074 = vmatprep.subr.mxu0 0.0
      %9075 = vmatpush1.msra.mxu0 0.0
      %9076 = vmatprep.subr.mxu0 0.0
      %9077 = vmatpush1.msra.mxu0 0.0
      %9078 = vmatprep.subr.mxu0 0.0
      %9079 = vmatpush1.msra.mxu0 0.0
      %9080 = vmatprep.subr.mxu0 0.0
      %9081 = vmatpush1.msra.mxu0 0.0
      %9082 = vmatprep.subr.mxu0 0.0
      %9083 = vmatpush1.msra.mxu0 0.0
      %9084 = vmatprep.subr.mxu0 0.0
      %9085 = vmatpush1.msra.mxu0 0.0
      %9086 = vmatprep.subr.mxu0 0.0
      %9087 = vmatpush1.msra.mxu0 0.0
      %9088 = vmatprep.subr.mxu0 0.0
      %9089 = vmatpush1.msra.mxu0 0.0
      %9090 = vmatprep.mubr.f32.mxu0 0.0
      %9091 = vmatmul.mubr.f32.gmra.mrb[0].mxu0 %v8748
      %v9092 = vpop.f32.mrb[0].mxu0
      %v9093 = vadd.f32 %v9004, %v9092
      %v9094 = vpop.f32.mrb[0].mxu0
      %v9095 = vadd.f32 %v9006, %v9094
      %9096 = vmatprep.mubr.f32.mxu0 0.0
      %9097 = vmatmul.mubr.f32.gmra.mrb[0].mxu0 %v8751
      %v9098 = vpop.f32.mrb[0].mxu0
      %v9099 = vadd.f32 %v9010, %v9098
      %v9100 = vpop.f32.mrb[0].mxu0
      %v9101 = vadd.f32 %v9012, %v9100
      %9102 = vmatprep.mubr.f32.mxu0 0.0
      %9103 = vmatmul.mubr.f32.gmra.mrb[0].mxu0 %v8754
      %v9104 = vpop.f32.mrb[0].mxu0
      %v9105 = vadd.f32 %v9016, %v9104
      %v9106 = vpop.f32.mrb[0].mxu0
      %v9107 = vadd.f32 %v9018, %v9106
      %9108 = vmatprep.mubr.f32.mxu0 0.0
      %9109 = vmatmul.mubr.f32.gmra.mrb[0].mxu0 %v8757
      %v9110 = vpop.f32.mrb[0].mxu0
      %v9111 = vadd.f32 %v9022, %v9110
      %v9112 = vpop.f32.mrb[0].mxu0
      %v9113 = vadd.f32 %v9024, %v9112
      %9114 = vdwg.mxu0
      %9115 = vmatprep.subr.mxu0 %v7652
      %9116 = vmatpush1.msra.mxu0 %v7651
      %9117 = vmatprep.subr.mxu0 %v7660
      %9118 = vmatpush1.msra.mxu0 %v7659
      %9119 = vmatprep.subr.mxu0 %v7668
      %9120 = vmatpush1.msra.mxu0 %v7667
      %9121 = vmatprep.subr.mxu0 %v7676
      %9122 = vmatpush1.msra.mxu0 %v7675
      %9123 = vmatprep.subr.mxu0 %v7747
      %9124 = vmatpush1.msra.mxu0 %v7746
      %9125 = vmatprep.subr.mxu0 %v7754
      %9126 = vmatpush1.msra.mxu0 %v7753
      %9127 = vmatprep.subr.mxu0 %v7761
      %9128 = vmatpush1.msra.mxu0 %v7760
      %9129 = vmatprep.subr.mxu0 %v7768
      %9130 = vmatpush1.msra.mxu0 %v7767
      %9131 = vmatprep.subr.mxu0 %v7940
      %9132 = vmatpush1.msra.mxu0 %v7939
      %9133 = vmatprep.subr.mxu0 %v7948
      %9134 = vmatpush1.msra.mxu0 %v7947
      %9135 = vmatprep.subr.mxu0 %v7956
      %9136 = vmatpush1.msra.mxu0 %v7955
      %9137 = vmatprep.subr.mxu0 %v7964
      %9138 = vmatpush1.msra.mxu0 %v7963
      %9139 = vmatprep.subr.mxu0 %v8100
      %9140 = vmatpush1.msra.mxu0 %v8099
      %9141 = vmatprep.subr.mxu0 %v8108
      %9142 = vmatpush1.msra.mxu0 %v8107
      %9143 = vmatprep.subr.mxu0 %v8116
      %9144 = vmatpush1.msra.mxu0 %v8115
      %9145 = vmatprep.subr.mxu0 %v8124
      %9146 = vmatpush1.msra.mxu0 %v8123
      %9147 = vmatprep.subr.mxu0 %v7460
      %9148 = vmatpush1.msra.mxu0 %v7459
      %9149 = vmatprep.subr.mxu0 %v7468
      %9150 = vmatpush1.msra.mxu0 %v7467
      %9151 = vmatprep.subr.mxu0 %v7476
      %9152 = vmatpush1.msra.mxu0 %v7475
      %9153 = vmatprep.subr.mxu0 %v7484
      %9154 = vmatpush1.msra.mxu0 %v7483
      %9155 = vmatprep.subr.mxu0 %v8260
      %9156 = vmatpush1.msra.mxu0 %v8259
      %9157 = vmatprep.subr.mxu0 %v8268
      %9158 = vmatpush1.msra.mxu0 %v8267
      %9159 = vmatprep.subr.mxu0 %v8276
      %9160 = vmatpush1.msra.mxu0 %v8275
      %9161 = vmatprep.subr.mxu0 %v8284
      %9162 = vmatpush1.msra.mxu0 %v8283
      %9163 = vmatprep.subr.mxu0 %v8420
      %9164 = vmatpush1.msra.mxu0 %v8419
      %9165 = vmatprep.subr.mxu0 %v8428
      %9166 = vmatpush1.msra.mxu0 %v8427
      %9167 = vmatprep.subr.mxu0 %v8436
      %9168 = vmatpush1.msra.mxu0 %v8435
      %9169 = vmatprep.subr.mxu0 %v8444
      %9170 = vmatpush1.msra.mxu0 %v8443
      %9171 = vmatprep.subr.mxu0 %v8516
      %9172 = vmatpush1.msra.mxu0 %v8515
      %9173 = vmatprep.subr.mxu0 %v8523
      %9174 = vmatpush1.msra.mxu0 %v8522
      %9175 = vmatprep.subr.mxu0 %v8530
      %9176 = vmatpush1.msra.mxu0 %v8529
      %9177 = vmatprep.subr.mxu0 %v8537
      %9178 = vmatpush1.msra.mxu0 %v8536
      %9179 = vmatprep.mubr.f32.mxu0 %v8736
      %9180 = vmatmul.mubr.f32.gmra.mrb[0].mxu0 %v8735
      %v9181 = vpop.f32.mrb[0].mxu0
      %v9182 = vadd.f32 0.0, %v9181
      %v9183 = vpop.f32.mrb[0].mxu0
      %v9184 = vadd.f32 0.0, %v9183
      %9185 = vmatprep.mubr.f32.mxu0 %v8739
      %9186 = vmatmul.mubr.f32.gmra.mrb[0].mxu0 %v8738
      %v9187 = vpop.f32.mrb[0].mxu0
      %v9188 = vadd.f32 0.0, %v9187
      %v9189 = vpop.f32.mrb[0].mxu0
      %v9190 = vadd.f32 0.0, %v9189
      %9191 = vmatprep.mubr.f32.mxu0 %v8742
      %9192 = vmatmul.mubr.f32.gmra.mrb[0].mxu0 %v8741
      %v9193 = vpop.f32.mrb[0].mxu0
      %v9194 = vadd.f32 0.0, %v9193
      %v9195 = vpop.f32.mrb[0].mxu0
      %v9196 = vadd.f32 0.0, %v9195
      %9197 = vmatprep.mubr.f32.mxu0 %v8745
      %9198 = vmatmul.mubr.f32.gmra.mrb[0].mxu0 %v8744
      %v9199 = vpop.f32.mrb[0].mxu0
      %v9200 = vadd.f32 0.0, %v9199
      %v9201 = vpop.f32.mrb[0].mxu0
      %v9202 = vadd.f32 0.0, %v9201
      %9203 = vdwg.mxu0
      %9204 = vmatprep.subr.mxu0 %v8708
      %9205 = vmatpush1.msra.mxu0 %v8707
      %9206 = vmatprep.subr.mxu0 %v8716
      %9207 = vmatpush1.msra.mxu0 %v8715
      %9208 = vmatprep.subr.mxu0 %v8724
      %9209 = vmatpush1.msra.mxu0 %v8723
      %9210 = vmatprep.subr.mxu0 %v8732
      %9211 = vmatpush1.msra.mxu0 %v8731
      %9212 = vmatprep.subr.mxu0 0.0
      %9213 = vmatpush1.msra.mxu0 0.0
      %9214 = vmatprep.subr.mxu0 0.0
      %9215 = vmatpush1.msra.mxu0 0.0
      %9216 = vmatprep.subr.mxu0 0.0
      %9217 = vmatpush1.msra.mxu0 0.0
      %9218 = vmatprep.subr.mxu0 0.0
      %9219 = vmatpush1.msra.mxu0 0.0
      %9220 = vmatprep.subr.mxu0 0.0
      %9221 = vmatpush1.msra.mxu0 0.0
      %9222 = vmatprep.subr.mxu0 0.0
      %9223 = vmatpush1.msra.mxu0 0.0
      %9224 = vmatprep.subr.mxu0 0.0
      %9225 = vmatpush1.msra.mxu0 0.0
      %9226 = vmatprep.subr.mxu0 0.0
      %9227 = vmatpush1.msra.mxu0 0.0
      %9228 = vmatprep.subr.mxu0 0.0
      %9229 = vmatpush1.msra.mxu0 0.0
      %9230 = vmatprep.subr.mxu0 0.0
      %9231 = vmatpush1.msra.mxu0 0.0
      %9232 = vmatprep.subr.mxu0 0.0
      %9233 = vmatpush1.msra.mxu0 0.0
      %9234 = vmatprep.subr.mxu0 0.0
      %9235 = vmatpush1.msra.mxu0 0.0
      %9236 = vmatprep.subr.mxu0 0.0
      %9237 = vmatpush1.msra.mxu0 0.0
      %9238 = vmatprep.subr.mxu0 0.0
      %9239 = vmatpush1.msra.mxu0 0.0
      %9240 = vmatprep.subr.mxu0 0.0
      %9241 = vmatpush1.msra.mxu0 0.0
      %9242 = vmatprep.subr.mxu0 0.0
      %9243 = vmatpush1.msra.mxu0 0.0
      %9244 = vmatprep.subr.mxu0 0.0
      %9245 = vmatpush1.msra.mxu0 0.0
      %9246 = vmatprep.subr.mxu0 0.0
      %9247 = vmatpush1.msra.mxu0 0.0
      %9248 = vmatprep.subr.mxu0 0.0
      %9249 = vmatpush1.msra.mxu0 0.0
      %9250 = vmatprep.subr.mxu0 0.0
      %9251 = vmatpush1.msra.mxu0 0.0
      %9252 = vmatprep.subr.mxu0 0.0
      %9253 = vmatpush1.msra.mxu0 0.0
      %9254 = vmatprep.subr.mxu0 0.0
      %9255 = vmatpush1.msra.mxu0 0.0
      %9256 = vmatprep.subr.mxu0 0.0
      %9257 = vmatpush1.msra.mxu0 0.0
      %9258 = vmatprep.subr.mxu0 0.0
      %9259 = vmatpush1.msra.mxu0 0.0
      %9260 = vmatprep.subr.mxu0 0.0
      %9261 = vmatpush1.msra.mxu0 0.0
      %9262 = vmatprep.subr.mxu0 0.0
      %9263 = vmatpush1.msra.mxu0 0.0
      %9264 = vmatprep.subr.mxu0 0.0
      %9265 = vmatpush1.msra.mxu0 0.0
      %9266 = vmatprep.subr.mxu0 0.0
      %9267 = vmatpush1.msra.mxu0 0.0
      %9268 = vmatprep.mubr.f32.mxu0 0.0
      %9269 = vmatmul.mubr.f32.gmra.mrb[0].mxu0 %v8748
      %v9270 = vpop.f32.mrb[0].mxu0
      %v9271 = vadd.f32 %v9182, %v9270
      %v9272 = vpop.f32.mrb[0].mxu0
      %v9273 = vadd.f32 %v9184, %v9272
      %9274 = vmatprep.mubr.f32.mxu0 0.0
      %9275 = vmatmul.mubr.f32.gmra.mrb[0].mxu0 %v8751
      %v9276 = vpop.f32.mrb[0].mxu0
      %v9277 = vadd.f32 %v9188, %v9276
      %v9278 = vpop.f32.mrb[0].mxu0
      %v9279 = vadd.f32 %v9190, %v9278
      %9280 = vmatprep.mubr.f32.mxu0 0.0
      %9281 = vmatmul.mubr.f32.gmra.mrb[0].mxu0 %v8754
      %v9282 = vpop.f32.mrb[0].mxu0
      %v9283 = vadd.f32 %v9194, %v9282
      %v9284 = vpop.f32.mrb[0].mxu0
      %v9285 = vadd.f32 %v9196, %v9284
      %9286 = vmatprep.mubr.f32.mxu0 0.0
      %9287 = vmatmul.mubr.f32.gmra.mrb[0].mxu0 %v8757
      %v9288 = vpop.f32.mrb[0].mxu0
      %v9289 = vadd.f32 %v9200, %v9288
      %v9290 = vpop.f32.mrb[0].mxu0
      %v9291 = vadd.f32 %v9202, %v9290
      %9292 = vdwg.mxu0
      %9293 = vmatprep.subr.mxu0 %v7654
      %9294 = vmatpush1.msra.mxu0 %v7653
      %9295 = vmatprep.subr.mxu0 %v7662
      %9296 = vmatpush1.msra.mxu0 %v7661
      %9297 = vmatprep.subr.mxu0 %v7670
      %9298 = vmatpush1.msra.mxu0 %v7669
      %9299 = vmatprep.subr.mxu0 %v7678
      %9300 = vmatpush1.msra.mxu0 %v7677
      %9301 = vmatprep.subr.mxu0 %v7749
      %9302 = vmatpush1.msra.mxu0 %v7748
      %9303 = vmatprep.subr.mxu0 %v7756
      %9304 = vmatpush1.msra.mxu0 %v7755
      %9305 = vmatprep.subr.mxu0 %v7763
      %9306 = vmatpush1.msra.mxu0 %v7762
      %9307 = vmatprep.subr.mxu0 %v7770
      %9308 = vmatpush1.msra.mxu0 %v7769
      %9309 = vmatprep.subr.mxu0 %v7942
      %9310 = vmatpush1.msra.mxu0 %v7941
      %9311 = vmatprep.subr.mxu0 %v7950
      %9312 = vmatpush1.msra.mxu0 %v7949
      %9313 = vmatprep.subr.mxu0 %v7958
      %9314 = vmatpush1.msra.mxu0 %v7957
      %9315 = vmatprep.subr.mxu0 %v7966
      %9316 = vmatpush1.msra.mxu0 %v7965
      %9317 = vmatprep.subr.mxu0 %v8102
      %9318 = vmatpush1.msra.mxu0 %v8101
      %9319 = vmatprep.subr.mxu0 %v8110
      %9320 = vmatpush1.msra.mxu0 %v8109
      %9321 = vmatprep.subr.mxu0 %v8118
      %9322 = vmatpush1.msra.mxu0 %v8117
      %9323 = vmatprep.subr.mxu0 %v8126
      %9324 = vmatpush1.msra.mxu0 %v8125
      %9325 = vmatprep.subr.mxu0 %v7462
      %9326 = vmatpush1.msra.mxu0 %v7461
      %9327 = vmatprep.subr.mxu0 %v7470
      %9328 = vmatpush1.msra.mxu0 %v7469
      %9329 = vmatprep.subr.mxu0 %v7478
      %9330 = vmatpush1.msra.mxu0 %v7477
      %9331 = vmatprep.subr.mxu0 %v7486
      %9332 = vmatpush1.msra.mxu0 %v7485
      %9333 = vmatprep.subr.mxu0 %v8262
      %9334 = vmatpush1.msra.mxu0 %v8261
      %9335 = vmatprep.subr.mxu0 %v8270
      %9336 = vmatpush1.msra.mxu0 %v8269
      %9337 = vmatprep.subr.mxu0 %v8278
      %9338 = vmatpush1.msra.mxu0 %v8277
      %9339 = vmatprep.subr.mxu0 %v8286
      %9340 = vmatpush1.msra.mxu0 %v8285
      %9341 = vmatprep.subr.mxu0 %v8422
      %9342 = vmatpush1.msra.mxu0 %v8421
      %9343 = vmatprep.subr.mxu0 %v8430
      %9344 = vmatpush1.msra.mxu0 %v8429
      %9345 = vmatprep.subr.mxu0 %v8438
      %9346 = vmatpush1.msra.mxu0 %v8437
      %9347 = vmatprep.subr.mxu0 %v8446
      %9348 = vmatpush1.msra.mxu0 %v8445
      %9349 = vmatprep.subr.mxu0 %v8571
      %9350 = vmatpush1.msra.mxu0 %v8517
      %9351 = vmatprep.subr.mxu0 %v8572
      %9352 = vmatpush1.msra.mxu0 %v8524
      %9353 = vmatprep.subr.mxu0 %v8573
      %9354 = vmatpush1.msra.mxu0 %v8531
      %9355 = vmatprep.subr.mxu0 %v8574
      %9356 = vmatpush1.msra.mxu0 %v8538
      %9357 = vmatprep.mubr.f32.mxu0 %v8736
      %9358 = vmatmul.mubr.f32.gmra.mrb[0].mxu0 %v8735
      %v9359 = vpop.f32.mrb[0].mxu0
      %v9360 = vadd.f32 0.0, %v9359
      %v9361 = vpop.f32.mrb[0].mxu0
      %v9362 = vadd.f32 0.0, %v9361
      %9363 = vmatprep.mubr.f32.mxu0 %v8739
      %9364 = vmatmul.mubr.f32.gmra.mrb[0].mxu0 %v8738
      %v9365 = vpop.f32.mrb[0].mxu0
      %v9366 = vadd.f32 0.0, %v9365
      %v9367 = vpop.f32.mrb[0].mxu0
      %v9368 = vadd.f32 0.0, %v9367
      %9369 = vmatprep.mubr.f32.mxu0 %v8742
      %9370 = vmatmul.mubr.f32.gmra.mrb[0].mxu0 %v8741
      %v9371 = vpop.f32.mrb[0].mxu0
      %v9372 = vadd.f32 0.0, %v9371
      %v9373 = vpop.f32.mrb[0].mxu0
      %v9374 = vadd.f32 0.0, %v9373
      %9375 = vmatprep.mubr.f32.mxu0 %v8745
      %9376 = vmatmul.mubr.f32.gmra.mrb[0].mxu0 %v8744
      %v9377 = vpop.f32.mrb[0].mxu0
      %v9378 = vadd.f32 0.0, %v9377
      %v9379 = vpop.f32.mrb[0].mxu0
      %v9380 = vadd.f32 0.0, %v9379
      %9381 = vdwg.mxu0
      %9382 = vmatprep.subr.mxu0 %v8710
      %9383 = vmatpush1.msra.mxu0 %v8709
      %9384 = vmatprep.subr.mxu0 %v8718
      %9385 = vmatpush1.msra.mxu0 %v8717
      %9386 = vmatprep.subr.mxu0 %v8726
      %9387 = vmatpush1.msra.mxu0 %v8725
      %9388 = vmatprep.subr.mxu0 %v8734
      %9389 = vmatpush1.msra.mxu0 %v8733
      %9390 = vmatprep.subr.mxu0 0.0
      %9391 = vmatpush1.msra.mxu0 0.0
      %9392 = vmatprep.subr.mxu0 0.0
      %9393 = vmatpush1.msra.mxu0 0.0
      %9394 = vmatprep.subr.mxu0 0.0
      %9395 = vmatpush1.msra.mxu0 0.0
      %9396 = vmatprep.subr.mxu0 0.0
      %9397 = vmatpush1.msra.mxu0 0.0
      %9398 = vmatprep.subr.mxu0 0.0
      %9399 = vmatpush1.msra.mxu0 0.0
      %9400 = vmatprep.subr.mxu0 0.0
      %9401 = vmatpush1.msra.mxu0 0.0
      %9402 = vmatprep.subr.mxu0 0.0
      %9403 = vmatpush1.msra.mxu0 0.0
      %9404 = vmatprep.subr.mxu0 0.0
      %9405 = vmatpush1.msra.mxu0 0.0
      %9406 = vmatprep.subr.mxu0 0.0
      %9407 = vmatpush1.msra.mxu0 0.0
      %9408 = vmatprep.subr.mxu0 0.0
      %9409 = vmatpush1.msra.mxu0 0.0
      %9410 = vmatprep.subr.mxu0 0.0
      %9411 = vmatpush1.msra.mxu0 0.0
      %9412 = vmatprep.subr.mxu0 0.0
      %9413 = vmatpush1.msra.mxu0 0.0
      %9414 = vmatprep.subr.mxu0 0.0
      %9415 = vmatpush1.msra.mxu0 0.0
      %9416 = vmatprep.subr.mxu0 0.0
      %9417 = vmatpush1.msra.mxu0 0.0
      %9418 = vmatprep.subr.mxu0 0.0
      %9419 = vmatpush1.msra.mxu0 0.0
      %9420 = vmatprep.subr.mxu0 0.0
      %9421 = vmatpush1.msra.mxu0 0.0
      %9422 = vmatprep.subr.mxu0 0.0
      %9423 = vmatpush1.msra.mxu0 0.0
      %9424 = vmatprep.subr.mxu0 0.0
      %9425 = vmatpush1.msra.mxu0 0.0
      %9426 = vmatprep.subr.mxu0 0.0
      %9427 = vmatpush1.msra.mxu0 0.0
      %9428 = vmatprep.subr.mxu0 0.0
      %9429 = vmatpush1.msra.mxu0 0.0
      %9430 = vmatprep.subr.mxu0 0.0
      %9431 = vmatpush1.msra.mxu0 0.0
      %9432 = vmatprep.subr.mxu0 0.0
      %9433 = vmatpush1.msra.mxu0 0.0
      %9434 = vmatprep.subr.mxu0 0.0
      %9435 = vmatpush1.msra.mxu0 0.0
      %9436 = vmatprep.subr.mxu0 0.0
      %9437 = vmatpush1.msra.mxu0 0.0
      %9438 = vmatprep.subr.mxu0 0.0
      %9439 = vmatpush1.msra.mxu0 0.0
      %9440 = vmatprep.subr.mxu0 0.0
      %9441 = vmatpush1.msra.mxu0 0.0
      %9442 = vmatprep.subr.mxu0 0.0
      %9443 = vmatpush1.msra.mxu0 0.0
      %9444 = vmatprep.subr.mxu0 0.0
      %9445 = vmatpush1.msra.mxu0 0.0
      %9446 = vmatprep.mubr.f32.mxu0 0.0
      %9447 = vmatmul.mubr.f32.gmra.mrb[0].mxu0 %v8748
      %v9448 = vpop.f32.mrb[0].mxu0
      %v9449 = vadd.f32 %v9360, %v9448
      %v9450 = vpop.f32.mrb[0].mxu0
      %v9451 = vadd.f32 %v9362, %v9450
      %9452 = vmatprep.mubr.f32.mxu0 0.0
      %9453 = vmatmul.mubr.f32.gmra.mrb[0].mxu0 %v8751
      %v9454 = vpop.f32.mrb[0].mxu0
      %v9455 = vadd.f32 %v9366, %v9454
      %v9456 = vpop.f32.mrb[0].mxu0
      %v9457 = vadd.f32 %v9368, %v9456
      %9458 = vmatprep.mubr.f32.mxu0 0.0
      %9459 = vmatmul.mubr.f32.gmra.mrb[0].mxu0 %v8754
      %v9460 = vpop.f32.mrb[0].mxu0
      %v9461 = vadd.f32 %v9372, %v9460
      %v9462 = vpop.f32.mrb[0].mxu0
      %v9463 = vadd.f32 %v9374, %v9462
      %9464 = vmatprep.mubr.f32.mxu0 0.0
      %9465 = vmatmul.mubr.f32.gmra.mrb[0].mxu0 %v8757
      %v9466 = vpop.f32.mrb[0].mxu0
      %v9467 = vadd.f32 %v9378, %v9466
      %v9468 = vpop.f32.mrb[0].mxu0
      %v9469 = vadd.f32 %v9380, %v9468
      %9470 = vdwg.mxu0
      %v9471 = vadd.f32 %v8915, %v8917
      %v9472 = vadd.f32 %v9471, %v9093
      %v9473 = vadd.f32 %v9472, %v9095
      %v9474 = vadd.f32 %v9473, %v9271
      %v9475 = vadd.f32 %v9474, %v9273
      %v9476 = vadd.f32 %v9475, %v9449
      %v9477 = vadd.f32 %v9476, %v9451
      %9478 = vadd.xlane.f32.xlu0 %v9477
      %v9479 = vpop.xlane.xlu0 %9478
      %v9480 = vadd.f32 %v8921, %v8923
      %v9481 = vadd.f32 %v9480, %v9099
      %v9482 = vadd.f32 %v9481, %v9101
      %v9483 = vadd.f32 %v9482, %v9277
      %v9484 = vadd.f32 %v9483, %v9279
      %v9485 = vadd.f32 %v9484, %v9455
      %v9486 = vadd.f32 %v9485, %v9457
      %9487 = vadd.xlane.f32.xlu0 %v9486
      %v9488 = vpop.xlane.xlu0 %9487
      %v9489 = vadd.f32 %v8927, %v8929
      %v9490 = vadd.f32 %v9489, %v9105
      %v9491 = vadd.f32 %v9490, %v9107
      %v9492 = vadd.f32 %v9491, %v9283
      %v9493 = vadd.f32 %v9492, %v9285
      %v9494 = vadd.f32 %v9493, %v9461
      %v9495 = vadd.f32 %v9494, %v9463
      %9496 = vadd.xlane.f32.xlu0 %v9495
      %v9497 = vpop.xlane.xlu0 %9496
      %v9498 = vadd.f32 %v8933, %v8935
      %v9499 = vadd.f32 %v9498, %v9111
      %v9500 = vadd.f32 %v9499, %v9113
      %v9501 = vadd.f32 %v9500, %v9289
      %v9502 = vadd.f32 %v9501, %v9291
      %v9503 = vadd.f32 %v9502, %v9467
      %v9504 = vadd.f32 %v9503, %v9469
      %9505 = vadd.xlane.f32.xlu0 %v9504
      %v9506 = vpop.xlane.xlu0 %9505
      %9507 = vmatprep.subr.mxu0 0.0
      %9508 = vmatpush1.msra.mxu0 %v9479
      %9509 = vmatprep.subr.mxu0 0.0
      %9510 = vmatpush1.msra.mxu0 %v9488
      %9511 = vmatprep.subr.mxu0 0.0
      %9512 = vmatpush1.msra.mxu0 %v9497
      %9513 = vmatprep.subr.mxu0 0.0
      %9514 = vmatpush1.msra.mxu0 %v9506
      %9515 = vmatprep.subr.mxu0 0.0
      %9516 = vmatpush1.msra.mxu0 0.0
      %9517 = vmatprep.subr.mxu0 0.0
      %9518 = vmatpush1.msra.mxu0 0.0
      %9519 = vmatprep.subr.mxu0 0.0
      %9520 = vmatpush1.msra.mxu0 0.0
      %9521 = vmatprep.subr.mxu0 0.0
      %9522 = vmatpush1.msra.mxu0 0.0
      %9523 = vmatprep.subr.mxu0 0.0
      %9524 = vmatpush1.msra.mxu0 0.0
      %9525 = vmatprep.subr.mxu0 0.0
      %9526 = vmatpush1.msra.mxu0 0.0
      %9527 = vmatprep.subr.mxu0 0.0
      %9528 = vmatpush1.msra.mxu0 0.0
      %9529 = vmatprep.subr.mxu0 0.0
      %9530 = vmatpush1.msra.mxu0 0.0
      %9531 = vmatprep.subr.mxu0 0.0
      %9532 = vmatpush1.msra.mxu0 0.0
      %9533 = vmatprep.subr.mxu0 0.0
      %9534 = vmatpush1.msra.mxu0 0.0
      %9535 = vmatprep.subr.mxu0 0.0
      %9536 = vmatpush1.msra.mxu0 0.0
      %9537 = vmatprep.subr.mxu0 0.0
      %9538 = vmatpush1.msra.mxu0 0.0
      %9539 = vmatprep.subr.mxu0 0.0
      %9540 = vmatpush1.msra.mxu0 0.0
      %9541 = vmatprep.subr.mxu0 0.0
      %9542 = vmatpush1.msra.mxu0 0.0
      %9543 = vmatprep.subr.mxu0 0.0
      %9544 = vmatpush1.msra.mxu0 0.0
      %9545 = vmatprep.subr.mxu0 0.0
      %9546 = vmatpush1.msra.mxu0 0.0
      %9547 = vmatprep.subr.mxu0 0.0
      %9548 = vmatpush1.msra.mxu0 0.0
      %9549 = vmatprep.subr.mxu0 0.0
      %9550 = vmatpush1.msra.mxu0 0.0
      %9551 = vmatprep.subr.mxu0 0.0
      %9552 = vmatpush1.msra.mxu0 0.0
      %9553 = vmatprep.subr.mxu0 0.0
      %9554 = vmatpush1.msra.mxu0 0.0
      %9555 = vmatprep.subr.mxu0 0.0
      %9556 = vmatpush1.msra.mxu0 0.0
      %9557 = vmatprep.subr.mxu0 0.0
      %9558 = vmatpush1.msra.mxu0 0.0
      %9559 = vmatprep.subr.mxu0 0.0
      %9560 = vmatpush1.msra.mxu0 0.0
      %9561 = vmatprep.subr.mxu0 0.0
      %9562 = vmatpush1.msra.mxu0 0.0
      %9563 = vmatprep.subr.mxu0 0.0
      %9564 = vmatpush1.msra.mxu0 0.0
      %9565 = vmatprep.subr.mxu0 0.0
      %9566 = vmatpush1.msra.mxu0 0.0
      %9567 = vmatprep.subr.mxu0 0.0
      %9568 = vmatpush1.msra.mxu0 0.0
      %9569 = vmatprep.subr.mxu0 0.0
      %9570 = vmatpush1.msra.mxu0 0.0
      %9571 = vmatprep.mubr.f32.mxu0 0.0
      %9572 = vmatmul.mubr.f32.gmra.mrb[0].mxu0 %v1081
      %v9573 = vpop.f32.mrb[0].mxu0
      %v9574 = vadd.f32 0.0, %v9573
      %v9575 = vpop.f32.mrb[0].mxu0
      %9576 = vmatprep.mubr.f32.mxu0 0.0
      %9577 = vmatmul.mubr.f32.gmra.mrb[0].mxu0 %v1084
      %v9578 = vpop.f32.mrb[0].mxu0
      %v9579 = vadd.f32 0.0, %v9578
      %v9580 = vpop.f32.mrb[0].mxu0
      %9581 = vmatprep.mubr.f32.mxu0 0.0
      %9582 = vmatmul.mubr.f32.gmra.mrb[0].mxu0 %v1087
      %v9583 = vpop.f32.mrb[0].mxu0
      %v9584 = vadd.f32 0.0, %v9583
      %v9585 = vpop.f32.mrb[0].mxu0
      %9586 = vmatprep.mubr.f32.mxu0 0.0
      %9587 = vmatmul.mubr.f32.gmra.mrb[0].mxu0 %v1090
      %v9588 = vpop.f32.mrb[0].mxu0
      %v9589 = vadd.f32 0.0, %v9588
      %v9590 = vpop.f32.mrb[0].mxu0
      %9591 = vdwg.mxu0
      %v9592 = vmul.f32 %v9574, 0.00024414063
      %v9593 = vmul.f32 %v9579, 0.00024414063
      %v9594 = vmul.f32 %v9584, 0.00024414063
      %v9595 = vmul.f32 %v9589, 0.00024414063
      %9597 = vset.pattern.permute.xlu0 0
      %9598 = vperm.xlu0 %9597, %v9592
      %v9599 = vpop.permute.xlu0 %9598
      %9602 = vset.pattern.permute.xlu0 0
      %9603 = vperm.xlu0 %9602, %v9593
      %v9604 = vpop.permute.xlu0 %9603
      %9607 = vset.pattern.permute.xlu0 0
      %9608 = vperm.xlu0 %9607, %v9594
      %v9609 = vpop.permute.xlu0 %9608
      %9612 = vset.pattern.permute.xlu0 0
      %9613 = vperm.xlu0 %9612, %v9595
      %v9614 = vpop.permute.xlu0 %9613
      %v9616 = vsub.f32 %v8915, %v9599
      %v9617 = vsub.f32 %v8917, %v9599
      %v9618 = vsub.f32 %v9093, %v9599
      %v9619 = vsub.f32 %v9095, %v9599
      %v9620 = vsub.f32 %v9271, %v9599
      %v9621 = vsub.f32 %v9273, %v9599
      %v9622 = vsub.f32 %v9449, %v9599
      %v9623 = vsub.f32 %v9451, %v9599
      %v9624 = vsub.f32 %v8921, %v9604
      %v9625 = vsub.f32 %v8923, %v9604
      %v9626 = vsub.f32 %v9099, %v9604
      %v9627 = vsub.f32 %v9101, %v9604
      %v9628 = vsub.f32 %v9277, %v9604
      %v9629 = vsub.f32 %v9279, %v9604
      %v9630 = vsub.f32 %v9455, %v9604
      %v9631 = vsub.f32 %v9457, %v9604
      %v9632 = vsub.f32 %v8927, %v9609
      %v9633 = vsub.f32 %v8929, %v9609
      %v9634 = vsub.f32 %v9105, %v9609
      %v9635 = vsub.f32 %v9107, %v9609
      %v9636 = vsub.f32 %v9283, %v9609
      %v9637 = vsub.f32 %v9285, %v9609
      %v9638 = vsub.f32 %v9461, %v9609
      %v9639 = vsub.f32 %v9463, %v9609
      %v9640 = vsub.f32 %v8933, %v9614
      %v9641 = vsub.f32 %v8935, %v9614
      %v9642 = vsub.f32 %v9111, %v9614
      %v9643 = vsub.f32 %v9113, %v9614
      %v9644 = vsub.f32 %v9289, %v9614
      %v9645 = vsub.f32 %v9291, %v9614
      %v9646 = vsub.f32 %v9467, %v9614
      %v9647 = vsub.f32 %v9469, %v9614
      %v9648 = vmul.f32 %v9616, %v9616
      %v9649 = vmul.f32 %v9617, %v9617
      %v9650 = vmul.f32 %v9618, %v9618
      %v9651 = vmul.f32 %v9619, %v9619
      %v9652 = vmul.f32 %v9620, %v9620
      %v9653 = vmul.f32 %v9621, %v9621
      %v9654 = vmul.f32 %v9622, %v9622
      %v9655 = vmul.f32 %v9623, %v9623
      %v9656 = vmul.f32 %v9624, %v9624
      %v9657 = vmul.f32 %v9625, %v9625
      %v9658 = vmul.f32 %v9626, %v9626
      %v9659 = vmul.f32 %v9627, %v9627
      %v9660 = vmul.f32 %v9628, %v9628
      %v9661 = vmul.f32 %v9629, %v9629
      %v9662 = vmul.f32 %v9630, %v9630
      %v9663 = vmul.f32 %v9631, %v9631
      %v9664 = vmul.f32 %v9632, %v9632
      %v9665 = vmul.f32 %v9633, %v9633
      %v9666 = vmul.f32 %v9634, %v9634
      %v9667 = vmul.f32 %v9635, %v9635
      %v9668 = vmul.f32 %v9636, %v9636
      %v9669 = vmul.f32 %v9637, %v9637
      %v9670 = vmul.f32 %v9638, %v9638
      %v9671 = vmul.f32 %v9639, %v9639
      %v9672 = vmul.f32 %v9640, %v9640
      %v9673 = vmul.f32 %v9641, %v9641
      %v9674 = vmul.f32 %v9642, %v9642
      %v9675 = vmul.f32 %v9643, %v9643
      %v9676 = vmul.f32 %v9644, %v9644
      %v9677 = vmul.f32 %v9645, %v9645
      %v9678 = vmul.f32 %v9646, %v9646
      %v9679 = vmul.f32 %v9647, %v9647
      %v9680 = vadd.f32 %v9648, %v9649
      %v9681 = vadd.f32 %v9680, %v9650
      %v9682 = vadd.f32 %v9681, %v9651
      %v9683 = vadd.f32 %v9682, %v9652
      %v9684 = vadd.f32 %v9683, %v9653
      %v9685 = vadd.f32 %v9684, %v9654
      %v9686 = vadd.f32 %v9685, %v9655
      %9687 = vadd.xlane.f32.xlu0 %v9686
      %v9688 = vpop.xlane.xlu0 %9687
      %v9689 = vadd.f32 %v9656, %v9657
      %v9690 = vadd.f32 %v9689, %v9658
      %v9691 = vadd.f32 %v9690, %v9659
      %v9692 = vadd.f32 %v9691, %v9660
      %v9693 = vadd.f32 %v9692, %v9661
      %v9694 = vadd.f32 %v9693, %v9662
      %v9695 = vadd.f32 %v9694, %v9663
      %9696 = vadd.xlane.f32.xlu0 %v9695
      %v9697 = vpop.xlane.xlu0 %9696
      %v9698 = vadd.f32 %v9664, %v9665
      %v9699 = vadd.f32 %v9698, %v9666
      %v9700 = vadd.f32 %v9699, %v9667
      %v9701 = vadd.f32 %v9700, %v9668
      %v9702 = vadd.f32 %v9701, %v9669
      %v9703 = vadd.f32 %v9702, %v9670
      %v9704 = vadd.f32 %v9703, %v9671
      %9705 = vadd.xlane.f32.xlu0 %v9704
      %v9706 = vpop.xlane.xlu0 %9705
      %v9707 = vadd.f32 %v9672, %v9673
      %v9708 = vadd.f32 %v9707, %v9674
      %v9709 = vadd.f32 %v9708, %v9675
      %v9710 = vadd.f32 %v9709, %v9676
      %v9711 = vadd.f32 %v9710, %v9677
      %v9712 = vadd.f32 %v9711, %v9678
      %v9713 = vadd.f32 %v9712, %v9679
      %9714 = vadd.xlane.f32.xlu0 %v9713
      %v9715 = vpop.xlane.xlu0 %9714
      %9716 = vmatprep.subr.mxu0 0.0
      %9717 = vmatpush1.msra.mxu0 %v9688
      %9718 = vmatprep.subr.mxu0 0.0
      %9719 = vmatpush1.msra.mxu0 %v9697
      %9720 = vmatprep.subr.mxu0 0.0
      %9721 = vmatpush1.msra.mxu0 %v9706
      %9722 = vmatprep.subr.mxu0 0.0
      %9723 = vmatpush1.msra.mxu0 %v9715
      %9724 = vmatprep.subr.mxu0 0.0
      %9725 = vmatpush1.msra.mxu0 0.0
      %9726 = vmatprep.subr.mxu0 0.0
      %9727 = vmatpush1.msra.mxu0 0.0
      %9728 = vmatprep.subr.mxu0 0.0
      %9729 = vmatpush1.msra.mxu0 0.0
      %9730 = vmatprep.subr.mxu0 0.0
      %9731 = vmatpush1.msra.mxu0 0.0
      %9732 = vmatprep.subr.mxu0 0.0
      %9733 = vmatpush1.msra.mxu0 0.0
      %9734 = vmatprep.subr.mxu0 0.0
      %9735 = vmatpush1.msra.mxu0 0.0
      %9736 = vmatprep.subr.mxu0 0.0
      %9737 = vmatpush1.msra.mxu0 0.0
      %9738 = vmatprep.subr.mxu0 0.0
      %9739 = vmatpush1.msra.mxu0 0.0
      %9740 = vmatprep.subr.mxu0 0.0
      %9741 = vmatpush1.msra.mxu0 0.0
      %9742 = vmatprep.subr.mxu0 0.0
      %9743 = vmatpush1.msra.mxu0 0.0
      %9744 = vmatprep.subr.mxu0 0.0
      %9745 = vmatpush1.msra.mxu0 0.0
      %9746 = vmatprep.subr.mxu0 0.0
      %9747 = vmatpush1.msra.mxu0 0.0
      %9748 = vmatprep.subr.mxu0 0.0
      %9749 = vmatpush1.msra.mxu0 0.0
      %9750 = vmatprep.subr.mxu0 0.0
      %9751 = vmatpush1.msra.mxu0 0.0
      %9752 = vmatprep.subr.mxu0 0.0
      %9753 = vmatpush1.msra.mxu0 0.0
      %9754 = vmatprep.subr.mxu0 0.0
      %9755 = vmatpush1.msra.mxu0 0.0
      %9756 = vmatprep.subr.mxu0 0.0
      %9757 = vmatpush1.msra.mxu0 0.0
      %9758 = vmatprep.subr.mxu0 0.0
      %9759 = vmatpush1.msra.mxu0 0.0
      %9760 = vmatprep.subr.mxu0 0.0
      %9761 = vmatpush1.msra.mxu0 0.0
      %9762 = vmatprep.subr.mxu0 0.0
      %9763 = vmatpush1.msra.mxu0 0.0
      %9764 = vmatprep.subr.mxu0 0.0
      %9765 = vmatpush1.msra.mxu0 0.0
      %9766 = vmatprep.subr.mxu0 0.0
      %9767 = vmatpush1.msra.mxu0 0.0
      %9768 = vmatprep.subr.mxu0 0.0
      %9769 = vmatpush1.msra.mxu0 0.0
      %9770 = vmatprep.subr.mxu0 0.0
      %9771 = vmatpush1.msra.mxu0 0.0
      %9772 = vmatprep.subr.mxu0 0.0
      %9773 = vmatpush1.msra.mxu0 0.0
      %9774 = vmatprep.subr.mxu0 0.0
      %9775 = vmatpush1.msra.mxu0 0.0
      %9776 = vmatprep.subr.mxu0 0.0
      %9777 = vmatpush1.msra.mxu0 0.0
      %9778 = vmatprep.subr.mxu0 0.0
      %9779 = vmatpush1.msra.mxu0 0.0
      %9780 = vmatprep.mubr.f32.mxu0 0.0
      %9781 = vmatmul.mubr.f32.gmra.mrb[0].mxu0 %v1081
      %v9782 = vpop.f32.mrb[0].mxu0
      %v9783 = vadd.f32 0.0, %v9782
      %v9784 = vpop.f32.mrb[0].mxu0
      %9785 = vmatprep.mubr.f32.mxu0 0.0
      %9786 = vmatmul.mubr.f32.gmra.mrb[0].mxu0 %v1084
      %v9787 = vpop.f32.mrb[0].mxu0
      %v9788 = vadd.f32 0.0, %v9787
      %v9789 = vpop.f32.mrb[0].mxu0
      %9790 = vmatprep.mubr.f32.mxu0 0.0
      %9791 = vmatmul.mubr.f32.gmra.mrb[0].mxu0 %v1087
      %v9792 = vpop.f32.mrb[0].mxu0
      %v9793 = vadd.f32 0.0, %v9792
      %v9794 = vpop.f32.mrb[0].mxu0
      %9795 = vmatprep.mubr.f32.mxu0 0.0
      %9796 = vmatmul.mubr.f32.gmra.mrb[0].mxu0 %v1090
      %v9797 = vpop.f32.mrb[0].mxu0
      %v9798 = vadd.f32 0.0, %v9797
      %v9799 = vpop.f32.mrb[0].mxu0
      %9800 = vdwg.mxu0
      %v9801 = vmul.f32 %v9783, 0.00024414063
      %v9802 = vmul.f32 %v9788, 0.00024414063
      %v9803 = vmul.f32 %v9793, 0.00024414063
      %v9804 = vmul.f32 %v9798, 0.00024414063
      %v9805 = vmax.f32 %v9801, 0.0
      %v9806 = vmax.f32 %v9802, 0.0
      %v9807 = vmax.f32 %v9803, 0.0
      %v9808 = vmax.f32 %v9804, 0.0
      %v9809 = vadd.f32 %v9805, 1e-05
      %v9810 = vadd.f32 %v9806, 1e-05
      %v9811 = vadd.f32 %v9807, 1e-05
      %v9812 = vadd.f32 %v9808, 1e-05
      %v9813 = vrsqrt.pop %v9809
      %v9814 = vrsqrt.pop %v9810
      %v9815 = vrsqrt.pop %v9811
      %v9816 = vrsqrt.pop %v9812
      %9818 = vset.pattern.permute.xlu0 0
      %9819 = vperm.xlu0 %9818, %v9813
      %v9820 = vpop.permute.xlu0 %9819
      %9823 = vset.pattern.permute.xlu0 0
      %9824 = vperm.xlu0 %9823, %v9814
      %v9825 = vpop.permute.xlu0 %9824
      %9828 = vset.pattern.permute.xlu0 0
      %9829 = vperm.xlu0 %9828, %v9815
      %v9830 = vpop.permute.xlu0 %9829
      %9833 = vset.pattern.permute.xlu0 0
      %9834 = vperm.xlu0 %9833, %v9816
      %v9835 = vpop.permute.xlu0 %9834
      %v9837 = vmul.f32 %v9616, %v9820
      %v9838 = vmul.f32 %v9617, %v9820
      %v9839 = vmul.f32 %v9618, %v9820
      %v9840 = vmul.f32 %v9619, %v9820
      %v9841 = vmul.f32 %v9620, %v9820
      %v9842 = vmul.f32 %v9621, %v9820
      %v9843 = vmul.f32 %v9622, %v9820
      %v9844 = vmul.f32 %v9623, %v9820
      %v9845 = vmul.f32 %v9624, %v9825
      %v9846 = vmul.f32 %v9625, %v9825
      %v9847 = vmul.f32 %v9626, %v9825
      %v9848 = vmul.f32 %v9627, %v9825
      %v9849 = vmul.f32 %v9628, %v9825
      %v9850 = vmul.f32 %v9629, %v9825
      %v9851 = vmul.f32 %v9630, %v9825
      %v9852 = vmul.f32 %v9631, %v9825
      %v9853 = vmul.f32 %v9632, %v9830
      %v9854 = vmul.f32 %v9633, %v9830
      %v9855 = vmul.f32 %v9634, %v9830
      %v9856 = vmul.f32 %v9635, %v9830
      %v9857 = vmul.f32 %v9636, %v9830
      %v9858 = vmul.f32 %v9637, %v9830
      %v9859 = vmul.f32 %v9638, %v9830
      %v9860 = vmul.f32 %v9639, %v9830
      %v9861 = vmul.f32 %v9640, %v9835
      %v9862 = vmul.f32 %v9641, %v9835
      %v9863 = vmul.f32 %v9642, %v9835
      %v9864 = vmul.f32 %v9643, %v9835
      %v9865 = vmul.f32 %v9644, %v9835
      %v9866 = vmul.f32 %v9645, %v9835
      %v9867 = vmul.f32 %v9646, %v9835
      %v9868 = vmul.f32 %v9647, %v9835
      %v9869 = vld [vmem:[%s21] sm:$0xff]
      %v9870 = vld [vmem:[%s21 + $0x8] sm:$0xff]
      %v9871 = vld [vmem:[%s21 + $0x10] sm:$0xff]
      %v9872 = vld [vmem:[%s21 + $0x18] sm:$0xff]
      %9874 = vset.pattern.permute.xlu0 0
      %9875 = vperm.xlu0 %9874, %v9869
      %v9876 = vpop.permute.xlu0 %9875
      %9879 = vset.pattern.permute.xlu0 0
      %9880 = vperm.xlu0 %9879, %v9870
      %v9881 = vpop.permute.xlu0 %9880
      %9884 = vset.pattern.permute.xlu0 0
      %9885 = vperm.xlu0 %9884, %v9871
      %v9886 = vpop.permute.xlu0 %9885
      %9889 = vset.pattern.permute.xlu0 0
      %9890 = vperm.xlu0 %9889, %v9872
      %v9891 = vpop.permute.xlu0 %9890
      %v9893 = vmul.f32 %v9837, %v9876
      %v9894 = vmul.f32 %v9838, %v9876
      %v9895 = vmul.f32 %v9839, %v9876
      %v9896 = vmul.f32 %v9840, %v9876
      %v9897 = vmul.f32 %v9841, %v9876
      %v9898 = vmul.f32 %v9842, %v9876
      %v9899 = vmul.f32 %v9843, %v9876
      %v9900 = vmul.f32 %v9844, %v9876
      %v9901 = vmul.f32 %v9845, %v9881
      %v9902 = vmul.f32 %v9846, %v9881
      %v9903 = vmul.f32 %v9847, %v9881
      %v9904 = vmul.f32 %v9848, %v9881
      %v9905 = vmul.f32 %v9849, %v9881
      %v9906 = vmul.f32 %v9850, %v9881
      %v9907 = vmul.f32 %v9851, %v9881
      %v9908 = vmul.f32 %v9852, %v9881
      %v9909 = vmul.f32 %v9853, %v9886
      %v9910 = vmul.f32 %v9854, %v9886
      %v9911 = vmul.f32 %v9855, %v9886
      %v9912 = vmul.f32 %v9856, %v9886
      %v9913 = vmul.f32 %v9857, %v9886
      %v9914 = vmul.f32 %v9858, %v9886
      %v9915 = vmul.f32 %v9859, %v9886
      %v9916 = vmul.f32 %v9860, %v9886
      %v9917 = vmul.f32 %v9861, %v9891
      %v9918 = vmul.f32 %v9862, %v9891
      %v9919 = vmul.f32 %v9863, %v9891
      %v9920 = vmul.f32 %v9864, %v9891
      %v9921 = vmul.f32 %v9865, %v9891
      %v9922 = vmul.f32 %v9866, %v9891
      %v9923 = vmul.f32 %v9867, %v9891
      %v9924 = vmul.f32 %v9868, %v9891
      %v9925 = vld [vmem:[%s22] sm:$0xff]
      %v9926 = vld [vmem:[%s22 + $0x8] sm:$0xff]
      %v9927 = vld [vmem:[%s22 + $0x10] sm:$0xff]
      %v9928 = vld [vmem:[%s22 + $0x18] sm:$0xff]
      %9930 = vset.pattern.permute.xlu0 0
      %9931 = vperm.xlu0 %9930, %v9925
      %v9932 = vpop.permute.xlu0 %9931
      %9935 = vset.pattern.permute.xlu0 0
      %9936 = vperm.xlu0 %9935, %v9926
      %v9937 = vpop.permute.xlu0 %9936
      %9940 = vset.pattern.permute.xlu0 0
      %9941 = vperm.xlu0 %9940, %v9927
      %v9942 = vpop.permute.xlu0 %9941
      %9945 = vset.pattern.permute.xlu0 0
      %9946 = vperm.xlu0 %9945, %v9928
      %v9947 = vpop.permute.xlu0 %9946
      %v9949 = vadd.f32 %v9893, %v9932
      %v9950 = vadd.f32 %v9894, %v9932
      %v9951 = vadd.f32 %v9895, %v9932
      %v9952 = vadd.f32 %v9896, %v9932
      %v9953 = vadd.f32 %v9897, %v9932
      %v9954 = vadd.f32 %v9898, %v9932
      %v9955 = vadd.f32 %v9899, %v9932
      %v9956 = vadd.f32 %v9900, %v9932
      %v9957 = vadd.f32 %v9901, %v9937
      %v9958 = vadd.f32 %v9902, %v9937
      %v9959 = vadd.f32 %v9903, %v9937
      %v9960 = vadd.f32 %v9904, %v9937
      %v9961 = vadd.f32 %v9905, %v9937
      %v9962 = vadd.f32 %v9906, %v9937
      %v9963 = vadd.f32 %v9907, %v9937
      %v9964 = vadd.f32 %v9908, %v9937
      %v9965 = vadd.f32 %v9909, %v9942
      %v9966 = vadd.f32 %v9910, %v9942
      %v9967 = vadd.f32 %v9911, %v9942
      %v9968 = vadd.f32 %v9912, %v9942
      %v9969 = vadd.f32 %v9913, %v9942
      %v9970 = vadd.f32 %v9914, %v9942
      %v9971 = vadd.f32 %v9915, %v9942
      %v9972 = vadd.f32 %v9916, %v9942
      %v9973 = vadd.f32 %v9917, %v9947
      %v9974 = vadd.f32 %v9918, %v9947
      %v9975 = vadd.f32 %v9919, %v9947
      %v9976 = vadd.f32 %v9920, %v9947
      %v9977 = vadd.f32 %v9921, %v9947
      %v9978 = vadd.f32 %v9922, %v9947
      %v9979 = vadd.f32 %v9923, %v9947
      %v9980 = vadd.f32 %v9924, %v9947
      %v9981 = vmul.f32 %v9949, 0.5
      %v9982 = vmul.f32 %v9950, 0.5
      %v9983 = vmul.f32 %v9951, 0.5
      %v9984 = vmul.f32 %v9952, 0.5
      %v9985 = vmul.f32 %v9953, 0.5
      %v9986 = vmul.f32 %v9954, 0.5
      %v9987 = vmul.f32 %v9955, 0.5
      %v9988 = vmul.f32 %v9956, 0.5
      %v9989 = vmul.f32 %v9957, 0.5
      %v9990 = vmul.f32 %v9958, 0.5
      %v9991 = vmul.f32 %v9959, 0.5
      %v9992 = vmul.f32 %v9960, 0.5
      %v9993 = vmul.f32 %v9961, 0.5
      %v9994 = vmul.f32 %v9962, 0.5
      %v9995 = vmul.f32 %v9963, 0.5
      %v9996 = vmul.f32 %v9964, 0.5
      %v9997 = vmul.f32 %v9965, 0.5
      %v9998 = vmul.f32 %v9966, 0.5
      %v9999 = vmul.f32 %v9967, 0.5
      %v10000 = vmul.f32 %v9968, 0.5
      %v10001 = vmul.f32 %v9969, 0.5
      %v10002 = vmul.f32 %v9970, 0.5
      %v10003 = vmul.f32 %v9971, 0.5
      %v10004 = vmul.f32 %v9972, 0.5
      %v10005 = vmul.f32 %v9973, 0.5
      %v10006 = vmul.f32 %v9974, 0.5
      %v10007 = vmul.f32 %v9975, 0.5
      %v10008 = vmul.f32 %v9976, 0.5
      %v10009 = vmul.f32 %v9977, 0.5
      %v10010 = vmul.f32 %v9978, 0.5
      %v10011 = vmul.f32 %v9979, 0.5
      %v10012 = vmul.f32 %v9980, 0.5
      %v10013 = vmul.f32 %v9949, 0.70710677
      %v10014 = vmul.f32 %v9950, 0.70710677
      %v10015 = vmul.f32 %v9951, 0.70710677
      %v10016 = vmul.f32 %v9952, 0.70710677
      %v10017 = vmul.f32 %v9953, 0.70710677
      %v10018 = vmul.f32 %v9954, 0.70710677
      %v10019 = vmul.f32 %v9955, 0.70710677
      %v10020 = vmul.f32 %v9956, 0.70710677
      %v10021 = vmul.f32 %v9957, 0.70710677
      %v10022 = vmul.f32 %v9958, 0.70710677
      %v10023 = vmul.f32 %v9959, 0.70710677
      %v10024 = vmul.f32 %v9960, 0.70710677
      %v10025 = vmul.f32 %v9961, 0.70710677
      %v10026 = vmul.f32 %v9962, 0.70710677
      %v10027 = vmul.f32 %v9963, 0.70710677
      %v10028 = vmul.f32 %v9964, 0.70710677
      %v10029 = vmul.f32 %v9965, 0.70710677
      %v10030 = vmul.f32 %v9966, 0.70710677
      %v10031 = vmul.f32 %v9967, 0.70710677
      %v10032 = vmul.f32 %v9968, 0.70710677
      %v10033 = vmul.f32 %v9969, 0.70710677
      %v10034 = vmul.f32 %v9970, 0.70710677
      %v10035 = vmul.f32 %v9971, 0.70710677
      %v10036 = vmul.f32 %v9972, 0.70710677
      %v10037 = vmul.f32 %v9973, 0.70710677
      %v10038 = vmul.f32 %v9974, 0.70710677
      %v10039 = vmul.f32 %v9975, 0.70710677
      %v10040 = vmul.f32 %v9976, 0.70710677
      %v10041 = vmul.f32 %v9977, 0.70710677
      %v10042 = vmul.f32 %v9978, 0.70710677
      %v10043 = vmul.f32 %v9979, 0.70710677
      %v10044 = vmul.f32 %v9980, 0.70710677
      %v10045 = verf.f32.pop %v10013
      %v10046 = verf.f32.pop %v10014
      %v10047 = verf.f32.pop %v10015
      %v10048 = verf.f32.pop %v10016
      %v10049 = verf.f32.pop %v10017
      %v10050 = verf.f32.pop %v10018
      %v10051 = verf.f32.pop %v10019
      %v10052 = verf.f32.pop %v10020
      %v10053 = verf.f32.pop %v10021
      %v10054 = verf.f32.pop %v10022
      %v10055 = verf.f32.pop %v10023
      %v10056 = verf.f32.pop %v10024
      %v10057 = verf.f32.pop %v10025
      %v10058 = verf.f32.pop %v10026
      %v10059 = verf.f32.pop %v10027
      %v10060 = verf.f32.pop %v10028
      %v10061 = verf.f32.pop %v10029
      %v10062 = verf.f32.pop %v10030
      %v10063 = verf.f32.pop %v10031
      %v10064 = verf.f32.pop %v10032
      %v10065 = verf.f32.pop %v10033
      %v10066 = verf.f32.pop %v10034
      %v10067 = verf.f32.pop %v10035
      %v10068 = verf.f32.pop %v10036
      %v10069 = verf.f32.pop %v10037
      %v10070 = verf.f32.pop %v10038
      %v10071 = verf.f32.pop %v10039
      %v10072 = verf.f32.pop %v10040
      %v10073 = verf.f32.pop %v10041
      %v10074 = verf.f32.pop %v10042
      %v10075 = verf.f32.pop %v10043
      %v10076 = verf.f32.pop %v10044
      %v10077 = vadd.f32 %v10045, 1.0
      %v10078 = vadd.f32 %v10046, 1.0
      %v10079 = vadd.f32 %v10047, 1.0
      %v10080 = vadd.f32 %v10048, 1.0
      %v10081 = vadd.f32 %v10049, 1.0
      %v10082 = vadd.f32 %v10050, 1.0
      %v10083 = vadd.f32 %v10051, 1.0
      %v10084 = vadd.f32 %v10052, 1.0
      %v10085 = vadd.f32 %v10053, 1.0
      %v10086 = vadd.f32 %v10054, 1.0
      %v10087 = vadd.f32 %v10055, 1.0
      %v10088 = vadd.f32 %v10056, 1.0
      %v10089 = vadd.f32 %v10057, 1.0
      %v10090 = vadd.f32 %v10058, 1.0
      %v10091 = vadd.f32 %v10059, 1.0
      %v10092 = vadd.f32 %v10060, 1.0
      %v10093 = vadd.f32 %v10061, 1.0
      %v10094 = vadd.f32 %v10062, 1.0
      %v10095 = vadd.f32 %v10063, 1.0
      %v10096 = vadd.f32 %v10064, 1.0
      %v10097 = vadd.f32 %v10065, 1.0
      %v10098 = vadd.f32 %v10066, 1.0
      %v10099 = vadd.f32 %v10067, 1.0
      %v10100 = vadd.f32 %v10068, 1.0
      %v10101 = vadd.f32 %v10069, 1.0
      %v10102 = vadd.f32 %v10070, 1.0
      %v10103 = vadd.f32 %v10071, 1.0
      %v10104 = vadd.f32 %v10072, 1.0
      %v10105 = vadd.f32 %v10073, 1.0
      %v10106 = vadd.f32 %v10074, 1.0
      %v10107 = vadd.f32 %v10075, 1.0
      %v10108 = vadd.f32 %v10076, 1.0
      %v10109 = vmul.f32 %v9981, %v10077
      %v10110 = vmul.f32 %v9982, %v10078
      %v10111 = vmul.f32 %v9983, %v10079
      %v10112 = vmul.f32 %v9984, %v10080
      %v10113 = vmul.f32 %v9985, %v10081
      %v10114 = vmul.f32 %v9986, %v10082
      %v10115 = vmul.f32 %v9987, %v10083
      %v10116 = vmul.f32 %v9988, %v10084
      %v10117 = vmul.f32 %v9989, %v10085
      %v10118 = vmul.f32 %v9990, %v10086
      %v10119 = vmul.f32 %v9991, %v10087
      %v10120 = vmul.f32 %v9992, %v10088
      %v10121 = vmul.f32 %v9993, %v10089
      %v10122 = vmul.f32 %v9994, %v10090
      %v10123 = vmul.f32 %v9995, %v10091
      %v10124 = vmul.f32 %v9996, %v10092
      %v10125 = vmul.f32 %v9997, %v10093
      %v10126 = vmul.f32 %v9998, %v10094
      %v10127 = vmul.f32 %v9999, %v10095
      %v10128 = vmul.f32 %v10000, %v10096
      %v10129 = vmul.f32 %v10001, %v10097
      %v10130 = vmul.f32 %v10002, %v10098
      %v10131 = vmul.f32 %v10003, %v10099
      %v10132 = vmul.f32 %v10004, %v10100
      %v10133 = vmul.f32 %v10005, %v10101
      %v10134 = vmul.f32 %v10006, %v10102
      %v10135 = vmul.f32 %v10007, %v10103
      %v10136 = vmul.f32 %v10008, %v10104
      %v10137 = vmul.f32 %v10009, %v10105
      %v10138 = vmul.f32 %v10010, %v10106
      %v10139 = vmul.f32 %v10011, %v10107
      %v10140 = vmul.f32 %v10012, %v10108
      %v10141 = vld [vmem:[%s23] sm:$0x1]
      %v10142 = vld [vmem:[#allocation2] sm:$0x1]
      %10144 = vset.pattern.permute.xlu0 0
      %10145 = vperm.xlu0 %10144, %v10142
      %v10146 = vpop.permute.xlu0 %10145
      %v10148 = vlaneseq
      %v10149 = vshrl.u32 %v10148, 7
      %v10150 = vsub.s32 0, %v10149
      %v10151 = vrot.slane %v10146, %v10150
      %v10153 = vsel %vm1079, %v10141, 0
      %10155 = vmatprep.subr.mxu0 %v10110
      %10156 = vmatpush1.msra.mxu0 %v10109
      %10157 = vmatprep.subr.mxu0 %v10118
      %10158 = vmatpush1.msra.mxu0 %v10117
      %10159 = vmatprep.subr.mxu0 %v10126
      %10160 = vmatpush1.msra.mxu0 %v10125
      %10161 = vmatprep.subr.mxu0 %v10134
      %10162 = vmatpush1.msra.mxu0 %v10133
      %10163 = vmatprep.subr.mxu0 0.0
      %10164 = vmatpush1.msra.mxu0 0.0
      %10165 = vmatprep.subr.mxu0 0.0
      %10166 = vmatpush1.msra.mxu0 0.0
      %10167 = vmatprep.subr.mxu0 0.0
      %10168 = vmatpush1.msra.mxu0 0.0
      %10169 = vmatprep.subr.mxu0 0.0
      %10170 = vmatpush1.msra.mxu0 0.0
      %10171 = vmatprep.subr.mxu0 0.0
      %10172 = vmatpush1.msra.mxu0 0.0
      %10173 = vmatprep.subr.mxu0 0.0
      %10174 = vmatpush1.msra.mxu0 0.0
      %10175 = vmatprep.subr.mxu0 0.0
      %10176 = vmatpush1.msra.mxu0 0.0
      %10177 = vmatprep.subr.mxu0 0.0
      %10178 = vmatpush1.msra.mxu0 0.0
      %10179 = vmatprep.subr.mxu0 0.0
      %10180 = vmatpush1.msra.mxu0 0.0
      %10181 = vmatprep.subr.mxu0 0.0
      %10182 = vmatpush1.msra.mxu0 0.0
      %10183 = vmatprep.subr.mxu0 0.0
      %10184 = vmatpush1.msra.mxu0 0.0
      %10185 = vmatprep.subr.mxu0 0.0
      %10186 = vmatpush1.msra.mxu0 0.0
      %10187 = vmatprep.subr.mxu0 0.0
      %10188 = vmatpush1.msra.mxu0 0.0
      %10189 = vmatprep.subr.mxu0 0.0
      %10190 = vmatpush1.msra.mxu0 0.0
      %10191 = vmatprep.subr.mxu0 0.0
      %10192 = vmatpush1.msra.mxu0 0.0
      %10193 = vmatprep.subr.mxu0 0.0
      %10194 = vmatpush1.msra.mxu0 0.0
      %10195 = vmatprep.subr.mxu0 0.0
      %10196 = vmatpush1.msra.mxu0 0.0
      %10197 = vmatprep.subr.mxu0 0.0
      %10198 = vmatpush1.msra.mxu0 0.0
      %10199 = vmatprep.subr.mxu0 0.0
      %10200 = vmatpush1.msra.mxu0 0.0
      %10201 = vmatprep.subr.mxu0 0.0
      %10202 = vmatpush1.msra.mxu0 0.0
      %10203 = vmatprep.subr.mxu0 0.0
      %10204 = vmatpush1.msra.mxu0 0.0
      %10205 = vmatprep.subr.mxu0 0.0
      %10206 = vmatpush1.msra.mxu0 0.0
      %10207 = vmatprep.subr.mxu0 0.0
      %10208 = vmatpush1.msra.mxu0 0.0
      %10209 = vmatprep.subr.mxu0 0.0
      %10210 = vmatpush1.msra.mxu0 0.0
      %10211 = vmatprep.subr.mxu0 0.0
      %10212 = vmatpush1.msra.mxu0 0.0
      %10213 = vmatprep.subr.mxu0 0.0
      %10214 = vmatpush1.msra.mxu0 0.0
      %10215 = vmatprep.subr.mxu0 0.0
      %10216 = vmatpush1.msra.mxu0 0.0
      %10217 = vmatprep.subr.mxu0 0.0
      %10218 = vmatpush1.msra.mxu0 0.0
      %10219 = vmatprep.mubr.f32.mxu0 0.0
      %10220 = vmatmul.mubr.f32.gmra.mrb[0].mxu0 %v10153
      %v10221 = vpop.f32.mrb[0].mxu0
      %v10222 = vadd.f32 %v10151, %v10221
      %v10223 = vpop.f32.mrb[0].mxu0
      %v10224 = vadd.f32 %v10151, %v10223
      %10225 = vdwg.mxu0
      %10226 = vmatprep.subr.mxu0 %v10112
      %10227 = vmatpush1.msra.mxu0 %v10111
      %10228 = vmatprep.subr.mxu0 %v10120
      %10229 = vmatpush1.msra.mxu0 %v10119
      %10230 = vmatprep.subr.mxu0 %v10128
      %10231 = vmatpush1.msra.mxu0 %v10127
      %10232 = vmatprep.subr.mxu0 %v10136
      %10233 = vmatpush1.msra.mxu0 %v10135
      %10234 = vmatprep.subr.mxu0 0.0
      %10235 = vmatpush1.msra.mxu0 0.0
      %10236 = vmatprep.subr.mxu0 0.0
      %10237 = vmatpush1.msra.mxu0 0.0
      %10238 = vmatprep.subr.mxu0 0.0
      %10239 = vmatpush1.msra.mxu0 0.0
      %10240 = vmatprep.subr.mxu0 0.0
      %10241 = vmatpush1.msra.mxu0 0.0
      %10242 = vmatprep.subr.mxu0 0.0
      %10243 = vmatpush1.msra.mxu0 0.0
      %10244 = vmatprep.subr.mxu0 0.0
      %10245 = vmatpush1.msra.mxu0 0.0
      %10246 = vmatprep.subr.mxu0 0.0
      %10247 = vmatpush1.msra.mxu0 0.0
      %10248 = vmatprep.subr.mxu0 0.0
      %10249 = vmatpush1.msra.mxu0 0.0
      %10250 = vmatprep.subr.mxu0 0.0
      %10251 = vmatpush1.msra.mxu0 0.0
      %10252 = vmatprep.subr.mxu0 0.0
      %10253 = vmatpush1.msra.mxu0 0.0
      %10254 = vmatprep.subr.mxu0 0.0
      %10255 = vmatpush1.msra.mxu0 0.0
      %10256 = vmatprep.subr.mxu0 0.0
      %10257 = vmatpush1.msra.mxu0 0.0
      %10258 = vmatprep.subr.mxu0 0.0
      %10259 = vmatpush1.msra.mxu0 0.0
      %10260 = vmatprep.subr.mxu0 0.0
      %10261 = vmatpush1.msra.mxu0 0.0
      %10262 = vmatprep.subr.mxu0 0.0
      %10263 = vmatpush1.msra.mxu0 0.0
      %10264 = vmatprep.subr.mxu0 0.0
      %10265 = vmatpush1.msra.mxu0 0.0
      %10266 = vmatprep.subr.mxu0 0.0
      %10267 = vmatpush1.msra.mxu0 0.0
      %10268 = vmatprep.subr.mxu0 0.0
      %10269 = vmatpush1.msra.mxu0 0.0
      %10270 = vmatprep.subr.mxu0 0.0
      %10271 = vmatpush1.msra.mxu0 0.0
      %10272 = vmatprep.subr.mxu0 0.0
      %10273 = vmatpush1.msra.mxu0 0.0
      %10274 = vmatprep.subr.mxu0 0.0
      %10275 = vmatpush1.msra.mxu0 0.0
      %10276 = vmatprep.subr.mxu0 0.0
      %10277 = vmatpush1.msra.mxu0 0.0
      %10278 = vmatprep.subr.mxu0 0.0
      %10279 = vmatpush1.msra.mxu0 0.0
      %10280 = vmatprep.subr.mxu0 0.0
      %10281 = vmatpush1.msra.mxu0 0.0
      %10282 = vmatprep.subr.mxu0 0.0
      %10283 = vmatpush1.msra.mxu0 0.0
      %10284 = vmatprep.subr.mxu0 0.0
      %10285 = vmatpush1.msra.mxu0 0.0
      %10286 = vmatprep.subr.mxu0 0.0
      %10287 = vmatpush1.msra.mxu0 0.0
      %10288 = vmatprep.subr.mxu0 0.0
      %10289 = vmatpush1.msra.mxu0 0.0
      %10290 = vmatprep.mubr.f32.mxu0 0.0
      %10291 = vmatmul.mubr.f32.gmra.mrb[0].mxu0 %v10153
      %v10292 = vpop.f32.mrb[0].mxu0
      %v10293 = vadd.f32 %v10151, %v10292
      %v10294 = vpop.f32.mrb[0].mxu0
      %v10295 = vadd.f32 %v10151, %v10294
      %10296 = vdwg.mxu0
      %10297 = vmatprep.subr.mxu0 %v10114
      %10298 = vmatpush1.msra.mxu0 %v10113
      %10299 = vmatprep.subr.mxu0 %v10122
      %10300 = vmatpush1.msra.mxu0 %v10121
      %10301 = vmatprep.subr.mxu0 %v10130
      %10302 = vmatpush1.msra.mxu0 %v10129
      %10303 = vmatprep.subr.mxu0 %v10138
      %10304 = vmatpush1.msra.mxu0 %v10137
      %10305 = vmatprep.subr.mxu0 0.0
      %10306 = vmatpush1.msra.mxu0 0.0
      %10307 = vmatprep.subr.mxu0 0.0
      %10308 = vmatpush1.msra.mxu0 0.0
      %10309 = vmatprep.subr.mxu0 0.0
      %10310 = vmatpush1.msra.mxu0 0.0
      %10311 = vmatprep.subr.mxu0 0.0
      %10312 = vmatpush1.msra.mxu0 0.0
      %10313 = vmatprep.subr.mxu0 0.0
      %10314 = vmatpush1.msra.mxu0 0.0
      %10315 = vmatprep.subr.mxu0 0.0
      %10316 = vmatpush1.msra.mxu0 0.0
      %10317 = vmatprep.subr.mxu0 0.0
      %10318 = vmatpush1.msra.mxu0 0.0
      %10319 = vmatprep.subr.mxu0 0.0
      %10320 = vmatpush1.msra.mxu0 0.0
      %10321 = vmatprep.subr.mxu0 0.0
      %10322 = vmatpush1.msra.mxu0 0.0
      %10323 = vmatprep.subr.mxu0 0.0
      %10324 = vmatpush1.msra.mxu0 0.0
      %10325 = vmatprep.subr.mxu0 0.0
      %10326 = vmatpush1.msra.mxu0 0.0
      %10327 = vmatprep.subr.mxu0 0.0
      %10328 = vmatpush1.msra.mxu0 0.0
      %10329 = vmatprep.subr.mxu0 0.0
      %10330 = vmatpush1.msra.mxu0 0.0
      %10331 = vmatprep.subr.mxu0 0.0
      %10332 = vmatpush1.msra.mxu0 0.0
      %10333 = vmatprep.subr.mxu0 0.0
      %10334 = vmatpush1.msra.mxu0 0.0
      %10335 = vmatprep.subr.mxu0 0.0
      %10336 = vmatpush1.msra.mxu0 0.0
      %10337 = vmatprep.subr.mxu0 0.0
      %10338 = vmatpush1.msra.mxu0 0.0
      %10339 = vmatprep.subr.mxu0 0.0
      %10340 = vmatpush1.msra.mxu0 0.0
      %10341 = vmatprep.subr.mxu0 0.0
      %10342 = vmatpush1.msra.mxu0 0.0
      %10343 = vmatprep.subr.mxu0 0.0
      %10344 = vmatpush1.msra.mxu0 0.0
      %10345 = vmatprep.subr.mxu0 0.0
      %10346 = vmatpush1.msra.mxu0 0.0
      %10347 = vmatprep.subr.mxu0 0.0
      %10348 = vmatpush1.msra.mxu0 0.0
      %10349 = vmatprep.subr.mxu0 0.0
      %10350 = vmatpush1.msra.mxu0 0.0
      %10351 = vmatprep.subr.mxu0 0.0
      %10352 = vmatpush1.msra.mxu0 0.0
      %10353 = vmatprep.subr.mxu0 0.0
      %10354 = vmatpush1.msra.mxu0 0.0
      %10355 = vmatprep.subr.mxu0 0.0
      %10356 = vmatpush1.msra.mxu0 0.0
      %10357 = vmatprep.subr.mxu0 0.0
      %10358 = vmatpush1.msra.mxu0 0.0
      %10359 = vmatprep.subr.mxu0 0.0
      %10360 = vmatpush1.msra.mxu0 0.0
      %10361 = vmatprep.mubr.f32.mxu0 0.0
      %10362 = vmatmul.mubr.f32.gmra.mrb[0].mxu0 %v10153
      %v10363 = vpop.f32.mrb[0].mxu0
      %v10364 = vadd.f32 %v10151, %v10363
      %v10365 = vpop.f32.mrb[0].mxu0
      %v10366 = vadd.f32 %v10151, %v10365
      %10367 = vdwg.mxu0
      %10368 = vmatprep.subr.mxu0 %v10116
      %10369 = vmatpush1.msra.mxu0 %v10115
      %10370 = vmatprep.subr.mxu0 %v10124
      %10371 = vmatpush1.msra.mxu0 %v10123
      %10372 = vmatprep.subr.mxu0 %v10132
      %10373 = vmatpush1.msra.mxu0 %v10131
      %10374 = vmatprep.subr.mxu0 %v10140
      %10375 = vmatpush1.msra.mxu0 %v10139
      %10376 = vmatprep.subr.mxu0 0.0
      %10377 = vmatpush1.msra.mxu0 0.0
      %10378 = vmatprep.subr.mxu0 0.0
      %10379 = vmatpush1.msra.mxu0 0.0
      %10380 = vmatprep.subr.mxu0 0.0
      %10381 = vmatpush1.msra.mxu0 0.0
      %10382 = vmatprep.subr.mxu0 0.0
      %10383 = vmatpush1.msra.mxu0 0.0
      %10384 = vmatprep.subr.mxu0 0.0
      %10385 = vmatpush1.msra.mxu0 0.0
      %10386 = vmatprep.subr.mxu0 0.0
      %10387 = vmatpush1.msra.mxu0 0.0
      %10388 = vmatprep.subr.mxu0 0.0
      %10389 = vmatpush1.msra.mxu0 0.0
      %10390 = vmatprep.subr.mxu0 0.0
      %10391 = vmatpush1.msra.mxu0 0.0
      %10392 = vmatprep.subr.mxu0 0.0
      %10393 = vmatpush1.msra.mxu0 0.0
      %10394 = vmatprep.subr.mxu0 0.0
      %10395 = vmatpush1.msra.mxu0 0.0
      %10396 = vmatprep.subr.mxu0 0.0
      %10397 = vmatpush1.msra.mxu0 0.0
      %10398 = vmatprep.subr.mxu0 0.0
      %10399 = vmatpush1.msra.mxu0 0.0
      %10400 = vmatprep.subr.mxu0 0.0
      %10401 = vmatpush1.msra.mxu0 0.0
      %10402 = vmatprep.subr.mxu0 0.0
      %10403 = vmatpush1.msra.mxu0 0.0
      %10404 = vmatprep.subr.mxu0 0.0
      %10405 = vmatpush1.msra.mxu0 0.0
      %10406 = vmatprep.subr.mxu0 0.0
      %10407 = vmatpush1.msra.mxu0 0.0
      %10408 = vmatprep.subr.mxu0 0.0
      %10409 = vmatpush1.msra.mxu0 0.0
      %10410 = vmatprep.subr.mxu0 0.0
      %10411 = vmatpush1.msra.mxu0 0.0
      %10412 = vmatprep.subr.mxu0 0.0
      %10413 = vmatpush1.msra.mxu0 0.0
      %10414 = vmatprep.subr.mxu0 0.0
      %10415 = vmatpush1.msra.mxu0 0.0
      %10416 = vmatprep.subr.mxu0 0.0
      %10417 = vmatpush1.msra.mxu0 0.0
      %10418 = vmatprep.subr.mxu0 0.0
      %10419 = vmatpush1.msra.mxu0 0.0
      %10420 = vmatprep.subr.mxu0 0.0
      %10421 = vmatpush1.msra.mxu0 0.0
      %10422 = vmatprep.subr.mxu0 0.0
      %10423 = vmatpush1.msra.mxu0 0.0
      %10424 = vmatprep.subr.mxu0 0.0
      %10425 = vmatpush1.msra.mxu0 0.0
      %10426 = vmatprep.subr.mxu0 0.0
      %10427 = vmatpush1.msra.mxu0 0.0
      %10428 = vmatprep.subr.mxu0 0.0
      %10429 = vmatpush1.msra.mxu0 0.0
      %10430 = vmatprep.subr.mxu0 0.0
      %10431 = vmatpush1.msra.mxu0 0.0
      %10432 = vmatprep.mubr.f32.mxu0 0.0
      %10433 = vmatmul.mubr.f32.gmra.mrb[0].mxu0 %v10153
      %v10434 = vpop.f32.mrb[0].mxu0
      %v10435 = vadd.f32 %v10151, %v10434
      %v10436 = vpop.f32.mrb[0].mxu0
      %v10437 = vadd.f32 %v10151, %v10436
      %10438 = vdwg.mxu0
      %v10447 = vcombine.low %v10222, %v10224
      %v10448 = vcombine.low %v10293, %v10295
      %v10449 = vcombine.low %v10364, %v10366
      %v10450 = vcombine.low %v10435, %v10437
      %v10452 = vunpack.c.l.s4 1966171168
      %v10453 = vunpack.c.0.s8 %v10452
      %v10454 = vlaneseq
      %v10455 = vshrl.u32 %v10454, 7
      %v10456 = vsub.s32 %v10453, %v10455
      %v10457 = vrot.slane %v10447, %v10456
      %v10459 = vunpack.c.l.s4 1966171168
      %v10460 = vunpack.c.0.s8 %v10459
      %v10461 = vlaneseq
      %v10462 = vshrl.u32 %v10461, 7
      %v10463 = vsub.s32 %v10460, %v10462
      %v10464 = vrot.slane %v10448, %v10463
      %v10466 = vunpack.c.l.s4 1966171168
      %v10467 = vunpack.c.0.s8 %v10466
      %v10468 = vlaneseq
      %v10469 = vshrl.u32 %v10468, 7
      %v10470 = vsub.s32 %v10467, %v10469
      %v10471 = vrot.slane %v10449, %v10470
      %v10473 = vunpack.c.l.s4 1966171168
      %v10474 = vunpack.c.0.s8 %v10473
      %v10475 = vlaneseq
      %v10476 = vshrl.u32 %v10475, 7
      %v10477 = vsub.s32 %v10474, %v10476
      %v10478 = vrot.slane %v10450, %v10477
      %v10479 = vcombine.low %v10457, %v10464
      %v10480 = vcombine.low %v10471, %v10478
      %v10482 = vunpack.c.l.s4 1966171168
      %v10483 = vunpack.c.0.s8 %v10482
      %v10484 = vlaneseq
      %v10485 = vshrl.u32 %v10484, 7
      %v10486 = vsub.s32 %v10483, %v10485
      %v10487 = vrot.slane %v10479, %v10486
      %v10489 = vunpack.c.l.s4 1966171168
      %v10490 = vunpack.c.0.s8 %v10489
      %v10491 = vlaneseq
      %v10492 = vshrl.u32 %v10491, 7
      %v10493 = vsub.s32 %v10490, %v10492
      %v10494 = vrot.slane %v10480, %v10493
      %v10495 = vcombine.low %v10487, %v10494
      %10497 = vst [vmem:[%s764] sm:$0xff] %v10495
      %p10498 = scmp.lt.s32.totalorder %s38, 1
      %s10499 = scalar_select %p10498, %s38, 1
      %s10500 = smul.addr %s10499, 8
      %s10501 = scalar_lea.vmem %s25, %s10500
      // Predicated region
      $region121: #{_lambda_.1} parent=119 // pred_check
        %p10502 = pneg %p586
      $region122: #{_lambda_.1} parent=119 // pred_check_branch
        %10504 = sbr.rel (%p10502) target = $region124
      $region123: #{_lambda_.1} parent=119 // pred_region
        _
      $region124: #{_lambda_.1} parent=119 // pred_fallthru
        _
    $region120: #{_lambda_.1} parent=5 // pred_fallthru
      _
    %p10505 = scmp.le.s32.totalorder 2, %s33
    // Predicated region
    $region125: #{_lambda_.1} parent=5 // pred_check
      %p10506 = pneg %p10505
    $region126: #{_lambda_.1} parent=5 // pred_check_branch
      %10508 = sbr.rel (%p10506) target = $region128
    $region127: #{_lambda_.1} parent=5 // pred_region
      %s10509 = ssub.s32 %s33, 2
      // Predicated region
      $region129: #{_lambda_.1} parent=127 // pred_check
        %p10510 = pneg %p592
      $region130: #{_lambda_.1} parent=127 // pred_check_branch
        %10512 = sbr.rel (%p10510) target = $region132
      $region131: #{_lambda_.1} parent=127 // pred_region
        %p10513 = scmp.lt.s32.totalorder %s39, 1
        %s10514 = scalar_select %p10513, %s39, 1
        %s10515 = smul.addr %s10514, 8
        %s10516 = scalar_lea.vmem %s25, %s10515
      $region132: #{_lambda_.1} parent=127 // pred_fallthru
        _
    $region128: #{_lambda_.1} parent=5 // pred_fallthru
      _
  $region6: #{_lambda_.1} parent=0 // loop_footer
    %s37 = sadd.s32 1, %s33
  $region7: #{_lambda_.1} parent=0 // loop_footer_branch
    %32 = sbr.rel target = $region3
  $region8: #{_lambda_.1} parent=0 // loop_exit
    _

</llo_original>
